<compile_context>
chip_gen: v6e
topology: v6e:2x2x1
jax: 0.10.0
libtpu: 0.0.40
codegen_flags: <defaults>
</compile_context>

<pallas_src>
import functools

import numpy as np
import jax
import jax.numpy as jnp
from jax import lax
from jax.experimental import pallas as pl
from jax.experimental.pallas import tpu as pltpu

# ----------------------------- static configuration -------------------------
B = 2            # batch
NZ = 32          # nz_enc
NGF = 8          # ngf
IMG = 16         # img_sz
NC = 3           # input_nc
NBITS = 8        # bitwise_categorical
C0 = NGF * 2     # 16 : ConvBlockFirstDec output channels
C1 = NGF         # 8  : pyramid-0 output channels
C2 = NGF         # 8  : additional_conv_layer output channels (feat)
C3 = NBITS * NC  # 24 : gen_head logits channels

H1, W1 = 8, 8            # map after the first upsample
N1 = H1 * W1             # 64 interior lanes
H2, W2 = 16, 16          # final map
N2 = H2 * W2             # 256 interior lanes (lane-dense)

BIT_TEMPLATE = (128.0, 64.0, 32.0, 16.0, 8.0, 4.0, 2.0, 1.0)


# ------------------------------- Pallas kernel -------------------------------
def _leaky(x):
    return jnp.where(x > 0, x, 0.2 * x)          # LeakyReLU(0.2)


def _conv3x3(x, w_ref, b_ref, t_ref):
    """3x3 'same' conv on an interior-only flat map, all on the MXU.

    x      : (Cin, N) value; rows = input channels, lanes = flattened HxW interior pixels
    w_ref  : (9*Cout, Cin) tap-stacked weights, tap k = dy*3+dx
    b_ref  : (Cout, 1)
    t_ref  : (9*N, N) tap-stacked 0/1 lane-shift matrices (zero-padding at image borders
             is encoded as all-zero columns), tap 4 (dy=dx=0) is the identity and skipped.
    """
    f32 = jnp.float32
    n = t_ref.shape[1]
    cout = w_ref.shape[0] // 9
    acc = None
    for k in range(9):
        if k == 4:
            xs = x                                                    # center tap: identity
        else:
            xs = jnp.dot(x, t_ref[k * n:(k + 1) * n, :],
                         preferred_element_type=f32)                  # shifted + zero-padded
        wk = w_ref[k * cout:(k + 1) * cout, :]
        term = jnp.dot(wk, xs, preferred_element_type=f32)
        acc = term if acc is None else acc + term
    return acc + b_ref[...]


def _decoder_kernel(zb_ref, w0_ref, b0_ref,
                    w1_ref, b1_ref, t8_ref,
                    u_ref, w2_ref, b2_ref, t16_ref,
                    w3_ref, b3_ref, wbit_ref,
                    feat_ref, images_ref, logits_ref):
    f32 = jnp.float32

    # --- ConvBlockFirstDec: deconv 1x1 -> 4x4 with the x2 nearest-upsample folded into W0,
    #     LeakyReLU(0.2).  (upsample commutes with the elementwise activation.)
    h0 = _leaky(jnp.dot(zb_ref[...], w0_ref[...], preferred_element_type=f32)
                + b0_ref[...])                                        # (C0, 64)

    # --- pyramid-0: conv3x3 (16 -> 8) on the 8x8 map + LeakyReLU
    h1 = _leaky(_conv3x3(h0, w1_ref, b1_ref, t8_ref))                 # (C1, 64)

    # --- nearest x2 upsample 8x8 -> 16x16 as one 0/1 matmul
    up1 = jnp.dot(h1, u_ref[...], preferred_element_type=f32)         # (C1, 256)

    # --- additional_conv_layer: conv3x3 (8 -> 8) + Tanh -> feat
    feat = jnp.tanh(_conv3x3(up1, w2_ref, b2_ref, t16_ref))           # (C2, 256)

    # --- gen_head: conv3x3 (8 -> 24), no activation -> logits
    logits = _conv3x3(feat, w3_ref, b3_ref, t16_ref)                  # (C3, 256)

    # --- ImageBitwiseCategorical.mean: sigmoid (EUP) + one tiny bit-template matmul (MXU)
    images = jnp.dot(wbit_ref[...], jax.nn.sigmoid(logits),
                     preferred_element_type=f32) - 1.0                # (NC, 256)

    # lane-dense (x, 256) block stores, one per output
    feat_ref[0] = feat
    logits_ref[0] = logits
    images_ref[0] = images


# ------------------------------ kernel wrapper -------------------------------
def _const_spec(shape):
    return pl.BlockSpec(shape, lambda b: (0, 0))


def decoder_pallas(z_blk, kp):
    out_shape = (
        jax.ShapeDtypeStruct((B, C2, N2), jnp.float32),   # feat   per sample (8, 256)
        jax.ShapeDtypeStruct((B, NC, N2), jnp.float32),   # images per sample (3, 256)
        jax.ShapeDtypeStruct((B, C3, N2), jnp.float32),   # logits per sample (24, 256)
    )
    in_specs = [
        pl.BlockSpec((C0, C0 * NZ), lambda b: (b, 0)),    # per-sample block-diag latent
        _const_spec(kp["w0"].shape), _const_spec(kp["b0"].shape),
        _const_spec(kp["w1"].shape), _const_spec(kp["b1"].shape), _const_spec(kp["t8"].shape),
        _const_spec(kp["u"].shape),
        _const_spec(kp["w2"].shape), _const_spec(kp["b2"].shape), _const_spec(kp["t16"].shape),
        _const_spec(kp["w3"].shape), _const_spec(kp["b3"].shape), _const_spec(kp["wbit"].shape),
    ]
    out_specs = (
        pl.BlockSpec((1, C2, N2), lambda b: (b, 0, 0)),
        pl.BlockSpec((1, NC, N2), lambda b: (b, 0, 0)),
        pl.BlockSpec((1, C3, N2), lambda b: (b, 0, 0)),
    )
    return pl.pallas_call(
        _decoder_kernel,
        out_shape=out_shape,
        grid=(B,),
        in_specs=in_specs,
        out_specs=out_specs,
        compiler_params=pltpu.CompilerParams(
            dimension_semantics=("parallel",),            # v7x: one batch element per TC
            vmem_limit_bytes=32 * 1024 * 1024,            # scale-up guardrail (safe on v5e..v7x)
        ),
    )(z_blk, kp["w0"], kp["b0"], kp["w1"], kp["b1"], kp["t8"],
      kp["u"], kp["w2"], kp["b2"], kp["t16"], kp["w3"], kp["b3"], kp["wbit"])


def probabilistic_conv_decoder_forward(z, kernel_params):
    # channel-block-diagonal latent: row b*C0+c holds z[b] in columns [c*NZ:(c+1)*NZ]
    eye = jnp.eye(C0, dtype=jnp.float32)
    z_blk = (z[:, None, None, :].astype(jnp.float32)
             * eye[None, :, :, None]).reshape(B * C0, C0 * NZ)
    feat2d, images2d, logits2d = decoder_pallas(z_blk, kernel_params)
    # row-major compatible reshapes only (free) -- no transposes needed.
    return {
        "feat": feat2d.reshape(B, C2, H2, W2),
        "images": images2d.reshape(B, NC, H2, W2),
        "distr_log_p": logits2d.reshape(B, NBITS, NC, H2, W2),
    }


# ------------------------- host-side parameter folding -----------------------
def prepare_kernel_params(raw):
    """One-time host prep: fold layout / upsample / taps / bit-template into matmul operands."""
    f32 = np.float32

    # layer 1: ConvTranspose(1x1 -> 4x4) weight (NZ, C0, 4, 4) + x2 nearest upsample folded in
    w0 = np.asarray(raw["w0"], f32)
    w0_up = w0.repeat(2, axis=2).repeat(2, axis=3)                       # (NZ, C0, 8, 8)
    W0 = np.transpose(w0_up, (1, 0, 2, 3)).reshape(C0 * NZ, N1)          # row = c*NZ+i, col = y*8+x
    b0 = np.asarray(raw["b0"], f32).reshape(C0, 1)

    def tap_stack(w):   # (Cout, Cin, 3, 3) -> (9*Cout, Cin), tap k = dy*3+dx
        w = np.asarray(w, f32)
        cout, cin = w.shape[:2]
        return np.transpose(w, (2, 3, 0, 1)).reshape(9 * cout, cin)

    def bias_col(b):
        b = np.asarray(b, f32)
        return b.reshape(b.shape[0], 1)

    def shift_matrices(hw):   # (9*hw*hw, hw*hw) 0/1 tap-shift matrices with zero padding
        n = hw * hw
        T = np.zeros((9, n, n), f32)
        for k in range(9):
            dy, dx = k // 3 - 1, k % 3 - 1
            for qy in range(hw):
                for qx in range(hw):
                    py, px = qy + dy, qx + dx
                    if 0 <= py < hw and 0 <= px < hw:
                        T[k, py * hw + px, qy * hw + qx] = 1.0
        return T.reshape(9 * n, n)

    U = np.zeros((N1, N2), f32)                                          # nearest x2: 8x8 -> 16x16
    for y in range(H2):
        for x in range(W2):
            U[(y // 2) * W1 + (x // 2), y * W2 + x] = 1.0

    Wbit = np.zeros((NC, C3), f32)                                       # bitwise-categorical mean
    for bit in range(NBITS):
        for c in range(NC):
            Wbit[c, bit * NC + c] = BIT_TEMPLATE[bit] / 127.5

    out = {
        "w0": W0, "b0": b0,
        "w1": tap_stack(raw["w1"]), "b1": bias_col(raw["b1"]), "t8": shift_matrices(W1),
        "u": U,
        "w2": tap_stack(raw["w2"]), "b2": bias_col(raw["b2"]), "t16": shift_matrices(W2),
        "w3": tap_stack(raw["w3"]), "b3": bias_col(raw["b3"]),
        "wbit": Wbit,
    }
    return {k: jnp.asarray(v) for k, v in out.items()}


# ------------------------------ pure-JAX reference ---------------------------
def reference_forward(z, raw):
    conv = functools.partial(
        lax.conv_general_dilated, window_strides=(1, 1), padding="SAME",
        dimension_numbers=("NCHW", "OIHW", "NCHW"), precision=lax.Precision.HIGHEST)
    h = jnp.einsum("bi,icyx->bcyx", z, raw["w0"],
                   precision=lax.Precision.HIGHEST) + raw["b0"][None, :, None, None]
    h = jnp.where(h > 0, h, 0.2 * h)
    h = jnp.repeat(jnp.repeat(h, 2, axis=2), 2, axis=3)
    h = conv(h, raw["w1"]) + raw["b1"][None, :, None, None]
    h = jnp.where(h > 0, h, 0.2 * h)
    h = jnp.repeat(jnp.repeat(h, 2, axis=2), 2, axis=3)
    feat = jnp.tanh(conv(h, raw["w2"]) + raw["b2"][None, :, None, None])
    logits = conv(feat, raw["w3"]) + raw["b3"][None, :, None, None]
    log_p = logits.reshape(B, NBITS, NC, IMG, IMG)
    template = jnp.array(BIT_TEMPLATE, jnp.float32)
    images = jnp.einsum("bkchw,k->bchw", jax.nn.sigmoid(log_p), template) / 127.5 - 1.0
    return feat, images, log_p


# ----------------------------------- main ------------------------------------
if __name__ == "__main__":
    key = jax.random.PRNGKey(0)
    kz, k0, k1, k2, k3, kb0, kb1, kb2, kb3 = jax.random.split(key, 9)

    def xavier(k, shape, fan_in, fan_out):
        std = jnp.sqrt(2.0 / (fan_in + fan_out))
        return std * jax.random.normal(k, shape, jnp.float32)

    raw = {
        # ConvTranspose2d(nz_enc=32, ngf*2=16, k=4) weight layout (in, out, kh, kw)
        "w0": xavier(k0, (NZ, C0, 4, 4), NZ * 16, C0 * 16),
        "b0": 0.05 * jax.random.normal(kb0, (C0,), jnp.float32),
        # pyramid-0 : Conv2d(16, 8, 3, padding=1)
        "w1": xavier(k1, (C1, C0, 3, 3), C0 * 9, C1 * 9),
        "b1": 0.05 * jax.random.normal(kb1, (C1,), jnp.float32),
        # additional_conv_layer : Conv2d(8, 8, 3, padding=1) + Tanh
        "w2": xavier(k2, (C2, C1, 3, 3), C1 * 9, C2 * 9),
        "b2": 0.05 * jax.random.normal(kb2, (C2,), jnp.float32),
        # gen_head (bitwise_categorical) : Conv2d(8, 24, 3, padding=1), no activation
        "w3": xavier(k3, (C3, C2, 3, 3), C2 * 9, C3 * 9),
        "b3": 0.05 * jax.random.normal(kb3, (C3,), jnp.float32),
    }
    z = jax.random.normal(kz, (B, NZ), jnp.float32)

    kparams = prepare_kernel_params(raw)                    # one-time host folding

    fwd = jax.jit(probabilistic_conv_decoder_forward)
    out = fwd(z, kparams)
    jax.block_until_ready(out)

    assert out["feat"].shape == (B, NGF, IMG, IMG)
    assert out["images"].shape == (B, NC, IMG, IMG)
    assert out["distr_log_p"].shape == (B, NBITS, NC, IMG, IMG)
    assert bool(jnp.all(jnp.isfinite(out["images"])))
    assert bool(jnp.all(out["images"] >= -1.0 - 1e-5)) and bool(jnp.all(out["images"] <= 1.0 + 1e-5))

    # correctness vs. a pure-JAX reference of the same module
    ref_feat, ref_images, ref_logp = reference_forward(z, raw)
    assert float(jnp.max(jnp.abs(out["feat"] - ref_feat))) < 2e-2
    assert float(jnp.max(jnp.abs(out["images"] - ref_images))) < 2e-2
    assert float(jnp.max(jnp.abs(out["distr_log_p"] - ref_logp))) < 2e-2

    # TODO(synk): nll()/ConstantUpdater and the distribution *object* (and the gaussian /
    # categorical / discrete_logistic_mixture branches) are training-time / other-hp constructs;
    # only the bitwise_categorical forward() semantics (feat, logits, mean image) are implemented.
    print("KERNEL_OK")
</pallas_src>

<mosaic_0001>
module attributes {stable_mosaic.version = 11 : i64} {
  func.func @_decoder_kernel(%arg0: i32, %arg1: memref<16x512xf32, #tpu.memory_space<vmem>>, %arg2: memref<512x64xf32, #tpu.memory_space<vmem>>, %arg3: memref<16x1xf32, #tpu.memory_space<vmem>>, %arg4: memref<72x16xf32, #tpu.memory_space<vmem>>, %arg5: memref<8x1xf32, #tpu.memory_space<vmem>>, %arg6: memref<576x64xf32, #tpu.memory_space<vmem>>, %arg7: memref<64x256xf32, #tpu.memory_space<vmem>>, %arg8: memref<72x8xf32, #tpu.memory_space<vmem>>, %arg9: memref<8x1xf32, #tpu.memory_space<vmem>>, %arg10: memref<2304x256xf32, #tpu.memory_space<vmem>>, %arg11: memref<216x8xf32, #tpu.memory_space<vmem>>, %arg12: memref<24x1xf32, #tpu.memory_space<vmem>>, %arg13: memref<3x24xf32, #tpu.memory_space<vmem>>, %arg14: memref<1x8x256xf32, #tpu.memory_space<vmem>>, %arg15: memref<1x3x256xf32, #tpu.memory_space<vmem>>, %arg16: memref<1x24x256xf32, #tpu.memory_space<vmem>>) attributes {dimension_semantics = [#tpu.dimension_semantics<parallel>], iteration_bounds = array<i64: 2>, scalar_prefetch = 0 : i64, scratch_operands = 0 : i64, tpu.core_type = #tpu.core_type<tc>, window_params = [{transform_indices = @transform_0, window_bounds = array<i64: 16, 512>}, {pipeline_mode = #tpu.pipeline_mode<synchronous>, transform_indices = @transform_1, window_bounds = array<i64: 512, 64>}, {pipeline_mode = #tpu.pipeline_mode<synchronous>, transform_indices = @transform_2, window_bounds = array<i64: 16, 1>}, {pipeline_mode = #tpu.pipeline_mode<synchronous>, transform_indices = @transform_3, window_bounds = array<i64: 72, 16>}, {pipeline_mode = #tpu.pipeline_mode<synchronous>, transform_indices = @transform_4, window_bounds = array<i64: 8, 1>}, {pipeline_mode = #tpu.pipeline_mode<synchronous>, transform_indices = @transform_5, window_bounds = array<i64: 576, 64>}, {pipeline_mode = #tpu.pipeline_mode<synchronous>, transform_indices = @transform_6, window_bounds = array<i64: 64, 256>}, {pipeline_mode = #tpu.pipeline_mode<synchronous>, transform_indices = @transform_7, window_bounds = array<i64: 72, 8>}, {pipeline_mode = #tpu.pipeline_mode<synchronous>, transform_indices = @transform_8, window_bounds = array<i64: 8, 1>}, {pipeline_mode = #tpu.pipeline_mode<synchronous>, transform_indices = @transform_9, window_bounds = array<i64: 2304, 256>}, {pipeline_mode = #tpu.pipeline_mode<synchronous>, transform_indices = @transform_10, window_bounds = array<i64: 216, 8>}, {pipeline_mode = #tpu.pipeline_mode<synchronous>, transform_indices = @transform_11, window_bounds = array<i64: 24, 1>}, {pipeline_mode = #tpu.pipeline_mode<synchronous>, transform_indices = @transform_12, window_bounds = array<i64: 3, 24>}, {transform_indices = @transform_13, window_bounds = array<i64: 1, 8, 256>}, {transform_indices = @transform_14, window_bounds = array<i64: 1, 3, 256>}, {transform_indices = @transform_15, window_bounds = array<i64: 1, 24, 256>}]} {
    %c0 = arith.constant 0 : index
    %c0_0 = arith.constant 0 : index
    %0 = vector.load %arg1[%c0, %c0_0] : memref<16x512xf32, #tpu.memory_space<vmem>>, vector<16x512xf32>
    %c0_1 = arith.constant 0 : index
    %c0_2 = arith.constant 0 : index
    %1 = vector.load %arg2[%c0_1, %c0_2] : memref<512x64xf32, #tpu.memory_space<vmem>>, vector<512x64xf32>
    %cst = arith.constant dense<0.000000e+00> : vector<16x64xf32>
    %2 = tpu.matmul %0, %1, %cst {dimension_numbers = #tpu.dot_dimension_numbers<[1], [0], [0], [1], [0, 0, 1, 1], [], []>} : vector<16x512xf32>, vector<512x64xf32>, vector<16x64xf32> -> vector<16x64xf32>
    %c0_3 = arith.constant 0 : index
    %c0_4 = arith.constant 0 : index
    %3 = vector.load %arg3[%c0_3, %c0_4] : memref<16x1xf32, #tpu.memory_space<vmem>>, vector<16x1xf32>
    %4 = vector.broadcast %3 : vector<16x1xf32> to vector<16x64xf32>
    %5 = arith.addf %2, %4 : vector<16x64xf32>
    %cst_5 = arith.constant 0.000000e+00 : f32
    %6 = vector.broadcast %cst_5 : f32 to vector<16x64xf32>
    %7 = arith.cmpf ogt, %5, %6 : vector<16x64xf32>
    %cst_6 = arith.constant 2.000000e-01 : f32
    %8 = vector.broadcast %cst_6 : f32 to vector<16x64xf32>
    %9 = arith.mulf %8, %5 : vector<16x64xf32>
    %10 = arith.select %7, %5, %9 : vector<16x64xi1>, vector<16x64xf32>
    %c0_7 = arith.constant 0 : index
    %c0_8 = arith.constant 0 : index
    %11 = vector.load %arg6[%c0_7, %c0_8] : memref<576x64xf32, #tpu.memory_space<vmem>>, vector<64x64xf32>
    %cst_9 = arith.constant dense<0.000000e+00> : vector<16x64xf32>
    %12 = tpu.matmul %10, %11, %cst_9 {dimension_numbers = #tpu.dot_dimension_numbers<[1], [0], [0], [1], [0, 0, 1, 1], [], []>} : vector<16x64xf32>, vector<64x64xf32>, vector<16x64xf32> -> vector<16x64xf32>
    %c0_10 = arith.constant 0 : index
    %c0_11 = arith.constant 0 : index
    %13 = vector.load %arg4[%c0_10, %c0_11] : memref<72x16xf32, #tpu.memory_space<vmem>>, vector<8x16xf32>
    %cst_12 = arith.constant dense<0.000000e+00> : vector<8x64xf32>
    %14 = tpu.matmul %13, %12, %cst_12 {dimension_numbers = #tpu.dot_dimension_numbers<[1], [0], [0], [1], [0, 0, 1, 1], [], []>} : vector<8x16xf32>, vector<16x64xf32>, vector<8x64xf32> -> vector<8x64xf32>
    %c64 = arith.constant 64 : index
    %c0_13 = arith.constant 0 : index
    %15 = vector.load %arg6[%c64, %c0_13] : memref<576x64xf32, #tpu.memory_space<vmem>>, vector<64x64xf32>
    %cst_14 = arith.constant dense<0.000000e+00> : vector<16x64xf32>
    %16 = tpu.matmul %10, %15, %cst_14 {dimension_numbers = #tpu.dot_dimension_numbers<[1], [0], [0], [1], [0, 0, 1, 1], [], []>} : vector<16x64xf32>, vector<64x64xf32>, vector<16x64xf32> -> vector<16x64xf32>
    %c8 = arith.constant 8 : index
    %c0_15 = arith.constant 0 : index
    %17 = vector.load %arg4[%c8, %c0_15] : memref<72x16xf32, #tpu.memory_space<vmem>>, vector<8x16xf32>
    %cst_16 = arith.constant dense<0.000000e+00> : vector<8x64xf32>
    %18 = tpu.matmul %17, %16, %cst_16 {dimension_numbers = #tpu.dot_dimension_numbers<[1], [0], [0], [1], [0, 0, 1, 1], [], []>} : vector<8x16xf32>, vector<16x64xf32>, vector<8x64xf32> -> vector<8x64xf32>
    %19 = arith.addf %14, %18 : vector<8x64xf32>
    %c128 = arith.constant 128 : index
    %c0_17 = arith.constant 0 : index
    %20 = vector.load %arg6[%c128, %c0_17] : memref<576x64xf32, #tpu.memory_space<vmem>>, vector<64x64xf32>
    %cst_18 = arith.constant dense<0.000000e+00> : vector<16x64xf32>
    %21 = tpu.matmul %10, %20, %cst_18 {dimension_numbers = #tpu.dot_dimension_numbers<[1], [0], [0], [1], [0, 0, 1, 1], [], []>} : vector<16x64xf32>, vector<64x64xf32>, vector<16x64xf32> -> vector<16x64xf32>
    %c16 = arith.constant 16 : index
    %c0_19 = arith.constant 0 : index
    %22 = vector.load %arg4[%c16, %c0_19] : memref<72x16xf32, #tpu.memory_space<vmem>>, vector<8x16xf32>
    %cst_20 = arith.constant dense<0.000000e+00> : vector<8x64xf32>
    %23 = tpu.matmul %22, %21, %cst_20 {dimension_numbers = #tpu.dot_dimension_numbers<[1], [0], [0], [1], [0, 0, 1, 1], [], []>} : vector<8x16xf32>, vector<16x64xf32>, vector<8x64xf32> -> vector<8x64xf32>
    %24 = arith.addf %19, %23 : vector<8x64xf32>
    %c192 = arith.constant 192 : index
    %c0_21 = arith.constant 0 : index
    %25 = vector.load %arg6[%c192, %c0_21] : memref<576x64xf32, #tpu.memory_space<vmem>>, vector<64x64xf32>
    %cst_22 = arith.constant dense<0.000000e+00> : vector<16x64xf32>
    %26 = tpu.matmul %10, %25, %cst_22 {dimension_numbers = #tpu.dot_dimension_numbers<[1], [0], [0], [1], [0, 0, 1, 1], [], []>} : vector<16x64xf32>, vector<64x64xf32>, vector<16x64xf32> -> vector<16x64xf32>
    %c24 = arith.constant 24 : index
    %c0_23 = arith.constant 0 : index
    %27 = vector.load %arg4[%c24, %c0_23] : memref<72x16xf32, #tpu.memory_space<vmem>>, vector<8x16xf32>
    %cst_24 = arith.constant dense<0.000000e+00> : vector<8x64xf32>
    %28 = tpu.matmul %27, %26, %cst_24 {dimension_numbers = #tpu.dot_dimension_numbers<[1], [0], [0], [1], [0, 0, 1, 1], [], []>} : vector<8x16xf32>, vector<16x64xf32>, vector<8x64xf32> -> vector<8x64xf32>
    %29 = arith.addf %24, %28 : vector<8x64xf32>
    %c32 = arith.constant 32 : index
    %c0_25 = arith.constant 0 : index
    %30 = vector.load %arg4[%c32, %c0_25] : memref<72x16xf32, #tpu.memory_space<vmem>>, vector<8x16xf32>
    %cst_26 = arith.constant dense<0.000000e+00> : vector<8x64xf32>
    %31 = tpu.matmul %30, %10, %cst_26 {dimension_numbers = #tpu.dot_dimension_numbers<[1], [0], [0], [1], [0, 0, 1, 1], [], []>} : vector<8x16xf32>, vector<16x64xf32>, vector<8x64xf32> -> vector<8x64xf32>
    %32 = arith.addf %29, %31 : vector<8x64xf32>
    %c320 = arith.constant 320 : index
    %c0_27 = arith.constant 0 : index
    %33 = vector.load %arg6[%c320, %c0_27] : memref<576x64xf32, #tpu.memory_space<vmem>>, vector<64x64xf32>
    %cst_28 = arith.constant dense<0.000000e+00> : vector<16x64xf32>
    %34 = tpu.matmul %10, %33, %cst_28 {dimension_numbers = #tpu.dot_dimension_numbers<[1], [0], [0], [1], [0, 0, 1, 1], [], []>} : vector<16x64xf32>, vector<64x64xf32>, vector<16x64xf32> -> vector<16x64xf32>
    %c40 = arith.constant 40 : index
    %c0_29 = arith.constant 0 : index
    %35 = vector.load %arg4[%c40, %c0_29] : memref<72x16xf32, #tpu.memory_space<vmem>>, vector<8x16xf32>
    %cst_30 = arith.constant dense<0.000000e+00> : vector<8x64xf32>
    %36 = tpu.matmul %35, %34, %cst_30 {dimension_numbers = #tpu.dot_dimension_numbers<[1], [0], [0], [1], [0, 0, 1, 1], [], []>} : vector<8x16xf32>, vector<16x64xf32>, vector<8x64xf32> -> vector<8x64xf32>
    %37 = arith.addf %32, %36 : vector<8x64xf32>
    %c384 = arith.constant 384 : index
    %c0_31 = arith.constant 0 : index
    %38 = vector.load %arg6[%c384, %c0_31] : memref<576x64xf32, #tpu.memory_space<vmem>>, vector<64x64xf32>
    %cst_32 = arith.constant dense<0.000000e+00> : vector<16x64xf32>
    %39 = tpu.matmul %10, %38, %cst_32 {dimension_numbers = #tpu.dot_dimension_numbers<[1], [0], [0], [1], [0, 0, 1, 1], [], []>} : vector<16x64xf32>, vector<64x64xf32>, vector<16x64xf32> -> vector<16x64xf32>
    %c48 = arith.constant 48 : index
    %c0_33 = arith.constant 0 : index
    %40 = vector.load %arg4[%c48, %c0_33] : memref<72x16xf32, #tpu.memory_space<vmem>>, vector<8x16xf32>
    %cst_34 = arith.constant dense<0.000000e+00> : vector<8x64xf32>
    %41 = tpu.matmul %40, %39, %cst_34 {dimension_numbers = #tpu.dot_dimension_numbers<[1], [0], [0], [1], [0, 0, 1, 1], [], []>} : vector<8x16xf32>, vector<16x64xf32>, vector<8x64xf32> -> vector<8x64xf32>
    %42 = arith.addf %37, %41 : vector<8x64xf32>
    %c448 = arith.constant 448 : index
    %c0_35 = arith.constant 0 : index
    %43 = vector.load %arg6[%c448, %c0_35] : memref<576x64xf32, #tpu.memory_space<vmem>>, vector<64x64xf32>
    %cst_36 = arith.constant dense<0.000000e+00> : vector<16x64xf32>
    %44 = tpu.matmul %10, %43, %cst_36 {dimension_numbers = #tpu.dot_dimension_numbers<[1], [0], [0], [1], [0, 0, 1, 1], [], []>} : vector<16x64xf32>, vector<64x64xf32>, vector<16x64xf32> -> vector<16x64xf32>
    %c56 = arith.constant 56 : index
    %c0_37 = arith.constant 0 : index
    %45 = vector.load %arg4[%c56, %c0_37] : memref<72x16xf32, #tpu.memory_space<vmem>>, vector<8x16xf32>
    %cst_38 = arith.constant dense<0.000000e+00> : vector<8x64xf32>
    %46 = tpu.matmul %45, %44, %cst_38 {dimension_numbers = #tpu.dot_dimension_numbers<[1], [0], [0], [1], [0, 0, 1, 1], [], []>} : vector<8x16xf32>, vector<16x64xf32>, vector<8x64xf32> -> vector<8x64xf32>
    %47 = arith.addf %42, %46 : vector<8x64xf32>
    %c512 = arith.constant 512 : index
    %c0_39 = arith.constant 0 : index
    %48 = vector.load %arg6[%c512, %c0_39] : memref<576x64xf32, #tpu.memory_space<vmem>>, vector<64x64xf32>
    %cst_40 = arith.constant dense<0.000000e+00> : vector<16x64xf32>
    %49 = tpu.matmul %10, %48, %cst_40 {dimension_numbers = #tpu.dot_dimension_numbers<[1], [0], [0], [1], [0, 0, 1, 1], [], []>} : vector<16x64xf32>, vector<64x64xf32>, vector<16x64xf32> -> vector<16x64xf32>
    %c64_41 = arith.constant 64 : index
    %c0_42 = arith.constant 0 : index
    %50 = vector.load %arg4[%c64_41, %c0_42] : memref<72x16xf32, #tpu.memory_space<vmem>>, vector<8x16xf32>
    %cst_43 = arith.constant dense<0.000000e+00> : vector<8x64xf32>
    %51 = tpu.matmul %50, %49, %cst_43 {dimension_numbers = #tpu.dot_dimension_numbers<[1], [0], [0], [1], [0, 0, 1, 1], [], []>} : vector<8x16xf32>, vector<16x64xf32>, vector<8x64xf32> -> vector<8x64xf32>
    %52 = arith.addf %47, %51 : vector<8x64xf32>
    %c0_44 = arith.constant 0 : index
    %c0_45 = arith.constant 0 : index
    %53 = vector.load %arg5[%c0_44, %c0_45] : memref<8x1xf32, #tpu.memory_space<vmem>>, vector<8x1xf32>
    %54 = vector.broadcast %53 : vector<8x1xf32> to vector<8x64xf32>
    %55 = arith.addf %52, %54 : vector<8x64xf32>
    %cst_46 = arith.constant 0.000000e+00 : f32
    %56 = vector.broadcast %cst_46 : f32 to vector<8x64xf32>
    %57 = arith.cmpf ogt, %55, %56 : vector<8x64xf32>
    %cst_47 = arith.constant 2.000000e-01 : f32
    %58 = vector.broadcast %cst_47 : f32 to vector<8x64xf32>
    %59 = arith.mulf %58, %55 : vector<8x64xf32>
    %60 = arith.select %57, %55, %59 : vector<8x64xi1>, vector<8x64xf32>
    %c0_48 = arith.constant 0 : index
    %c0_49 = arith.constant 0 : index
    %61 = vector.load %arg7[%c0_48, %c0_49] : memref<64x256xf32, #tpu.memory_space<vmem>>, vector<64x256xf32>
    %cst_50 = arith.constant dense<0.000000e+00> : vector<8x256xf32>
    %62 = tpu.matmul %60, %61, %cst_50 {dimension_numbers = #tpu.dot_dimension_numbers<[1], [0], [0], [1], [0, 0, 1, 1], [], []>} : vector<8x64xf32>, vector<64x256xf32>, vector<8x256xf32> -> vector<8x256xf32>
    %c0_51 = arith.constant 0 : index
    %c0_52 = arith.constant 0 : index
    %63 = vector.load %arg10[%c0_51, %c0_52] : memref<2304x256xf32, #tpu.memory_space<vmem>>, vector<256x256xf32>
    %cst_53 = arith.constant dense<0.000000e+00> : vector<8x256xf32>
    %64 = tpu.matmul %62, %63, %cst_53 {dimension_numbers = #tpu.dot_dimension_numbers<[1], [0], [0], [1], [0, 0, 1, 1], [], []>} : vector<8x256xf32>, vector<256x256xf32>, vector<8x256xf32> -> vector<8x256xf32>
    %c0_54 = arith.constant 0 : index
    %c0_55 = arith.constant 0 : index
    %65 = vector.load %arg8[%c0_54, %c0_55] : memref<72x8xf32, #tpu.memory_space<vmem>>, vector<8x8xf32>
    %cst_56 = arith.constant dense<0.000000e+00> : vector<8x256xf32>
    %66 = tpu.matmul %65, %64, %cst_56 {dimension_numbers = #tpu.dot_dimension_numbers<[1], [0], [0], [1], [0, 0, 1, 1], [], []>} : vector<8x8xf32>, vector<8x256xf32>, vector<8x256xf32> -> vector<8x256xf32>
    %c256 = arith.constant 256 : index
    %c0_57 = arith.constant 0 : index
    %67 = vector.load %arg10[%c256, %c0_57] : memref<2304x256xf32, #tpu.memory_space<vmem>>, vector<256x256xf32>
    %cst_58 = arith.constant dense<0.000000e+00> : vector<8x256xf32>
    %68 = tpu.matmul %62, %67, %cst_58 {dimension_numbers = #tpu.dot_dimension_numbers<[1], [0], [0], [1], [0, 0, 1, 1], [], []>} : vector<8x256xf32>, vector<256x256xf32>, vector<8x256xf32> -> vector<8x256xf32>
    %c8_59 = arith.constant 8 : index
    %c0_60 = arith.constant 0 : index
    %69 = vector.load %arg8[%c8_59, %c0_60] : memref<72x8xf32, #tpu.memory_space<vmem>>, vector<8x8xf32>
    %cst_61 = arith.constant dense<0.000000e+00> : vector<8x256xf32>
    %70 = tpu.matmul %69, %68, %cst_61 {dimension_numbers = #tpu.dot_dimension_numbers<[1], [0], [0], [1], [0, 0, 1, 1], [], []>} : vector<8x8xf32>, vector<8x256xf32>, vector<8x256xf32> -> vector<8x256xf32>
    %71 = arith.addf %66, %70 : vector<8x256xf32>
    %c512_62 = arith.constant 512 : index
    %c0_63 = arith.constant 0 : index
    %72 = vector.load %arg10[%c512_62, %c0_63] : memref<2304x256xf32, #tpu.memory_space<vmem>>, vector<256x256xf32>
    %cst_64 = arith.constant dense<0.000000e+00> : vector<8x256xf32>
    %73 = tpu.matmul %62, %72, %cst_64 {dimension_numbers = #tpu.dot_dimension_numbers<[1], [0], [0], [1], [0, 0, 1, 1], [], []>} : vector<8x256xf32>, vector<256x256xf32>, vector<8x256xf32> -> vector<8x256xf32>
    %c16_65 = arith.constant 16 : index
    %c0_66 = arith.constant 0 : index
    %74 = vector.load %arg8[%c16_65, %c0_66] : memref<72x8xf32, #tpu.memory_space<vmem>>, vector<8x8xf32>
    %cst_67 = arith.constant dense<0.000000e+00> : vector<8x256xf32>
    %75 = tpu.matmul %74, %73, %cst_67 {dimension_numbers = #tpu.dot_dimension_numbers<[1], [0], [0], [1], [0, 0, 1, 1], [], []>} : vector<8x8xf32>, vector<8x256xf32>, vector<8x256xf32> -> vector<8x256xf32>
    %76 = arith.addf %71, %75 : vector<8x256xf32>
    %c768 = arith.constant 768 : index
    %c0_68 = arith.constant 0 : index
    %77 = vector.load %arg10[%c768, %c0_68] : memref<2304x256xf32, #tpu.memory_space<vmem>>, vector<256x256xf32>
    %cst_69 = arith.constant dense<0.000000e+00> : vector<8x256xf32>
    %78 = tpu.matmul %62, %77, %cst_69 {dimension_numbers = #tpu.dot_dimension_numbers<[1], [0], [0], [1], [0, 0, 1, 1], [], []>} : vector<8x256xf32>, vector<256x256xf32>, vector<8x256xf32> -> vector<8x256xf32>
    %c24_70 = arith.constant 24 : index
    %c0_71 = arith.constant 0 : index
    %79 = vector.load %arg8[%c24_70, %c0_71] : memref<72x8xf32, #tpu.memory_space<vmem>>, vector<8x8xf32>
    %cst_72 = arith.constant dense<0.000000e+00> : vector<8x256xf32>
    %80 = tpu.matmul %79, %78, %cst_72 {dimension_numbers = #tpu.dot_dimension_numbers<[1], [0], [0], [1], [0, 0, 1, 1], [], []>} : vector<8x8xf32>, vector<8x256xf32>, vector<8x256xf32> -> vector<8x256xf32>
    %81 = arith.addf %76, %80 : vector<8x256xf32>
    %c32_73 = arith.constant 32 : index
    %c0_74 = arith.constant 0 : index
    %82 = vector.load %arg8[%c32_73, %c0_74] : memref<72x8xf32, #tpu.memory_space<vmem>>, vector<8x8xf32>
    %cst_75 = arith.constant dense<0.000000e+00> : vector<8x256xf32>
    %83 = tpu.matmul %82, %62, %cst_75 {dimension_numbers = #tpu.dot_dimension_numbers<[1], [0], [0], [1], [0, 0, 1, 1], [], []>} : vector<8x8xf32>, vector<8x256xf32>, vector<8x256xf32> -> vector<8x256xf32>
    %84 = arith.addf %81, %83 : vector<8x256xf32>
    %c1280 = arith.constant 1280 : index
    %c0_76 = arith.constant 0 : index
    %85 = vector.load %arg10[%c1280, %c0_76] : memref<2304x256xf32, #tpu.memory_space<vmem>>, vector<256x256xf32>
    %cst_77 = arith.constant dense<0.000000e+00> : vector<8x256xf32>
    %86 = tpu.matmul %62, %85, %cst_77 {dimension_numbers = #tpu.dot_dimension_numbers<[1], [0], [0], [1], [0, 0, 1, 1], [], []>} : vector<8x256xf32>, vector<256x256xf32>, vector<8x256xf32> -> vector<8x256xf32>
    %c40_78 = arith.constant 40 : index
    %c0_79 = arith.constant 0 : index
    %87 = vector.load %arg8[%c40_78, %c0_79] : memref<72x8xf32, #tpu.memory_space<vmem>>, vector<8x8xf32>
    %cst_80 = arith.constant dense<0.000000e+00> : vector<8x256xf32>
    %88 = tpu.matmul %87, %86, %cst_80 {dimension_numbers = #tpu.dot_dimension_numbers<[1], [0], [0], [1], [0, 0, 1, 1], [], []>} : vector<8x8xf32>, vector<8x256xf32>, vector<8x256xf32> -> vector<8x256xf32>
    %89 = arith.addf %84, %88 : vector<8x256xf32>
    %c1536 = arith.constant 1536 : index
    %c0_81 = arith.constant 0 : index
    %90 = vector.load %arg10[%c1536, %c0_81] : memref<2304x256xf32, #tpu.memory_space<vmem>>, vector<256x256xf32>
    %cst_82 = arith.constant dense<0.000000e+00> : vector<8x256xf32>
    %91 = tpu.matmul %62, %90, %cst_82 {dimension_numbers = #tpu.dot_dimension_numbers<[1], [0], [0], [1], [0, 0, 1, 1], [], []>} : vector<8x256xf32>, vector<256x256xf32>, vector<8x256xf32> -> vector<8x256xf32>
    %c48_83 = arith.constant 48 : index
    %c0_84 = arith.constant 0 : index
    %92 = vector.load %arg8[%c48_83, %c0_84] : memref<72x8xf32, #tpu.memory_space<vmem>>, vector<8x8xf32>
    %cst_85 = arith.constant dense<0.000000e+00> : vector<8x256xf32>
    %93 = tpu.matmul %92, %91, %cst_85 {dimension_numbers = #tpu.dot_dimension_numbers<[1], [0], [0], [1], [0, 0, 1, 1], [], []>} : vector<8x8xf32>, vector<8x256xf32>, vector<8x256xf32> -> vector<8x256xf32>
    %94 = arith.addf %89, %93 : vector<8x256xf32>
    %c1792 = arith.constant 1792 : index
    %c0_86 = arith.constant 0 : index
    %95 = vector.load %arg10[%c1792, %c0_86] : memref<2304x256xf32, #tpu.memory_space<vmem>>, vector<256x256xf32>
    %cst_87 = arith.constant dense<0.000000e+00> : vector<8x256xf32>
    %96 = tpu.matmul %62, %95, %cst_87 {dimension_numbers = #tpu.dot_dimension_numbers<[1], [0], [0], [1], [0, 0, 1, 1], [], []>} : vector<8x256xf32>, vector<256x256xf32>, vector<8x256xf32> -> vector<8x256xf32>
    %c56_88 = arith.constant 56 : index
    %c0_89 = arith.constant 0 : index
    %97 = vector.load %arg8[%c56_88, %c0_89] : memref<72x8xf32, #tpu.memory_space<vmem>>, vector<8x8xf32>
    %cst_90 = arith.constant dense<0.000000e+00> : vector<8x256xf32>
    %98 = tpu.matmul %97, %96, %cst_90 {dimension_numbers = #tpu.dot_dimension_numbers<[1], [0], [0], [1], [0, 0, 1, 1], [], []>} : vector<8x8xf32>, vector<8x256xf32>, vector<8x256xf32> -> vector<8x256xf32>
    %99 = arith.addf %94, %98 : vector<8x256xf32>
    %c2048 = arith.constant 2048 : index
    %c0_91 = arith.constant 0 : index
    %100 = vector.load %arg10[%c2048, %c0_91] : memref<2304x256xf32, #tpu.memory_space<vmem>>, vector<256x256xf32>
    %cst_92 = arith.constant dense<0.000000e+00> : vector<8x256xf32>
    %101 = tpu.matmul %62, %100, %cst_92 {dimension_numbers = #tpu.dot_dimension_numbers<[1], [0], [0], [1], [0, 0, 1, 1], [], []>} : vector<8x256xf32>, vector<256x256xf32>, vector<8x256xf32> -> vector<8x256xf32>
    %c64_93 = arith.constant 64 : index
    %c0_94 = arith.constant 0 : index
    %102 = vector.load %arg8[%c64_93, %c0_94] : memref<72x8xf32, #tpu.memory_space<vmem>>, vector<8x8xf32>
    %cst_95 = arith.constant dense<0.000000e+00> : vector<8x256xf32>
    %103 = tpu.matmul %102, %101, %cst_95 {dimension_numbers = #tpu.dot_dimension_numbers<[1], [0], [0], [1], [0, 0, 1, 1], [], []>} : vector<8x8xf32>, vector<8x256xf32>, vector<8x256xf32> -> vector<8x256xf32>
    %104 = arith.addf %99, %103 : vector<8x256xf32>
    %c0_96 = arith.constant 0 : index
    %c0_97 = arith.constant 0 : index
    %105 = vector.load %arg9[%c0_96, %c0_97] : memref<8x1xf32, #tpu.memory_space<vmem>>, vector<8x1xf32>
    %106 = vector.broadcast %105 : vector<8x1xf32> to vector<8x256xf32>
    %107 = arith.addf %104, %106 : vector<8x256xf32>
    %108 = math.tanh %107 : vector<8x256xf32>
    %c0_98 = arith.constant 0 : index
    %c0_99 = arith.constant 0 : index
    %109 = vector.load %arg10[%c0_98, %c0_99] : memref<2304x256xf32, #tpu.memory_space<vmem>>, vector<256x256xf32>
    %cst_100 = arith.constant dense<0.000000e+00> : vector<8x256xf32>
    %110 = tpu.matmul %108, %109, %cst_100 {dimension_numbers = #tpu.dot_dimension_numbers<[1], [0], [0], [1], [0, 0, 1, 1], [], []>} : vector<8x256xf32>, vector<256x256xf32>, vector<8x256xf32> -> vector<8x256xf32>
    %c0_101 = arith.constant 0 : index
    %c0_102 = arith.constant 0 : index
    %111 = vector.load %arg11[%c0_101, %c0_102] : memref<216x8xf32, #tpu.memory_space<vmem>>, vector<24x8xf32>
    %cst_103 = arith.constant dense<0.000000e+00> : vector<24x256xf32>
    %112 = tpu.matmul %111, %110, %cst_103 {dimension_numbers = #tpu.dot_dimension_numbers<[1], [0], [0], [1], [0, 0, 1, 1], [], []>} : vector<24x8xf32>, vector<8x256xf32>, vector<24x256xf32> -> vector<24x256xf32>
    %c256_104 = arith.constant 256 : index
    %c0_105 = arith.constant 0 : index
    %113 = vector.load %arg10[%c256_104, %c0_105] : memref<2304x256xf32, #tpu.memory_space<vmem>>, vector<256x256xf32>
    %cst_106 = arith.constant dense<0.000000e+00> : vector<8x256xf32>
    %114 = tpu.matmul %108, %113, %cst_106 {dimension_numbers = #tpu.dot_dimension_numbers<[1], [0], [0], [1], [0, 0, 1, 1], [], []>} : vector<8x256xf32>, vector<256x256xf32>, vector<8x256xf32> -> vector<8x256xf32>
    %c24_107 = arith.constant 24 : index
    %c0_108 = arith.constant 0 : index
    %115 = vector.load %arg11[%c24_107, %c0_108] : memref<216x8xf32, #tpu.memory_space<vmem>>, vector<24x8xf32>
    %cst_109 = arith.constant dense<0.000000e+00> : vector<24x256xf32>
    %116 = tpu.matmul %115, %114, %cst_109 {dimension_numbers = #tpu.dot_dimension_numbers<[1], [0], [0], [1], [0, 0, 1, 1], [], []>} : vector<24x8xf32>, vector<8x256xf32>, vector<24x256xf32> -> vector<24x256xf32>
    %117 = arith.addf %112, %116 : vector<24x256xf32>
    %c512_110 = arith.constant 512 : index
    %c0_111 = arith.constant 0 : index
    %118 = vector.load %arg10[%c512_110, %c0_111] : memref<2304x256xf32, #tpu.memory_space<vmem>>, vector<256x256xf32>
    %cst_112 = arith.constant dense<0.000000e+00> : vector<8x256xf32>
    %119 = tpu.matmul %108, %118, %cst_112 {dimension_numbers = #tpu.dot_dimension_numbers<[1], [0], [0], [1], [0, 0, 1, 1], [], []>} : vector<8x256xf32>, vector<256x256xf32>, vector<8x256xf32> -> vector<8x256xf32>
    %c48_113 = arith.constant 48 : index
    %c0_114 = arith.constant 0 : index
    %120 = vector.load %arg11[%c48_113, %c0_114] : memref<216x8xf32, #tpu.memory_space<vmem>>, vector<24x8xf32>
    %cst_115 = arith.constant dense<0.000000e+00> : vector<24x256xf32>
    %121 = tpu.matmul %120, %119, %cst_115 {dimension_numbers = #tpu.dot_dimension_numbers<[1], [0], [0], [1], [0, 0, 1, 1], [], []>} : vector<24x8xf32>, vector<8x256xf32>, vector<24x256xf32> -> vector<24x256xf32>
    %122 = arith.addf %117, %121 : vector<24x256xf32>
    %c768_116 = arith.constant 768 : index
    %c0_117 = arith.constant 0 : index
    %123 = vector.load %arg10[%c768_116, %c0_117] : memref<2304x256xf32, #tpu.memory_space<vmem>>, vector<256x256xf32>
    %cst_118 = arith.constant dense<0.000000e+00> : vector<8x256xf32>
    %124 = tpu.matmul %108, %123, %cst_118 {dimension_numbers = #tpu.dot_dimension_numbers<[1], [0], [0], [1], [0, 0, 1, 1], [], []>} : vector<8x256xf32>, vector<256x256xf32>, vector<8x256xf32> -> vector<8x256xf32>
    %c72 = arith.constant 72 : index
    %c0_119 = arith.constant 0 : index
    %125 = vector.load %arg11[%c72, %c0_119] : memref<216x8xf32, #tpu.memory_space<vmem>>, vector<24x8xf32>
    %cst_120 = arith.constant dense<0.000000e+00> : vector<24x256xf32>
    %126 = tpu.matmul %125, %124, %cst_120 {dimension_numbers = #tpu.dot_dimension_numbers<[1], [0], [0], [1], [0, 0, 1, 1], [], []>} : vector<24x8xf32>, vector<8x256xf32>, vector<24x256xf32> -> vector<24x256xf32>
    %127 = arith.addf %122, %126 : vector<24x256xf32>
    %c96 = arith.constant 96 : index
    %c0_121 = arith.constant 0 : index
    %128 = vector.load %arg11[%c96, %c0_121] : memref<216x8xf32, #tpu.memory_space<vmem>>, vector<24x8xf32>
    %cst_122 = arith.constant dense<0.000000e+00> : vector<24x256xf32>
    %129 = tpu.matmul %128, %108, %cst_122 {dimension_numbers = #tpu.dot_dimension_numbers<[1], [0], [0], [1], [0, 0, 1, 1], [], []>} : vector<24x8xf32>, vector<8x256xf32>, vector<24x256xf32> -> vector<24x256xf32>
    %130 = arith.addf %127, %129 : vector<24x256xf32>
    %c1280_123 = arith.constant 1280 : index
    %c0_124 = arith.constant 0 : index
    %131 = vector.load %arg10[%c1280_123, %c0_124] : memref<2304x256xf32, #tpu.memory_space<vmem>>, vector<256x256xf32>
    %cst_125 = arith.constant dense<0.000000e+00> : vector<8x256xf32>
    %132 = tpu.matmul %108, %131, %cst_125 {dimension_numbers = #tpu.dot_dimension_numbers<[1], [0], [0], [1], [0, 0, 1, 1], [], []>} : vector<8x256xf32>, vector<256x256xf32>, vector<8x256xf32> -> vector<8x256xf32>
    %c120 = arith.constant 120 : index
    %c0_126 = arith.constant 0 : index
    %133 = vector.load %arg11[%c120, %c0_126] : memref<216x8xf32, #tpu.memory_space<vmem>>, vector<24x8xf32>
    %cst_127 = arith.constant dense<0.000000e+00> : vector<24x256xf32>
    %134 = tpu.matmul %133, %132, %cst_127 {dimension_numbers = #tpu.dot_dimension_numbers<[1], [0], [0], [1], [0, 0, 1, 1], [], []>} : vector<24x8xf32>, vector<8x256xf32>, vector<24x256xf32> -> vector<24x256xf32>
    %135 = arith.addf %130, %134 : vector<24x256xf32>
    %c1536_128 = arith.constant 1536 : index
    %c0_129 = arith.constant 0 : index
    %136 = vector.load %arg10[%c1536_128, %c0_129] : memref<2304x256xf32, #tpu.memory_space<vmem>>, vector<256x256xf32>
    %cst_130 = arith.constant dense<0.000000e+00> : vector<8x256xf32>
    %137 = tpu.matmul %108, %136, %cst_130 {dimension_numbers = #tpu.dot_dimension_numbers<[1], [0], [0], [1], [0, 0, 1, 1], [], []>} : vector<8x256xf32>, vector<256x256xf32>, vector<8x256xf32> -> vector<8x256xf32>
    %c144 = arith.constant 144 : index
    %c0_131 = arith.constant 0 : index
    %138 = vector.load %arg11[%c144, %c0_131] : memref<216x8xf32, #tpu.memory_space<vmem>>, vector<24x8xf32>
    %cst_132 = arith.constant dense<0.000000e+00> : vector<24x256xf32>
    %139 = tpu.matmul %138, %137, %cst_132 {dimension_numbers = #tpu.dot_dimension_numbers<[1], [0], [0], [1], [0, 0, 1, 1], [], []>} : vector<24x8xf32>, vector<8x256xf32>, vector<24x256xf32> -> vector<24x256xf32>
    %140 = arith.addf %135, %139 : vector<24x256xf32>
    %c1792_133 = arith.constant 1792 : index
    %c0_134 = arith.constant 0 : index
    %141 = vector.load %arg10[%c1792_133, %c0_134] : memref<2304x256xf32, #tpu.memory_space<vmem>>, vector<256x256xf32>
    %cst_135 = arith.constant dense<0.000000e+00> : vector<8x256xf32>
    %142 = tpu.matmul %108, %141, %cst_135 {dimension_numbers = #tpu.dot_dimension_numbers<[1], [0], [0], [1], [0, 0, 1, 1], [], []>} : vector<8x256xf32>, vector<256x256xf32>, vector<8x256xf32> -> vector<8x256xf32>
    %c168 = arith.constant 168 : index
    %c0_136 = arith.constant 0 : index
    %143 = vector.load %arg11[%c168, %c0_136] : memref<216x8xf32, #tpu.memory_space<vmem>>, vector<24x8xf32>
    %cst_137 = arith.constant dense<0.000000e+00> : vector<24x256xf32>
    %144 = tpu.matmul %143, %142, %cst_137 {dimension_numbers = #tpu.dot_dimension_numbers<[1], [0], [0], [1], [0, 0, 1, 1], [], []>} : vector<24x8xf32>, vector<8x256xf32>, vector<24x256xf32> -> vector<24x256xf32>
    %145 = arith.addf %140, %144 : vector<24x256xf32>
    %c2048_138 = arith.constant 2048 : index
    %c0_139 = arith.constant 0 : index
    %146 = vector.load %arg10[%c2048_138, %c0_139] : memref<2304x256xf32, #tpu.memory_space<vmem>>, vector<256x256xf32>
    %cst_140 = arith.constant dense<0.000000e+00> : vector<8x256xf32>
    %147 = tpu.matmul %108, %146, %cst_140 {dimension_numbers = #tpu.dot_dimension_numbers<[1], [0], [0], [1], [0, 0, 1, 1], [], []>} : vector<8x256xf32>, vector<256x256xf32>, vector<8x256xf32> -> vector<8x256xf32>
    %c192_141 = arith.constant 192 : index
    %c0_142 = arith.constant 0 : index
    %148 = vector.load %arg11[%c192_141, %c0_142] : memref<216x8xf32, #tpu.memory_space<vmem>>, vector<24x8xf32>
    %cst_143 = arith.constant dense<0.000000e+00> : vector<24x256xf32>
    %149 = tpu.matmul %148, %147, %cst_143 {dimension_numbers = #tpu.dot_dimension_numbers<[1], [0], [0], [1], [0, 0, 1, 1], [], []>} : vector<24x8xf32>, vector<8x256xf32>, vector<24x256xf32> -> vector<24x256xf32>
    %150 = arith.addf %145, %149 : vector<24x256xf32>
    %c0_144 = arith.constant 0 : index
    %c0_145 = arith.constant 0 : index
    %151 = vector.load %arg12[%c0_144, %c0_145] : memref<24x1xf32, #tpu.memory_space<vmem>>, vector<24x1xf32>
    %152 = vector.broadcast %151 : vector<24x1xf32> to vector<24x256xf32>
    %153 = arith.addf %150, %152 : vector<24x256xf32>
    %c0_146 = arith.constant 0 : index
    %c0_147 = arith.constant 0 : index
    %154 = vector.load %arg13[%c0_146, %c0_147] : memref<3x24xf32, #tpu.memory_space<vmem>>, vector<3x24xf32>
    %155 = arith.negf %153 : vector<24x256xf32>
    %156 = math.exp %155 : vector<24x256xf32>
    %cst_148 = arith.constant 1.000000e+00 : f32
    %157 = vector.broadcast %cst_148 : f32 to vector<24x256xf32>
    %158 = arith.addf %157, %156 : vector<24x256xf32>
    %159 = arith.divf %157, %158 : vector<24x256xf32>
    %cst_149 = arith.constant dense<0.000000e+00> : vector<3x256xf32>
    %160 = tpu.matmul %154, %159, %cst_149 {dimension_numbers = #tpu.dot_dimension_numbers<[1], [0], [0], [1], [0, 0, 1, 1], [], []>} : vector<3x24xf32>, vector<24x256xf32>, vector<3x256xf32> -> vector<3x256xf32>
    %cst_150 = arith.constant 1.000000e+00 : f32
    %161 = vector.broadcast %cst_150 : f32 to vector<3x256xf32>
    %162 = arith.subf %160, %161 : vector<3x256xf32>
    %c0_151 = arith.constant 0 : index
    %c0_152 = arith.constant 0 : index
    %c0_153 = arith.constant 0 : index
    %163 = vector.load %arg14[%c0_151, %c0_152, %c0_153] : memref<1x8x256xf32, #tpu.memory_space<vmem>>, vector<1x8x256xf32>
    %164 = vector.shape_cast %163 : vector<1x8x256xf32> to vector<8x256xf32>
    %165 = vector.shape_cast %108 : vector<8x256xf32> to vector<1x8x256xf32>
    tpu.vector_store %arg14[%c0_151, %c0_152, %c0_153], %165 {strides = array<i32>} : memref<1x8x256xf32, #tpu.memory_space<vmem>>, vector<1x8x256xf32>,
    %c0_154 = arith.constant 0 : index
    %c0_155 = arith.constant 0 : index
    %c0_156 = arith.constant 0 : index
    %166 = vector.load %arg16[%c0_154, %c0_155, %c0_156] : memref<1x24x256xf32, #tpu.memory_space<vmem>>, vector<1x24x256xf32>
    %167 = vector.shape_cast %166 : vector<1x24x256xf32> to vector<24x256xf32>
    %168 = vector.shape_cast %153 : vector<24x256xf32> to vector<1x24x256xf32>
    tpu.vector_store %arg16[%c0_154, %c0_155, %c0_156], %168 {strides = array<i32>} : memref<1x24x256xf32, #tpu.memory_space<vmem>>, vector<1x24x256xf32>,
    %c0_157 = arith.constant 0 : index
    %c0_158 = arith.constant 0 : index
    %c0_159 = arith.constant 0 : index
    %169 = vector.load %arg15[%c0_157, %c0_158, %c0_159] : memref<1x3x256xf32, #tpu.memory_space<vmem>>, vector<1x3x256xf32>
    %170 = vector.shape_cast %169 : vector<1x3x256xf32> to vector<3x256xf32>
    %171 = vector.shape_cast %162 : vector<3x256xf32> to vector<1x3x256xf32>
    tpu.vector_store %arg15[%c0_157, %c0_158, %c0_159], %171 {strides = array<i32>} : memref<1x3x256xf32, #tpu.memory_space<vmem>>, vector<1x3x256xf32>,
    return
  }
  func.func @transform_0(%arg0: i32) -> (i32, i32) {
    %c0_i32 = arith.constant 0 : i32
    %c0_i32_0 = arith.constant 0 : i32
    return %arg0, %c0_i32 : i32, i32
  }
  func.func @transform_1(%arg0: i32) -> (i32, i32) {
    %c0_i32 = arith.constant 0 : i32
    %c0_i32_0 = arith.constant 0 : i32
    %c0_i32_1 = arith.constant 0 : i32
    return %c0_i32, %c0_i32_0 : i32, i32
  }
  func.func @transform_2(%arg0: i32) -> (i32, i32) {
    %c0_i32 = arith.constant 0 : i32
    %c0_i32_0 = arith.constant 0 : i32
    %c0_i32_1 = arith.constant 0 : i32
    return %c0_i32, %c0_i32_0 : i32, i32
  }
  func.func @transform_3(%arg0: i32) -> (i32, i32) {
    %c0_i32 = arith.constant 0 : i32
    %c0_i32_0 = arith.constant 0 : i32
    %c0_i32_1 = arith.constant 0 : i32
    return %c0_i32, %c0_i32_0 : i32, i32
  }
  func.func @transform_4(%arg0: i32) -> (i32, i32) {
    %c0_i32 = arith.constant 0 : i32
    %c0_i32_0 = arith.constant 0 : i32
    %c0_i32_1 = arith.constant 0 : i32
    return %c0_i32, %c0_i32_0 : i32, i32
  }
  func.func @transform_5(%arg0: i32) -> (i32, i32) {
    %c0_i32 = arith.constant 0 : i32
    %c0_i32_0 = arith.constant 0 : i32
    %c0_i32_1 = arith.constant 0 : i32
    return %c0_i32, %c0_i32_0 : i32, i32
  }
  func.func @transform_6(%arg0: i32) -> (i32, i32) {
    %c0_i32 = arith.constant 0 : i32
    %c0_i32_0 = arith.constant 0 : i32
    %c0_i32_1 = arith.constant 0 : i32
    return %c0_i32, %c0_i32_0 : i32, i32
  }
  func.func @transform_7(%arg0: i32) -> (i32, i32) {
    %c0_i32 = arith.constant 0 : i32
    %c0_i32_0 = arith.constant 0 : i32
    %c0_i32_1 = arith.constant 0 : i32
    return %c0_i32, %c0_i32_0 : i32, i32
  }
  func.func @transform_8(%arg0: i32) -> (i32, i32) {
    %c0_i32 = arith.constant 0 : i32
    %c0_i32_0 = arith.constant 0 : i32
    %c0_i32_1 = arith.constant 0 : i32
    return %c0_i32, %c0_i32_0 : i32, i32
  }
  func.func @transform_9(%arg0: i32) -> (i32, i32) {
    %c0_i32 = arith.constant 0 : i32
    %c0_i32_0 = arith.constant 0 : i32
    %c0_i32_1 = arith.constant 0 : i32
    return %c0_i32, %c0_i32_0 : i32, i32
  }
  func.func @transform_10(%arg0: i32) -> (i32, i32) {
    %c0_i32 = arith.constant 0 : i32
    %c0_i32_0 = arith.constant 0 : i32
    %c0_i32_1 = arith.constant 0 : i32
    return %c0_i32, %c0_i32_0 : i32, i32
  }
  func.func @transform_11(%arg0: i32) -> (i32, i32) {
    %c0_i32 = arith.constant 0 : i32
    %c0_i32_0 = arith.constant 0 : i32
    %c0_i32_1 = arith.constant 0 : i32
    return %c0_i32, %c0_i32_0 : i32, i32
  }
  func.func @transform_12(%arg0: i32) -> (i32, i32) {
    %c0_i32 = arith.constant 0 : i32
    %c0_i32_0 = arith.constant 0 : i32
    %c0_i32_1 = arith.constant 0 : i32
    return %c0_i32, %c0_i32_0 : i32, i32
  }
  func.func @transform_13(%arg0: i32) -> (i32, i32, i32) {
    %c0_i32 = arith.constant 0 : i32
    %c0_i32_0 = arith.constant 0 : i32
    %c0_i32_1 = arith.constant 0 : i32
    return %arg0, %c0_i32, %c0_i32_0 : i32, i32, i32
  }
  func.func @transform_14(%arg0: i32) -> (i32, i32, i32) {
    %c0_i32 = arith.constant 0 : i32
    %c0_i32_0 = arith.constant 0 : i32
    %c0_i32_1 = arith.constant 0 : i32
    return %arg0, %c0_i32, %c0_i32_0 : i32, i32, i32
  }
  func.func @transform_15(%arg0: i32) -> (i32, i32, i32) {
    %c0_i32 = arith.constant 0 : i32
    %c0_i32_0 = arith.constant 0 : i32
    %c0_i32_1 = arith.constant 0 : i32
    return %arg0, %c0_i32, %c0_i32_0 : i32, i32, i32
  }
}

</mosaic_0001>

<llo_original>
// kernel: probabilistic_conv_decoder_forward.1
$region0: #{probabilistic_conv_decoder_forward.1}
  #allocation0 [shape = 'u32[]', space=smem, size = 0x4, offset = 0x4, fixed_abs, tag = 'smem constant byte address 0x4 - core index']
  #allocation1 [shape = 'u32[144,128]{1,0:T(1,128)}', space=vmem, size = 0x12000, scoped, tag = 'internal scratch']
  %s0 = inlined_call_operand.vmem [shape: f32[32,512], index: 0, kind: input, shape index: {}]
  %s1 = inlined_call_operand.vmem [shape: f32[512,64], index: 1, kind: input, shape index: {}]
  %s2 = inlined_call_operand.vmem [shape: f32[16,1], index: 2, kind: input, shape index: {}]
  %s3 = inlined_call_operand.vmem [shape: f32[72,16], index: 3, kind: input, shape index: {}]
  %s4 = inlined_call_operand.vmem [shape: f32[8,1], index: 4, kind: input, shape index: {}]
  %s5 = inlined_call_operand.vmem [shape: f32[576,64], index: 5, kind: input, shape index: {}]
  %s6 = inlined_call_operand.hbm [shape: f32[64,256], index: 6, kind: input, shape index: {}]
  %s7 = inlined_call_operand.vmem [shape: f32[72,8], index: 7, kind: input, shape index: {}]
  %s8 = inlined_call_operand.vmem [shape: f32[8,1], index: 8, kind: input, shape index: {}]
  %s9 = inlined_call_operand.hbm [shape: f32[2304,256], index: 9, kind: input, shape index: {}]
  %s10 = inlined_call_operand.vmem [shape: f32[216,8], index: 10, kind: input, shape index: {}]
  %s11 = inlined_call_operand.vmem [shape: f32[24,1], index: 11, kind: input, shape index: {}]
  %s12 = inlined_call_operand.hbm [shape: f32[3,24], index: 12, kind: input, shape index: {}]
  %s13 = inlined_call_operand.vmem [shape: f32[2,8,256], index: 13, kind: output, shape index: {0}]
  %s14 = inlined_call_operand.vmem [shape: f32[2,3,256], index: 14, kind: output, shape index: {1}]
  %s15 = inlined_call_operand.vmem [shape: f32[2,24,256], index: 15, kind: output, shape index: {2}]
  %16 = xla_tuple %s13, %s14, %s15
  %s17 = sld [smem:[#allocation0]]
  $region113: #{probabilistic_conv_decoder_forward.1} parent=0
    _
  %s19 = ssub.s32 1, %s17
  %s20 = scalar_select 0, %s19, %s17
  $region1: #{probabilistic_conv_decoder_forward.1} parent=0
    #allocation2 [shape = 'u8[65536]{0}', space=vmem, size = 0x10000, scoped, tag = 'input window, operand 6, single buffered']
    #allocation3 [shape = 's32[2]{0}', space=sflag, size = 0x8, scoped, tag = 'scoped memory for probabilistic_conv_decoder_forward.1']
    #allocation4 [shape = 'u8[2359296]{0}', space=vmem, size = 0x240000, scoped, tag = 'input window, operand 9, single buffered']
    #allocation5 [shape = 's32[1]{0}', space=sflag, size = 0x4, scoped, tag = 'scoped memory for probabilistic_conv_decoder_forward.1']
    #allocation6 [shape = 'u8[2048]{0}', space=vmem, size = 0x800, scoped, tag = 'input window, operand 12, single buffered']
    %21 = vsyncpa [#allocation3], 0
    %22 = vsyncpa [#allocation5], 0
    loop: start=0, step=1, limit=4
    $region2: #{probabilistic_conv_decoder_forward.1} parent=1 // loop_pre_header
      _
    $region3: #{probabilistic_conv_decoder_forward.1} parent=1 // loop_header
      %s24 = sphi 0, %s28
      %p25 = scmp.ge.s32.totalorder %s24, 4
      %s34 = sphi 0, %s36
      %s37 = sphi 0, %s34
      %s38 = sphi 0, %s37
      %s54 = sphi 0, %s38
      %s58 = sphi 0, %s58
      %s60 = sphi 0, %s58
      %s61 = sphi 0, %s60
      %s75 = sphi 0, %s61
      %s79 = sphi 0, %s79
      %s81 = sphi 0, %s79
      %s82 = sphi 0, %s81
      %s96 = sphi 0, %s82
      %s100 = sphi 0, %s100
      %s102 = sphi 0, %s100
      %s103 = sphi 0, %s102
      %s117 = sphi 0, %s103
      %s121 = sphi 0, %s121
      %s123 = sphi 0, %s121
      %s124 = sphi 0, %s123
      %s138 = sphi 0, %s124
      %s142 = sphi 0, %s142
      %s144 = sphi 0, %s142
      %s145 = sphi 0, %s144
      %s159 = sphi 0, %s145
      %s163 = sphi 0, %s163
      %s165 = sphi 0, %s163
      %s166 = sphi 0, %s165
      %s180 = sphi 0, %s166
      %s184 = sphi 0, %s184
      %s186 = sphi 0, %s184
      %s187 = sphi 0, %s186
      %s201 = sphi 0, %s187
      %s205 = sphi 0, %s205
      %s207 = sphi 0, %s205
      %s208 = sphi 0, %s207
      %s222 = sphi 0, %s208
      %s226 = sphi 0, %s226
      %s228 = sphi 0, %s226
      %s229 = sphi 0, %s228
      %s243 = sphi 0, %s229
      %s247 = sphi 0, %s247
      %s249 = sphi 0, %s247
      %s250 = sphi 0, %s249
      %s264 = sphi 0, %s250
      %s268 = sphi 0, %s268
      %s270 = sphi 0, %s268
      %s271 = sphi 0, %s270
      %s285 = sphi 0, %s271
      %s289 = sphi 0, %s289
      %s291 = sphi 0, %s289
      %s292 = sphi 0, %s291
      %s306 = sphi 0, %s292
      %s312 = sphi 0, %s314
      %s315 = sphi 0, %s312
      %s316 = sphi 0, %s315
      %s332 = sphi 0, %s316
      %s338 = sphi 0, %s340
      %s341 = sphi 0, %s338
      %s342 = sphi 0, %s341
      %s358 = sphi 0, %s342
      %s364 = sphi 0, %s366
      %s367 = sphi 0, %s364
      %s368 = sphi 0, %s367
      %s384 = sphi 0, %s368
    $region4: #{probabilistic_conv_decoder_forward.1} parent=1 // loop_header_branch
      %27 = sbr.rel (%p25) target = $region8
    $region5: #{probabilistic_conv_decoder_forward.1} parent=1 // loop_body
      %s29 = ssub.s32 %s24, 1
      %s30 = ssub.s32 %s24, 2
      %s31 = sadd.s32 %s24, 1
      %s32 = ssub.s32 %s24, %s31
      %p33 = scmp.eq.s32.totalorder %s32, 0
      %s35 = sadd.s32 %s34, 1
      %s36 = scalar_select %p33, %s34, %s35
      %p39 = pneg %p33
      %p40 = scmp.eq.s32.totalorder %s24, 1
      %p41 = por %p39, %p40
      %p42 = scmp.ne.s32.totalorder %s34, %s37
      %p43 = scmp.eq.s32.totalorder %s24, 0
      %p44 = por %p42, %p43
      %p45 = scmp.ne.s32.totalorder %s34, %s37
      %p46 = scmp.eq.s32.totalorder %s29, 1
      %p47 = por %p45, %p46
      %p48 = scmp.ne.s32.totalorder %s37, %s38
      %p49 = scmp.eq.s32.totalorder %s29, 0
      %p50 = por %p48, %p49
      %p51 = scmp.ne.s32.totalorder %s37, %s38
      %p52 = scmp.eq.s32.totalorder %s30, 1
      %p53 = por %p51, %p52
      %p55 = scmp.ne.s32.totalorder %s38, %s54
      %p56 = scmp.eq.s32.totalorder %s30, 0
      %p57 = por %p55, %p56
      %s59 = sadd.s32 %s58, 1
      %p62 = scmp.eq.s32.totalorder %s24, 1
      %p63 = scmp.ne.s32.totalorder %s58, %s60
      %p64 = scmp.eq.s32.totalorder %s24, 0
      %p65 = por %p63, %p64
      %p66 = scmp.ne.s32.totalorder %s58, %s60
      %p67 = scmp.eq.s32.totalorder %s29, 1
      %p68 = por %p66, %p67
      %p69 = scmp.ne.s32.totalorder %s60, %s61
      %p70 = scmp.eq.s32.totalorder %s29, 0
      %p71 = por %p69, %p70
      %p72 = scmp.ne.s32.totalorder %s60, %s61
      %p73 = scmp.eq.s32.totalorder %s30, 1
      %p74 = por %p72, %p73
      %p76 = scmp.ne.s32.totalorder %s61, %s75
      %p77 = scmp.eq.s32.totalorder %s30, 0
      %p78 = por %p76, %p77
      %s80 = sadd.s32 %s79, 1
      %p83 = scmp.eq.s32.totalorder %s24, 1
      %p84 = scmp.ne.s32.totalorder %s79, %s81
      %p85 = scmp.eq.s32.totalorder %s24, 0
      %p86 = por %p84, %p85
      %p87 = scmp.ne.s32.totalorder %s79, %s81
      %p88 = scmp.eq.s32.totalorder %s29, 1
      %p89 = por %p87, %p88
      %p90 = scmp.ne.s32.totalorder %s81, %s82
      %p91 = scmp.eq.s32.totalorder %s29, 0
      %p92 = por %p90, %p91
      %p93 = scmp.ne.s32.totalorder %s81, %s82
      %p94 = scmp.eq.s32.totalorder %s30, 1
      %p95 = por %p93, %p94
      %p97 = scmp.ne.s32.totalorder %s82, %s96
      %p98 = scmp.eq.s32.totalorder %s30, 0
      %p99 = por %p97, %p98
      %s101 = sadd.s32 %s100, 1
      %p104 = scmp.eq.s32.totalorder %s24, 1
      %p105 = scmp.ne.s32.totalorder %s100, %s102
      %p106 = scmp.eq.s32.totalorder %s24, 0
      %p107 = por %p105, %p106
      %p108 = scmp.ne.s32.totalorder %s100, %s102
      %p109 = scmp.eq.s32.totalorder %s29, 1
      %p110 = por %p108, %p109
      %p111 = scmp.ne.s32.totalorder %s102, %s103
      %p112 = scmp.eq.s32.totalorder %s29, 0
      %p113 = por %p111, %p112
      %p114 = scmp.ne.s32.totalorder %s102, %s103
      %p115 = scmp.eq.s32.totalorder %s30, 1
      %p116 = por %p114, %p115
      %p118 = scmp.ne.s32.totalorder %s103, %s117
      %p119 = scmp.eq.s32.totalorder %s30, 0
      %p120 = por %p118, %p119
      %s122 = sadd.s32 %s121, 1
      %p125 = scmp.eq.s32.totalorder %s24, 1
      %p126 = scmp.ne.s32.totalorder %s121, %s123
      %p127 = scmp.eq.s32.totalorder %s24, 0
      %p128 = por %p126, %p127
      %p129 = scmp.ne.s32.totalorder %s121, %s123
      %p130 = scmp.eq.s32.totalorder %s29, 1
      %p131 = por %p129, %p130
      %p132 = scmp.ne.s32.totalorder %s123, %s124
      %p133 = scmp.eq.s32.totalorder %s29, 0
      %p134 = por %p132, %p133
      %p135 = scmp.ne.s32.totalorder %s123, %s124
      %p136 = scmp.eq.s32.totalorder %s30, 1
      %p137 = por %p135, %p136
      %p139 = scmp.ne.s32.totalorder %s124, %s138
      %p140 = scmp.eq.s32.totalorder %s30, 0
      %p141 = por %p139, %p140
      %s143 = sadd.s32 %s142, 1
      %p146 = scmp.eq.s32.totalorder %s24, 1
      %p147 = scmp.ne.s32.totalorder %s142, %s144
      %p148 = scmp.eq.s32.totalorder %s24, 0
      %p149 = por %p147, %p148
      %p150 = scmp.ne.s32.totalorder %s142, %s144
      %p151 = scmp.eq.s32.totalorder %s29, 1
      %p152 = por %p150, %p151
      %p153 = scmp.ne.s32.totalorder %s144, %s145
      %p154 = scmp.eq.s32.totalorder %s29, 0
      %p155 = por %p153, %p154
      %p156 = scmp.ne.s32.totalorder %s144, %s145
      %p157 = scmp.eq.s32.totalorder %s30, 1
      %p158 = por %p156, %p157
      %p160 = scmp.ne.s32.totalorder %s145, %s159
      %p161 = scmp.eq.s32.totalorder %s30, 0
      %p162 = por %p160, %p161
      %s164 = sadd.s32 %s163, 1
      %p167 = scmp.eq.s32.totalorder %s24, 1
      %p168 = scmp.ne.s32.totalorder %s163, %s165
      %p169 = scmp.eq.s32.totalorder %s24, 0
      %p170 = por %p168, %p169
      %p171 = scmp.ne.s32.totalorder %s163, %s165
      %p172 = scmp.eq.s32.totalorder %s29, 1
      %p173 = por %p171, %p172
      %p174 = scmp.ne.s32.totalorder %s165, %s166
      %p175 = scmp.eq.s32.totalorder %s29, 0
      %p176 = por %p174, %p175
      %p177 = scmp.ne.s32.totalorder %s165, %s166
      %p178 = scmp.eq.s32.totalorder %s30, 1
      %p179 = por %p177, %p178
      %p181 = scmp.ne.s32.totalorder %s166, %s180
      %p182 = scmp.eq.s32.totalorder %s30, 0
      %p183 = por %p181, %p182
      %s185 = sadd.s32 %s184, 1
      %p188 = scmp.eq.s32.totalorder %s24, 1
      %p189 = scmp.ne.s32.totalorder %s184, %s186
      %p190 = scmp.eq.s32.totalorder %s24, 0
      %p191 = por %p189, %p190
      %p192 = scmp.ne.s32.totalorder %s184, %s186
      %p193 = scmp.eq.s32.totalorder %s29, 1
      %p194 = por %p192, %p193
      %p195 = scmp.ne.s32.totalorder %s186, %s187
      %p196 = scmp.eq.s32.totalorder %s29, 0
      %p197 = por %p195, %p196
      %p198 = scmp.ne.s32.totalorder %s186, %s187
      %p199 = scmp.eq.s32.totalorder %s30, 1
      %p200 = por %p198, %p199
      %p202 = scmp.ne.s32.totalorder %s187, %s201
      %p203 = scmp.eq.s32.totalorder %s30, 0
      %p204 = por %p202, %p203
      %s206 = sadd.s32 %s205, 1
      %p209 = scmp.eq.s32.totalorder %s24, 1
      %p210 = scmp.ne.s32.totalorder %s205, %s207
      %p211 = scmp.eq.s32.totalorder %s24, 0
      %p212 = por %p210, %p211
      %p213 = scmp.ne.s32.totalorder %s205, %s207
      %p214 = scmp.eq.s32.totalorder %s29, 1
      %p215 = por %p213, %p214
      %p216 = scmp.ne.s32.totalorder %s207, %s208
      %p217 = scmp.eq.s32.totalorder %s29, 0
      %p218 = por %p216, %p217
      %p219 = scmp.ne.s32.totalorder %s207, %s208
      %p220 = scmp.eq.s32.totalorder %s30, 1
      %p221 = por %p219, %p220
      %p223 = scmp.ne.s32.totalorder %s208, %s222
      %p224 = scmp.eq.s32.totalorder %s30, 0
      %p225 = por %p223, %p224
      %s227 = sadd.s32 %s226, 1
      %p230 = scmp.eq.s32.totalorder %s24, 1
      %p231 = scmp.ne.s32.totalorder %s226, %s228
      %p232 = scmp.eq.s32.totalorder %s24, 0
      %p233 = por %p231, %p232
      %p234 = scmp.ne.s32.totalorder %s226, %s228
      %p235 = scmp.eq.s32.totalorder %s29, 1
      %p236 = por %p234, %p235
      %p237 = scmp.ne.s32.totalorder %s228, %s229
      %p238 = scmp.eq.s32.totalorder %s29, 0
      %p239 = por %p237, %p238
      %p240 = scmp.ne.s32.totalorder %s228, %s229
      %p241 = scmp.eq.s32.totalorder %s30, 1
      %p242 = por %p240, %p241
      %p244 = scmp.ne.s32.totalorder %s229, %s243
      %p245 = scmp.eq.s32.totalorder %s30, 0
      %p246 = por %p244, %p245
      %s248 = sadd.s32 %s247, 1
      %p251 = scmp.eq.s32.totalorder %s24, 1
      %p252 = scmp.ne.s32.totalorder %s247, %s249
      %p253 = scmp.eq.s32.totalorder %s24, 0
      %p254 = por %p252, %p253
      %p255 = scmp.ne.s32.totalorder %s247, %s249
      %p256 = scmp.eq.s32.totalorder %s29, 1
      %p257 = por %p255, %p256
      %p258 = scmp.ne.s32.totalorder %s249, %s250
      %p259 = scmp.eq.s32.totalorder %s29, 0
      %p260 = por %p258, %p259
      %p261 = scmp.ne.s32.totalorder %s249, %s250
      %p262 = scmp.eq.s32.totalorder %s30, 1
      %p263 = por %p261, %p262
      %p265 = scmp.ne.s32.totalorder %s250, %s264
      %p266 = scmp.eq.s32.totalorder %s30, 0
      %p267 = por %p265, %p266
      %s269 = sadd.s32 %s268, 1
      %p272 = scmp.eq.s32.totalorder %s24, 1
      %p273 = scmp.ne.s32.totalorder %s268, %s270
      %p274 = scmp.eq.s32.totalorder %s24, 0
      %p275 = por %p273, %p274
      %p276 = scmp.ne.s32.totalorder %s268, %s270
      %p277 = scmp.eq.s32.totalorder %s29, 1
      %p278 = por %p276, %p277
      %p279 = scmp.ne.s32.totalorder %s270, %s271
      %p280 = scmp.eq.s32.totalorder %s29, 0
      %p281 = por %p279, %p280
      %p282 = scmp.ne.s32.totalorder %s270, %s271
      %p283 = scmp.eq.s32.totalorder %s30, 1
      %p284 = por %p282, %p283
      %p286 = scmp.ne.s32.totalorder %s271, %s285
      %p287 = scmp.eq.s32.totalorder %s30, 0
      %p288 = por %p286, %p287
      %s290 = sadd.s32 %s289, 1
      %p293 = scmp.eq.s32.totalorder %s24, 1
      %p294 = scmp.ne.s32.totalorder %s289, %s291
      %p295 = scmp.eq.s32.totalorder %s24, 0
      %p296 = por %p294, %p295
      %p297 = scmp.ne.s32.totalorder %s289, %s291
      %p298 = scmp.eq.s32.totalorder %s29, 1
      %p299 = por %p297, %p298
      %p300 = scmp.ne.s32.totalorder %s291, %s292
      %p301 = scmp.eq.s32.totalorder %s29, 0
      %p302 = por %p300, %p301
      %p303 = scmp.ne.s32.totalorder %s291, %s292
      %p304 = scmp.eq.s32.totalorder %s30, 1
      %p305 = por %p303, %p304
      %p307 = scmp.ne.s32.totalorder %s292, %s306
      %p308 = scmp.eq.s32.totalorder %s30, 0
      %p309 = por %p307, %p308
      %s310 = ssub.s32 %s24, %s31
      %p311 = scmp.eq.s32.totalorder %s310, 0
      %s313 = sadd.s32 %s312, 1
      %s314 = scalar_select %p311, %s312, %s313
      %p317 = pneg %p311
      %p318 = scmp.eq.s32.totalorder %s24, 1
      %p319 = por %p317, %p318
      %p320 = scmp.ne.s32.totalorder %s312, %s315
      %p321 = scmp.eq.s32.totalorder %s24, 0
      %p322 = por %p320, %p321
      %p323 = scmp.ne.s32.totalorder %s312, %s315
      %p324 = scmp.eq.s32.totalorder %s29, 1
      %p325 = por %p323, %p324
      %p326 = scmp.ne.s32.totalorder %s315, %s316
      %p327 = scmp.eq.s32.totalorder %s29, 0
      %p328 = por %p326, %p327
      %p329 = scmp.ne.s32.totalorder %s315, %s316
      %p330 = scmp.eq.s32.totalorder %s30, 1
      %p331 = por %p329, %p330
      %p333 = scmp.ne.s32.totalorder %s316, %s332
      %p334 = scmp.eq.s32.totalorder %s30, 0
      %p335 = por %p333, %p334
      %s336 = ssub.s32 %s24, %s31
      %p337 = scmp.eq.s32.totalorder %s336, 0
      %s339 = sadd.s32 %s338, 1
      %s340 = scalar_select %p337, %s338, %s339
      %p343 = pneg %p337
      %p344 = scmp.eq.s32.totalorder %s24, 1
      %p345 = por %p343, %p344
      %p346 = scmp.ne.s32.totalorder %s338, %s341
      %p347 = scmp.eq.s32.totalorder %s24, 0
      %p348 = por %p346, %p347
      %p349 = scmp.ne.s32.totalorder %s338, %s341
      %p350 = scmp.eq.s32.totalorder %s29, 1
      %p351 = por %p349, %p350
      %p352 = scmp.ne.s32.totalorder %s341, %s342
      %p353 = scmp.eq.s32.totalorder %s29, 0
      %p354 = por %p352, %p353
      %p355 = scmp.ne.s32.totalorder %s341, %s342
      %p356 = scmp.eq.s32.totalorder %s30, 1
      %p357 = por %p355, %p356
      %p359 = scmp.ne.s32.totalorder %s342, %s358
      %p360 = scmp.eq.s32.totalorder %s30, 0
      %p361 = por %p359, %p360
      %s362 = ssub.s32 %s24, %s31
      %p363 = scmp.eq.s32.totalorder %s362, 0
      %s365 = sadd.s32 %s364, 1
      %s366 = scalar_select %p363, %s364, %s365
      %p369 = pneg %p363
      %p370 = scmp.eq.s32.totalorder %s24, 1
      %p371 = por %p369, %p370
      %p372 = scmp.ne.s32.totalorder %s364, %s367
      %p373 = scmp.eq.s32.totalorder %s24, 0
      %p374 = por %p372, %p373
      %p375 = scmp.ne.s32.totalorder %s364, %s367
      %p376 = scmp.eq.s32.totalorder %s29, 1
      %p377 = por %p375, %p376
      %p378 = scmp.ne.s32.totalorder %s367, %s368
      %p379 = scmp.eq.s32.totalorder %s29, 0
      %p380 = por %p378, %p379
      %p381 = scmp.ne.s32.totalorder %s367, %s368
      %p382 = scmp.eq.s32.totalorder %s30, 1
      %p383 = por %p381, %p382
      %p385 = scmp.ne.s32.totalorder %s368, %s384
      %p386 = scmp.eq.s32.totalorder %s30, 0
      %p387 = por %p385, %p386
      %p388 = scmp.le.s32.totalorder 1, %s24
      %p389 = scmp.lt.s32.totalorder %s24, 3
      %p390 = pnand %p388, %p389
      %p391 = pneg %p390
      // Predicated region
      $region9: #{probabilistic_conv_decoder_forward.1} parent=5 // pred_check
        _
      $region10: #{probabilistic_conv_decoder_forward.1} parent=5 // pred_check_branch
        %393 = sbr.rel (%p390) target = $region12
      $region11: #{probabilistic_conv_decoder_forward.1} parent=5 // pred_region
        %s394 = ssub.s32 %s24, 1
        // Predicated region
        $region13: #{probabilistic_conv_decoder_forward.1} parent=11 // pred_check
          %p395 = pneg %p71
        $region14: #{probabilistic_conv_decoder_forward.1} parent=11 // pred_check_branch
          %397 = sbr.rel (%p395) target = $region16
        $region15: #{probabilistic_conv_decoder_forward.1} parent=11 // pred_region
          _
        $region16: #{probabilistic_conv_decoder_forward.1} parent=11 // pred_fallthru
          _
        // Predicated region
        $region17: #{probabilistic_conv_decoder_forward.1} parent=11 // pred_check
          %p398 = pneg %p92
        $region18: #{probabilistic_conv_decoder_forward.1} parent=11 // pred_check_branch
          %400 = sbr.rel (%p398) target = $region20
        $region19: #{probabilistic_conv_decoder_forward.1} parent=11 // pred_region
          _
        $region20: #{probabilistic_conv_decoder_forward.1} parent=11 // pred_fallthru
          _
        // Predicated region
        $region21: #{probabilistic_conv_decoder_forward.1} parent=11 // pred_check
          %p401 = pneg %p113
        $region22: #{probabilistic_conv_decoder_forward.1} parent=11 // pred_check_branch
          %403 = sbr.rel (%p401) target = $region24
        $region23: #{probabilistic_conv_decoder_forward.1} parent=11 // pred_region
          _
        $region24: #{probabilistic_conv_decoder_forward.1} parent=11 // pred_fallthru
          _
        // Predicated region
        $region25: #{probabilistic_conv_decoder_forward.1} parent=11 // pred_check
          %p404 = pneg %p134
        $region26: #{probabilistic_conv_decoder_forward.1} parent=11 // pred_check_branch
          %406 = sbr.rel (%p404) target = $region28
        $region27: #{probabilistic_conv_decoder_forward.1} parent=11 // pred_region
          _
        $region28: #{probabilistic_conv_decoder_forward.1} parent=11 // pred_fallthru
          _
        // Predicated region
        $region29: #{probabilistic_conv_decoder_forward.1} parent=11 // pred_check
          %p407 = pneg %p155
        $region30: #{probabilistic_conv_decoder_forward.1} parent=11 // pred_check_branch
          %409 = sbr.rel (%p407) target = $region32
        $region31: #{probabilistic_conv_decoder_forward.1} parent=11 // pred_region
          _
        $region32: #{probabilistic_conv_decoder_forward.1} parent=11 // pred_fallthru
          _
        // Predicated region
        $region33: #{probabilistic_conv_decoder_forward.1} parent=11 // pred_check
          %p410 = pneg %p176
        $region34: #{probabilistic_conv_decoder_forward.1} parent=11 // pred_check_branch
          %412 = sbr.rel (%p410) target = $region36
        $region35: #{probabilistic_conv_decoder_forward.1} parent=11 // pred_region
          %s414 = ssub.s32 2048, 2048
          %415 = vsyncadd [#allocation3], %s414
          %s416 = sshll.u32 [#allocation2], 4
          %s417 = int_to_ptr.vmem [resolvable:$true] %s416
          %422 = dma.hbm_to_vmem [thread:$0]  %s6, 2048, %s417, [#allocation3], 256, 256, 16
        $region36: #{probabilistic_conv_decoder_forward.1} parent=11 // pred_fallthru
          _
        // Predicated region
        $region37: #{probabilistic_conv_decoder_forward.1} parent=11 // pred_check
          %p423 = pneg %p197
        $region38: #{probabilistic_conv_decoder_forward.1} parent=11 // pred_check_branch
          %425 = sbr.rel (%p423) target = $region40
        $region39: #{probabilistic_conv_decoder_forward.1} parent=11 // pred_region
          _
        $region40: #{probabilistic_conv_decoder_forward.1} parent=11 // pred_fallthru
          _
        // Predicated region
        $region41: #{probabilistic_conv_decoder_forward.1} parent=11 // pred_check
          %p426 = pneg %p218
        $region42: #{probabilistic_conv_decoder_forward.1} parent=11 // pred_check_branch
          %428 = sbr.rel (%p426) target = $region44
        $region43: #{probabilistic_conv_decoder_forward.1} parent=11 // pred_region
          _
        $region44: #{probabilistic_conv_decoder_forward.1} parent=11 // pred_fallthru
          _
        // Predicated region
        $region45: #{probabilistic_conv_decoder_forward.1} parent=11 // pred_check
          %p429 = pneg %p239
        $region46: #{probabilistic_conv_decoder_forward.1} parent=11 // pred_check_branch
          %431 = sbr.rel (%p429) target = $region48
        $region47: #{probabilistic_conv_decoder_forward.1} parent=11 // pred_region
          %s433 = ssub.s32 73728, 73728
          %434 = vsyncadd [#allocation5], %s433
          %s435 = sshll.u32 [#allocation4], 4
          %s436 = int_to_ptr.vmem [resolvable:$true] %s435
          %441 = dma.hbm_to_vmem [thread:$0]  %s9, 73728, %s436, [#allocation5], 256, 256, 16
        $region48: #{probabilistic_conv_decoder_forward.1} parent=11 // pred_fallthru
          _
        // Predicated region
        $region49: #{probabilistic_conv_decoder_forward.1} parent=11 // pred_check
          %p442 = pneg %p260
        $region50: #{probabilistic_conv_decoder_forward.1} parent=11 // pred_check_branch
          %444 = sbr.rel (%p442) target = $region52
        $region51: #{probabilistic_conv_decoder_forward.1} parent=11 // pred_region
          _
        $region52: #{probabilistic_conv_decoder_forward.1} parent=11 // pred_fallthru
          _
        // Predicated region
        $region53: #{probabilistic_conv_decoder_forward.1} parent=11 // pred_check
          %p445 = pneg %p281
        $region54: #{probabilistic_conv_decoder_forward.1} parent=11 // pred_check_branch
          %447 = sbr.rel (%p445) target = $region56
        $region55: #{probabilistic_conv_decoder_forward.1} parent=11 // pred_region
          _
        $region56: #{probabilistic_conv_decoder_forward.1} parent=11 // pred_fallthru
          _
        // Predicated region
        $region57: #{probabilistic_conv_decoder_forward.1} parent=11 // pred_check
          %p448 = pneg %p302
        $region58: #{probabilistic_conv_decoder_forward.1} parent=11 // pred_check_branch
          %450 = sbr.rel (%p448) target = $region60
        $region59: #{probabilistic_conv_decoder_forward.1} parent=11 // pred_region
          %s452 = ssub.s32 64, 64
          %453 = vsyncadd [#allocation5], %s452
          %s455 = sshll.u32 [#allocation6], 4
          %s456 = int_to_ptr.vmem [resolvable:$true] %s455
          %458 = dma.hbm_to_vmem [thread:$0]  %s12, 64, %s456, [#allocation5]
        $region60: #{probabilistic_conv_decoder_forward.1} parent=11 // pred_fallthru
          _
      $region12: #{probabilistic_conv_decoder_forward.1} parent=5 // pred_fallthru
        _
      %p459 = scmp.lt.s32.totalorder %s24, 2
      // Predicated region
      $region61: #{probabilistic_conv_decoder_forward.1} parent=5 // pred_check
        %p460 = pneg %p459
      $region62: #{probabilistic_conv_decoder_forward.1} parent=5 // pred_check_branch
        %462 = sbr.rel (%p460) target = $region64
      $region63: #{probabilistic_conv_decoder_forward.1} parent=5 // pred_region
        // Predicated region
        $region65: #{probabilistic_conv_decoder_forward.1} parent=63 // pred_check
          %p463 = pneg %p44
        $region66: #{probabilistic_conv_decoder_forward.1} parent=63 // pred_check_branch
          %465 = sbr.rel (%p463) target = $region68
        $region67: #{probabilistic_conv_decoder_forward.1} parent=63 // pred_region
          %s466 = smul.u32 2, %s24
          %p467 = scmp.lt.s32.totalorder %s466, 3
          %s468 = scalar_select %p467, %s466, 3
          %s469 = smul.addr %s468, 4
          %s470 = smul.addr %s469, 8
          %s471 = scalar_lea.vmem %s0, %s470
          %s472 = smul.u32 2, %s24
        $region68: #{probabilistic_conv_decoder_forward.1} parent=63 // pred_fallthru
          _
      $region64: #{probabilistic_conv_decoder_forward.1} parent=5 // pred_fallthru
        _
      %p473 = scmp.le.s32.totalorder 1, %s24
      %p474 = scmp.lt.s32.totalorder %s24, 3
      %p475 = pnand %p473, %p474
      %p476 = pneg %p475
      // Predicated region
      $region69: #{probabilistic_conv_decoder_forward.1} parent=5 // pred_check
        _
      $region70: #{probabilistic_conv_decoder_forward.1} parent=5 // pred_check_branch
        %478 = sbr.rel (%p475) target = $region72
      $region71: #{probabilistic_conv_decoder_forward.1} parent=5 // pred_region
        %s479 = ssub.s32 %s24, 1
        // Predicated region
        $region73: #{probabilistic_conv_decoder_forward.1} parent=71 // pred_check
          %p480 = pneg %p176
        $region74: #{probabilistic_conv_decoder_forward.1} parent=71 // pred_check_branch
          %482 = sbr.rel (%p480) target = $region76
        $region75: #{probabilistic_conv_decoder_forward.1} parent=71 // pred_region
          %483 = dma.done [#allocation3], 2048
        $region76: #{probabilistic_conv_decoder_forward.1} parent=71 // pred_fallthru
          _
        // Predicated region
        $region77: #{probabilistic_conv_decoder_forward.1} parent=71 // pred_check
          %p484 = pneg %p239
        $region78: #{probabilistic_conv_decoder_forward.1} parent=71 // pred_check_branch
          %486 = sbr.rel (%p484) target = $region80
        $region79: #{probabilistic_conv_decoder_forward.1} parent=71 // pred_region
          %487 = dma.done [#allocation5], 73728
        $region80: #{probabilistic_conv_decoder_forward.1} parent=71 // pred_fallthru
          _
        // Predicated region
        $region81: #{probabilistic_conv_decoder_forward.1} parent=71 // pred_check
          %p488 = pneg %p302
        $region82: #{probabilistic_conv_decoder_forward.1} parent=71 // pred_check_branch
          %490 = sbr.rel (%p488) target = $region84
        $region83: #{probabilistic_conv_decoder_forward.1} parent=71 // pred_region
          %491 = dma.done [#allocation5], 64
        $region84: #{probabilistic_conv_decoder_forward.1} parent=71 // pred_fallthru
          _
        %s492 = smul.u32 2, %s29
        %p493 = scmp.lt.s32.totalorder %s492, 3
        %s494 = scalar_select %p493, %s492, 3
        %s495 = smul.addr %s494, 4
        %s496 = smul.addr %s495, 8
        %s497 = scalar_lea.vmem %s0, %s496
        %p498 = pneg %p50
        %p499 = pneg %p47
        %p500 = pneg %p71
        %p501 = pneg %p68
        %p502 = pneg %p92
        %p503 = pneg %p89
        %p504 = pneg %p113
        %p505 = pneg %p110
        %p506 = pneg %p134
        %p507 = pneg %p131
        %p508 = pneg %p155
        %p509 = pneg %p152
        %p510 = pneg %p176
        %p511 = pneg %p173
        %p512 = pneg %p197
        %p513 = pneg %p194
        %p514 = pneg %p218
        %p515 = pneg %p215
        %p516 = pneg %p239
        %p517 = pneg %p236
        %p518 = pneg %p260
        %p519 = pneg %p257
        %p520 = pneg %p281
        %p521 = pneg %p278
        %p522 = pneg %p302
        %p523 = pneg %p299
        %p524 = pneg %p328
        %p525 = pneg %p325
        %p526 = scmp.lt.s32.totalorder %s29, 1
        %s527 = scalar_select %p526, %s29, 1
        %s528 = smul.addr %s527, 2
        %s529 = smul.addr %s528, 8
        %s530 = scalar_lea.vmem %s13, %s529
        %p531 = pneg %p354
        %p532 = pneg %p351
        %p533 = scmp.lt.s32.totalorder %s29, 1
        %s534 = scalar_select %p533, %s29, 1
        %s535 = smul.addr %s534, 2
        %s536 = smul.addr %s535, 4
        %s537 = scalar_lea.vmem %s14, %s536
        %p538 = pneg %p380
        %p539 = pneg %p377
        %p540 = scmp.lt.s32.totalorder %s29, 1
        %s541 = scalar_select %p540, %s29, 1
        %s542 = smul.addr %s541, 6
        %s543 = smul.addr %s542, 8
        %s544 = scalar_lea.vmem %s15, %s543
        %s545 = smul.u32 2, %s29
        %p546 = scmp.lt.s32.totalorder %s545, 3
        %s547 = scalar_select %p546, %s545, 3
        %s548 = smul.addr %s547, 4
        %s549 = smul.addr %s548, 8
        %s550 = scalar_lea.vmem %s0, %s549
        %s551 = smul.u32 2, %s29
        %p552 = scmp.lt.s32.totalorder %s29, 1
        %s553 = scalar_select %p552, %s29, 1
        %s554 = smul.addr %s553, 2
        %s555 = smul.addr %s554, 8
        %s556 = scalar_lea.vmem %s13, %s555
        %p557 = scmp.lt.s32.totalorder %s29, 1
        %s558 = scalar_select %p557, %s29, 1
        %s559 = smul.addr %s558, 2
        %s560 = smul.addr %s559, 4
        %s561 = scalar_lea.vmem %s14, %s560
        %p562 = scmp.lt.s32.totalorder %s29, 1
        %s563 = scalar_select %p562, %s29, 1
        %s564 = smul.addr %s563, 6
        %s565 = smul.addr %s564, 8
        %s566 = scalar_lea.vmem %s15, %s565
        %v567 = vld [vmem:[%s550] sm:$0xff]
        %v568 = vld [vmem:[%s550 + $0x8] sm:$0xff]
        %v569 = vld [vmem:[%s550 + $0x10] sm:$0xff]
        %v570 = vld [vmem:[%s550 + $0x18] sm:$0xff]
        %v571 = vld [vmem:[%s550 + $0x20] sm:$0xff]
        %v572 = vld [vmem:[%s550 + $0x28] sm:$0xff]
        %v573 = vld [vmem:[%s550 + $0x30] sm:$0xff]
        %v574 = vld [vmem:[%s550 + $0x38] sm:$0xff]
        %v575 = vld [vmem:[%s1] sm:$0xff]
        %v576 = vld [vmem:[%s1 + $0x8] sm:$0xff]
        %v577 = vld [vmem:[%s1 + $0x10] sm:$0xff]
        %v578 = vld [vmem:[%s1 + $0x18] sm:$0xff]
        %v579 = vld [vmem:[%s1 + $0x20] sm:$0xff]
        %v580 = vld [vmem:[%s1 + $0x28] sm:$0xff]
        %v581 = vld [vmem:[%s1 + $0x30] sm:$0xff]
        %v582 = vld [vmem:[%s1 + $0x38] sm:$0xff]
        %v583 = vld [vmem:[%s1 + $0x40] sm:$0xff]
        %v584 = vld [vmem:[%s1 + $0x48] sm:$0xff]
        %v585 = vld [vmem:[%s1 + $0x50] sm:$0xff]
        %v586 = vld [vmem:[%s1 + $0x58] sm:$0xff]
        %v587 = vld [vmem:[%s1 + $0x60] sm:$0xff]
        %v588 = vld [vmem:[%s1 + $0x68] sm:$0xff]
        %v589 = vld [vmem:[%s1 + $0x70] sm:$0xff]
        %v590 = vld [vmem:[%s1 + $0x78] sm:$0xff]
        %v591 = vld [vmem:[%s1 + $0x80] sm:$0xff]
        %v592 = vld [vmem:[%s1 + $0x88] sm:$0xff]
        %v593 = vld [vmem:[%s1 + $0x90] sm:$0xff]
        %v594 = vld [vmem:[%s1 + $0x98] sm:$0xff]
        %v595 = vld [vmem:[%s1 + $0xa0] sm:$0xff]
        %v596 = vld [vmem:[%s1 + $0xa8] sm:$0xff]
        %v597 = vld [vmem:[%s1 + $0xb0] sm:$0xff]
        %v598 = vld [vmem:[%s1 + $0xb8] sm:$0xff]
        %v599 = vld [vmem:[%s1 + $0xc0] sm:$0xff]
        %v600 = vld [vmem:[%s1 + $0xc8] sm:$0xff]
        %v601 = vld [vmem:[%s1 + $0xd0] sm:$0xff]
        %v602 = vld [vmem:[%s1 + $0xd8] sm:$0xff]
        %v603 = vld [vmem:[%s1 + $0xe0] sm:$0xff]
        %v604 = vld [vmem:[%s1 + $0xe8] sm:$0xff]
        %v605 = vld [vmem:[%s1 + $0xf0] sm:$0xff]
        %v606 = vld [vmem:[%s1 + $0xf8] sm:$0xff]
        %v607 = vld [vmem:[%s1 + $0x100] sm:$0xff]
        %v608 = vld [vmem:[%s1 + $0x108] sm:$0xff]
        %v609 = vld [vmem:[%s1 + $0x110] sm:$0xff]
        %v610 = vld [vmem:[%s1 + $0x118] sm:$0xff]
        %v611 = vld [vmem:[%s1 + $0x120] sm:$0xff]
        %v612 = vld [vmem:[%s1 + $0x128] sm:$0xff]
        %v613 = vld [vmem:[%s1 + $0x130] sm:$0xff]
        %v614 = vld [vmem:[%s1 + $0x138] sm:$0xff]
        %v615 = vld [vmem:[%s1 + $0x140] sm:$0xff]
        %v616 = vld [vmem:[%s1 + $0x148] sm:$0xff]
        %v617 = vld [vmem:[%s1 + $0x150] sm:$0xff]
        %v618 = vld [vmem:[%s1 + $0x158] sm:$0xff]
        %v619 = vld [vmem:[%s1 + $0x160] sm:$0xff]
        %v620 = vld [vmem:[%s1 + $0x168] sm:$0xff]
        %v621 = vld [vmem:[%s1 + $0x170] sm:$0xff]
        %v622 = vld [vmem:[%s1 + $0x178] sm:$0xff]
        %v623 = vld [vmem:[%s1 + $0x180] sm:$0xff]
        %v624 = vld [vmem:[%s1 + $0x188] sm:$0xff]
        %v625 = vld [vmem:[%s1 + $0x190] sm:$0xff]
        %v626 = vld [vmem:[%s1 + $0x198] sm:$0xff]
        %v627 = vld [vmem:[%s1 + $0x1a0] sm:$0xff]
        %v628 = vld [vmem:[%s1 + $0x1a8] sm:$0xff]
        %v629 = vld [vmem:[%s1 + $0x1b0] sm:$0xff]
        %v630 = vld [vmem:[%s1 + $0x1b8] sm:$0xff]
        %v631 = vld [vmem:[%s1 + $0x1c0] sm:$0xff]
        %v632 = vld [vmem:[%s1 + $0x1c8] sm:$0xff]
        %v633 = vld [vmem:[%s1 + $0x1d0] sm:$0xff]
        %v634 = vld [vmem:[%s1 + $0x1d8] sm:$0xff]
        %v635 = vld [vmem:[%s1 + $0x1e0] sm:$0xff]
        %v636 = vld [vmem:[%s1 + $0x1e8] sm:$0xff]
        %v637 = vld [vmem:[%s1 + $0x1f0] sm:$0xff]
        %v638 = vld [vmem:[%s1 + $0x1f8] sm:$0xff]
        %v639 = vld [vmem:[%s2] sm:$0xff]
        %v640 = vld [vmem:[%s2 + $0x8] sm:$0xff]
        %642 = vset.pattern.permute.xlu0 0
        %643 = vperm.xlu0 %642, %v639
        %v644 = vpop.permute.xlu0 %643
        %647 = vset.pattern.permute.xlu0 0
        %648 = vperm.xlu0 %647, %v640
        %v649 = vpop.permute.xlu0 %648
        %651 = vmatprep.subr.mxu0 0.0
        %652 = vmatpush1.msra.mxu0 %v590
        %653 = vmatprep.subr.mxu0 0.0
        %654 = vmatpush1.msra.mxu0 %v589
        %655 = vmatprep.subr.mxu0 0.0
        %656 = vmatpush1.msra.mxu0 %v588
        %657 = vmatprep.subr.mxu0 0.0
        %658 = vmatpush1.msra.mxu0 %v587
        %659 = vmatprep.subr.mxu0 0.0
        %660 = vmatpush1.msra.mxu0 %v586
        %661 = vmatprep.subr.mxu0 0.0
        %662 = vmatpush1.msra.mxu0 %v585
        %663 = vmatprep.subr.mxu0 0.0
        %664 = vmatpush1.msra.mxu0 %v584
        %665 = vmatprep.subr.mxu0 0.0
        %666 = vmatpush1.msra.mxu0 %v583
        %667 = vmatprep.subr.mxu0 0.0
        %668 = vmatpush1.msra.mxu0 %v582
        %669 = vmatprep.subr.mxu0 0.0
        %670 = vmatpush1.msra.mxu0 %v581
        %671 = vmatprep.subr.mxu0 0.0
        %672 = vmatpush1.msra.mxu0 %v580
        %673 = vmatprep.subr.mxu0 0.0
        %674 = vmatpush1.msra.mxu0 %v579
        %675 = vmatprep.subr.mxu0 0.0
        %676 = vmatpush1.msra.mxu0 %v578
        %677 = vmatprep.subr.mxu0 0.0
        %678 = vmatpush1.msra.mxu0 %v577
        %679 = vmatprep.subr.mxu0 0.0
        %680 = vmatpush1.msra.mxu0 %v576
        %681 = vmatprep.subr.mxu0 0.0
        %682 = vmatpush1.msra.mxu0 %v575
        %683 = vmatprep.subr.mxu0 0.0
        %684 = vmatpush2.msra.mxu0 %v606
        %685 = vmatprep.subr.mxu0 0.0
        %686 = vmatpush2.msra.mxu0 %v605
        %687 = vmatprep.subr.mxu0 0.0
        %688 = vmatpush2.msra.mxu0 %v604
        %689 = vmatprep.subr.mxu0 0.0
        %690 = vmatpush2.msra.mxu0 %v603
        %691 = vmatprep.subr.mxu0 0.0
        %692 = vmatpush2.msra.mxu0 %v602
        %693 = vmatprep.subr.mxu0 0.0
        %694 = vmatpush2.msra.mxu0 %v601
        %695 = vmatprep.subr.mxu0 0.0
        %696 = vmatpush2.msra.mxu0 %v600
        %697 = vmatprep.subr.mxu0 0.0
        %698 = vmatpush2.msra.mxu0 %v599
        %699 = vmatprep.subr.mxu0 0.0
        %700 = vmatpush2.msra.mxu0 %v598
        %701 = vmatprep.subr.mxu0 0.0
        %702 = vmatpush2.msra.mxu0 %v597
        %703 = vmatprep.subr.mxu0 0.0
        %704 = vmatpush2.msra.mxu0 %v596
        %705 = vmatprep.subr.mxu0 0.0
        %706 = vmatpush2.msra.mxu0 %v595
        %707 = vmatprep.subr.mxu0 0.0
        %708 = vmatpush2.msra.mxu0 %v594
        %709 = vmatprep.subr.mxu0 0.0
        %710 = vmatpush2.msra.mxu0 %v593
        %711 = vmatprep.subr.mxu0 0.0
        %712 = vmatpush2.msra.mxu0 %v592
        %713 = vmatprep.subr.mxu0 0.0
        %714 = vmatpush2.msra.mxu0 %v591
        %715 = vmatprep.mubr.f32.mxu0 %v568
        %716 = vmatmul.mubr.f32.gmra.mxu0 %v567
        %v717 = vpop.f32.mrf.mxu0
        %v718 = vadd.f32 %v644, %v717
        %v719 = vpop.f32.mrf.mxu0
        %720 = vmatprep.mubr.f32.mxu0 %v572
        %721 = vmatmul.mubr.f32.gmra.mxu0 %v571
        %v722 = vpop.f32.mrf.mxu0
        %v723 = vadd.f32 %v649, %v722
        %v724 = vpop.f32.mrf.mxu0
        %725 = vdwg.mxu0
        %726 = vmatprep.subr.mxu0 0.0
        %727 = vmatpush1.msra.mxu0 %v622
        %728 = vmatprep.subr.mxu0 0.0
        %729 = vmatpush1.msra.mxu0 %v621
        %730 = vmatprep.subr.mxu0 0.0
        %731 = vmatpush1.msra.mxu0 %v620
        %732 = vmatprep.subr.mxu0 0.0
        %733 = vmatpush1.msra.mxu0 %v619
        %734 = vmatprep.subr.mxu0 0.0
        %735 = vmatpush1.msra.mxu0 %v618
        %736 = vmatprep.subr.mxu0 0.0
        %737 = vmatpush1.msra.mxu0 %v617
        %738 = vmatprep.subr.mxu0 0.0
        %739 = vmatpush1.msra.mxu0 %v616
        %740 = vmatprep.subr.mxu0 0.0
        %741 = vmatpush1.msra.mxu0 %v615
        %742 = vmatprep.subr.mxu0 0.0
        %743 = vmatpush1.msra.mxu0 %v614
        %744 = vmatprep.subr.mxu0 0.0
        %745 = vmatpush1.msra.mxu0 %v613
        %746 = vmatprep.subr.mxu0 0.0
        %747 = vmatpush1.msra.mxu0 %v612
        %748 = vmatprep.subr.mxu0 0.0
        %749 = vmatpush1.msra.mxu0 %v611
        %750 = vmatprep.subr.mxu0 0.0
        %751 = vmatpush1.msra.mxu0 %v610
        %752 = vmatprep.subr.mxu0 0.0
        %753 = vmatpush1.msra.mxu0 %v609
        %754 = vmatprep.subr.mxu0 0.0
        %755 = vmatpush1.msra.mxu0 %v608
        %756 = vmatprep.subr.mxu0 0.0
        %757 = vmatpush1.msra.mxu0 %v607
        %758 = vmatprep.subr.mxu0 0.0
        %759 = vmatpush2.msra.mxu0 %v638
        %760 = vmatprep.subr.mxu0 0.0
        %761 = vmatpush2.msra.mxu0 %v637
        %762 = vmatprep.subr.mxu0 0.0
        %763 = vmatpush2.msra.mxu0 %v636
        %764 = vmatprep.subr.mxu0 0.0
        %765 = vmatpush2.msra.mxu0 %v635
        %766 = vmatprep.subr.mxu0 0.0
        %767 = vmatpush2.msra.mxu0 %v634
        %768 = vmatprep.subr.mxu0 0.0
        %769 = vmatpush2.msra.mxu0 %v633
        %770 = vmatprep.subr.mxu0 0.0
        %771 = vmatpush2.msra.mxu0 %v632
        %772 = vmatprep.subr.mxu0 0.0
        %773 = vmatpush2.msra.mxu0 %v631
        %774 = vmatprep.subr.mxu0 0.0
        %775 = vmatpush2.msra.mxu0 %v630
        %776 = vmatprep.subr.mxu0 0.0
        %777 = vmatpush2.msra.mxu0 %v629
        %778 = vmatprep.subr.mxu0 0.0
        %779 = vmatpush2.msra.mxu0 %v628
        %780 = vmatprep.subr.mxu0 0.0
        %781 = vmatpush2.msra.mxu0 %v627
        %782 = vmatprep.subr.mxu0 0.0
        %783 = vmatpush2.msra.mxu0 %v626
        %784 = vmatprep.subr.mxu0 0.0
        %785 = vmatpush2.msra.mxu0 %v625
        %786 = vmatprep.subr.mxu0 0.0
        %787 = vmatpush2.msra.mxu0 %v624
        %788 = vmatprep.subr.mxu0 0.0
        %789 = vmatpush2.msra.mxu0 %v623
        %790 = vmatprep.mubr.f32.mxu0 %v570
        %791 = vmatmul.mubr.f32.gmra.mxu0 %v569
        %v792 = vpop.f32.mrf.mxu0
        %v793 = vadd.f32 %v718, %v792
        %v794 = vpop.f32.mrf.mxu0
        %795 = vmatprep.mubr.f32.mxu0 %v574
        %796 = vmatmul.mubr.f32.gmra.mxu0 %v573
        %v797 = vpop.f32.mrf.mxu0
        %v798 = vadd.f32 %v723, %v797
        %v799 = vpop.f32.mrf.mxu0
        %800 = vdwg.mxu0
        %vm801 = vcmp.gt.f32.partialorder %v793, 0.0
        %vm802 = vcmp.gt.f32.partialorder %v798, 0.0
        %v803 = vmul.f32 %v793, 0.2
        %v804 = vmul.f32 %v798, 0.2
        %v805 = vsel %vm801, %v793, %v803
        %v806 = vsel %vm802, %v798, %v804
        %v807 = vld [vmem:[%s5] sm:$0xff]
        %v808 = vld [vmem:[%s5 + $0x8] sm:$0xff]
        %v809 = vld [vmem:[%s5 + $0x10] sm:$0xff]
        %v810 = vld [vmem:[%s5 + $0x18] sm:$0xff]
        %v811 = vld [vmem:[%s5 + $0x20] sm:$0xff]
        %v812 = vld [vmem:[%s5 + $0x28] sm:$0xff]
        %v813 = vld [vmem:[%s5 + $0x30] sm:$0xff]
        %v814 = vld [vmem:[%s5 + $0x38] sm:$0xff]
        %vm815 = vcmask 523264
        %v817 = vsel %vm815, %v805, 0
        %v820 = vsel %vm815, %v806, 0
        %822 = vmatprep.subr.mxu0 0.0
        %823 = vmatpush1.msra.mxu0 0.0
        %824 = vmatprep.subr.mxu0 0.0
        %825 = vmatpush1.msra.mxu0 0.0
        %826 = vmatprep.subr.mxu0 0.0
        %827 = vmatpush1.msra.mxu0 0.0
        %828 = vmatprep.subr.mxu0 0.0
        %829 = vmatpush1.msra.mxu0 0.0
        %830 = vmatprep.subr.mxu0 0.0
        %831 = vmatpush1.msra.mxu0 0.0
        %832 = vmatprep.subr.mxu0 0.0
        %833 = vmatpush1.msra.mxu0 0.0
        %834 = vmatprep.subr.mxu0 0.0
        %835 = vmatpush1.msra.mxu0 0.0
        %836 = vmatprep.subr.mxu0 0.0
        %837 = vmatpush1.msra.mxu0 0.0
        %838 = vmatprep.subr.mxu0 0.0
        %839 = vmatpush1.msra.mxu0 %v814
        %840 = vmatprep.subr.mxu0 0.0
        %841 = vmatpush1.msra.mxu0 %v813
        %842 = vmatprep.subr.mxu0 0.0
        %843 = vmatpush1.msra.mxu0 %v812
        %844 = vmatprep.subr.mxu0 0.0
        %845 = vmatpush1.msra.mxu0 %v811
        %846 = vmatprep.subr.mxu0 0.0
        %847 = vmatpush1.msra.mxu0 %v810
        %848 = vmatprep.subr.mxu0 0.0
        %849 = vmatpush1.msra.mxu0 %v809
        %850 = vmatprep.subr.mxu0 0.0
        %851 = vmatpush1.msra.mxu0 %v808
        %852 = vmatprep.subr.mxu0 0.0
        %853 = vmatpush1.msra.mxu0 %v807
        %854 = vmatprep.subr.mxu0 0.0
        %855 = vmatpush2.msra.mxu0 0.0
        %856 = vmatprep.subr.mxu0 0.0
        %857 = vmatpush2.msra.mxu0 0.0
        %858 = vmatprep.subr.mxu0 0.0
        %859 = vmatpush2.msra.mxu0 0.0
        %860 = vmatprep.subr.mxu0 0.0
        %861 = vmatpush2.msra.mxu0 0.0
        %862 = vmatprep.subr.mxu0 0.0
        %863 = vmatpush2.msra.mxu0 0.0
        %864 = vmatprep.subr.mxu0 0.0
        %865 = vmatpush2.msra.mxu0 0.0
        %866 = vmatprep.subr.mxu0 0.0
        %867 = vmatpush2.msra.mxu0 0.0
        %868 = vmatprep.subr.mxu0 0.0
        %869 = vmatpush2.msra.mxu0 0.0
        %870 = vmatprep.subr.mxu0 0.0
        %871 = vmatpush2.msra.mxu0 0.0
        %872 = vmatprep.subr.mxu0 0.0
        %873 = vmatpush2.msra.mxu0 0.0
        %874 = vmatprep.subr.mxu0 0.0
        %875 = vmatpush2.msra.mxu0 0.0
        %876 = vmatprep.subr.mxu0 0.0
        %877 = vmatpush2.msra.mxu0 0.0
        %878 = vmatprep.subr.mxu0 0.0
        %879 = vmatpush2.msra.mxu0 0.0
        %880 = vmatprep.subr.mxu0 0.0
        %881 = vmatpush2.msra.mxu0 0.0
        %882 = vmatprep.subr.mxu0 0.0
        %883 = vmatpush2.msra.mxu0 0.0
        %884 = vmatprep.subr.mxu0 0.0
        %885 = vmatpush2.msra.mxu0 0.0
        %886 = vmatprep.mubr.f32.mxu0 0.0
        %887 = vmatmul.mubr.f32.gmra.mxu0 %v817
        %v888 = vpop.f32.mrf.mxu0
        %v889 = vadd.f32 0.0, %v888
        %v890 = vpop.f32.mrf.mxu0
        %891 = vmatprep.mubr.f32.mxu0 0.0
        %892 = vmatmul.mubr.f32.gmra.mxu0 %v820
        %v893 = vpop.f32.mrf.mxu0
        %v894 = vadd.f32 0.0, %v893
        %v895 = vpop.f32.mrf.mxu0
        %896 = vdwg.mxu0
        %v897 = vld [vmem:[%s3] sm:$0xff]
        %v898 = vld [vmem:[%s5 + $0x40] sm:$0xff]
        %v899 = vld [vmem:[%s5 + $0x48] sm:$0xff]
        %v900 = vld [vmem:[%s5 + $0x50] sm:$0xff]
        %v901 = vld [vmem:[%s5 + $0x58] sm:$0xff]
        %v902 = vld [vmem:[%s5 + $0x60] sm:$0xff]
        %v903 = vld [vmem:[%s5 + $0x68] sm:$0xff]
        %v904 = vld [vmem:[%s5 + $0x70] sm:$0xff]
        %v905 = vld [vmem:[%s5 + $0x78] sm:$0xff]
        %906 = vmatprep.subr.mxu0 0.0
        %907 = vmatpush1.msra.mxu0 0.0
        %908 = vmatprep.subr.mxu0 0.0
        %909 = vmatpush1.msra.mxu0 0.0
        %910 = vmatprep.subr.mxu0 0.0
        %911 = vmatpush1.msra.mxu0 0.0
        %912 = vmatprep.subr.mxu0 0.0
        %913 = vmatpush1.msra.mxu0 0.0
        %914 = vmatprep.subr.mxu0 0.0
        %915 = vmatpush1.msra.mxu0 0.0
        %916 = vmatprep.subr.mxu0 0.0
        %917 = vmatpush1.msra.mxu0 0.0
        %918 = vmatprep.subr.mxu0 0.0
        %919 = vmatpush1.msra.mxu0 0.0
        %920 = vmatprep.subr.mxu0 0.0
        %921 = vmatpush1.msra.mxu0 0.0
        %922 = vmatprep.subr.mxu0 0.0
        %923 = vmatpush1.msra.mxu0 %v905
        %924 = vmatprep.subr.mxu0 0.0
        %925 = vmatpush1.msra.mxu0 %v904
        %926 = vmatprep.subr.mxu0 0.0
        %927 = vmatpush1.msra.mxu0 %v903
        %928 = vmatprep.subr.mxu0 0.0
        %929 = vmatpush1.msra.mxu0 %v902
        %930 = vmatprep.subr.mxu0 0.0
        %931 = vmatpush1.msra.mxu0 %v901
        %932 = vmatprep.subr.mxu0 0.0
        %933 = vmatpush1.msra.mxu0 %v900
        %934 = vmatprep.subr.mxu0 0.0
        %935 = vmatpush1.msra.mxu0 %v899
        %936 = vmatprep.subr.mxu0 0.0
        %937 = vmatpush1.msra.mxu0 %v898
        %938 = vmatprep.subr.mxu0 0.0
        %939 = vmatpush2.msra.mxu0 0.0
        %940 = vmatprep.subr.mxu0 0.0
        %941 = vmatpush2.msra.mxu0 0.0
        %942 = vmatprep.subr.mxu0 0.0
        %943 = vmatpush2.msra.mxu0 0.0
        %944 = vmatprep.subr.mxu0 0.0
        %945 = vmatpush2.msra.mxu0 0.0
        %946 = vmatprep.subr.mxu0 0.0
        %947 = vmatpush2.msra.mxu0 0.0
        %948 = vmatprep.subr.mxu0 0.0
        %949 = vmatpush2.msra.mxu0 0.0
        %950 = vmatprep.subr.mxu0 0.0
        %951 = vmatpush2.msra.mxu0 0.0
        %952 = vmatprep.subr.mxu0 0.0
        %953 = vmatpush2.msra.mxu0 0.0
        %954 = vmatprep.subr.mxu0 0.0
        %955 = vmatpush2.msra.mxu0 0.0
        %956 = vmatprep.subr.mxu0 0.0
        %957 = vmatpush2.msra.mxu0 0.0
        %958 = vmatprep.subr.mxu0 0.0
        %959 = vmatpush2.msra.mxu0 0.0
        %960 = vmatprep.subr.mxu0 0.0
        %961 = vmatpush2.msra.mxu0 0.0
        %962 = vmatprep.subr.mxu0 0.0
        %963 = vmatpush2.msra.mxu0 0.0
        %964 = vmatprep.subr.mxu0 0.0
        %965 = vmatpush2.msra.mxu0 0.0
        %966 = vmatprep.subr.mxu0 0.0
        %967 = vmatpush2.msra.mxu0 0.0
        %968 = vmatprep.subr.mxu0 0.0
        %969 = vmatpush2.msra.mxu0 0.0
        %970 = vmatprep.mubr.f32.mxu0 0.0
        %971 = vmatmul.mubr.f32.gmra.mxu0 %v817
        %v972 = vpop.f32.mrf.mxu0
        %v973 = vadd.f32 0.0, %v972
        %v974 = vpop.f32.mrf.mxu0
        %975 = vmatprep.mubr.f32.mxu0 0.0
        %976 = vmatmul.mubr.f32.gmra.mxu0 %v820
        %v977 = vpop.f32.mrf.mxu0
        %v978 = vadd.f32 0.0, %v977
        %v979 = vpop.f32.mrf.mxu0
        %980 = vdwg.mxu0
        %v981 = vld [vmem:[%s3 + $0x8] sm:$0xff]
        %vm982 = vcmask 130048
        %v984 = vsel %vm982, %v981, 0
        %986 = vmatprep.subr.mxu0 0.0
        %987 = vmatpush1.msra.mxu0 0.0
        %988 = vmatprep.subr.mxu0 0.0
        %989 = vmatpush1.msra.mxu0 0.0
        %990 = vmatprep.subr.mxu0 0.0
        %991 = vmatpush1.msra.mxu0 0.0
        %992 = vmatprep.subr.mxu0 0.0
        %993 = vmatpush1.msra.mxu0 0.0
        %994 = vmatprep.subr.mxu0 0.0
        %995 = vmatpush1.msra.mxu0 0.0
        %996 = vmatprep.subr.mxu0 0.0
        %997 = vmatpush1.msra.mxu0 0.0
        %998 = vmatprep.subr.mxu0 0.0
        %999 = vmatpush1.msra.mxu0 0.0
        %1000 = vmatprep.subr.mxu0 0.0
        %1001 = vmatpush1.msra.mxu0 0.0
        %1002 = vmatprep.subr.mxu0 0.0
        %1003 = vmatpush1.msra.mxu0 0.0
        %1004 = vmatprep.subr.mxu0 0.0
        %1005 = vmatpush1.msra.mxu0 0.0
        %1006 = vmatprep.subr.mxu0 0.0
        %1007 = vmatpush1.msra.mxu0 0.0
        %1008 = vmatprep.subr.mxu0 0.0
        %1009 = vmatpush1.msra.mxu0 0.0
        %1010 = vmatprep.subr.mxu0 0.0
        %1011 = vmatpush1.msra.mxu0 0.0
        %1012 = vmatprep.subr.mxu0 0.0
        %1013 = vmatpush1.msra.mxu0 0.0
        %1014 = vmatprep.subr.mxu0 0.0
        %1015 = vmatpush1.msra.mxu0 %v978
        %1016 = vmatprep.subr.mxu0 0.0
        %1017 = vmatpush1.msra.mxu0 %v973
        %1018 = vmatprep.subr.mxu0 0.0
        %1019 = vmatpush2.msra.mxu0 0.0
        %1020 = vmatprep.subr.mxu0 0.0
        %1021 = vmatpush2.msra.mxu0 0.0
        %1022 = vmatprep.subr.mxu0 0.0
        %1023 = vmatpush2.msra.mxu0 0.0
        %1024 = vmatprep.subr.mxu0 0.0
        %1025 = vmatpush2.msra.mxu0 0.0
        %1026 = vmatprep.subr.mxu0 0.0
        %1027 = vmatpush2.msra.mxu0 0.0
        %1028 = vmatprep.subr.mxu0 0.0
        %1029 = vmatpush2.msra.mxu0 0.0
        %1030 = vmatprep.subr.mxu0 0.0
        %1031 = vmatpush2.msra.mxu0 0.0
        %1032 = vmatprep.subr.mxu0 0.0
        %1033 = vmatpush2.msra.mxu0 0.0
        %1034 = vmatprep.subr.mxu0 0.0
        %1035 = vmatpush2.msra.mxu0 0.0
        %1036 = vmatprep.subr.mxu0 0.0
        %1037 = vmatpush2.msra.mxu0 0.0
        %1038 = vmatprep.subr.mxu0 0.0
        %1039 = vmatpush2.msra.mxu0 0.0
        %1040 = vmatprep.subr.mxu0 0.0
        %1041 = vmatpush2.msra.mxu0 0.0
        %1042 = vmatprep.subr.mxu0 0.0
        %1043 = vmatpush2.msra.mxu0 0.0
        %1044 = vmatprep.subr.mxu0 0.0
        %1045 = vmatpush2.msra.mxu0 0.0
        %1046 = vmatprep.subr.mxu0 0.0
        %1047 = vmatpush2.msra.mxu0 0.0
        %1048 = vmatprep.subr.mxu0 0.0
        %1049 = vmatpush2.msra.mxu0 0.0
        %1050 = vmatprep.mubr.f32.mxu0 0.0
        %1051 = vmatmul.mubr.f32.gmra.mxu0 %v984
        %v1052 = vpop.f32.mrf.mxu0
        %v1053 = vadd.f32 0.0, %v1052
        %v1054 = vpop.f32.mrf.mxu0
        %1055 = vdwg.mxu0
        %v1057 = vsel %vm982, %v897, 0
        %1059 = vmatprep.subr.mxu0 0.0
        %1060 = vmatpush1.msra.mxu0 0.0
        %1061 = vmatprep.subr.mxu0 0.0
        %1062 = vmatpush1.msra.mxu0 0.0
        %1063 = vmatprep.subr.mxu0 0.0
        %1064 = vmatpush1.msra.mxu0 0.0
        %1065 = vmatprep.subr.mxu0 0.0
        %1066 = vmatpush1.msra.mxu0 0.0
        %1067 = vmatprep.subr.mxu0 0.0
        %1068 = vmatpush1.msra.mxu0 0.0
        %1069 = vmatprep.subr.mxu0 0.0
        %1070 = vmatpush1.msra.mxu0 0.0
        %1071 = vmatprep.subr.mxu0 0.0
        %1072 = vmatpush1.msra.mxu0 0.0
        %1073 = vmatprep.subr.mxu0 0.0
        %1074 = vmatpush1.msra.mxu0 0.0
        %1075 = vmatprep.subr.mxu0 0.0
        %1076 = vmatpush1.msra.mxu0 0.0
        %1077 = vmatprep.subr.mxu0 0.0
        %1078 = vmatpush1.msra.mxu0 0.0
        %1079 = vmatprep.subr.mxu0 0.0
        %1080 = vmatpush1.msra.mxu0 0.0
        %1081 = vmatprep.subr.mxu0 0.0
        %1082 = vmatpush1.msra.mxu0 0.0
        %1083 = vmatprep.subr.mxu0 0.0
        %1084 = vmatpush1.msra.mxu0 0.0
        %1085 = vmatprep.subr.mxu0 0.0
        %1086 = vmatpush1.msra.mxu0 0.0
        %1087 = vmatprep.subr.mxu0 0.0
        %1088 = vmatpush1.msra.mxu0 %v894
        %1089 = vmatprep.subr.mxu0 0.0
        %1090 = vmatpush1.msra.mxu0 %v889
        %1091 = vmatprep.subr.mxu0 0.0
        %1092 = vmatpush2.msra.mxu0 0.0
        %1093 = vmatprep.subr.mxu0 0.0
        %1094 = vmatpush2.msra.mxu0 0.0
        %1095 = vmatprep.subr.mxu0 0.0
        %1096 = vmatpush2.msra.mxu0 0.0
        %1097 = vmatprep.subr.mxu0 0.0
        %1098 = vmatpush2.msra.mxu0 0.0
        %1099 = vmatprep.subr.mxu0 0.0
        %1100 = vmatpush2.msra.mxu0 0.0
        %1101 = vmatprep.subr.mxu0 0.0
        %1102 = vmatpush2.msra.mxu0 0.0
        %1103 = vmatprep.subr.mxu0 0.0
        %1104 = vmatpush2.msra.mxu0 0.0
        %1105 = vmatprep.subr.mxu0 0.0
        %1106 = vmatpush2.msra.mxu0 0.0
        %1107 = vmatprep.subr.mxu0 0.0
        %1108 = vmatpush2.msra.mxu0 0.0
        %1109 = vmatprep.subr.mxu0 0.0
        %1110 = vmatpush2.msra.mxu0 0.0
        %1111 = vmatprep.subr.mxu0 0.0
        %1112 = vmatpush2.msra.mxu0 0.0
        %1113 = vmatprep.subr.mxu0 0.0
        %1114 = vmatpush2.msra.mxu0 0.0
        %1115 = vmatprep.subr.mxu0 0.0
        %1116 = vmatpush2.msra.mxu0 0.0
        %1117 = vmatprep.subr.mxu0 0.0
        %1118 = vmatpush2.msra.mxu0 0.0
        %1119 = vmatprep.subr.mxu0 0.0
        %1120 = vmatpush2.msra.mxu0 0.0
        %1121 = vmatprep.subr.mxu0 0.0
        %1122 = vmatpush2.msra.mxu0 0.0
        %1123 = vmatprep.mubr.f32.mxu0 0.0
        %1124 = vmatmul.mubr.f32.gmra.mxu0 %v1057
        %v1125 = vpop.f32.mrf.mxu0
        %v1126 = vadd.f32 %v1053, %v1125
        %v1127 = vpop.f32.mrf.mxu0
        %1128 = vdwg.mxu0
        %v1129 = vld [vmem:[%s5 + $0x80] sm:$0xff]
        %v1130 = vld [vmem:[%s5 + $0x88] sm:$0xff]
        %v1131 = vld [vmem:[%s5 + $0x90] sm:$0xff]
        %v1132 = vld [vmem:[%s5 + $0x98] sm:$0xff]
        %v1133 = vld [vmem:[%s5 + $0xa0] sm:$0xff]
        %v1134 = vld [vmem:[%s5 + $0xa8] sm:$0xff]
        %v1135 = vld [vmem:[%s5 + $0xb0] sm:$0xff]
        %v1136 = vld [vmem:[%s5 + $0xb8] sm:$0xff]
        %1137 = vmatprep.subr.mxu0 0.0
        %1138 = vmatpush1.msra.mxu0 0.0
        %1139 = vmatprep.subr.mxu0 0.0
        %1140 = vmatpush1.msra.mxu0 0.0
        %1141 = vmatprep.subr.mxu0 0.0
        %1142 = vmatpush1.msra.mxu0 0.0
        %1143 = vmatprep.subr.mxu0 0.0
        %1144 = vmatpush1.msra.mxu0 0.0
        %1145 = vmatprep.subr.mxu0 0.0
        %1146 = vmatpush1.msra.mxu0 0.0
        %1147 = vmatprep.subr.mxu0 0.0
        %1148 = vmatpush1.msra.mxu0 0.0
        %1149 = vmatprep.subr.mxu0 0.0
        %1150 = vmatpush1.msra.mxu0 0.0
        %1151 = vmatprep.subr.mxu0 0.0
        %1152 = vmatpush1.msra.mxu0 0.0
        %1153 = vmatprep.subr.mxu0 0.0
        %1154 = vmatpush1.msra.mxu0 %v1136
        %1155 = vmatprep.subr.mxu0 0.0
        %1156 = vmatpush1.msra.mxu0 %v1135
        %1157 = vmatprep.subr.mxu0 0.0
        %1158 = vmatpush1.msra.mxu0 %v1134
        %1159 = vmatprep.subr.mxu0 0.0
        %1160 = vmatpush1.msra.mxu0 %v1133
        %1161 = vmatprep.subr.mxu0 0.0
        %1162 = vmatpush1.msra.mxu0 %v1132
        %1163 = vmatprep.subr.mxu0 0.0
        %1164 = vmatpush1.msra.mxu0 %v1131
        %1165 = vmatprep.subr.mxu0 0.0
        %1166 = vmatpush1.msra.mxu0 %v1130
        %1167 = vmatprep.subr.mxu0 0.0
        %1168 = vmatpush1.msra.mxu0 %v1129
        %1169 = vmatprep.subr.mxu0 0.0
        %1170 = vmatpush2.msra.mxu0 0.0
        %1171 = vmatprep.subr.mxu0 0.0
        %1172 = vmatpush2.msra.mxu0 0.0
        %1173 = vmatprep.subr.mxu0 0.0
        %1174 = vmatpush2.msra.mxu0 0.0
        %1175 = vmatprep.subr.mxu0 0.0
        %1176 = vmatpush2.msra.mxu0 0.0
        %1177 = vmatprep.subr.mxu0 0.0
        %1178 = vmatpush2.msra.mxu0 0.0
        %1179 = vmatprep.subr.mxu0 0.0
        %1180 = vmatpush2.msra.mxu0 0.0
        %1181 = vmatprep.subr.mxu0 0.0
        %1182 = vmatpush2.msra.mxu0 0.0
        %1183 = vmatprep.subr.mxu0 0.0
        %1184 = vmatpush2.msra.mxu0 0.0
        %1185 = vmatprep.subr.mxu0 0.0
        %1186 = vmatpush2.msra.mxu0 0.0
        %1187 = vmatprep.subr.mxu0 0.0
        %1188 = vmatpush2.msra.mxu0 0.0
        %1189 = vmatprep.subr.mxu0 0.0
        %1190 = vmatpush2.msra.mxu0 0.0
        %1191 = vmatprep.subr.mxu0 0.0
        %1192 = vmatpush2.msra.mxu0 0.0
        %1193 = vmatprep.subr.mxu0 0.0
        %1194 = vmatpush2.msra.mxu0 0.0
        %1195 = vmatprep.subr.mxu0 0.0
        %1196 = vmatpush2.msra.mxu0 0.0
        %1197 = vmatprep.subr.mxu0 0.0
        %1198 = vmatpush2.msra.mxu0 0.0
        %1199 = vmatprep.subr.mxu0 0.0
        %1200 = vmatpush2.msra.mxu0 0.0
        %1201 = vmatprep.mubr.f32.mxu0 0.0
        %1202 = vmatmul.mubr.f32.gmra.mxu0 %v817
        %v1203 = vpop.f32.mrf.mxu0
        %v1204 = vadd.f32 0.0, %v1203
        %v1205 = vpop.f32.mrf.mxu0
        %1206 = vmatprep.mubr.f32.mxu0 0.0
        %1207 = vmatmul.mubr.f32.gmra.mxu0 %v820
        %v1208 = vpop.f32.mrf.mxu0
        %v1209 = vadd.f32 0.0, %v1208
        %v1210 = vpop.f32.mrf.mxu0
        %1211 = vdwg.mxu0
        %v1212 = vld [vmem:[%s3 + $0x10] sm:$0xff]
        %v1214 = vsel %vm982, %v1212, 0
        %1216 = vmatprep.subr.mxu0 0.0
        %1217 = vmatpush1.msra.mxu0 0.0
        %1218 = vmatprep.subr.mxu0 0.0
        %1219 = vmatpush1.msra.mxu0 0.0
        %1220 = vmatprep.subr.mxu0 0.0
        %1221 = vmatpush1.msra.mxu0 0.0
        %1222 = vmatprep.subr.mxu0 0.0
        %1223 = vmatpush1.msra.mxu0 0.0
        %1224 = vmatprep.subr.mxu0 0.0
        %1225 = vmatpush1.msra.mxu0 0.0
        %1226 = vmatprep.subr.mxu0 0.0
        %1227 = vmatpush1.msra.mxu0 0.0
        %1228 = vmatprep.subr.mxu0 0.0
        %1229 = vmatpush1.msra.mxu0 0.0
        %1230 = vmatprep.subr.mxu0 0.0
        %1231 = vmatpush1.msra.mxu0 0.0
        %1232 = vmatprep.subr.mxu0 0.0
        %1233 = vmatpush1.msra.mxu0 0.0
        %1234 = vmatprep.subr.mxu0 0.0
        %1235 = vmatpush1.msra.mxu0 0.0
        %1236 = vmatprep.subr.mxu0 0.0
        %1237 = vmatpush1.msra.mxu0 0.0
        %1238 = vmatprep.subr.mxu0 0.0
        %1239 = vmatpush1.msra.mxu0 0.0
        %1240 = vmatprep.subr.mxu0 0.0
        %1241 = vmatpush1.msra.mxu0 0.0
        %1242 = vmatprep.subr.mxu0 0.0
        %1243 = vmatpush1.msra.mxu0 0.0
        %1244 = vmatprep.subr.mxu0 0.0
        %1245 = vmatpush1.msra.mxu0 %v1209
        %1246 = vmatprep.subr.mxu0 0.0
        %1247 = vmatpush1.msra.mxu0 %v1204
        %1248 = vmatprep.subr.mxu0 0.0
        %1249 = vmatpush2.msra.mxu0 0.0
        %1250 = vmatprep.subr.mxu0 0.0
        %1251 = vmatpush2.msra.mxu0 0.0
        %1252 = vmatprep.subr.mxu0 0.0
        %1253 = vmatpush2.msra.mxu0 0.0
        %1254 = vmatprep.subr.mxu0 0.0
        %1255 = vmatpush2.msra.mxu0 0.0
        %1256 = vmatprep.subr.mxu0 0.0
        %1257 = vmatpush2.msra.mxu0 0.0
        %1258 = vmatprep.subr.mxu0 0.0
        %1259 = vmatpush2.msra.mxu0 0.0
        %1260 = vmatprep.subr.mxu0 0.0
        %1261 = vmatpush2.msra.mxu0 0.0
        %1262 = vmatprep.subr.mxu0 0.0
        %1263 = vmatpush2.msra.mxu0 0.0
        %1264 = vmatprep.subr.mxu0 0.0
        %1265 = vmatpush2.msra.mxu0 0.0
        %1266 = vmatprep.subr.mxu0 0.0
        %1267 = vmatpush2.msra.mxu0 0.0
        %1268 = vmatprep.subr.mxu0 0.0
        %1269 = vmatpush2.msra.mxu0 0.0
        %1270 = vmatprep.subr.mxu0 0.0
        %1271 = vmatpush2.msra.mxu0 0.0
        %1272 = vmatprep.subr.mxu0 0.0
        %1273 = vmatpush2.msra.mxu0 0.0
        %1274 = vmatprep.subr.mxu0 0.0
        %1275 = vmatpush2.msra.mxu0 0.0
        %1276 = vmatprep.subr.mxu0 0.0
        %1277 = vmatpush2.msra.mxu0 0.0
        %1278 = vmatprep.subr.mxu0 0.0
        %1279 = vmatpush2.msra.mxu0 0.0
        %1280 = vmatprep.mubr.f32.mxu0 0.0
        %1281 = vmatmul.mubr.f32.gmra.mxu0 %v1214
        %v1282 = vpop.f32.mrf.mxu0
        %v1283 = vadd.f32 0.0, %v1282
        %v1284 = vpop.f32.mrf.mxu0
        %1285 = vdwg.mxu0
        %v1286 = vadd.f32 %v1126, %v1283
        %v1287 = vld [vmem:[%s5 + $0xc0] sm:$0xff]
        %v1288 = vld [vmem:[%s5 + $0xc8] sm:$0xff]
        %v1289 = vld [vmem:[%s5 + $0xd0] sm:$0xff]
        %v1290 = vld [vmem:[%s5 + $0xd8] sm:$0xff]
        %v1291 = vld [vmem:[%s5 + $0xe0] sm:$0xff]
        %v1292 = vld [vmem:[%s5 + $0xe8] sm:$0xff]
        %v1293 = vld [vmem:[%s5 + $0xf0] sm:$0xff]
        %v1294 = vld [vmem:[%s5 + $0xf8] sm:$0xff]
        %1295 = vmatprep.subr.mxu0 0.0
        %1296 = vmatpush1.msra.mxu0 0.0
        %1297 = vmatprep.subr.mxu0 0.0
        %1298 = vmatpush1.msra.mxu0 0.0
        %1299 = vmatprep.subr.mxu0 0.0
        %1300 = vmatpush1.msra.mxu0 0.0
        %1301 = vmatprep.subr.mxu0 0.0
        %1302 = vmatpush1.msra.mxu0 0.0
        %1303 = vmatprep.subr.mxu0 0.0
        %1304 = vmatpush1.msra.mxu0 0.0
        %1305 = vmatprep.subr.mxu0 0.0
        %1306 = vmatpush1.msra.mxu0 0.0
        %1307 = vmatprep.subr.mxu0 0.0
        %1308 = vmatpush1.msra.mxu0 0.0
        %1309 = vmatprep.subr.mxu0 0.0
        %1310 = vmatpush1.msra.mxu0 0.0
        %1311 = vmatprep.subr.mxu0 0.0
        %1312 = vmatpush1.msra.mxu0 %v1294
        %1313 = vmatprep.subr.mxu0 0.0
        %1314 = vmatpush1.msra.mxu0 %v1293
        %1315 = vmatprep.subr.mxu0 0.0
        %1316 = vmatpush1.msra.mxu0 %v1292
        %1317 = vmatprep.subr.mxu0 0.0
        %1318 = vmatpush1.msra.mxu0 %v1291
        %1319 = vmatprep.subr.mxu0 0.0
        %1320 = vmatpush1.msra.mxu0 %v1290
        %1321 = vmatprep.subr.mxu0 0.0
        %1322 = vmatpush1.msra.mxu0 %v1289
        %1323 = vmatprep.subr.mxu0 0.0
        %1324 = vmatpush1.msra.mxu0 %v1288
        %1325 = vmatprep.subr.mxu0 0.0
        %1326 = vmatpush1.msra.mxu0 %v1287
        %1327 = vmatprep.subr.mxu0 0.0
        %1328 = vmatpush2.msra.mxu0 0.0
        %1329 = vmatprep.subr.mxu0 0.0
        %1330 = vmatpush2.msra.mxu0 0.0
        %1331 = vmatprep.subr.mxu0 0.0
        %1332 = vmatpush2.msra.mxu0 0.0
        %1333 = vmatprep.subr.mxu0 0.0
        %1334 = vmatpush2.msra.mxu0 0.0
        %1335 = vmatprep.subr.mxu0 0.0
        %1336 = vmatpush2.msra.mxu0 0.0
        %1337 = vmatprep.subr.mxu0 0.0
        %1338 = vmatpush2.msra.mxu0 0.0
        %1339 = vmatprep.subr.mxu0 0.0
        %1340 = vmatpush2.msra.mxu0 0.0
        %1341 = vmatprep.subr.mxu0 0.0
        %1342 = vmatpush2.msra.mxu0 0.0
        %1343 = vmatprep.subr.mxu0 0.0
        %1344 = vmatpush2.msra.mxu0 0.0
        %1345 = vmatprep.subr.mxu0 0.0
        %1346 = vmatpush2.msra.mxu0 0.0
        %1347 = vmatprep.subr.mxu0 0.0
        %1348 = vmatpush2.msra.mxu0 0.0
        %1349 = vmatprep.subr.mxu0 0.0
        %1350 = vmatpush2.msra.mxu0 0.0
        %1351 = vmatprep.subr.mxu0 0.0
        %1352 = vmatpush2.msra.mxu0 0.0
        %1353 = vmatprep.subr.mxu0 0.0
        %1354 = vmatpush2.msra.mxu0 0.0
        %1355 = vmatprep.subr.mxu0 0.0
        %1356 = vmatpush2.msra.mxu0 0.0
        %1357 = vmatprep.subr.mxu0 0.0
        %1358 = vmatpush2.msra.mxu0 0.0
        %1359 = vmatprep.mubr.f32.mxu0 0.0
        %1360 = vmatmul.mubr.f32.gmra.mxu0 %v817
        %v1361 = vpop.f32.mrf.mxu0
        %v1362 = vadd.f32 0.0, %v1361
        %v1363 = vpop.f32.mrf.mxu0
        %1364 = vmatprep.mubr.f32.mxu0 0.0
        %1365 = vmatmul.mubr.f32.gmra.mxu0 %v820
        %v1366 = vpop.f32.mrf.mxu0
        %v1367 = vadd.f32 0.0, %v1366
        %v1368 = vpop.f32.mrf.mxu0
        %1369 = vdwg.mxu0
        %v1370 = vld [vmem:[%s3 + $0x18] sm:$0xff]
        %v1372 = vsel %vm982, %v1370, 0
        %1374 = vmatprep.subr.mxu0 0.0
        %1375 = vmatpush1.msra.mxu0 0.0
        %1376 = vmatprep.subr.mxu0 0.0
        %1377 = vmatpush1.msra.mxu0 0.0
        %1378 = vmatprep.subr.mxu0 0.0
        %1379 = vmatpush1.msra.mxu0 0.0
        %1380 = vmatprep.subr.mxu0 0.0
        %1381 = vmatpush1.msra.mxu0 0.0
        %1382 = vmatprep.subr.mxu0 0.0
        %1383 = vmatpush1.msra.mxu0 0.0
        %1384 = vmatprep.subr.mxu0 0.0
        %1385 = vmatpush1.msra.mxu0 0.0
        %1386 = vmatprep.subr.mxu0 0.0
        %1387 = vmatpush1.msra.mxu0 0.0
        %1388 = vmatprep.subr.mxu0 0.0
        %1389 = vmatpush1.msra.mxu0 0.0
        %1390 = vmatprep.subr.mxu0 0.0
        %1391 = vmatpush1.msra.mxu0 0.0
        %1392 = vmatprep.subr.mxu0 0.0
        %1393 = vmatpush1.msra.mxu0 0.0
        %1394 = vmatprep.subr.mxu0 0.0
        %1395 = vmatpush1.msra.mxu0 0.0
        %1396 = vmatprep.subr.mxu0 0.0
        %1397 = vmatpush1.msra.mxu0 0.0
        %1398 = vmatprep.subr.mxu0 0.0
        %1399 = vmatpush1.msra.mxu0 0.0
        %1400 = vmatprep.subr.mxu0 0.0
        %1401 = vmatpush1.msra.mxu0 0.0
        %1402 = vmatprep.subr.mxu0 0.0
        %1403 = vmatpush1.msra.mxu0 %v1367
        %1404 = vmatprep.subr.mxu0 0.0
        %1405 = vmatpush1.msra.mxu0 %v1362
        %1406 = vmatprep.subr.mxu0 0.0
        %1407 = vmatpush2.msra.mxu0 0.0
        %1408 = vmatprep.subr.mxu0 0.0
        %1409 = vmatpush2.msra.mxu0 0.0
        %1410 = vmatprep.subr.mxu0 0.0
        %1411 = vmatpush2.msra.mxu0 0.0
        %1412 = vmatprep.subr.mxu0 0.0
        %1413 = vmatpush2.msra.mxu0 0.0
        %1414 = vmatprep.subr.mxu0 0.0
        %1415 = vmatpush2.msra.mxu0 0.0
        %1416 = vmatprep.subr.mxu0 0.0
        %1417 = vmatpush2.msra.mxu0 0.0
        %1418 = vmatprep.subr.mxu0 0.0
        %1419 = vmatpush2.msra.mxu0 0.0
        %1420 = vmatprep.subr.mxu0 0.0
        %1421 = vmatpush2.msra.mxu0 0.0
        %1422 = vmatprep.subr.mxu0 0.0
        %1423 = vmatpush2.msra.mxu0 0.0
        %1424 = vmatprep.subr.mxu0 0.0
        %1425 = vmatpush2.msra.mxu0 0.0
        %1426 = vmatprep.subr.mxu0 0.0
        %1427 = vmatpush2.msra.mxu0 0.0
        %1428 = vmatprep.subr.mxu0 0.0
        %1429 = vmatpush2.msra.mxu0 0.0
        %1430 = vmatprep.subr.mxu0 0.0
        %1431 = vmatpush2.msra.mxu0 0.0
        %1432 = vmatprep.subr.mxu0 0.0
        %1433 = vmatpush2.msra.mxu0 0.0
        %1434 = vmatprep.subr.mxu0 0.0
        %1435 = vmatpush2.msra.mxu0 0.0
        %1436 = vmatprep.subr.mxu0 0.0
        %1437 = vmatpush2.msra.mxu0 0.0
        %1438 = vmatprep.mubr.f32.mxu0 0.0
        %1439 = vmatmul.mubr.f32.gmra.mxu0 %v1372
        %v1440 = vpop.f32.mrf.mxu0
        %v1441 = vadd.f32 0.0, %v1440
        %v1442 = vpop.f32.mrf.mxu0
        %1443 = vdwg.mxu0
        %v1444 = vadd.f32 %v1286, %v1441
        %v1445 = vld [vmem:[%s3 + $0x20] sm:$0xff]
        %v1447 = vsel %vm982, %v1445, 0
        %1449 = vmatprep.subr.mxu0 0.0
        %1450 = vmatpush1.msra.mxu0 0.0
        %1451 = vmatprep.subr.mxu0 0.0
        %1452 = vmatpush1.msra.mxu0 0.0
        %1453 = vmatprep.subr.mxu0 0.0
        %1454 = vmatpush1.msra.mxu0 0.0
        %1455 = vmatprep.subr.mxu0 0.0
        %1456 = vmatpush1.msra.mxu0 0.0
        %1457 = vmatprep.subr.mxu0 0.0
        %1458 = vmatpush1.msra.mxu0 0.0
        %1459 = vmatprep.subr.mxu0 0.0
        %1460 = vmatpush1.msra.mxu0 0.0
        %1461 = vmatprep.subr.mxu0 0.0
        %1462 = vmatpush1.msra.mxu0 0.0
        %1463 = vmatprep.subr.mxu0 0.0
        %1464 = vmatpush1.msra.mxu0 0.0
        %1465 = vmatprep.subr.mxu0 0.0
        %1466 = vmatpush1.msra.mxu0 0.0
        %1467 = vmatprep.subr.mxu0 0.0
        %1468 = vmatpush1.msra.mxu0 0.0
        %1469 = vmatprep.subr.mxu0 0.0
        %1470 = vmatpush1.msra.mxu0 0.0
        %1471 = vmatprep.subr.mxu0 0.0
        %1472 = vmatpush1.msra.mxu0 0.0
        %1473 = vmatprep.subr.mxu0 0.0
        %1474 = vmatpush1.msra.mxu0 0.0
        %1475 = vmatprep.subr.mxu0 0.0
        %1476 = vmatpush1.msra.mxu0 0.0
        %1477 = vmatprep.subr.mxu0 0.0
        %1478 = vmatpush1.msra.mxu0 %v806
        %1479 = vmatprep.subr.mxu0 0.0
        %1480 = vmatpush1.msra.mxu0 %v805
        %1481 = vmatprep.subr.mxu0 0.0
        %1482 = vmatpush2.msra.mxu0 0.0
        %1483 = vmatprep.subr.mxu0 0.0
        %1484 = vmatpush2.msra.mxu0 0.0
        %1485 = vmatprep.subr.mxu0 0.0
        %1486 = vmatpush2.msra.mxu0 0.0
        %1487 = vmatprep.subr.mxu0 0.0
        %1488 = vmatpush2.msra.mxu0 0.0
        %1489 = vmatprep.subr.mxu0 0.0
        %1490 = vmatpush2.msra.mxu0 0.0
        %1491 = vmatprep.subr.mxu0 0.0
        %1492 = vmatpush2.msra.mxu0 0.0
        %1493 = vmatprep.subr.mxu0 0.0
        %1494 = vmatpush2.msra.mxu0 0.0
        %1495 = vmatprep.subr.mxu0 0.0
        %1496 = vmatpush2.msra.mxu0 0.0
        %1497 = vmatprep.subr.mxu0 0.0
        %1498 = vmatpush2.msra.mxu0 0.0
        %1499 = vmatprep.subr.mxu0 0.0
        %1500 = vmatpush2.msra.mxu0 0.0
        %1501 = vmatprep.subr.mxu0 0.0
        %1502 = vmatpush2.msra.mxu0 0.0
        %1503 = vmatprep.subr.mxu0 0.0
        %1504 = vmatpush2.msra.mxu0 0.0
        %1505 = vmatprep.subr.mxu0 0.0
        %1506 = vmatpush2.msra.mxu0 0.0
        %1507 = vmatprep.subr.mxu0 0.0
        %1508 = vmatpush2.msra.mxu0 0.0
        %1509 = vmatprep.subr.mxu0 0.0
        %1510 = vmatpush2.msra.mxu0 0.0
        %1511 = vmatprep.subr.mxu0 0.0
        %1512 = vmatpush2.msra.mxu0 0.0
        %1513 = vmatprep.mubr.f32.mxu0 0.0
        %1514 = vmatmul.mubr.f32.gmra.mxu0 %v1447
        %v1515 = vpop.f32.mrf.mxu0
        %v1516 = vadd.f32 0.0, %v1515
        %v1517 = vpop.f32.mrf.mxu0
        %1518 = vdwg.mxu0
        %v1519 = vadd.f32 %v1444, %v1516
        %v1520 = vld [vmem:[%s5 + $0x140] sm:$0xff]
        %v1521 = vld [vmem:[%s5 + $0x148] sm:$0xff]
        %v1522 = vld [vmem:[%s5 + $0x150] sm:$0xff]
        %v1523 = vld [vmem:[%s5 + $0x158] sm:$0xff]
        %v1524 = vld [vmem:[%s5 + $0x160] sm:$0xff]
        %v1525 = vld [vmem:[%s5 + $0x168] sm:$0xff]
        %v1526 = vld [vmem:[%s5 + $0x170] sm:$0xff]
        %v1527 = vld [vmem:[%s5 + $0x178] sm:$0xff]
        %1528 = vmatprep.subr.mxu0 0.0
        %1529 = vmatpush1.msra.mxu0 0.0
        %1530 = vmatprep.subr.mxu0 0.0
        %1531 = vmatpush1.msra.mxu0 0.0
        %1532 = vmatprep.subr.mxu0 0.0
        %1533 = vmatpush1.msra.mxu0 0.0
        %1534 = vmatprep.subr.mxu0 0.0
        %1535 = vmatpush1.msra.mxu0 0.0
        %1536 = vmatprep.subr.mxu0 0.0
        %1537 = vmatpush1.msra.mxu0 0.0
        %1538 = vmatprep.subr.mxu0 0.0
        %1539 = vmatpush1.msra.mxu0 0.0
        %1540 = vmatprep.subr.mxu0 0.0
        %1541 = vmatpush1.msra.mxu0 0.0
        %1542 = vmatprep.subr.mxu0 0.0
        %1543 = vmatpush1.msra.mxu0 0.0
        %1544 = vmatprep.subr.mxu0 0.0
        %1545 = vmatpush1.msra.mxu0 %v1527
        %1546 = vmatprep.subr.mxu0 0.0
        %1547 = vmatpush1.msra.mxu0 %v1526
        %1548 = vmatprep.subr.mxu0 0.0
        %1549 = vmatpush1.msra.mxu0 %v1525
        %1550 = vmatprep.subr.mxu0 0.0
        %1551 = vmatpush1.msra.mxu0 %v1524
        %1552 = vmatprep.subr.mxu0 0.0
        %1553 = vmatpush1.msra.mxu0 %v1523
        %1554 = vmatprep.subr.mxu0 0.0
        %1555 = vmatpush1.msra.mxu0 %v1522
        %1556 = vmatprep.subr.mxu0 0.0
        %1557 = vmatpush1.msra.mxu0 %v1521
        %1558 = vmatprep.subr.mxu0 0.0
        %1559 = vmatpush1.msra.mxu0 %v1520
        %1560 = vmatprep.subr.mxu0 0.0
        %1561 = vmatpush2.msra.mxu0 0.0
        %1562 = vmatprep.subr.mxu0 0.0
        %1563 = vmatpush2.msra.mxu0 0.0
        %1564 = vmatprep.subr.mxu0 0.0
        %1565 = vmatpush2.msra.mxu0 0.0
        %1566 = vmatprep.subr.mxu0 0.0
        %1567 = vmatpush2.msra.mxu0 0.0
        %1568 = vmatprep.subr.mxu0 0.0
        %1569 = vmatpush2.msra.mxu0 0.0
        %1570 = vmatprep.subr.mxu0 0.0
        %1571 = vmatpush2.msra.mxu0 0.0
        %1572 = vmatprep.subr.mxu0 0.0
        %1573 = vmatpush2.msra.mxu0 0.0
        %1574 = vmatprep.subr.mxu0 0.0
        %1575 = vmatpush2.msra.mxu0 0.0
        %1576 = vmatprep.subr.mxu0 0.0
        %1577 = vmatpush2.msra.mxu0 0.0
        %1578 = vmatprep.subr.mxu0 0.0
        %1579 = vmatpush2.msra.mxu0 0.0
        %1580 = vmatprep.subr.mxu0 0.0
        %1581 = vmatpush2.msra.mxu0 0.0
        %1582 = vmatprep.subr.mxu0 0.0
        %1583 = vmatpush2.msra.mxu0 0.0
        %1584 = vmatprep.subr.mxu0 0.0
        %1585 = vmatpush2.msra.mxu0 0.0
        %1586 = vmatprep.subr.mxu0 0.0
        %1587 = vmatpush2.msra.mxu0 0.0
        %1588 = vmatprep.subr.mxu0 0.0
        %1589 = vmatpush2.msra.mxu0 0.0
        %1590 = vmatprep.subr.mxu0 0.0
        %1591 = vmatpush2.msra.mxu0 0.0
        %1592 = vmatprep.mubr.f32.mxu0 0.0
        %1593 = vmatmul.mubr.f32.gmra.mxu0 %v817
        %v1594 = vpop.f32.mrf.mxu0
        %v1595 = vadd.f32 0.0, %v1594
        %v1596 = vpop.f32.mrf.mxu0
        %1597 = vmatprep.mubr.f32.mxu0 0.0
        %1598 = vmatmul.mubr.f32.gmra.mxu0 %v820
        %v1599 = vpop.f32.mrf.mxu0
        %v1600 = vadd.f32 0.0, %v1599
        %v1601 = vpop.f32.mrf.mxu0
        %1602 = vdwg.mxu0
        %v1603 = vld [vmem:[%s3 + $0x28] sm:$0xff]
        %v1605 = vsel %vm982, %v1603, 0
        %1607 = vmatprep.subr.mxu0 0.0
        %1608 = vmatpush1.msra.mxu0 0.0
        %1609 = vmatprep.subr.mxu0 0.0
        %1610 = vmatpush1.msra.mxu0 0.0
        %1611 = vmatprep.subr.mxu0 0.0
        %1612 = vmatpush1.msra.mxu0 0.0
        %1613 = vmatprep.subr.mxu0 0.0
        %1614 = vmatpush1.msra.mxu0 0.0
        %1615 = vmatprep.subr.mxu0 0.0
        %1616 = vmatpush1.msra.mxu0 0.0
        %1617 = vmatprep.subr.mxu0 0.0
        %1618 = vmatpush1.msra.mxu0 0.0
        %1619 = vmatprep.subr.mxu0 0.0
        %1620 = vmatpush1.msra.mxu0 0.0
        %1621 = vmatprep.subr.mxu0 0.0
        %1622 = vmatpush1.msra.mxu0 0.0
        %1623 = vmatprep.subr.mxu0 0.0
        %1624 = vmatpush1.msra.mxu0 0.0
        %1625 = vmatprep.subr.mxu0 0.0
        %1626 = vmatpush1.msra.mxu0 0.0
        %1627 = vmatprep.subr.mxu0 0.0
        %1628 = vmatpush1.msra.mxu0 0.0
        %1629 = vmatprep.subr.mxu0 0.0
        %1630 = vmatpush1.msra.mxu0 0.0
        %1631 = vmatprep.subr.mxu0 0.0
        %1632 = vmatpush1.msra.mxu0 0.0
        %1633 = vmatprep.subr.mxu0 0.0
        %1634 = vmatpush1.msra.mxu0 0.0
        %1635 = vmatprep.subr.mxu0 0.0
        %1636 = vmatpush1.msra.mxu0 %v1600
        %1637 = vmatprep.subr.mxu0 0.0
        %1638 = vmatpush1.msra.mxu0 %v1595
        %1639 = vmatprep.subr.mxu0 0.0
        %1640 = vmatpush2.msra.mxu0 0.0
        %1641 = vmatprep.subr.mxu0 0.0
        %1642 = vmatpush2.msra.mxu0 0.0
        %1643 = vmatprep.subr.mxu0 0.0
        %1644 = vmatpush2.msra.mxu0 0.0
        %1645 = vmatprep.subr.mxu0 0.0
        %1646 = vmatpush2.msra.mxu0 0.0
        %1647 = vmatprep.subr.mxu0 0.0
        %1648 = vmatpush2.msra.mxu0 0.0
        %1649 = vmatprep.subr.mxu0 0.0
        %1650 = vmatpush2.msra.mxu0 0.0
        %1651 = vmatprep.subr.mxu0 0.0
        %1652 = vmatpush2.msra.mxu0 0.0
        %1653 = vmatprep.subr.mxu0 0.0
        %1654 = vmatpush2.msra.mxu0 0.0
        %1655 = vmatprep.subr.mxu0 0.0
        %1656 = vmatpush2.msra.mxu0 0.0
        %1657 = vmatprep.subr.mxu0 0.0
        %1658 = vmatpush2.msra.mxu0 0.0
        %1659 = vmatprep.subr.mxu0 0.0
        %1660 = vmatpush2.msra.mxu0 0.0
        %1661 = vmatprep.subr.mxu0 0.0
        %1662 = vmatpush2.msra.mxu0 0.0
        %1663 = vmatprep.subr.mxu0 0.0
        %1664 = vmatpush2.msra.mxu0 0.0
        %1665 = vmatprep.subr.mxu0 0.0
        %1666 = vmatpush2.msra.mxu0 0.0
        %1667 = vmatprep.subr.mxu0 0.0
        %1668 = vmatpush2.msra.mxu0 0.0
        %1669 = vmatprep.subr.mxu0 0.0
        %1670 = vmatpush2.msra.mxu0 0.0
        %1671 = vmatprep.mubr.f32.mxu0 0.0
        %1672 = vmatmul.mubr.f32.gmra.mxu0 %v1605
        %v1673 = vpop.f32.mrf.mxu0
        %v1674 = vadd.f32 0.0, %v1673
        %v1675 = vpop.f32.mrf.mxu0
        %1676 = vdwg.mxu0
        %v1677 = vadd.f32 %v1519, %v1674
        %v1678 = vld [vmem:[%s5 + $0x180] sm:$0xff]
        %v1679 = vld [vmem:[%s5 + $0x188] sm:$0xff]
        %v1680 = vld [vmem:[%s5 + $0x190] sm:$0xff]
        %v1681 = vld [vmem:[%s5 + $0x198] sm:$0xff]
        %v1682 = vld [vmem:[%s5 + $0x1a0] sm:$0xff]
        %v1683 = vld [vmem:[%s5 + $0x1a8] sm:$0xff]
        %v1684 = vld [vmem:[%s5 + $0x1b0] sm:$0xff]
        %v1685 = vld [vmem:[%s5 + $0x1b8] sm:$0xff]
        %1686 = vmatprep.subr.mxu0 0.0
        %1687 = vmatpush1.msra.mxu0 0.0
        %1688 = vmatprep.subr.mxu0 0.0
        %1689 = vmatpush1.msra.mxu0 0.0
        %1690 = vmatprep.subr.mxu0 0.0
        %1691 = vmatpush1.msra.mxu0 0.0
        %1692 = vmatprep.subr.mxu0 0.0
        %1693 = vmatpush1.msra.mxu0 0.0
        %1694 = vmatprep.subr.mxu0 0.0
        %1695 = vmatpush1.msra.mxu0 0.0
        %1696 = vmatprep.subr.mxu0 0.0
        %1697 = vmatpush1.msra.mxu0 0.0
        %1698 = vmatprep.subr.mxu0 0.0
        %1699 = vmatpush1.msra.mxu0 0.0
        %1700 = vmatprep.subr.mxu0 0.0
        %1701 = vmatpush1.msra.mxu0 0.0
        %1702 = vmatprep.subr.mxu0 0.0
        %1703 = vmatpush1.msra.mxu0 %v1685
        %1704 = vmatprep.subr.mxu0 0.0
        %1705 = vmatpush1.msra.mxu0 %v1684
        %1706 = vmatprep.subr.mxu0 0.0
        %1707 = vmatpush1.msra.mxu0 %v1683
        %1708 = vmatprep.subr.mxu0 0.0
        %1709 = vmatpush1.msra.mxu0 %v1682
        %1710 = vmatprep.subr.mxu0 0.0
        %1711 = vmatpush1.msra.mxu0 %v1681
        %1712 = vmatprep.subr.mxu0 0.0
        %1713 = vmatpush1.msra.mxu0 %v1680
        %1714 = vmatprep.subr.mxu0 0.0
        %1715 = vmatpush1.msra.mxu0 %v1679
        %1716 = vmatprep.subr.mxu0 0.0
        %1717 = vmatpush1.msra.mxu0 %v1678
        %1718 = vmatprep.subr.mxu0 0.0
        %1719 = vmatpush2.msra.mxu0 0.0
        %1720 = vmatprep.subr.mxu0 0.0
        %1721 = vmatpush2.msra.mxu0 0.0
        %1722 = vmatprep.subr.mxu0 0.0
        %1723 = vmatpush2.msra.mxu0 0.0
        %1724 = vmatprep.subr.mxu0 0.0
        %1725 = vmatpush2.msra.mxu0 0.0
        %1726 = vmatprep.subr.mxu0 0.0
        %1727 = vmatpush2.msra.mxu0 0.0
        %1728 = vmatprep.subr.mxu0 0.0
        %1729 = vmatpush2.msra.mxu0 0.0
        %1730 = vmatprep.subr.mxu0 0.0
        %1731 = vmatpush2.msra.mxu0 0.0
        %1732 = vmatprep.subr.mxu0 0.0
        %1733 = vmatpush2.msra.mxu0 0.0
        %1734 = vmatprep.subr.mxu0 0.0
        %1735 = vmatpush2.msra.mxu0 0.0
        %1736 = vmatprep.subr.mxu0 0.0
        %1737 = vmatpush2.msra.mxu0 0.0
        %1738 = vmatprep.subr.mxu0 0.0
        %1739 = vmatpush2.msra.mxu0 0.0
        %1740 = vmatprep.subr.mxu0 0.0
        %1741 = vmatpush2.msra.mxu0 0.0
        %1742 = vmatprep.subr.mxu0 0.0
        %1743 = vmatpush2.msra.mxu0 0.0
        %1744 = vmatprep.subr.mxu0 0.0
        %1745 = vmatpush2.msra.mxu0 0.0
        %1746 = vmatprep.subr.mxu0 0.0
        %1747 = vmatpush2.msra.mxu0 0.0
        %1748 = vmatprep.subr.mxu0 0.0
        %1749 = vmatpush2.msra.mxu0 0.0
        %1750 = vmatprep.mubr.f32.mxu0 0.0
        %1751 = vmatmul.mubr.f32.gmra.mxu0 %v817
        %v1752 = vpop.f32.mrf.mxu0
        %v1753 = vadd.f32 0.0, %v1752
        %v1754 = vpop.f32.mrf.mxu0
        %1755 = vmatprep.mubr.f32.mxu0 0.0
        %1756 = vmatmul.mubr.f32.gmra.mxu0 %v820
        %v1757 = vpop.f32.mrf.mxu0
        %v1758 = vadd.f32 0.0, %v1757
        %v1759 = vpop.f32.mrf.mxu0
        %1760 = vdwg.mxu0
        %v1761 = vld [vmem:[%s3 + $0x30] sm:$0xff]
        %v1763 = vsel %vm982, %v1761, 0
        %1765 = vmatprep.subr.mxu0 0.0
        %1766 = vmatpush1.msra.mxu0 0.0
        %1767 = vmatprep.subr.mxu0 0.0
        %1768 = vmatpush1.msra.mxu0 0.0
        %1769 = vmatprep.subr.mxu0 0.0
        %1770 = vmatpush1.msra.mxu0 0.0
        %1771 = vmatprep.subr.mxu0 0.0
        %1772 = vmatpush1.msra.mxu0 0.0
        %1773 = vmatprep.subr.mxu0 0.0
        %1774 = vmatpush1.msra.mxu0 0.0
        %1775 = vmatprep.subr.mxu0 0.0
        %1776 = vmatpush1.msra.mxu0 0.0
        %1777 = vmatprep.subr.mxu0 0.0
        %1778 = vmatpush1.msra.mxu0 0.0
        %1779 = vmatprep.subr.mxu0 0.0
        %1780 = vmatpush1.msra.mxu0 0.0
        %1781 = vmatprep.subr.mxu0 0.0
        %1782 = vmatpush1.msra.mxu0 0.0
        %1783 = vmatprep.subr.mxu0 0.0
        %1784 = vmatpush1.msra.mxu0 0.0
        %1785 = vmatprep.subr.mxu0 0.0
        %1786 = vmatpush1.msra.mxu0 0.0
        %1787 = vmatprep.subr.mxu0 0.0
        %1788 = vmatpush1.msra.mxu0 0.0
        %1789 = vmatprep.subr.mxu0 0.0
        %1790 = vmatpush1.msra.mxu0 0.0
        %1791 = vmatprep.subr.mxu0 0.0
        %1792 = vmatpush1.msra.mxu0 0.0
        %1793 = vmatprep.subr.mxu0 0.0
        %1794 = vmatpush1.msra.mxu0 %v1758
        %1795 = vmatprep.subr.mxu0 0.0
        %1796 = vmatpush1.msra.mxu0 %v1753
        %1797 = vmatprep.subr.mxu0 0.0
        %1798 = vmatpush2.msra.mxu0 0.0
        %1799 = vmatprep.subr.mxu0 0.0
        %1800 = vmatpush2.msra.mxu0 0.0
        %1801 = vmatprep.subr.mxu0 0.0
        %1802 = vmatpush2.msra.mxu0 0.0
        %1803 = vmatprep.subr.mxu0 0.0
        %1804 = vmatpush2.msra.mxu0 0.0
        %1805 = vmatprep.subr.mxu0 0.0
        %1806 = vmatpush2.msra.mxu0 0.0
        %1807 = vmatprep.subr.mxu0 0.0
        %1808 = vmatpush2.msra.mxu0 0.0
        %1809 = vmatprep.subr.mxu0 0.0
        %1810 = vmatpush2.msra.mxu0 0.0
        %1811 = vmatprep.subr.mxu0 0.0
        %1812 = vmatpush2.msra.mxu0 0.0
        %1813 = vmatprep.subr.mxu0 0.0
        %1814 = vmatpush2.msra.mxu0 0.0
        %1815 = vmatprep.subr.mxu0 0.0
        %1816 = vmatpush2.msra.mxu0 0.0
        %1817 = vmatprep.subr.mxu0 0.0
        %1818 = vmatpush2.msra.mxu0 0.0
        %1819 = vmatprep.subr.mxu0 0.0
        %1820 = vmatpush2.msra.mxu0 0.0
        %1821 = vmatprep.subr.mxu0 0.0
        %1822 = vmatpush2.msra.mxu0 0.0
        %1823 = vmatprep.subr.mxu0 0.0
        %1824 = vmatpush2.msra.mxu0 0.0
        %1825 = vmatprep.subr.mxu0 0.0
        %1826 = vmatpush2.msra.mxu0 0.0
        %1827 = vmatprep.subr.mxu0 0.0
        %1828 = vmatpush2.msra.mxu0 0.0
        %1829 = vmatprep.mubr.f32.mxu0 0.0
        %1830 = vmatmul.mubr.f32.gmra.mxu0 %v1763
        %v1831 = vpop.f32.mrf.mxu0
        %v1832 = vadd.f32 0.0, %v1831
        %v1833 = vpop.f32.mrf.mxu0
        %1834 = vdwg.mxu0
        %v1835 = vadd.f32 %v1677, %v1832
        %v1836 = vld [vmem:[%s5 + $0x1c0] sm:$0xff]
        %v1837 = vld [vmem:[%s5 + $0x1c8] sm:$0xff]
        %v1838 = vld [vmem:[%s5 + $0x1d0] sm:$0xff]
        %v1839 = vld [vmem:[%s5 + $0x1d8] sm:$0xff]
        %v1840 = vld [vmem:[%s5 + $0x1e0] sm:$0xff]
        %v1841 = vld [vmem:[%s5 + $0x1e8] sm:$0xff]
        %v1842 = vld [vmem:[%s5 + $0x1f0] sm:$0xff]
        %v1843 = vld [vmem:[%s5 + $0x1f8] sm:$0xff]
        %1844 = vmatprep.subr.mxu0 0.0
        %1845 = vmatpush1.msra.mxu0 0.0
        %1846 = vmatprep.subr.mxu0 0.0
        %1847 = vmatpush1.msra.mxu0 0.0
        %1848 = vmatprep.subr.mxu0 0.0
        %1849 = vmatpush1.msra.mxu0 0.0
        %1850 = vmatprep.subr.mxu0 0.0
        %1851 = vmatpush1.msra.mxu0 0.0
        %1852 = vmatprep.subr.mxu0 0.0
        %1853 = vmatpush1.msra.mxu0 0.0
        %1854 = vmatprep.subr.mxu0 0.0
        %1855 = vmatpush1.msra.mxu0 0.0
        %1856 = vmatprep.subr.mxu0 0.0
        %1857 = vmatpush1.msra.mxu0 0.0
        %1858 = vmatprep.subr.mxu0 0.0
        %1859 = vmatpush1.msra.mxu0 0.0
        %1860 = vmatprep.subr.mxu0 0.0
        %1861 = vmatpush1.msra.mxu0 %v1843
        %1862 = vmatprep.subr.mxu0 0.0
        %1863 = vmatpush1.msra.mxu0 %v1842
        %1864 = vmatprep.subr.mxu0 0.0
        %1865 = vmatpush1.msra.mxu0 %v1841
        %1866 = vmatprep.subr.mxu0 0.0
        %1867 = vmatpush1.msra.mxu0 %v1840
        %1868 = vmatprep.subr.mxu0 0.0
        %1869 = vmatpush1.msra.mxu0 %v1839
        %1870 = vmatprep.subr.mxu0 0.0
        %1871 = vmatpush1.msra.mxu0 %v1838
        %1872 = vmatprep.subr.mxu0 0.0
        %1873 = vmatpush1.msra.mxu0 %v1837
        %1874 = vmatprep.subr.mxu0 0.0
        %1875 = vmatpush1.msra.mxu0 %v1836
        %1876 = vmatprep.subr.mxu0 0.0
        %1877 = vmatpush2.msra.mxu0 0.0
        %1878 = vmatprep.subr.mxu0 0.0
        %1879 = vmatpush2.msra.mxu0 0.0
        %1880 = vmatprep.subr.mxu0 0.0
        %1881 = vmatpush2.msra.mxu0 0.0
        %1882 = vmatprep.subr.mxu0 0.0
        %1883 = vmatpush2.msra.mxu0 0.0
        %1884 = vmatprep.subr.mxu0 0.0
        %1885 = vmatpush2.msra.mxu0 0.0
        %1886 = vmatprep.subr.mxu0 0.0
        %1887 = vmatpush2.msra.mxu0 0.0
        %1888 = vmatprep.subr.mxu0 0.0
        %1889 = vmatpush2.msra.mxu0 0.0
        %1890 = vmatprep.subr.mxu0 0.0
        %1891 = vmatpush2.msra.mxu0 0.0
        %1892 = vmatprep.subr.mxu0 0.0
        %1893 = vmatpush2.msra.mxu0 0.0
        %1894 = vmatprep.subr.mxu0 0.0
        %1895 = vmatpush2.msra.mxu0 0.0
        %1896 = vmatprep.subr.mxu0 0.0
        %1897 = vmatpush2.msra.mxu0 0.0
        %1898 = vmatprep.subr.mxu0 0.0
        %1899 = vmatpush2.msra.mxu0 0.0
        %1900 = vmatprep.subr.mxu0 0.0
        %1901 = vmatpush2.msra.mxu0 0.0
        %1902 = vmatprep.subr.mxu0 0.0
        %1903 = vmatpush2.msra.mxu0 0.0
        %1904 = vmatprep.subr.mxu0 0.0
        %1905 = vmatpush2.msra.mxu0 0.0
        %1906 = vmatprep.subr.mxu0 0.0
        %1907 = vmatpush2.msra.mxu0 0.0
        %1908 = vmatprep.mubr.f32.mxu0 0.0
        %1909 = vmatmul.mubr.f32.gmra.mxu0 %v817
        %v1910 = vpop.f32.mrf.mxu0
        %v1911 = vadd.f32 0.0, %v1910
        %v1912 = vpop.f32.mrf.mxu0
        %1913 = vmatprep.mubr.f32.mxu0 0.0
        %1914 = vmatmul.mubr.f32.gmra.mxu0 %v820
        %v1915 = vpop.f32.mrf.mxu0
        %v1916 = vadd.f32 0.0, %v1915
        %v1917 = vpop.f32.mrf.mxu0
        %1918 = vdwg.mxu0
        %v1919 = vld [vmem:[%s3 + $0x38] sm:$0xff]
        %v1921 = vsel %vm982, %v1919, 0
        %1923 = vmatprep.subr.mxu0 0.0
        %1924 = vmatpush1.msra.mxu0 0.0
        %1925 = vmatprep.subr.mxu0 0.0
        %1926 = vmatpush1.msra.mxu0 0.0
        %1927 = vmatprep.subr.mxu0 0.0
        %1928 = vmatpush1.msra.mxu0 0.0
        %1929 = vmatprep.subr.mxu0 0.0
        %1930 = vmatpush1.msra.mxu0 0.0
        %1931 = vmatprep.subr.mxu0 0.0
        %1932 = vmatpush1.msra.mxu0 0.0
        %1933 = vmatprep.subr.mxu0 0.0
        %1934 = vmatpush1.msra.mxu0 0.0
        %1935 = vmatprep.subr.mxu0 0.0
        %1936 = vmatpush1.msra.mxu0 0.0
        %1937 = vmatprep.subr.mxu0 0.0
        %1938 = vmatpush1.msra.mxu0 0.0
        %1939 = vmatprep.subr.mxu0 0.0
        %1940 = vmatpush1.msra.mxu0 0.0
        %1941 = vmatprep.subr.mxu0 0.0
        %1942 = vmatpush1.msra.mxu0 0.0
        %1943 = vmatprep.subr.mxu0 0.0
        %1944 = vmatpush1.msra.mxu0 0.0
        %1945 = vmatprep.subr.mxu0 0.0
        %1946 = vmatpush1.msra.mxu0 0.0
        %1947 = vmatprep.subr.mxu0 0.0
        %1948 = vmatpush1.msra.mxu0 0.0
        %1949 = vmatprep.subr.mxu0 0.0
        %1950 = vmatpush1.msra.mxu0 0.0
        %1951 = vmatprep.subr.mxu0 0.0
        %1952 = vmatpush1.msra.mxu0 %v1916
        %1953 = vmatprep.subr.mxu0 0.0
        %1954 = vmatpush1.msra.mxu0 %v1911
        %1955 = vmatprep.subr.mxu0 0.0
        %1956 = vmatpush2.msra.mxu0 0.0
        %1957 = vmatprep.subr.mxu0 0.0
        %1958 = vmatpush2.msra.mxu0 0.0
        %1959 = vmatprep.subr.mxu0 0.0
        %1960 = vmatpush2.msra.mxu0 0.0
        %1961 = vmatprep.subr.mxu0 0.0
        %1962 = vmatpush2.msra.mxu0 0.0
        %1963 = vmatprep.subr.mxu0 0.0
        %1964 = vmatpush2.msra.mxu0 0.0
        %1965 = vmatprep.subr.mxu0 0.0
        %1966 = vmatpush2.msra.mxu0 0.0
        %1967 = vmatprep.subr.mxu0 0.0
        %1968 = vmatpush2.msra.mxu0 0.0
        %1969 = vmatprep.subr.mxu0 0.0
        %1970 = vmatpush2.msra.mxu0 0.0
        %1971 = vmatprep.subr.mxu0 0.0
        %1972 = vmatpush2.msra.mxu0 0.0
        %1973 = vmatprep.subr.mxu0 0.0
        %1974 = vmatpush2.msra.mxu0 0.0
        %1975 = vmatprep.subr.mxu0 0.0
        %1976 = vmatpush2.msra.mxu0 0.0
        %1977 = vmatprep.subr.mxu0 0.0
        %1978 = vmatpush2.msra.mxu0 0.0
        %1979 = vmatprep.subr.mxu0 0.0
        %1980 = vmatpush2.msra.mxu0 0.0
        %1981 = vmatprep.subr.mxu0 0.0
        %1982 = vmatpush2.msra.mxu0 0.0
        %1983 = vmatprep.subr.mxu0 0.0
        %1984 = vmatpush2.msra.mxu0 0.0
        %1985 = vmatprep.subr.mxu0 0.0
        %1986 = vmatpush2.msra.mxu0 0.0
        %1987 = vmatprep.mubr.f32.mxu0 0.0
        %1988 = vmatmul.mubr.f32.gmra.mxu0 %v1921
        %v1989 = vpop.f32.mrf.mxu0
        %v1990 = vadd.f32 0.0, %v1989
        %v1991 = vpop.f32.mrf.mxu0
        %1992 = vdwg.mxu0
        %v1993 = vadd.f32 %v1835, %v1990
        %v1994 = vld [vmem:[%s5 + $0x200] sm:$0xff]
        %v1995 = vld [vmem:[%s5 + $0x208] sm:$0xff]
        %v1996 = vld [vmem:[%s5 + $0x210] sm:$0xff]
        %v1997 = vld [vmem:[%s5 + $0x218] sm:$0xff]
        %v1998 = vld [vmem:[%s5 + $0x220] sm:$0xff]
        %v1999 = vld [vmem:[%s5 + $0x228] sm:$0xff]
        %v2000 = vld [vmem:[%s5 + $0x230] sm:$0xff]
        %v2001 = vld [vmem:[%s5 + $0x238] sm:$0xff]
        %2002 = vmatprep.subr.mxu0 0.0
        %2003 = vmatpush1.msra.mxu0 0.0
        %2004 = vmatprep.subr.mxu0 0.0
        %2005 = vmatpush1.msra.mxu0 0.0
        %2006 = vmatprep.subr.mxu0 0.0
        %2007 = vmatpush1.msra.mxu0 0.0
        %2008 = vmatprep.subr.mxu0 0.0
        %2009 = vmatpush1.msra.mxu0 0.0
        %2010 = vmatprep.subr.mxu0 0.0
        %2011 = vmatpush1.msra.mxu0 0.0
        %2012 = vmatprep.subr.mxu0 0.0
        %2013 = vmatpush1.msra.mxu0 0.0
        %2014 = vmatprep.subr.mxu0 0.0
        %2015 = vmatpush1.msra.mxu0 0.0
        %2016 = vmatprep.subr.mxu0 0.0
        %2017 = vmatpush1.msra.mxu0 0.0
        %2018 = vmatprep.subr.mxu0 0.0
        %2019 = vmatpush1.msra.mxu0 %v2001
        %2020 = vmatprep.subr.mxu0 0.0
        %2021 = vmatpush1.msra.mxu0 %v2000
        %2022 = vmatprep.subr.mxu0 0.0
        %2023 = vmatpush1.msra.mxu0 %v1999
        %2024 = vmatprep.subr.mxu0 0.0
        %2025 = vmatpush1.msra.mxu0 %v1998
        %2026 = vmatprep.subr.mxu0 0.0
        %2027 = vmatpush1.msra.mxu0 %v1997
        %2028 = vmatprep.subr.mxu0 0.0
        %2029 = vmatpush1.msra.mxu0 %v1996
        %2030 = vmatprep.subr.mxu0 0.0
        %2031 = vmatpush1.msra.mxu0 %v1995
        %2032 = vmatprep.subr.mxu0 0.0
        %2033 = vmatpush1.msra.mxu0 %v1994
        %2034 = vmatprep.subr.mxu0 0.0
        %2035 = vmatpush2.msra.mxu0 0.0
        %2036 = vmatprep.subr.mxu0 0.0
        %2037 = vmatpush2.msra.mxu0 0.0
        %2038 = vmatprep.subr.mxu0 0.0
        %2039 = vmatpush2.msra.mxu0 0.0
        %2040 = vmatprep.subr.mxu0 0.0
        %2041 = vmatpush2.msra.mxu0 0.0
        %2042 = vmatprep.subr.mxu0 0.0
        %2043 = vmatpush2.msra.mxu0 0.0
        %2044 = vmatprep.subr.mxu0 0.0
        %2045 = vmatpush2.msra.mxu0 0.0
        %2046 = vmatprep.subr.mxu0 0.0
        %2047 = vmatpush2.msra.mxu0 0.0
        %2048 = vmatprep.subr.mxu0 0.0
        %2049 = vmatpush2.msra.mxu0 0.0
        %2050 = vmatprep.subr.mxu0 0.0
        %2051 = vmatpush2.msra.mxu0 0.0
        %2052 = vmatprep.subr.mxu0 0.0
        %2053 = vmatpush2.msra.mxu0 0.0
        %2054 = vmatprep.subr.mxu0 0.0
        %2055 = vmatpush2.msra.mxu0 0.0
        %2056 = vmatprep.subr.mxu0 0.0
        %2057 = vmatpush2.msra.mxu0 0.0
        %2058 = vmatprep.subr.mxu0 0.0
        %2059 = vmatpush2.msra.mxu0 0.0
        %2060 = vmatprep.subr.mxu0 0.0
        %2061 = vmatpush2.msra.mxu0 0.0
        %2062 = vmatprep.subr.mxu0 0.0
        %2063 = vmatpush2.msra.mxu0 0.0
        %2064 = vmatprep.subr.mxu0 0.0
        %2065 = vmatpush2.msra.mxu0 0.0
        %2066 = vmatprep.mubr.f32.mxu0 0.0
        %2067 = vmatmul.mubr.f32.gmra.mxu0 %v817
        %v2068 = vpop.f32.mrf.mxu0
        %v2069 = vadd.f32 0.0, %v2068
        %v2070 = vpop.f32.mrf.mxu0
        %2071 = vmatprep.mubr.f32.mxu0 0.0
        %2072 = vmatmul.mubr.f32.gmra.mxu0 %v820
        %v2073 = vpop.f32.mrf.mxu0
        %v2074 = vadd.f32 0.0, %v2073
        %v2075 = vpop.f32.mrf.mxu0
        %2076 = vdwg.mxu0
        %v2077 = vld [vmem:[%s3 + $0x40] sm:$0xff]
        %v2079 = vsel %vm982, %v2077, 0
        %2081 = vmatprep.subr.mxu0 0.0
        %2082 = vmatpush1.msra.mxu0 0.0
        %2083 = vmatprep.subr.mxu0 0.0
        %2084 = vmatpush1.msra.mxu0 0.0
        %2085 = vmatprep.subr.mxu0 0.0
        %2086 = vmatpush1.msra.mxu0 0.0
        %2087 = vmatprep.subr.mxu0 0.0
        %2088 = vmatpush1.msra.mxu0 0.0
        %2089 = vmatprep.subr.mxu0 0.0
        %2090 = vmatpush1.msra.mxu0 0.0
        %2091 = vmatprep.subr.mxu0 0.0
        %2092 = vmatpush1.msra.mxu0 0.0
        %2093 = vmatprep.subr.mxu0 0.0
        %2094 = vmatpush1.msra.mxu0 0.0
        %2095 = vmatprep.subr.mxu0 0.0
        %2096 = vmatpush1.msra.mxu0 0.0
        %2097 = vmatprep.subr.mxu0 0.0
        %2098 = vmatpush1.msra.mxu0 0.0
        %2099 = vmatprep.subr.mxu0 0.0
        %2100 = vmatpush1.msra.mxu0 0.0
        %2101 = vmatprep.subr.mxu0 0.0
        %2102 = vmatpush1.msra.mxu0 0.0
        %2103 = vmatprep.subr.mxu0 0.0
        %2104 = vmatpush1.msra.mxu0 0.0
        %2105 = vmatprep.subr.mxu0 0.0
        %2106 = vmatpush1.msra.mxu0 0.0
        %2107 = vmatprep.subr.mxu0 0.0
        %2108 = vmatpush1.msra.mxu0 0.0
        %2109 = vmatprep.subr.mxu0 0.0
        %2110 = vmatpush1.msra.mxu0 %v2074
        %2111 = vmatprep.subr.mxu0 0.0
        %2112 = vmatpush1.msra.mxu0 %v2069
        %2113 = vmatprep.subr.mxu0 0.0
        %2114 = vmatpush2.msra.mxu0 0.0
        %2115 = vmatprep.subr.mxu0 0.0
        %2116 = vmatpush2.msra.mxu0 0.0
        %2117 = vmatprep.subr.mxu0 0.0
        %2118 = vmatpush2.msra.mxu0 0.0
        %2119 = vmatprep.subr.mxu0 0.0
        %2120 = vmatpush2.msra.mxu0 0.0
        %2121 = vmatprep.subr.mxu0 0.0
        %2122 = vmatpush2.msra.mxu0 0.0
        %2123 = vmatprep.subr.mxu0 0.0
        %2124 = vmatpush2.msra.mxu0 0.0
        %2125 = vmatprep.subr.mxu0 0.0
        %2126 = vmatpush2.msra.mxu0 0.0
        %2127 = vmatprep.subr.mxu0 0.0
        %2128 = vmatpush2.msra.mxu0 0.0
        %2129 = vmatprep.subr.mxu0 0.0
        %2130 = vmatpush2.msra.mxu0 0.0
        %2131 = vmatprep.subr.mxu0 0.0
        %2132 = vmatpush2.msra.mxu0 0.0
        %2133 = vmatprep.subr.mxu0 0.0
        %2134 = vmatpush2.msra.mxu0 0.0
        %2135 = vmatprep.subr.mxu0 0.0
        %2136 = vmatpush2.msra.mxu0 0.0
        %2137 = vmatprep.subr.mxu0 0.0
        %2138 = vmatpush2.msra.mxu0 0.0
        %2139 = vmatprep.subr.mxu0 0.0
        %2140 = vmatpush2.msra.mxu0 0.0
        %2141 = vmatprep.subr.mxu0 0.0
        %2142 = vmatpush2.msra.mxu0 0.0
        %2143 = vmatprep.subr.mxu0 0.0
        %2144 = vmatpush2.msra.mxu0 0.0
        %2145 = vmatprep.mubr.f32.mxu0 0.0
        %2146 = vmatmul.mubr.f32.gmra.mxu0 %v2079
        %v2147 = vpop.f32.mrf.mxu0
        %v2148 = vadd.f32 0.0, %v2147
        %v2149 = vpop.f32.mrf.mxu0
        %2150 = vdwg.mxu0
        %v2151 = vadd.f32 %v1993, %v2148
        %v2152 = vld [vmem:[%s4] sm:$0xff]
        %2154 = vset.pattern.permute.xlu0 0
        %2155 = vperm.xlu0 %2154, %v2152
        %v2156 = vpop.permute.xlu0 %2155
        %v2158 = vadd.f32 %v2151, %v2156
        %vm2159 = vcmp.gt.f32.partialorder %v2158, 0.0
        %v2160 = vmul.f32 %v2158, 0.2
        %v2161 = vsel %vm2159, %v2158, %v2160
        %v2162 = vld [vmem:[#allocation2] sm:$0xff]
        %v2163 = vld [vmem:[#allocation2 + $0x8] sm:$0xff]
        %v2164 = vld [vmem:[#allocation2 + $0x10] sm:$0xff]
        %v2165 = vld [vmem:[#allocation2 + $0x18] sm:$0xff]
        %v2166 = vld [vmem:[#allocation2 + $0x20] sm:$0xff]
        %v2167 = vld [vmem:[#allocation2 + $0x28] sm:$0xff]
        %v2168 = vld [vmem:[#allocation2 + $0x30] sm:$0xff]
        %v2169 = vld [vmem:[#allocation2 + $0x38] sm:$0xff]
        %v2170 = vld [vmem:[#allocation2 + $0x40] sm:$0xff]
        %v2171 = vld [vmem:[#allocation2 + $0x48] sm:$0xff]
        %v2172 = vld [vmem:[#allocation2 + $0x50] sm:$0xff]
        %v2173 = vld [vmem:[#allocation2 + $0x58] sm:$0xff]
        %v2174 = vld [vmem:[#allocation2 + $0x60] sm:$0xff]
        %v2175 = vld [vmem:[#allocation2 + $0x68] sm:$0xff]
        %v2176 = vld [vmem:[#allocation2 + $0x70] sm:$0xff]
        %v2177 = vld [vmem:[#allocation2 + $0x78] sm:$0xff]
        %v2179 = vsel %vm815, %v2161, 0
        %2181 = vmatprep.subr.mxu0 0.0
        %2182 = vmatpush1.msra.mxu0 0.0
        %2183 = vmatprep.subr.mxu0 0.0
        %2184 = vmatpush1.msra.mxu0 0.0
        %2185 = vmatprep.subr.mxu0 0.0
        %2186 = vmatpush1.msra.mxu0 0.0
        %2187 = vmatprep.subr.mxu0 0.0
        %2188 = vmatpush1.msra.mxu0 0.0
        %2189 = vmatprep.subr.mxu0 0.0
        %2190 = vmatpush1.msra.mxu0 0.0
        %2191 = vmatprep.subr.mxu0 0.0
        %2192 = vmatpush1.msra.mxu0 0.0
        %2193 = vmatprep.subr.mxu0 0.0
        %2194 = vmatpush1.msra.mxu0 0.0
        %2195 = vmatprep.subr.mxu0 0.0
        %2196 = vmatpush1.msra.mxu0 0.0
        %2197 = vmatprep.subr.mxu0 %v2177
        %2198 = vmatpush1.msra.mxu0 %v2176
        %2199 = vmatprep.subr.mxu0 %v2175
        %2200 = vmatpush1.msra.mxu0 %v2174
        %2201 = vmatprep.subr.mxu0 %v2173
        %2202 = vmatpush1.msra.mxu0 %v2172
        %2203 = vmatprep.subr.mxu0 %v2171
        %2204 = vmatpush1.msra.mxu0 %v2170
        %2205 = vmatprep.subr.mxu0 %v2169
        %2206 = vmatpush1.msra.mxu0 %v2168
        %2207 = vmatprep.subr.mxu0 %v2167
        %2208 = vmatpush1.msra.mxu0 %v2166
        %2209 = vmatprep.subr.mxu0 %v2165
        %2210 = vmatpush1.msra.mxu0 %v2164
        %2211 = vmatprep.subr.mxu0 %v2163
        %2212 = vmatpush1.msra.mxu0 %v2162
        %2213 = vmatprep.subr.mxu0 0.0
        %2214 = vmatpush2.msra.mxu0 0.0
        %2215 = vmatprep.subr.mxu0 0.0
        %2216 = vmatpush2.msra.mxu0 0.0
        %2217 = vmatprep.subr.mxu0 0.0
        %2218 = vmatpush2.msra.mxu0 0.0
        %2219 = vmatprep.subr.mxu0 0.0
        %2220 = vmatpush2.msra.mxu0 0.0
        %2221 = vmatprep.subr.mxu0 0.0
        %2222 = vmatpush2.msra.mxu0 0.0
        %2223 = vmatprep.subr.mxu0 0.0
        %2224 = vmatpush2.msra.mxu0 0.0
        %2225 = vmatprep.subr.mxu0 0.0
        %2226 = vmatpush2.msra.mxu0 0.0
        %2227 = vmatprep.subr.mxu0 0.0
        %2228 = vmatpush2.msra.mxu0 0.0
        %2229 = vmatprep.subr.mxu0 0.0
        %2230 = vmatpush2.msra.mxu0 0.0
        %2231 = vmatprep.subr.mxu0 0.0
        %2232 = vmatpush2.msra.mxu0 0.0
        %2233 = vmatprep.subr.mxu0 0.0
        %2234 = vmatpush2.msra.mxu0 0.0
        %2235 = vmatprep.subr.mxu0 0.0
        %2236 = vmatpush2.msra.mxu0 0.0
        %2237 = vmatprep.subr.mxu0 0.0
        %2238 = vmatpush2.msra.mxu0 0.0
        %2239 = vmatprep.subr.mxu0 0.0
        %2240 = vmatpush2.msra.mxu0 0.0
        %2241 = vmatprep.subr.mxu0 0.0
        %2242 = vmatpush2.msra.mxu0 0.0
        %2243 = vmatprep.subr.mxu0 0.0
        %2244 = vmatpush2.msra.mxu0 0.0
        %2245 = vmatprep.mubr.f32.mxu0 0.0
        %2246 = vmatmul.mubr.f32.gmra.mxu0 %v2179
        %v2247 = vpop.f32.mrf.mxu0
        %v2248 = vadd.f32 0.0, %v2247
        %v2249 = vpop.f32.mrf.mxu0
        %v2250 = vadd.f32 0.0, %v2249
        %2251 = vdwg.mxu0
        %v2252 = vld [vmem:[#allocation4] sm:$0xff]
        %v2253 = vld [vmem:[#allocation4 + $0x8] sm:$0xff]
        %v2254 = vld [vmem:[#allocation4 + $0x10] sm:$0xff]
        %v2255 = vld [vmem:[#allocation4 + $0x18] sm:$0xff]
        %v2256 = vld [vmem:[#allocation4 + $0x20] sm:$0xff]
        %v2257 = vld [vmem:[#allocation4 + $0x28] sm:$0xff]
        %v2258 = vld [vmem:[#allocation4 + $0x30] sm:$0xff]
        %v2259 = vld [vmem:[#allocation4 + $0x38] sm:$0xff]
        %v2260 = vld [vmem:[#allocation4 + $0x40] sm:$0xff]
        %v2261 = vld [vmem:[#allocation4 + $0x48] sm:$0xff]
        %v2262 = vld [vmem:[#allocation4 + $0x50] sm:$0xff]
        %v2263 = vld [vmem:[#allocation4 + $0x58] sm:$0xff]
        %v2264 = vld [vmem:[#allocation4 + $0x60] sm:$0xff]
        %v2265 = vld [vmem:[#allocation4 + $0x68] sm:$0xff]
        %v2266 = vld [vmem:[#allocation4 + $0x70] sm:$0xff]
        %v2267 = vld [vmem:[#allocation4 + $0x78] sm:$0xff]
        %v2268 = vld [vmem:[#allocation4 + $0x80] sm:$0xff]
        %v2269 = vld [vmem:[#allocation4 + $0x88] sm:$0xff]
        %v2270 = vld [vmem:[#allocation4 + $0x90] sm:$0xff]
        %v2271 = vld [vmem:[#allocation4 + $0x98] sm:$0xff]
        %v2272 = vld [vmem:[#allocation4 + $0xa0] sm:$0xff]
        %v2273 = vld [vmem:[#allocation4 + $0xa8] sm:$0xff]
        %v2274 = vld [vmem:[#allocation4 + $0xb0] sm:$0xff]
        %v2275 = vld [vmem:[#allocation4 + $0xb8] sm:$0xff]
        %v2276 = vld [vmem:[#allocation4 + $0xc0] sm:$0xff]
        %v2277 = vld [vmem:[#allocation4 + $0xc8] sm:$0xff]
        %v2278 = vld [vmem:[#allocation4 + $0xd0] sm:$0xff]
        %v2279 = vld [vmem:[#allocation4 + $0xd8] sm:$0xff]
        %v2280 = vld [vmem:[#allocation4 + $0xe0] sm:$0xff]
        %v2281 = vld [vmem:[#allocation4 + $0xe8] sm:$0xff]
        %v2282 = vld [vmem:[#allocation4 + $0xf0] sm:$0xff]
        %v2283 = vld [vmem:[#allocation4 + $0xf8] sm:$0xff]
        %v2284 = vld [vmem:[#allocation4 + $0x100] sm:$0xff]
        %v2285 = vld [vmem:[#allocation4 + $0x108] sm:$0xff]
        %v2286 = vld [vmem:[#allocation4 + $0x110] sm:$0xff]
        %v2287 = vld [vmem:[#allocation4 + $0x118] sm:$0xff]
        %v2288 = vld [vmem:[#allocation4 + $0x120] sm:$0xff]
        %v2289 = vld [vmem:[#allocation4 + $0x128] sm:$0xff]
        %v2290 = vld [vmem:[#allocation4 + $0x130] sm:$0xff]
        %v2291 = vld [vmem:[#allocation4 + $0x138] sm:$0xff]
        %v2292 = vld [vmem:[#allocation4 + $0x140] sm:$0xff]
        %v2293 = vld [vmem:[#allocation4 + $0x148] sm:$0xff]
        %v2294 = vld [vmem:[#allocation4 + $0x150] sm:$0xff]
        %v2295 = vld [vmem:[#allocation4 + $0x158] sm:$0xff]
        %v2296 = vld [vmem:[#allocation4 + $0x160] sm:$0xff]
        %v2297 = vld [vmem:[#allocation4 + $0x168] sm:$0xff]
        %v2298 = vld [vmem:[#allocation4 + $0x170] sm:$0xff]
        %v2299 = vld [vmem:[#allocation4 + $0x178] sm:$0xff]
        %v2300 = vld [vmem:[#allocation4 + $0x180] sm:$0xff]
        %v2301 = vld [vmem:[#allocation4 + $0x188] sm:$0xff]
        %v2302 = vld [vmem:[#allocation4 + $0x190] sm:$0xff]
        %v2303 = vld [vmem:[#allocation4 + $0x198] sm:$0xff]
        %v2304 = vld [vmem:[#allocation4 + $0x1a0] sm:$0xff]
        %v2305 = vld [vmem:[#allocation4 + $0x1a8] sm:$0xff]
        %v2306 = vld [vmem:[#allocation4 + $0x1b0] sm:$0xff]
        %v2307 = vld [vmem:[#allocation4 + $0x1b8] sm:$0xff]
        %v2308 = vld [vmem:[#allocation4 + $0x1c0] sm:$0xff]
        %v2309 = vld [vmem:[#allocation4 + $0x1c8] sm:$0xff]
        %v2310 = vld [vmem:[#allocation4 + $0x1d0] sm:$0xff]
        %v2311 = vld [vmem:[#allocation4 + $0x1d8] sm:$0xff]
        %v2312 = vld [vmem:[#allocation4 + $0x1e0] sm:$0xff]
        %v2313 = vld [vmem:[#allocation4 + $0x1e8] sm:$0xff]
        %v2314 = vld [vmem:[#allocation4 + $0x1f0] sm:$0xff]
        %v2315 = vld [vmem:[#allocation4 + $0x1f8] sm:$0xff]
        %2316 = vmatprep.subr.mxu0 %v2283
        %2317 = vmatpush1.msra.mxu0 %v2282
        %2318 = vmatprep.subr.mxu0 %v2281
        %2319 = vmatpush1.msra.mxu0 %v2280
        %2320 = vmatprep.subr.mxu0 %v2279
        %2321 = vmatpush1.msra.mxu0 %v2278
        %2322 = vmatprep.subr.mxu0 %v2277
        %2323 = vmatpush1.msra.mxu0 %v2276
        %2324 = vmatprep.subr.mxu0 %v2275
        %2325 = vmatpush1.msra.mxu0 %v2274
        %2326 = vmatprep.subr.mxu0 %v2273
        %2327 = vmatpush1.msra.mxu0 %v2272
        %2328 = vmatprep.subr.mxu0 %v2271
        %2329 = vmatpush1.msra.mxu0 %v2270
        %2330 = vmatprep.subr.mxu0 %v2269
        %2331 = vmatpush1.msra.mxu0 %v2268
        %2332 = vmatprep.subr.mxu0 %v2267
        %2333 = vmatpush1.msra.mxu0 %v2266
        %2334 = vmatprep.subr.mxu0 %v2265
        %2335 = vmatpush1.msra.mxu0 %v2264
        %2336 = vmatprep.subr.mxu0 %v2263
        %2337 = vmatpush1.msra.mxu0 %v2262
        %2338 = vmatprep.subr.mxu0 %v2261
        %2339 = vmatpush1.msra.mxu0 %v2260
        %2340 = vmatprep.subr.mxu0 %v2259
        %2341 = vmatpush1.msra.mxu0 %v2258
        %2342 = vmatprep.subr.mxu0 %v2257
        %2343 = vmatpush1.msra.mxu0 %v2256
        %2344 = vmatprep.subr.mxu0 %v2255
        %2345 = vmatpush1.msra.mxu0 %v2254
        %2346 = vmatprep.subr.mxu0 %v2253
        %2347 = vmatpush1.msra.mxu0 %v2252
        %2348 = vmatprep.subr.mxu0 %v2315
        %2349 = vmatpush2.msra.mxu0 %v2314
        %2350 = vmatprep.subr.mxu0 %v2313
        %2351 = vmatpush2.msra.mxu0 %v2312
        %2352 = vmatprep.subr.mxu0 %v2311
        %2353 = vmatpush2.msra.mxu0 %v2310
        %2354 = vmatprep.subr.mxu0 %v2309
        %2355 = vmatpush2.msra.mxu0 %v2308
        %2356 = vmatprep.subr.mxu0 %v2307
        %2357 = vmatpush2.msra.mxu0 %v2306
        %2358 = vmatprep.subr.mxu0 %v2305
        %2359 = vmatpush2.msra.mxu0 %v2304
        %2360 = vmatprep.subr.mxu0 %v2303
        %2361 = vmatpush2.msra.mxu0 %v2302
        %2362 = vmatprep.subr.mxu0 %v2301
        %2363 = vmatpush2.msra.mxu0 %v2300
        %2364 = vmatprep.subr.mxu0 %v2299
        %2365 = vmatpush2.msra.mxu0 %v2298
        %2366 = vmatprep.subr.mxu0 %v2297
        %2367 = vmatpush2.msra.mxu0 %v2296
        %2368 = vmatprep.subr.mxu0 %v2295
        %2369 = vmatpush2.msra.mxu0 %v2294
        %2370 = vmatprep.subr.mxu0 %v2293
        %2371 = vmatpush2.msra.mxu0 %v2292
        %2372 = vmatprep.subr.mxu0 %v2291
        %2373 = vmatpush2.msra.mxu0 %v2290
        %2374 = vmatprep.subr.mxu0 %v2289
        %2375 = vmatpush2.msra.mxu0 %v2288
        %2376 = vmatprep.subr.mxu0 %v2287
        %2377 = vmatpush2.msra.mxu0 %v2286
        %2378 = vmatprep.subr.mxu0 %v2285
        %2379 = vmatpush2.msra.mxu0 %v2284
        %2380 = vmatprep.mubr.f32.mxu0 %v2250
        %2381 = vmatmul.mubr.f32.gmra.mxu0 %v2248
        %v2382 = vpop.f32.mrf.mxu0
        %v2383 = vadd.f32 0.0, %v2382
        %v2384 = vpop.f32.mrf.mxu0
        %v2385 = vadd.f32 0.0, %v2384
        %2386 = vdwg.mxu0
        %v2387 = vld [vmem:[%s7] sm:$0xff]
        %v2388 = vld [vmem:[#allocation4 + $0x200] sm:$0xff]
        %v2389 = vld [vmem:[#allocation4 + $0x208] sm:$0xff]
        %v2390 = vld [vmem:[#allocation4 + $0x210] sm:$0xff]
        %v2391 = vld [vmem:[#allocation4 + $0x218] sm:$0xff]
        %v2392 = vld [vmem:[#allocation4 + $0x220] sm:$0xff]
        %v2393 = vld [vmem:[#allocation4 + $0x228] sm:$0xff]
        %v2394 = vld [vmem:[#allocation4 + $0x230] sm:$0xff]
        %v2395 = vld [vmem:[#allocation4 + $0x238] sm:$0xff]
        %v2396 = vld [vmem:[#allocation4 + $0x240] sm:$0xff]
        %v2397 = vld [vmem:[#allocation4 + $0x248] sm:$0xff]
        %v2398 = vld [vmem:[#allocation4 + $0x250] sm:$0xff]
        %v2399 = vld [vmem:[#allocation4 + $0x258] sm:$0xff]
        %v2400 = vld [vmem:[#allocation4 + $0x260] sm:$0xff]
        %v2401 = vld [vmem:[#allocation4 + $0x268] sm:$0xff]
        %v2402 = vld [vmem:[#allocation4 + $0x270] sm:$0xff]
        %v2403 = vld [vmem:[#allocation4 + $0x278] sm:$0xff]
        %v2404 = vld [vmem:[#allocation4 + $0x280] sm:$0xff]
        %v2405 = vld [vmem:[#allocation4 + $0x288] sm:$0xff]
        %v2406 = vld [vmem:[#allocation4 + $0x290] sm:$0xff]
        %v2407 = vld [vmem:[#allocation4 + $0x298] sm:$0xff]
        %v2408 = vld [vmem:[#allocation4 + $0x2a0] sm:$0xff]
        %v2409 = vld [vmem:[#allocation4 + $0x2a8] sm:$0xff]
        %v2410 = vld [vmem:[#allocation4 + $0x2b0] sm:$0xff]
        %v2411 = vld [vmem:[#allocation4 + $0x2b8] sm:$0xff]
        %v2412 = vld [vmem:[#allocation4 + $0x2c0] sm:$0xff]
        %v2413 = vld [vmem:[#allocation4 + $0x2c8] sm:$0xff]
        %v2414 = vld [vmem:[#allocation4 + $0x2d0] sm:$0xff]
        %v2415 = vld [vmem:[#allocation4 + $0x2d8] sm:$0xff]
        %v2416 = vld [vmem:[#allocation4 + $0x2e0] sm:$0xff]
        %v2417 = vld [vmem:[#allocation4 + $0x2e8] sm:$0xff]
        %v2418 = vld [vmem:[#allocation4 + $0x2f0] sm:$0xff]
        %v2419 = vld [vmem:[#allocation4 + $0x2f8] sm:$0xff]
        %v2420 = vld [vmem:[#allocation4 + $0x300] sm:$0xff]
        %v2421 = vld [vmem:[#allocation4 + $0x308] sm:$0xff]
        %v2422 = vld [vmem:[#allocation4 + $0x310] sm:$0xff]
        %v2423 = vld [vmem:[#allocation4 + $0x318] sm:$0xff]
        %v2424 = vld [vmem:[#allocation4 + $0x320] sm:$0xff]
        %v2425 = vld [vmem:[#allocation4 + $0x328] sm:$0xff]
        %v2426 = vld [vmem:[#allocation4 + $0x330] sm:$0xff]
        %v2427 = vld [vmem:[#allocation4 + $0x338] sm:$0xff]
        %v2428 = vld [vmem:[#allocation4 + $0x340] sm:$0xff]
        %v2429 = vld [vmem:[#allocation4 + $0x348] sm:$0xff]
        %v2430 = vld [vmem:[#allocation4 + $0x350] sm:$0xff]
        %v2431 = vld [vmem:[#allocation4 + $0x358] sm:$0xff]
        %v2432 = vld [vmem:[#allocation4 + $0x360] sm:$0xff]
        %v2433 = vld [vmem:[#allocation4 + $0x368] sm:$0xff]
        %v2434 = vld [vmem:[#allocation4 + $0x370] sm:$0xff]
        %v2435 = vld [vmem:[#allocation4 + $0x378] sm:$0xff]
        %v2436 = vld [vmem:[#allocation4 + $0x380] sm:$0xff]
        %v2437 = vld [vmem:[#allocation4 + $0x388] sm:$0xff]
        %v2438 = vld [vmem:[#allocation4 + $0x390] sm:$0xff]
        %v2439 = vld [vmem:[#allocation4 + $0x398] sm:$0xff]
        %v2440 = vld [vmem:[#allocation4 + $0x3a0] sm:$0xff]
        %v2441 = vld [vmem:[#allocation4 + $0x3a8] sm:$0xff]
        %v2442 = vld [vmem:[#allocation4 + $0x3b0] sm:$0xff]
        %v2443 = vld [vmem:[#allocation4 + $0x3b8] sm:$0xff]
        %v2444 = vld [vmem:[#allocation4 + $0x3c0] sm:$0xff]
        %v2445 = vld [vmem:[#allocation4 + $0x3c8] sm:$0xff]
        %v2446 = vld [vmem:[#allocation4 + $0x3d0] sm:$0xff]
        %v2447 = vld [vmem:[#allocation4 + $0x3d8] sm:$0xff]
        %v2448 = vld [vmem:[#allocation4 + $0x3e0] sm:$0xff]
        %v2449 = vld [vmem:[#allocation4 + $0x3e8] sm:$0xff]
        %v2450 = vld [vmem:[#allocation4 + $0x3f0] sm:$0xff]
        %v2451 = vld [vmem:[#allocation4 + $0x3f8] sm:$0xff]
        %2452 = vmatprep.subr.mxu0 %v2419
        %2453 = vmatpush1.msra.mxu0 %v2418
        %2454 = vmatprep.subr.mxu0 %v2417
        %2455 = vmatpush1.msra.mxu0 %v2416
        %2456 = vmatprep.subr.mxu0 %v2415
        %2457 = vmatpush1.msra.mxu0 %v2414
        %2458 = vmatprep.subr.mxu0 %v2413
        %2459 = vmatpush1.msra.mxu0 %v2412
        %2460 = vmatprep.subr.mxu0 %v2411
        %2461 = vmatpush1.msra.mxu0 %v2410
        %2462 = vmatprep.subr.mxu0 %v2409
        %2463 = vmatpush1.msra.mxu0 %v2408
        %2464 = vmatprep.subr.mxu0 %v2407
        %2465 = vmatpush1.msra.mxu0 %v2406
        %2466 = vmatprep.subr.mxu0 %v2405
        %2467 = vmatpush1.msra.mxu0 %v2404
        %2468 = vmatprep.subr.mxu0 %v2403
        %2469 = vmatpush1.msra.mxu0 %v2402
        %2470 = vmatprep.subr.mxu0 %v2401
        %2471 = vmatpush1.msra.mxu0 %v2400
        %2472 = vmatprep.subr.mxu0 %v2399
        %2473 = vmatpush1.msra.mxu0 %v2398
        %2474 = vmatprep.subr.mxu0 %v2397
        %2475 = vmatpush1.msra.mxu0 %v2396
        %2476 = vmatprep.subr.mxu0 %v2395
        %2477 = vmatpush1.msra.mxu0 %v2394
        %2478 = vmatprep.subr.mxu0 %v2393
        %2479 = vmatpush1.msra.mxu0 %v2392
        %2480 = vmatprep.subr.mxu0 %v2391
        %2481 = vmatpush1.msra.mxu0 %v2390
        %2482 = vmatprep.subr.mxu0 %v2389
        %2483 = vmatpush1.msra.mxu0 %v2388
        %2484 = vmatprep.subr.mxu0 %v2451
        %2485 = vmatpush2.msra.mxu0 %v2450
        %2486 = vmatprep.subr.mxu0 %v2449
        %2487 = vmatpush2.msra.mxu0 %v2448
        %2488 = vmatprep.subr.mxu0 %v2447
        %2489 = vmatpush2.msra.mxu0 %v2446
        %2490 = vmatprep.subr.mxu0 %v2445
        %2491 = vmatpush2.msra.mxu0 %v2444
        %2492 = vmatprep.subr.mxu0 %v2443
        %2493 = vmatpush2.msra.mxu0 %v2442
        %2494 = vmatprep.subr.mxu0 %v2441
        %2495 = vmatpush2.msra.mxu0 %v2440
        %2496 = vmatprep.subr.mxu0 %v2439
        %2497 = vmatpush2.msra.mxu0 %v2438
        %2498 = vmatprep.subr.mxu0 %v2437
        %2499 = vmatpush2.msra.mxu0 %v2436
        %2500 = vmatprep.subr.mxu0 %v2435
        %2501 = vmatpush2.msra.mxu0 %v2434
        %2502 = vmatprep.subr.mxu0 %v2433
        %2503 = vmatpush2.msra.mxu0 %v2432
        %2504 = vmatprep.subr.mxu0 %v2431
        %2505 = vmatpush2.msra.mxu0 %v2430
        %2506 = vmatprep.subr.mxu0 %v2429
        %2507 = vmatpush2.msra.mxu0 %v2428
        %2508 = vmatprep.subr.mxu0 %v2427
        %2509 = vmatpush2.msra.mxu0 %v2426
        %2510 = vmatprep.subr.mxu0 %v2425
        %2511 = vmatpush2.msra.mxu0 %v2424
        %2512 = vmatprep.subr.mxu0 %v2423
        %2513 = vmatpush2.msra.mxu0 %v2422
        %2514 = vmatprep.subr.mxu0 %v2421
        %2515 = vmatpush2.msra.mxu0 %v2420
        %2516 = vmatprep.mubr.f32.mxu0 %v2250
        %2517 = vmatmul.mubr.f32.gmra.mxu0 %v2248
        %v2518 = vpop.f32.mrf.mxu0
        %v2519 = vadd.f32 0.0, %v2518
        %v2520 = vpop.f32.mrf.mxu0
        %v2521 = vadd.f32 0.0, %v2520
        %2522 = vdwg.mxu0
        %v2523 = vld [vmem:[%s7 + $0x8] sm:$0xff]
        %vm2524 = vcmask 64512
        %v2526 = vsel %vm2524, %v2523, 0
        %2528 = vmatprep.subr.mxu0 0.0
        %2529 = vmatpush1.msra.mxu0 0.0
        %2530 = vmatprep.subr.mxu0 0.0
        %2531 = vmatpush1.msra.mxu0 0.0
        %2532 = vmatprep.subr.mxu0 0.0
        %2533 = vmatpush1.msra.mxu0 0.0
        %2534 = vmatprep.subr.mxu0 0.0
        %2535 = vmatpush1.msra.mxu0 0.0
        %2536 = vmatprep.subr.mxu0 0.0
        %2537 = vmatpush1.msra.mxu0 0.0
        %2538 = vmatprep.subr.mxu0 0.0
        %2539 = vmatpush1.msra.mxu0 0.0
        %2540 = vmatprep.subr.mxu0 0.0
        %2541 = vmatpush1.msra.mxu0 0.0
        %2542 = vmatprep.subr.mxu0 0.0
        %2543 = vmatpush1.msra.mxu0 0.0
        %2544 = vmatprep.subr.mxu0 0.0
        %2545 = vmatpush1.msra.mxu0 0.0
        %2546 = vmatprep.subr.mxu0 0.0
        %2547 = vmatpush1.msra.mxu0 0.0
        %2548 = vmatprep.subr.mxu0 0.0
        %2549 = vmatpush1.msra.mxu0 0.0
        %2550 = vmatprep.subr.mxu0 0.0
        %2551 = vmatpush1.msra.mxu0 0.0
        %2552 = vmatprep.subr.mxu0 0.0
        %2553 = vmatpush1.msra.mxu0 0.0
        %2554 = vmatprep.subr.mxu0 0.0
        %2555 = vmatpush1.msra.mxu0 0.0
        %2556 = vmatprep.subr.mxu0 0.0
        %2557 = vmatpush1.msra.mxu0 0.0
        %2558 = vmatprep.subr.mxu0 %v2521
        %2559 = vmatpush1.msra.mxu0 %v2519
        %2560 = vmatprep.subr.mxu0 0.0
        %2561 = vmatpush2.msra.mxu0 0.0
        %2562 = vmatprep.subr.mxu0 0.0
        %2563 = vmatpush2.msra.mxu0 0.0
        %2564 = vmatprep.subr.mxu0 0.0
        %2565 = vmatpush2.msra.mxu0 0.0
        %2566 = vmatprep.subr.mxu0 0.0
        %2567 = vmatpush2.msra.mxu0 0.0
        %2568 = vmatprep.subr.mxu0 0.0
        %2569 = vmatpush2.msra.mxu0 0.0
        %2570 = vmatprep.subr.mxu0 0.0
        %2571 = vmatpush2.msra.mxu0 0.0
        %2572 = vmatprep.subr.mxu0 0.0
        %2573 = vmatpush2.msra.mxu0 0.0
        %2574 = vmatprep.subr.mxu0 0.0
        %2575 = vmatpush2.msra.mxu0 0.0
        %2576 = vmatprep.subr.mxu0 0.0
        %2577 = vmatpush2.msra.mxu0 0.0
        %2578 = vmatprep.subr.mxu0 0.0
        %2579 = vmatpush2.msra.mxu0 0.0
        %2580 = vmatprep.subr.mxu0 0.0
        %2581 = vmatpush2.msra.mxu0 0.0
        %2582 = vmatprep.subr.mxu0 0.0
        %2583 = vmatpush2.msra.mxu0 0.0
        %2584 = vmatprep.subr.mxu0 0.0
        %2585 = vmatpush2.msra.mxu0 0.0
        %2586 = vmatprep.subr.mxu0 0.0
        %2587 = vmatpush2.msra.mxu0 0.0
        %2588 = vmatprep.subr.mxu0 0.0
        %2589 = vmatpush2.msra.mxu0 0.0
        %2590 = vmatprep.subr.mxu0 0.0
        %2591 = vmatpush2.msra.mxu0 0.0
        %2592 = vmatprep.mubr.f32.mxu0 0.0
        %2593 = vmatmul.mubr.f32.gmra.mxu0 %v2526
        %v2594 = vpop.f32.mrf.mxu0
        %v2595 = vadd.f32 0.0, %v2594
        %v2596 = vpop.f32.mrf.mxu0
        %v2597 = vadd.f32 0.0, %v2596
        %2598 = vdwg.mxu0
        %v2600 = vsel %vm2524, %v2387, 0
        %2602 = vmatprep.subr.mxu0 0.0
        %2603 = vmatpush1.msra.mxu0 0.0
        %2604 = vmatprep.subr.mxu0 0.0
        %2605 = vmatpush1.msra.mxu0 0.0
        %2606 = vmatprep.subr.mxu0 0.0
        %2607 = vmatpush1.msra.mxu0 0.0
        %2608 = vmatprep.subr.mxu0 0.0
        %2609 = vmatpush1.msra.mxu0 0.0
        %2610 = vmatprep.subr.mxu0 0.0
        %2611 = vmatpush1.msra.mxu0 0.0
        %2612 = vmatprep.subr.mxu0 0.0
        %2613 = vmatpush1.msra.mxu0 0.0
        %2614 = vmatprep.subr.mxu0 0.0
        %2615 = vmatpush1.msra.mxu0 0.0
        %2616 = vmatprep.subr.mxu0 0.0
        %2617 = vmatpush1.msra.mxu0 0.0
        %2618 = vmatprep.subr.mxu0 0.0
        %2619 = vmatpush1.msra.mxu0 0.0
        %2620 = vmatprep.subr.mxu0 0.0
        %2621 = vmatpush1.msra.mxu0 0.0
        %2622 = vmatprep.subr.mxu0 0.0
        %2623 = vmatpush1.msra.mxu0 0.0
        %2624 = vmatprep.subr.mxu0 0.0
        %2625 = vmatpush1.msra.mxu0 0.0
        %2626 = vmatprep.subr.mxu0 0.0
        %2627 = vmatpush1.msra.mxu0 0.0
        %2628 = vmatprep.subr.mxu0 0.0
        %2629 = vmatpush1.msra.mxu0 0.0
        %2630 = vmatprep.subr.mxu0 0.0
        %2631 = vmatpush1.msra.mxu0 0.0
        %2632 = vmatprep.subr.mxu0 %v2385
        %2633 = vmatpush1.msra.mxu0 %v2383
        %2634 = vmatprep.subr.mxu0 0.0
        %2635 = vmatpush2.msra.mxu0 0.0
        %2636 = vmatprep.subr.mxu0 0.0
        %2637 = vmatpush2.msra.mxu0 0.0
        %2638 = vmatprep.subr.mxu0 0.0
        %2639 = vmatpush2.msra.mxu0 0.0
        %2640 = vmatprep.subr.mxu0 0.0
        %2641 = vmatpush2.msra.mxu0 0.0
        %2642 = vmatprep.subr.mxu0 0.0
        %2643 = vmatpush2.msra.mxu0 0.0
        %2644 = vmatprep.subr.mxu0 0.0
        %2645 = vmatpush2.msra.mxu0 0.0
        %2646 = vmatprep.subr.mxu0 0.0
        %2647 = vmatpush2.msra.mxu0 0.0
        %2648 = vmatprep.subr.mxu0 0.0
        %2649 = vmatpush2.msra.mxu0 0.0
        %2650 = vmatprep.subr.mxu0 0.0
        %2651 = vmatpush2.msra.mxu0 0.0
        %2652 = vmatprep.subr.mxu0 0.0
        %2653 = vmatpush2.msra.mxu0 0.0
        %2654 = vmatprep.subr.mxu0 0.0
        %2655 = vmatpush2.msra.mxu0 0.0
        %2656 = vmatprep.subr.mxu0 0.0
        %2657 = vmatpush2.msra.mxu0 0.0
        %2658 = vmatprep.subr.mxu0 0.0
        %2659 = vmatpush2.msra.mxu0 0.0
        %2660 = vmatprep.subr.mxu0 0.0
        %2661 = vmatpush2.msra.mxu0 0.0
        %2662 = vmatprep.subr.mxu0 0.0
        %2663 = vmatpush2.msra.mxu0 0.0
        %2664 = vmatprep.subr.mxu0 0.0
        %2665 = vmatpush2.msra.mxu0 0.0
        %2666 = vmatprep.mubr.f32.mxu0 0.0
        %2667 = vmatmul.mubr.f32.gmra.mxu0 %v2600
        %v2668 = vpop.f32.mrf.mxu0
        %v2669 = vadd.f32 %v2595, %v2668
        %v2670 = vpop.f32.mrf.mxu0
        %v2671 = vadd.f32 %v2597, %v2670
        %2672 = vdwg.mxu0
        %v2673 = vld [vmem:[#allocation4 + $0x400] sm:$0xff]
        %v2674 = vld [vmem:[#allocation4 + $0x408] sm:$0xff]
        %v2675 = vld [vmem:[#allocation4 + $0x410] sm:$0xff]
        %v2676 = vld [vmem:[#allocation4 + $0x418] sm:$0xff]
        %v2677 = vld [vmem:[#allocation4 + $0x420] sm:$0xff]
        %v2678 = vld [vmem:[#allocation4 + $0x428] sm:$0xff]
        %v2679 = vld [vmem:[#allocation4 + $0x430] sm:$0xff]
        %v2680 = vld [vmem:[#allocation4 + $0x438] sm:$0xff]
        %v2681 = vld [vmem:[#allocation4 + $0x440] sm:$0xff]
        %v2682 = vld [vmem:[#allocation4 + $0x448] sm:$0xff]
        %v2683 = vld [vmem:[#allocation4 + $0x450] sm:$0xff]
        %v2684 = vld [vmem:[#allocation4 + $0x458] sm:$0xff]
        %v2685 = vld [vmem:[#allocation4 + $0x460] sm:$0xff]
        %v2686 = vld [vmem:[#allocation4 + $0x468] sm:$0xff]
        %v2687 = vld [vmem:[#allocation4 + $0x470] sm:$0xff]
        %v2688 = vld [vmem:[#allocation4 + $0x478] sm:$0xff]
        %v2689 = vld [vmem:[#allocation4 + $0x480] sm:$0xff]
        %v2690 = vld [vmem:[#allocation4 + $0x488] sm:$0xff]
        %v2691 = vld [vmem:[#allocation4 + $0x490] sm:$0xff]
        %v2692 = vld [vmem:[#allocation4 + $0x498] sm:$0xff]
        %v2693 = vld [vmem:[#allocation4 + $0x4a0] sm:$0xff]
        %v2694 = vld [vmem:[#allocation4 + $0x4a8] sm:$0xff]
        %v2695 = vld [vmem:[#allocation4 + $0x4b0] sm:$0xff]
        %v2696 = vld [vmem:[#allocation4 + $0x4b8] sm:$0xff]
        %v2697 = vld [vmem:[#allocation4 + $0x4c0] sm:$0xff]
        %v2698 = vld [vmem:[#allocation4 + $0x4c8] sm:$0xff]
        %v2699 = vld [vmem:[#allocation4 + $0x4d0] sm:$0xff]
        %v2700 = vld [vmem:[#allocation4 + $0x4d8] sm:$0xff]
        %v2701 = vld [vmem:[#allocation4 + $0x4e0] sm:$0xff]
        %v2702 = vld [vmem:[#allocation4 + $0x4e8] sm:$0xff]
        %v2703 = vld [vmem:[#allocation4 + $0x4f0] sm:$0xff]
        %v2704 = vld [vmem:[#allocation4 + $0x4f8] sm:$0xff]
        %v2705 = vld [vmem:[#allocation4 + $0x500] sm:$0xff]
        %v2706 = vld [vmem:[#allocation4 + $0x508] sm:$0xff]
        %v2707 = vld [vmem:[#allocation4 + $0x510] sm:$0xff]
        %v2708 = vld [vmem:[#allocation4 + $0x518] sm:$0xff]
        %v2709 = vld [vmem:[#allocation4 + $0x520] sm:$0xff]
        %v2710 = vld [vmem:[#allocation4 + $0x528] sm:$0xff]
        %v2711 = vld [vmem:[#allocation4 + $0x530] sm:$0xff]
        %v2712 = vld [vmem:[#allocation4 + $0x538] sm:$0xff]
        %v2713 = vld [vmem:[#allocation4 + $0x540] sm:$0xff]
        %v2714 = vld [vmem:[#allocation4 + $0x548] sm:$0xff]
        %v2715 = vld [vmem:[#allocation4 + $0x550] sm:$0xff]
        %v2716 = vld [vmem:[#allocation4 + $0x558] sm:$0xff]
        %v2717 = vld [vmem:[#allocation4 + $0x560] sm:$0xff]
        %v2718 = vld [vmem:[#allocation4 + $0x568] sm:$0xff]
        %v2719 = vld [vmem:[#allocation4 + $0x570] sm:$0xff]
        %v2720 = vld [vmem:[#allocation4 + $0x578] sm:$0xff]
        %v2721 = vld [vmem:[#allocation4 + $0x580] sm:$0xff]
        %v2722 = vld [vmem:[#allocation4 + $0x588] sm:$0xff]
        %v2723 = vld [vmem:[#allocation4 + $0x590] sm:$0xff]
        %v2724 = vld [vmem:[#allocation4 + $0x598] sm:$0xff]
        %v2725 = vld [vmem:[#allocation4 + $0x5a0] sm:$0xff]
        %v2726 = vld [vmem:[#allocation4 + $0x5a8] sm:$0xff]
        %v2727 = vld [vmem:[#allocation4 + $0x5b0] sm:$0xff]
        %v2728 = vld [vmem:[#allocation4 + $0x5b8] sm:$0xff]
        %v2729 = vld [vmem:[#allocation4 + $0x5c0] sm:$0xff]
        %v2730 = vld [vmem:[#allocation4 + $0x5c8] sm:$0xff]
        %v2731 = vld [vmem:[#allocation4 + $0x5d0] sm:$0xff]
        %v2732 = vld [vmem:[#allocation4 + $0x5d8] sm:$0xff]
        %v2733 = vld [vmem:[#allocation4 + $0x5e0] sm:$0xff]
        %v2734 = vld [vmem:[#allocation4 + $0x5e8] sm:$0xff]
        %v2735 = vld [vmem:[#allocation4 + $0x5f0] sm:$0xff]
        %v2736 = vld [vmem:[#allocation4 + $0x5f8] sm:$0xff]
        %2737 = vmatprep.subr.mxu0 %v2704
        %2738 = vmatpush1.msra.mxu0 %v2703
        %2739 = vmatprep.subr.mxu0 %v2702
        %2740 = vmatpush1.msra.mxu0 %v2701
        %2741 = vmatprep.subr.mxu0 %v2700
        %2742 = vmatpush1.msra.mxu0 %v2699
        %2743 = vmatprep.subr.mxu0 %v2698
        %2744 = vmatpush1.msra.mxu0 %v2697
        %2745 = vmatprep.subr.mxu0 %v2696
        %2746 = vmatpush1.msra.mxu0 %v2695
        %2747 = vmatprep.subr.mxu0 %v2694
        %2748 = vmatpush1.msra.mxu0 %v2693
        %2749 = vmatprep.subr.mxu0 %v2692
        %2750 = vmatpush1.msra.mxu0 %v2691
        %2751 = vmatprep.subr.mxu0 %v2690
        %2752 = vmatpush1.msra.mxu0 %v2689
        %2753 = vmatprep.subr.mxu0 %v2688
        %2754 = vmatpush1.msra.mxu0 %v2687
        %2755 = vmatprep.subr.mxu0 %v2686
        %2756 = vmatpush1.msra.mxu0 %v2685
        %2757 = vmatprep.subr.mxu0 %v2684
        %2758 = vmatpush1.msra.mxu0 %v2683
        %2759 = vmatprep.subr.mxu0 %v2682
        %2760 = vmatpush1.msra.mxu0 %v2681
        %2761 = vmatprep.subr.mxu0 %v2680
        %2762 = vmatpush1.msra.mxu0 %v2679
        %2763 = vmatprep.subr.mxu0 %v2678
        %2764 = vmatpush1.msra.mxu0 %v2677
        %2765 = vmatprep.subr.mxu0 %v2676
        %2766 = vmatpush1.msra.mxu0 %v2675
        %2767 = vmatprep.subr.mxu0 %v2674
        %2768 = vmatpush1.msra.mxu0 %v2673
        %2769 = vmatprep.subr.mxu0 %v2736
        %2770 = vmatpush2.msra.mxu0 %v2735
        %2771 = vmatprep.subr.mxu0 %v2734
        %2772 = vmatpush2.msra.mxu0 %v2733
        %2773 = vmatprep.subr.mxu0 %v2732
        %2774 = vmatpush2.msra.mxu0 %v2731
        %2775 = vmatprep.subr.mxu0 %v2730
        %2776 = vmatpush2.msra.mxu0 %v2729
        %2777 = vmatprep.subr.mxu0 %v2728
        %2778 = vmatpush2.msra.mxu0 %v2727
        %2779 = vmatprep.subr.mxu0 %v2726
        %2780 = vmatpush2.msra.mxu0 %v2725
        %2781 = vmatprep.subr.mxu0 %v2724
        %2782 = vmatpush2.msra.mxu0 %v2723
        %2783 = vmatprep.subr.mxu0 %v2722
        %2784 = vmatpush2.msra.mxu0 %v2721
        %2785 = vmatprep.subr.mxu0 %v2720
        %2786 = vmatpush2.msra.mxu0 %v2719
        %2787 = vmatprep.subr.mxu0 %v2718
        %2788 = vmatpush2.msra.mxu0 %v2717
        %2789 = vmatprep.subr.mxu0 %v2716
        %2790 = vmatpush2.msra.mxu0 %v2715
        %2791 = vmatprep.subr.mxu0 %v2714
        %2792 = vmatpush2.msra.mxu0 %v2713
        %2793 = vmatprep.subr.mxu0 %v2712
        %2794 = vmatpush2.msra.mxu0 %v2711
        %2795 = vmatprep.subr.mxu0 %v2710
        %2796 = vmatpush2.msra.mxu0 %v2709
        %2797 = vmatprep.subr.mxu0 %v2708
        %2798 = vmatpush2.msra.mxu0 %v2707
        %2799 = vmatprep.subr.mxu0 %v2706
        %2800 = vmatpush2.msra.mxu0 %v2705
        %2801 = vmatprep.mubr.f32.mxu0 %v2250
        %2802 = vmatmul.mubr.f32.gmra.mxu0 %v2248
        %v2803 = vpop.f32.mrf.mxu0
        %v2804 = vadd.f32 0.0, %v2803
        %v2805 = vpop.f32.mrf.mxu0
        %v2806 = vadd.f32 0.0, %v2805
        %2807 = vdwg.mxu0
        %v2808 = vld [vmem:[%s7 + $0x10] sm:$0xff]
        %v2810 = vsel %vm2524, %v2808, 0
        %2812 = vmatprep.subr.mxu0 0.0
        %2813 = vmatpush1.msra.mxu0 0.0
        %2814 = vmatprep.subr.mxu0 0.0
        %2815 = vmatpush1.msra.mxu0 0.0
        %2816 = vmatprep.subr.mxu0 0.0
        %2817 = vmatpush1.msra.mxu0 0.0
        %2818 = vmatprep.subr.mxu0 0.0
        %2819 = vmatpush1.msra.mxu0 0.0
        %2820 = vmatprep.subr.mxu0 0.0
        %2821 = vmatpush1.msra.mxu0 0.0
        %2822 = vmatprep.subr.mxu0 0.0
        %2823 = vmatpush1.msra.mxu0 0.0
        %2824 = vmatprep.subr.mxu0 0.0
        %2825 = vmatpush1.msra.mxu0 0.0
        %2826 = vmatprep.subr.mxu0 0.0
        %2827 = vmatpush1.msra.mxu0 0.0
        %2828 = vmatprep.subr.mxu0 0.0
        %2829 = vmatpush1.msra.mxu0 0.0
        %2830 = vmatprep.subr.mxu0 0.0
        %2831 = vmatpush1.msra.mxu0 0.0
        %2832 = vmatprep.subr.mxu0 0.0
        %2833 = vmatpush1.msra.mxu0 0.0
        %2834 = vmatprep.subr.mxu0 0.0
        %2835 = vmatpush1.msra.mxu0 0.0
        %2836 = vmatprep.subr.mxu0 0.0
        %2837 = vmatpush1.msra.mxu0 0.0
        %2838 = vmatprep.subr.mxu0 0.0
        %2839 = vmatpush1.msra.mxu0 0.0
        %2840 = vmatprep.subr.mxu0 0.0
        %2841 = vmatpush1.msra.mxu0 0.0
        %2842 = vmatprep.subr.mxu0 %v2806
        %2843 = vmatpush1.msra.mxu0 %v2804
        %2844 = vmatprep.subr.mxu0 0.0
        %2845 = vmatpush2.msra.mxu0 0.0
        %2846 = vmatprep.subr.mxu0 0.0
        %2847 = vmatpush2.msra.mxu0 0.0
        %2848 = vmatprep.subr.mxu0 0.0
        %2849 = vmatpush2.msra.mxu0 0.0
        %2850 = vmatprep.subr.mxu0 0.0
        %2851 = vmatpush2.msra.mxu0 0.0
        %2852 = vmatprep.subr.mxu0 0.0
        %2853 = vmatpush2.msra.mxu0 0.0
        %2854 = vmatprep.subr.mxu0 0.0
        %2855 = vmatpush2.msra.mxu0 0.0
        %2856 = vmatprep.subr.mxu0 0.0
        %2857 = vmatpush2.msra.mxu0 0.0
        %2858 = vmatprep.subr.mxu0 0.0
        %2859 = vmatpush2.msra.mxu0 0.0
        %2860 = vmatprep.subr.mxu0 0.0
        %2861 = vmatpush2.msra.mxu0 0.0
        %2862 = vmatprep.subr.mxu0 0.0
        %2863 = vmatpush2.msra.mxu0 0.0
        %2864 = vmatprep.subr.mxu0 0.0
        %2865 = vmatpush2.msra.mxu0 0.0
        %2866 = vmatprep.subr.mxu0 0.0
        %2867 = vmatpush2.msra.mxu0 0.0
        %2868 = vmatprep.subr.mxu0 0.0
        %2869 = vmatpush2.msra.mxu0 0.0
        %2870 = vmatprep.subr.mxu0 0.0
        %2871 = vmatpush2.msra.mxu0 0.0
        %2872 = vmatprep.subr.mxu0 0.0
        %2873 = vmatpush2.msra.mxu0 0.0
        %2874 = vmatprep.subr.mxu0 0.0
        %2875 = vmatpush2.msra.mxu0 0.0
        %2876 = vmatprep.mubr.f32.mxu0 0.0
        %2877 = vmatmul.mubr.f32.gmra.mxu0 %v2810
        %v2878 = vpop.f32.mrf.mxu0
        %v2879 = vadd.f32 0.0, %v2878
        %v2880 = vpop.f32.mrf.mxu0
        %v2881 = vadd.f32 0.0, %v2880
        %2882 = vdwg.mxu0
        %v2883 = vadd.f32 %v2669, %v2879
        %v2884 = vadd.f32 %v2671, %v2881
        %v2885 = vld [vmem:[#allocation4 + $0x600] sm:$0xff]
        %v2886 = vld [vmem:[#allocation4 + $0x608] sm:$0xff]
        %v2887 = vld [vmem:[#allocation4 + $0x610] sm:$0xff]
        %v2888 = vld [vmem:[#allocation4 + $0x618] sm:$0xff]
        %v2889 = vld [vmem:[#allocation4 + $0x620] sm:$0xff]
        %v2890 = vld [vmem:[#allocation4 + $0x628] sm:$0xff]
        %v2891 = vld [vmem:[#allocation4 + $0x630] sm:$0xff]
        %v2892 = vld [vmem:[#allocation4 + $0x638] sm:$0xff]
        %v2893 = vld [vmem:[#allocation4 + $0x640] sm:$0xff]
        %v2894 = vld [vmem:[#allocation4 + $0x648] sm:$0xff]
        %v2895 = vld [vmem:[#allocation4 + $0x650] sm:$0xff]
        %v2896 = vld [vmem:[#allocation4 + $0x658] sm:$0xff]
        %v2897 = vld [vmem:[#allocation4 + $0x660] sm:$0xff]
        %v2898 = vld [vmem:[#allocation4 + $0x668] sm:$0xff]
        %v2899 = vld [vmem:[#allocation4 + $0x670] sm:$0xff]
        %v2900 = vld [vmem:[#allocation4 + $0x678] sm:$0xff]
        %v2901 = vld [vmem:[#allocation4 + $0x680] sm:$0xff]
        %v2902 = vld [vmem:[#allocation4 + $0x688] sm:$0xff]
        %v2903 = vld [vmem:[#allocation4 + $0x690] sm:$0xff]
        %v2904 = vld [vmem:[#allocation4 + $0x698] sm:$0xff]
        %v2905 = vld [vmem:[#allocation4 + $0x6a0] sm:$0xff]
        %v2906 = vld [vmem:[#allocation4 + $0x6a8] sm:$0xff]
        %v2907 = vld [vmem:[#allocation4 + $0x6b0] sm:$0xff]
        %v2908 = vld [vmem:[#allocation4 + $0x6b8] sm:$0xff]
        %v2909 = vld [vmem:[#allocation4 + $0x6c0] sm:$0xff]
        %v2910 = vld [vmem:[#allocation4 + $0x6c8] sm:$0xff]
        %v2911 = vld [vmem:[#allocation4 + $0x6d0] sm:$0xff]
        %v2912 = vld [vmem:[#allocation4 + $0x6d8] sm:$0xff]
        %v2913 = vld [vmem:[#allocation4 + $0x6e0] sm:$0xff]
        %v2914 = vld [vmem:[#allocation4 + $0x6e8] sm:$0xff]
        %v2915 = vld [vmem:[#allocation4 + $0x6f0] sm:$0xff]
        %v2916 = vld [vmem:[#allocation4 + $0x6f8] sm:$0xff]
        %v2917 = vld [vmem:[#allocation4 + $0x700] sm:$0xff]
        %v2918 = vld [vmem:[#allocation4 + $0x708] sm:$0xff]
        %v2919 = vld [vmem:[#allocation4 + $0x710] sm:$0xff]
        %v2920 = vld [vmem:[#allocation4 + $0x718] sm:$0xff]
        %v2921 = vld [vmem:[#allocation4 + $0x720] sm:$0xff]
        %v2922 = vld [vmem:[#allocation4 + $0x728] sm:$0xff]
        %v2923 = vld [vmem:[#allocation4 + $0x730] sm:$0xff]
        %v2924 = vld [vmem:[#allocation4 + $0x738] sm:$0xff]
        %v2925 = vld [vmem:[#allocation4 + $0x740] sm:$0xff]
        %v2926 = vld [vmem:[#allocation4 + $0x748] sm:$0xff]
        %v2927 = vld [vmem:[#allocation4 + $0x750] sm:$0xff]
        %v2928 = vld [vmem:[#allocation4 + $0x758] sm:$0xff]
        %v2929 = vld [vmem:[#allocation4 + $0x760] sm:$0xff]
        %v2930 = vld [vmem:[#allocation4 + $0x768] sm:$0xff]
        %v2931 = vld [vmem:[#allocation4 + $0x770] sm:$0xff]
        %v2932 = vld [vmem:[#allocation4 + $0x778] sm:$0xff]
        %v2933 = vld [vmem:[#allocation4 + $0x780] sm:$0xff]
        %v2934 = vld [vmem:[#allocation4 + $0x788] sm:$0xff]
        %v2935 = vld [vmem:[#allocation4 + $0x790] sm:$0xff]
        %v2936 = vld [vmem:[#allocation4 + $0x798] sm:$0xff]
        %v2937 = vld [vmem:[#allocation4 + $0x7a0] sm:$0xff]
        %v2938 = vld [vmem:[#allocation4 + $0x7a8] sm:$0xff]
        %v2939 = vld [vmem:[#allocation4 + $0x7b0] sm:$0xff]
        %v2940 = vld [vmem:[#allocation4 + $0x7b8] sm:$0xff]
        %v2941 = vld [vmem:[#allocation4 + $0x7c0] sm:$0xff]
        %v2942 = vld [vmem:[#allocation4 + $0x7c8] sm:$0xff]
        %v2943 = vld [vmem:[#allocation4 + $0x7d0] sm:$0xff]
        %v2944 = vld [vmem:[#allocation4 + $0x7d8] sm:$0xff]
        %v2945 = vld [vmem:[#allocation4 + $0x7e0] sm:$0xff]
        %v2946 = vld [vmem:[#allocation4 + $0x7e8] sm:$0xff]
        %v2947 = vld [vmem:[#allocation4 + $0x7f0] sm:$0xff]
        %v2948 = vld [vmem:[#allocation4 + $0x7f8] sm:$0xff]
        %2949 = vmatprep.subr.mxu0 %v2916
        %2950 = vmatpush1.msra.mxu0 %v2915
        %2951 = vmatprep.subr.mxu0 %v2914
        %2952 = vmatpush1.msra.mxu0 %v2913
        %2953 = vmatprep.subr.mxu0 %v2912
        %2954 = vmatpush1.msra.mxu0 %v2911
        %2955 = vmatprep.subr.mxu0 %v2910
        %2956 = vmatpush1.msra.mxu0 %v2909
        %2957 = vmatprep.subr.mxu0 %v2908
        %2958 = vmatpush1.msra.mxu0 %v2907
        %2959 = vmatprep.subr.mxu0 %v2906
        %2960 = vmatpush1.msra.mxu0 %v2905
        %2961 = vmatprep.subr.mxu0 %v2904
        %2962 = vmatpush1.msra.mxu0 %v2903
        %2963 = vmatprep.subr.mxu0 %v2902
        %2964 = vmatpush1.msra.mxu0 %v2901
        %2965 = vmatprep.subr.mxu0 %v2900
        %2966 = vmatpush1.msra.mxu0 %v2899
        %2967 = vmatprep.subr.mxu0 %v2898
        %2968 = vmatpush1.msra.mxu0 %v2897
        %2969 = vmatprep.subr.mxu0 %v2896
        %2970 = vmatpush1.msra.mxu0 %v2895
        %2971 = vmatprep.subr.mxu0 %v2894
        %2972 = vmatpush1.msra.mxu0 %v2893
        %2973 = vmatprep.subr.mxu0 %v2892
        %2974 = vmatpush1.msra.mxu0 %v2891
        %2975 = vmatprep.subr.mxu0 %v2890
        %2976 = vmatpush1.msra.mxu0 %v2889
        %2977 = vmatprep.subr.mxu0 %v2888
        %2978 = vmatpush1.msra.mxu0 %v2887
        %2979 = vmatprep.subr.mxu0 %v2886
        %2980 = vmatpush1.msra.mxu0 %v2885
        %2981 = vmatprep.subr.mxu0 %v2948
        %2982 = vmatpush2.msra.mxu0 %v2947
        %2983 = vmatprep.subr.mxu0 %v2946
        %2984 = vmatpush2.msra.mxu0 %v2945
        %2985 = vmatprep.subr.mxu0 %v2944
        %2986 = vmatpush2.msra.mxu0 %v2943
        %2987 = vmatprep.subr.mxu0 %v2942
        %2988 = vmatpush2.msra.mxu0 %v2941
        %2989 = vmatprep.subr.mxu0 %v2940
        %2990 = vmatpush2.msra.mxu0 %v2939
        %2991 = vmatprep.subr.mxu0 %v2938
        %2992 = vmatpush2.msra.mxu0 %v2937
        %2993 = vmatprep.subr.mxu0 %v2936
        %2994 = vmatpush2.msra.mxu0 %v2935
        %2995 = vmatprep.subr.mxu0 %v2934
        %2996 = vmatpush2.msra.mxu0 %v2933
        %2997 = vmatprep.subr.mxu0 %v2932
        %2998 = vmatpush2.msra.mxu0 %v2931
        %2999 = vmatprep.subr.mxu0 %v2930
        %3000 = vmatpush2.msra.mxu0 %v2929
        %3001 = vmatprep.subr.mxu0 %v2928
        %3002 = vmatpush2.msra.mxu0 %v2927
        %3003 = vmatprep.subr.mxu0 %v2926
        %3004 = vmatpush2.msra.mxu0 %v2925
        %3005 = vmatprep.subr.mxu0 %v2924
        %3006 = vmatpush2.msra.mxu0 %v2923
        %3007 = vmatprep.subr.mxu0 %v2922
        %3008 = vmatpush2.msra.mxu0 %v2921
        %3009 = vmatprep.subr.mxu0 %v2920
        %3010 = vmatpush2.msra.mxu0 %v2919
        %3011 = vmatprep.subr.mxu0 %v2918
        %3012 = vmatpush2.msra.mxu0 %v2917
        %3013 = vmatprep.mubr.f32.mxu0 %v2250
        %3014 = vmatmul.mubr.f32.gmra.mxu0 %v2248
        %v3015 = vpop.f32.mrf.mxu0
        %v3016 = vadd.f32 0.0, %v3015
        %v3017 = vpop.f32.mrf.mxu0
        %v3018 = vadd.f32 0.0, %v3017
        %3019 = vdwg.mxu0
        %v3020 = vld [vmem:[%s7 + $0x18] sm:$0xff]
        %v3022 = vsel %vm2524, %v3020, 0
        %3024 = vmatprep.subr.mxu0 0.0
        %3025 = vmatpush1.msra.mxu0 0.0
        %3026 = vmatprep.subr.mxu0 0.0
        %3027 = vmatpush1.msra.mxu0 0.0
        %3028 = vmatprep.subr.mxu0 0.0
        %3029 = vmatpush1.msra.mxu0 0.0
        %3030 = vmatprep.subr.mxu0 0.0
        %3031 = vmatpush1.msra.mxu0 0.0
        %3032 = vmatprep.subr.mxu0 0.0
        %3033 = vmatpush1.msra.mxu0 0.0
        %3034 = vmatprep.subr.mxu0 0.0
        %3035 = vmatpush1.msra.mxu0 0.0
        %3036 = vmatprep.subr.mxu0 0.0
        %3037 = vmatpush1.msra.mxu0 0.0
        %3038 = vmatprep.subr.mxu0 0.0
        %3039 = vmatpush1.msra.mxu0 0.0
        %3040 = vmatprep.subr.mxu0 0.0
        %3041 = vmatpush1.msra.mxu0 0.0
        %3042 = vmatprep.subr.mxu0 0.0
        %3043 = vmatpush1.msra.mxu0 0.0
        %3044 = vmatprep.subr.mxu0 0.0
        %3045 = vmatpush1.msra.mxu0 0.0
        %3046 = vmatprep.subr.mxu0 0.0
        %3047 = vmatpush1.msra.mxu0 0.0
        %3048 = vmatprep.subr.mxu0 0.0
        %3049 = vmatpush1.msra.mxu0 0.0
        %3050 = vmatprep.subr.mxu0 0.0
        %3051 = vmatpush1.msra.mxu0 0.0
        %3052 = vmatprep.subr.mxu0 0.0
        %3053 = vmatpush1.msra.mxu0 0.0
        %3054 = vmatprep.subr.mxu0 %v3018
        %3055 = vmatpush1.msra.mxu0 %v3016
        %3056 = vmatprep.subr.mxu0 0.0
        %3057 = vmatpush2.msra.mxu0 0.0
        %3058 = vmatprep.subr.mxu0 0.0
        %3059 = vmatpush2.msra.mxu0 0.0
        %3060 = vmatprep.subr.mxu0 0.0
        %3061 = vmatpush2.msra.mxu0 0.0
        %3062 = vmatprep.subr.mxu0 0.0
        %3063 = vmatpush2.msra.mxu0 0.0
        %3064 = vmatprep.subr.mxu0 0.0
        %3065 = vmatpush2.msra.mxu0 0.0
        %3066 = vmatprep.subr.mxu0 0.0
        %3067 = vmatpush2.msra.mxu0 0.0
        %3068 = vmatprep.subr.mxu0 0.0
        %3069 = vmatpush2.msra.mxu0 0.0
        %3070 = vmatprep.subr.mxu0 0.0
        %3071 = vmatpush2.msra.mxu0 0.0
        %3072 = vmatprep.subr.mxu0 0.0
        %3073 = vmatpush2.msra.mxu0 0.0
        %3074 = vmatprep.subr.mxu0 0.0
        %3075 = vmatpush2.msra.mxu0 0.0
        %3076 = vmatprep.subr.mxu0 0.0
        %3077 = vmatpush2.msra.mxu0 0.0
        %3078 = vmatprep.subr.mxu0 0.0
        %3079 = vmatpush2.msra.mxu0 0.0
        %3080 = vmatprep.subr.mxu0 0.0
        %3081 = vmatpush2.msra.mxu0 0.0
        %3082 = vmatprep.subr.mxu0 0.0
        %3083 = vmatpush2.msra.mxu0 0.0
        %3084 = vmatprep.subr.mxu0 0.0
        %3085 = vmatpush2.msra.mxu0 0.0
        %3086 = vmatprep.subr.mxu0 0.0
        %3087 = vmatpush2.msra.mxu0 0.0
        %3088 = vmatprep.mubr.f32.mxu0 0.0
        %3089 = vmatmul.mubr.f32.gmra.mxu0 %v3022
        %v3090 = vpop.f32.mrf.mxu0
        %v3091 = vadd.f32 0.0, %v3090
        %v3092 = vpop.f32.mrf.mxu0
        %v3093 = vadd.f32 0.0, %v3092
        %3094 = vdwg.mxu0
        %v3095 = vadd.f32 %v2883, %v3091
        %v3096 = vadd.f32 %v2884, %v3093
        %v3097 = vld [vmem:[%s7 + $0x20] sm:$0xff]
        %v3099 = vsel %vm2524, %v3097, 0
        %3101 = vmatprep.subr.mxu0 0.0
        %3102 = vmatpush1.msra.mxu0 0.0
        %3103 = vmatprep.subr.mxu0 0.0
        %3104 = vmatpush1.msra.mxu0 0.0
        %3105 = vmatprep.subr.mxu0 0.0
        %3106 = vmatpush1.msra.mxu0 0.0
        %3107 = vmatprep.subr.mxu0 0.0
        %3108 = vmatpush1.msra.mxu0 0.0
        %3109 = vmatprep.subr.mxu0 0.0
        %3110 = vmatpush1.msra.mxu0 0.0
        %3111 = vmatprep.subr.mxu0 0.0
        %3112 = vmatpush1.msra.mxu0 0.0
        %3113 = vmatprep.subr.mxu0 0.0
        %3114 = vmatpush1.msra.mxu0 0.0
        %3115 = vmatprep.subr.mxu0 0.0
        %3116 = vmatpush1.msra.mxu0 0.0
        %3117 = vmatprep.subr.mxu0 0.0
        %3118 = vmatpush1.msra.mxu0 0.0
        %3119 = vmatprep.subr.mxu0 0.0
        %3120 = vmatpush1.msra.mxu0 0.0
        %3121 = vmatprep.subr.mxu0 0.0
        %3122 = vmatpush1.msra.mxu0 0.0
        %3123 = vmatprep.subr.mxu0 0.0
        %3124 = vmatpush1.msra.mxu0 0.0
        %3125 = vmatprep.subr.mxu0 0.0
        %3126 = vmatpush1.msra.mxu0 0.0
        %3127 = vmatprep.subr.mxu0 0.0
        %3128 = vmatpush1.msra.mxu0 0.0
        %3129 = vmatprep.subr.mxu0 0.0
        %3130 = vmatpush1.msra.mxu0 0.0
        %3131 = vmatprep.subr.mxu0 %v2250
        %3132 = vmatpush1.msra.mxu0 %v2248
        %3133 = vmatprep.subr.mxu0 0.0
        %3134 = vmatpush2.msra.mxu0 0.0
        %3135 = vmatprep.subr.mxu0 0.0
        %3136 = vmatpush2.msra.mxu0 0.0
        %3137 = vmatprep.subr.mxu0 0.0
        %3138 = vmatpush2.msra.mxu0 0.0
        %3139 = vmatprep.subr.mxu0 0.0
        %3140 = vmatpush2.msra.mxu0 0.0
        %3141 = vmatprep.subr.mxu0 0.0
        %3142 = vmatpush2.msra.mxu0 0.0
        %3143 = vmatprep.subr.mxu0 0.0
        %3144 = vmatpush2.msra.mxu0 0.0
        %3145 = vmatprep.subr.mxu0 0.0
        %3146 = vmatpush2.msra.mxu0 0.0
        %3147 = vmatprep.subr.mxu0 0.0
        %3148 = vmatpush2.msra.mxu0 0.0
        %3149 = vmatprep.subr.mxu0 0.0
        %3150 = vmatpush2.msra.mxu0 0.0
        %3151 = vmatprep.subr.mxu0 0.0
        %3152 = vmatpush2.msra.mxu0 0.0
        %3153 = vmatprep.subr.mxu0 0.0
        %3154 = vmatpush2.msra.mxu0 0.0
        %3155 = vmatprep.subr.mxu0 0.0
        %3156 = vmatpush2.msra.mxu0 0.0
        %3157 = vmatprep.subr.mxu0 0.0
        %3158 = vmatpush2.msra.mxu0 0.0
        %3159 = vmatprep.subr.mxu0 0.0
        %3160 = vmatpush2.msra.mxu0 0.0
        %3161 = vmatprep.subr.mxu0 0.0
        %3162 = vmatpush2.msra.mxu0 0.0
        %3163 = vmatprep.subr.mxu0 0.0
        %3164 = vmatpush2.msra.mxu0 0.0
        %3165 = vmatprep.mubr.f32.mxu0 0.0
        %3166 = vmatmul.mubr.f32.gmra.mxu0 %v3099
        %v3167 = vpop.f32.mrf.mxu0
        %v3168 = vadd.f32 0.0, %v3167
        %v3169 = vpop.f32.mrf.mxu0
        %v3170 = vadd.f32 0.0, %v3169
        %3171 = vdwg.mxu0
        %v3172 = vadd.f32 %v3095, %v3168
        %v3173 = vadd.f32 %v3096, %v3170
        %v3174 = vld [vmem:[#allocation4 + $0xa00] sm:$0xff]
        %v3175 = vld [vmem:[#allocation4 + $0xa08] sm:$0xff]
        %v3176 = vld [vmem:[#allocation4 + $0xa10] sm:$0xff]
        %v3177 = vld [vmem:[#allocation4 + $0xa18] sm:$0xff]
        %v3178 = vld [vmem:[#allocation4 + $0xa20] sm:$0xff]
        %v3179 = vld [vmem:[#allocation4 + $0xa28] sm:$0xff]
        %v3180 = vld [vmem:[#allocation4 + $0xa30] sm:$0xff]
        %v3181 = vld [vmem:[#allocation4 + $0xa38] sm:$0xff]
        %v3182 = vld [vmem:[#allocation4 + $0xa40] sm:$0xff]
        %v3183 = vld [vmem:[#allocation4 + $0xa48] sm:$0xff]
        %v3184 = vld [vmem:[#allocation4 + $0xa50] sm:$0xff]
        %v3185 = vld [vmem:[#allocation4 + $0xa58] sm:$0xff]
        %v3186 = vld [vmem:[#allocation4 + $0xa60] sm:$0xff]
        %v3187 = vld [vmem:[#allocation4 + $0xa68] sm:$0xff]
        %v3188 = vld [vmem:[#allocation4 + $0xa70] sm:$0xff]
        %v3189 = vld [vmem:[#allocation4 + $0xa78] sm:$0xff]
        %v3190 = vld [vmem:[#allocation4 + $0xa80] sm:$0xff]
        %v3191 = vld [vmem:[#allocation4 + $0xa88] sm:$0xff]
        %v3192 = vld [vmem:[#allocation4 + $0xa90] sm:$0xff]
        %v3193 = vld [vmem:[#allocation4 + $0xa98] sm:$0xff]
        %v3194 = vld [vmem:[#allocation4 + $0xaa0] sm:$0xff]
        %v3195 = vld [vmem:[#allocation4 + $0xaa8] sm:$0xff]
        %v3196 = vld [vmem:[#allocation4 + $0xab0] sm:$0xff]
        %v3197 = vld [vmem:[#allocation4 + $0xab8] sm:$0xff]
        %v3198 = vld [vmem:[#allocation4 + $0xac0] sm:$0xff]
        %v3199 = vld [vmem:[#allocation4 + $0xac8] sm:$0xff]
        %v3200 = vld [vmem:[#allocation4 + $0xad0] sm:$0xff]
        %v3201 = vld [vmem:[#allocation4 + $0xad8] sm:$0xff]
        %v3202 = vld [vmem:[#allocation4 + $0xae0] sm:$0xff]
        %v3203 = vld [vmem:[#allocation4 + $0xae8] sm:$0xff]
        %v3204 = vld [vmem:[#allocation4 + $0xaf0] sm:$0xff]
        %v3205 = vld [vmem:[#allocation4 + $0xaf8] sm:$0xff]
        %v3206 = vld [vmem:[#allocation4 + $0xb00] sm:$0xff]
        %v3207 = vld [vmem:[#allocation4 + $0xb08] sm:$0xff]
        %v3208 = vld [vmem:[#allocation4 + $0xb10] sm:$0xff]
        %v3209 = vld [vmem:[#allocation4 + $0xb18] sm:$0xff]
        %v3210 = vld [vmem:[#allocation4 + $0xb20] sm:$0xff]
        %v3211 = vld [vmem:[#allocation4 + $0xb28] sm:$0xff]
        %v3212 = vld [vmem:[#allocation4 + $0xb30] sm:$0xff]
        %v3213 = vld [vmem:[#allocation4 + $0xb38] sm:$0xff]
        %v3214 = vld [vmem:[#allocation4 + $0xb40] sm:$0xff]
        %v3215 = vld [vmem:[#allocation4 + $0xb48] sm:$0xff]
        %v3216 = vld [vmem:[#allocation4 + $0xb50] sm:$0xff]
        %v3217 = vld [vmem:[#allocation4 + $0xb58] sm:$0xff]
        %v3218 = vld [vmem:[#allocation4 + $0xb60] sm:$0xff]
        %v3219 = vld [vmem:[#allocation4 + $0xb68] sm:$0xff]
        %v3220 = vld [vmem:[#allocation4 + $0xb70] sm:$0xff]
        %v3221 = vld [vmem:[#allocation4 + $0xb78] sm:$0xff]
        %v3222 = vld [vmem:[#allocation4 + $0xb80] sm:$0xff]
        %v3223 = vld [vmem:[#allocation4 + $0xb88] sm:$0xff]
        %v3224 = vld [vmem:[#allocation4 + $0xb90] sm:$0xff]
        %v3225 = vld [vmem:[#allocation4 + $0xb98] sm:$0xff]
        %v3226 = vld [vmem:[#allocation4 + $0xba0] sm:$0xff]
        %v3227 = vld [vmem:[#allocation4 + $0xba8] sm:$0xff]
        %v3228 = vld [vmem:[#allocation4 + $0xbb0] sm:$0xff]
        %v3229 = vld [vmem:[#allocation4 + $0xbb8] sm:$0xff]
        %v3230 = vld [vmem:[#allocation4 + $0xbc0] sm:$0xff]
        %v3231 = vld [vmem:[#allocation4 + $0xbc8] sm:$0xff]
        %v3232 = vld [vmem:[#allocation4 + $0xbd0] sm:$0xff]
        %v3233 = vld [vmem:[#allocation4 + $0xbd8] sm:$0xff]
        %v3234 = vld [vmem:[#allocation4 + $0xbe0] sm:$0xff]
        %v3235 = vld [vmem:[#allocation4 + $0xbe8] sm:$0xff]
        %v3236 = vld [vmem:[#allocation4 + $0xbf0] sm:$0xff]
        %v3237 = vld [vmem:[#allocation4 + $0xbf8] sm:$0xff]
        %3238 = vmatprep.subr.mxu0 %v3205
        %3239 = vmatpush1.msra.mxu0 %v3204
        %3240 = vmatprep.subr.mxu0 %v3203
        %3241 = vmatpush1.msra.mxu0 %v3202
        %3242 = vmatprep.subr.mxu0 %v3201
        %3243 = vmatpush1.msra.mxu0 %v3200
        %3244 = vmatprep.subr.mxu0 %v3199
        %3245 = vmatpush1.msra.mxu0 %v3198
        %3246 = vmatprep.subr.mxu0 %v3197
        %3247 = vmatpush1.msra.mxu0 %v3196
        %3248 = vmatprep.subr.mxu0 %v3195
        %3249 = vmatpush1.msra.mxu0 %v3194
        %3250 = vmatprep.subr.mxu0 %v3193
        %3251 = vmatpush1.msra.mxu0 %v3192
        %3252 = vmatprep.subr.mxu0 %v3191
        %3253 = vmatpush1.msra.mxu0 %v3190
        %3254 = vmatprep.subr.mxu0 %v3189
        %3255 = vmatpush1.msra.mxu0 %v3188
        %3256 = vmatprep.subr.mxu0 %v3187
        %3257 = vmatpush1.msra.mxu0 %v3186
        %3258 = vmatprep.subr.mxu0 %v3185
        %3259 = vmatpush1.msra.mxu0 %v3184
        %3260 = vmatprep.subr.mxu0 %v3183
        %3261 = vmatpush1.msra.mxu0 %v3182
        %3262 = vmatprep.subr.mxu0 %v3181
        %3263 = vmatpush1.msra.mxu0 %v3180
        %3264 = vmatprep.subr.mxu0 %v3179
        %3265 = vmatpush1.msra.mxu0 %v3178
        %3266 = vmatprep.subr.mxu0 %v3177
        %3267 = vmatpush1.msra.mxu0 %v3176
        %3268 = vmatprep.subr.mxu0 %v3175
        %3269 = vmatpush1.msra.mxu0 %v3174
        %3270 = vmatprep.subr.mxu0 %v3237
        %3271 = vmatpush2.msra.mxu0 %v3236
        %3272 = vmatprep.subr.mxu0 %v3235
        %3273 = vmatpush2.msra.mxu0 %v3234
        %3274 = vmatprep.subr.mxu0 %v3233
        %3275 = vmatpush2.msra.mxu0 %v3232
        %3276 = vmatprep.subr.mxu0 %v3231
        %3277 = vmatpush2.msra.mxu0 %v3230
        %3278 = vmatprep.subr.mxu0 %v3229
        %3279 = vmatpush2.msra.mxu0 %v3228
        %3280 = vmatprep.subr.mxu0 %v3227
        %3281 = vmatpush2.msra.mxu0 %v3226
        %3282 = vmatprep.subr.mxu0 %v3225
        %3283 = vmatpush2.msra.mxu0 %v3224
        %3284 = vmatprep.subr.mxu0 %v3223
        %3285 = vmatpush2.msra.mxu0 %v3222
        %3286 = vmatprep.subr.mxu0 %v3221
        %3287 = vmatpush2.msra.mxu0 %v3220
        %3288 = vmatprep.subr.mxu0 %v3219
        %3289 = vmatpush2.msra.mxu0 %v3218
        %3290 = vmatprep.subr.mxu0 %v3217
        %3291 = vmatpush2.msra.mxu0 %v3216
        %3292 = vmatprep.subr.mxu0 %v3215
        %3293 = vmatpush2.msra.mxu0 %v3214
        %3294 = vmatprep.subr.mxu0 %v3213
        %3295 = vmatpush2.msra.mxu0 %v3212
        %3296 = vmatprep.subr.mxu0 %v3211
        %3297 = vmatpush2.msra.mxu0 %v3210
        %3298 = vmatprep.subr.mxu0 %v3209
        %3299 = vmatpush2.msra.mxu0 %v3208
        %3300 = vmatprep.subr.mxu0 %v3207
        %3301 = vmatpush2.msra.mxu0 %v3206
        %3302 = vmatprep.mubr.f32.mxu0 %v2250
        %3303 = vmatmul.mubr.f32.gmra.mxu0 %v2248
        %v3304 = vpop.f32.mrf.mxu0
        %v3305 = vadd.f32 0.0, %v3304
        %v3306 = vpop.f32.mrf.mxu0
        %v3307 = vadd.f32 0.0, %v3306
        %3308 = vdwg.mxu0
        %v3309 = vld [vmem:[%s7 + $0x28] sm:$0xff]
        %v3311 = vsel %vm2524, %v3309, 0
        %3313 = vmatprep.subr.mxu0 0.0
        %3314 = vmatpush1.msra.mxu0 0.0
        %3315 = vmatprep.subr.mxu0 0.0
        %3316 = vmatpush1.msra.mxu0 0.0
        %3317 = vmatprep.subr.mxu0 0.0
        %3318 = vmatpush1.msra.mxu0 0.0
        %3319 = vmatprep.subr.mxu0 0.0
        %3320 = vmatpush1.msra.mxu0 0.0
        %3321 = vmatprep.subr.mxu0 0.0
        %3322 = vmatpush1.msra.mxu0 0.0
        %3323 = vmatprep.subr.mxu0 0.0
        %3324 = vmatpush1.msra.mxu0 0.0
        %3325 = vmatprep.subr.mxu0 0.0
        %3326 = vmatpush1.msra.mxu0 0.0
        %3327 = vmatprep.subr.mxu0 0.0
        %3328 = vmatpush1.msra.mxu0 0.0
        %3329 = vmatprep.subr.mxu0 0.0
        %3330 = vmatpush1.msra.mxu0 0.0
        %3331 = vmatprep.subr.mxu0 0.0
        %3332 = vmatpush1.msra.mxu0 0.0
        %3333 = vmatprep.subr.mxu0 0.0
        %3334 = vmatpush1.msra.mxu0 0.0
        %3335 = vmatprep.subr.mxu0 0.0
        %3336 = vmatpush1.msra.mxu0 0.0
        %3337 = vmatprep.subr.mxu0 0.0
        %3338 = vmatpush1.msra.mxu0 0.0
        %3339 = vmatprep.subr.mxu0 0.0
        %3340 = vmatpush1.msra.mxu0 0.0
        %3341 = vmatprep.subr.mxu0 0.0
        %3342 = vmatpush1.msra.mxu0 0.0
        %3343 = vmatprep.subr.mxu0 %v3307
        %3344 = vmatpush1.msra.mxu0 %v3305
        %3345 = vmatprep.subr.mxu0 0.0
        %3346 = vmatpush2.msra.mxu0 0.0
        %3347 = vmatprep.subr.mxu0 0.0
        %3348 = vmatpush2.msra.mxu0 0.0
        %3349 = vmatprep.subr.mxu0 0.0
        %3350 = vmatpush2.msra.mxu0 0.0
        %3351 = vmatprep.subr.mxu0 0.0
        %3352 = vmatpush2.msra.mxu0 0.0
        %3353 = vmatprep.subr.mxu0 0.0
        %3354 = vmatpush2.msra.mxu0 0.0
        %3355 = vmatprep.subr.mxu0 0.0
        %3356 = vmatpush2.msra.mxu0 0.0
        %3357 = vmatprep.subr.mxu0 0.0
        %3358 = vmatpush2.msra.mxu0 0.0
        %3359 = vmatprep.subr.mxu0 0.0
        %3360 = vmatpush2.msra.mxu0 0.0
        %3361 = vmatprep.subr.mxu0 0.0
        %3362 = vmatpush2.msra.mxu0 0.0
        %3363 = vmatprep.subr.mxu0 0.0
        %3364 = vmatpush2.msra.mxu0 0.0
        %3365 = vmatprep.subr.mxu0 0.0
        %3366 = vmatpush2.msra.mxu0 0.0
        %3367 = vmatprep.subr.mxu0 0.0
        %3368 = vmatpush2.msra.mxu0 0.0
        %3369 = vmatprep.subr.mxu0 0.0
        %3370 = vmatpush2.msra.mxu0 0.0
        %3371 = vmatprep.subr.mxu0 0.0
        %3372 = vmatpush2.msra.mxu0 0.0
        %3373 = vmatprep.subr.mxu0 0.0
        %3374 = vmatpush2.msra.mxu0 0.0
        %3375 = vmatprep.subr.mxu0 0.0
        %3376 = vmatpush2.msra.mxu0 0.0
        %3377 = vmatprep.mubr.f32.mxu0 0.0
        %3378 = vmatmul.mubr.f32.gmra.mxu0 %v3311
        %v3379 = vpop.f32.mrf.mxu0
        %v3380 = vadd.f32 0.0, %v3379
        %v3381 = vpop.f32.mrf.mxu0
        %v3382 = vadd.f32 0.0, %v3381
        %3383 = vdwg.mxu0
        %v3384 = vadd.f32 %v3172, %v3380
        %v3385 = vadd.f32 %v3173, %v3382
        %v3386 = vld [vmem:[#allocation4 + $0xc00] sm:$0xff]
        %v3387 = vld [vmem:[#allocation4 + $0xc08] sm:$0xff]
        %v3388 = vld [vmem:[#allocation4 + $0xc10] sm:$0xff]
        %v3389 = vld [vmem:[#allocation4 + $0xc18] sm:$0xff]
        %v3390 = vld [vmem:[#allocation4 + $0xc20] sm:$0xff]
        %v3391 = vld [vmem:[#allocation4 + $0xc28] sm:$0xff]
        %v3392 = vld [vmem:[#allocation4 + $0xc30] sm:$0xff]
        %v3393 = vld [vmem:[#allocation4 + $0xc38] sm:$0xff]
        %v3394 = vld [vmem:[#allocation4 + $0xc40] sm:$0xff]
        %v3395 = vld [vmem:[#allocation4 + $0xc48] sm:$0xff]
        %v3396 = vld [vmem:[#allocation4 + $0xc50] sm:$0xff]
        %v3397 = vld [vmem:[#allocation4 + $0xc58] sm:$0xff]
        %v3398 = vld [vmem:[#allocation4 + $0xc60] sm:$0xff]
        %v3399 = vld [vmem:[#allocation4 + $0xc68] sm:$0xff]
        %v3400 = vld [vmem:[#allocation4 + $0xc70] sm:$0xff]
        %v3401 = vld [vmem:[#allocation4 + $0xc78] sm:$0xff]
        %v3402 = vld [vmem:[#allocation4 + $0xc80] sm:$0xff]
        %v3403 = vld [vmem:[#allocation4 + $0xc88] sm:$0xff]
        %v3404 = vld [vmem:[#allocation4 + $0xc90] sm:$0xff]
        %v3405 = vld [vmem:[#allocation4 + $0xc98] sm:$0xff]
        %v3406 = vld [vmem:[#allocation4 + $0xca0] sm:$0xff]
        %v3407 = vld [vmem:[#allocation4 + $0xca8] sm:$0xff]
        %v3408 = vld [vmem:[#allocation4 + $0xcb0] sm:$0xff]
        %v3409 = vld [vmem:[#allocation4 + $0xcb8] sm:$0xff]
        %v3410 = vld [vmem:[#allocation4 + $0xcc0] sm:$0xff]
        %v3411 = vld [vmem:[#allocation4 + $0xcc8] sm:$0xff]
        %v3412 = vld [vmem:[#allocation4 + $0xcd0] sm:$0xff]
        %v3413 = vld [vmem:[#allocation4 + $0xcd8] sm:$0xff]
        %v3414 = vld [vmem:[#allocation4 + $0xce0] sm:$0xff]
        %v3415 = vld [vmem:[#allocation4 + $0xce8] sm:$0xff]
        %v3416 = vld [vmem:[#allocation4 + $0xcf0] sm:$0xff]
        %v3417 = vld [vmem:[#allocation4 + $0xcf8] sm:$0xff]
        %v3418 = vld [vmem:[#allocation4 + $0xd00] sm:$0xff]
        %v3419 = vld [vmem:[#allocation4 + $0xd08] sm:$0xff]
        %v3420 = vld [vmem:[#allocation4 + $0xd10] sm:$0xff]
        %v3421 = vld [vmem:[#allocation4 + $0xd18] sm:$0xff]
        %v3422 = vld [vmem:[#allocation4 + $0xd20] sm:$0xff]
        %v3423 = vld [vmem:[#allocation4 + $0xd28] sm:$0xff]
        %v3424 = vld [vmem:[#allocation4 + $0xd30] sm:$0xff]
        %v3425 = vld [vmem:[#allocation4 + $0xd38] sm:$0xff]
        %v3426 = vld [vmem:[#allocation4 + $0xd40] sm:$0xff]
        %v3427 = vld [vmem:[#allocation4 + $0xd48] sm:$0xff]
        %v3428 = vld [vmem:[#allocation4 + $0xd50] sm:$0xff]
        %v3429 = vld [vmem:[#allocation4 + $0xd58] sm:$0xff]
        %v3430 = vld [vmem:[#allocation4 + $0xd60] sm:$0xff]
        %v3431 = vld [vmem:[#allocation4 + $0xd68] sm:$0xff]
        %v3432 = vld [vmem:[#allocation4 + $0xd70] sm:$0xff]
        %v3433 = vld [vmem:[#allocation4 + $0xd78] sm:$0xff]
        %v3434 = vld [vmem:[#allocation4 + $0xd80] sm:$0xff]
        %v3435 = vld [vmem:[#allocation4 + $0xd88] sm:$0xff]
        %v3436 = vld [vmem:[#allocation4 + $0xd90] sm:$0xff]
        %v3437 = vld [vmem:[#allocation4 + $0xd98] sm:$0xff]
        %v3438 = vld [vmem:[#allocation4 + $0xda0] sm:$0xff]
        %v3439 = vld [vmem:[#allocation4 + $0xda8] sm:$0xff]
        %v3440 = vld [vmem:[#allocation4 + $0xdb0] sm:$0xff]
        %v3441 = vld [vmem:[#allocation4 + $0xdb8] sm:$0xff]
        %v3442 = vld [vmem:[#allocation4 + $0xdc0] sm:$0xff]
        %v3443 = vld [vmem:[#allocation4 + $0xdc8] sm:$0xff]
        %v3444 = vld [vmem:[#allocation4 + $0xdd0] sm:$0xff]
        %v3445 = vld [vmem:[#allocation4 + $0xdd8] sm:$0xff]
        %v3446 = vld [vmem:[#allocation4 + $0xde0] sm:$0xff]
        %v3447 = vld [vmem:[#allocation4 + $0xde8] sm:$0xff]
        %v3448 = vld [vmem:[#allocation4 + $0xdf0] sm:$0xff]
        %v3449 = vld [vmem:[#allocation4 + $0xdf8] sm:$0xff]
        %3450 = vmatprep.subr.mxu0 %v3417
        %3451 = vmatpush1.msra.mxu0 %v3416
        %3452 = vmatprep.subr.mxu0 %v3415
        %3453 = vmatpush1.msra.mxu0 %v3414
        %3454 = vmatprep.subr.mxu0 %v3413
        %3455 = vmatpush1.msra.mxu0 %v3412
        %3456 = vmatprep.subr.mxu0 %v3411
        %3457 = vmatpush1.msra.mxu0 %v3410
        %3458 = vmatprep.subr.mxu0 %v3409
        %3459 = vmatpush1.msra.mxu0 %v3408
        %3460 = vmatprep.subr.mxu0 %v3407
        %3461 = vmatpush1.msra.mxu0 %v3406
        %3462 = vmatprep.subr.mxu0 %v3405
        %3463 = vmatpush1.msra.mxu0 %v3404
        %3464 = vmatprep.subr.mxu0 %v3403
        %3465 = vmatpush1.msra.mxu0 %v3402
        %3466 = vmatprep.subr.mxu0 %v3401
        %3467 = vmatpush1.msra.mxu0 %v3400
        %3468 = vmatprep.subr.mxu0 %v3399
        %3469 = vmatpush1.msra.mxu0 %v3398
        %3470 = vmatprep.subr.mxu0 %v3397
        %3471 = vmatpush1.msra.mxu0 %v3396
        %3472 = vmatprep.subr.mxu0 %v3395
        %3473 = vmatpush1.msra.mxu0 %v3394
        %3474 = vmatprep.subr.mxu0 %v3393
        %3475 = vmatpush1.msra.mxu0 %v3392
        %3476 = vmatprep.subr.mxu0 %v3391
        %3477 = vmatpush1.msra.mxu0 %v3390
        %3478 = vmatprep.subr.mxu0 %v3389
        %3479 = vmatpush1.msra.mxu0 %v3388
        %3480 = vmatprep.subr.mxu0 %v3387
        %3481 = vmatpush1.msra.mxu0 %v3386
        %3482 = vmatprep.subr.mxu0 %v3449
        %3483 = vmatpush2.msra.mxu0 %v3448
        %3484 = vmatprep.subr.mxu0 %v3447
        %3485 = vmatpush2.msra.mxu0 %v3446
        %3486 = vmatprep.subr.mxu0 %v3445
        %3487 = vmatpush2.msra.mxu0 %v3444
        %3488 = vmatprep.subr.mxu0 %v3443
        %3489 = vmatpush2.msra.mxu0 %v3442
        %3490 = vmatprep.subr.mxu0 %v3441
        %3491 = vmatpush2.msra.mxu0 %v3440
        %3492 = vmatprep.subr.mxu0 %v3439
        %3493 = vmatpush2.msra.mxu0 %v3438
        %3494 = vmatprep.subr.mxu0 %v3437
        %3495 = vmatpush2.msra.mxu0 %v3436
        %3496 = vmatprep.subr.mxu0 %v3435
        %3497 = vmatpush2.msra.mxu0 %v3434
        %3498 = vmatprep.subr.mxu0 %v3433
        %3499 = vmatpush2.msra.mxu0 %v3432
        %3500 = vmatprep.subr.mxu0 %v3431
        %3501 = vmatpush2.msra.mxu0 %v3430
        %3502 = vmatprep.subr.mxu0 %v3429
        %3503 = vmatpush2.msra.mxu0 %v3428
        %3504 = vmatprep.subr.mxu0 %v3427
        %3505 = vmatpush2.msra.mxu0 %v3426
        %3506 = vmatprep.subr.mxu0 %v3425
        %3507 = vmatpush2.msra.mxu0 %v3424
        %3508 = vmatprep.subr.mxu0 %v3423
        %3509 = vmatpush2.msra.mxu0 %v3422
        %3510 = vmatprep.subr.mxu0 %v3421
        %3511 = vmatpush2.msra.mxu0 %v3420
        %3512 = vmatprep.subr.mxu0 %v3419
        %3513 = vmatpush2.msra.mxu0 %v3418
        %3514 = vmatprep.mubr.f32.mxu0 %v2250
        %3515 = vmatmul.mubr.f32.gmra.mxu0 %v2248
        %v3516 = vpop.f32.mrf.mxu0
        %v3517 = vadd.f32 0.0, %v3516
        %v3518 = vpop.f32.mrf.mxu0
        %v3519 = vadd.f32 0.0, %v3518
        %3520 = vdwg.mxu0
        %v3521 = vld [vmem:[%s7 + $0x30] sm:$0xff]
        %v3523 = vsel %vm2524, %v3521, 0
        %3525 = vmatprep.subr.mxu0 0.0
        %3526 = vmatpush1.msra.mxu0 0.0
        %3527 = vmatprep.subr.mxu0 0.0
        %3528 = vmatpush1.msra.mxu0 0.0
        %3529 = vmatprep.subr.mxu0 0.0
        %3530 = vmatpush1.msra.mxu0 0.0
        %3531 = vmatprep.subr.mxu0 0.0
        %3532 = vmatpush1.msra.mxu0 0.0
        %3533 = vmatprep.subr.mxu0 0.0
        %3534 = vmatpush1.msra.mxu0 0.0
        %3535 = vmatprep.subr.mxu0 0.0
        %3536 = vmatpush1.msra.mxu0 0.0
        %3537 = vmatprep.subr.mxu0 0.0
        %3538 = vmatpush1.msra.mxu0 0.0
        %3539 = vmatprep.subr.mxu0 0.0
        %3540 = vmatpush1.msra.mxu0 0.0
        %3541 = vmatprep.subr.mxu0 0.0
        %3542 = vmatpush1.msra.mxu0 0.0
        %3543 = vmatprep.subr.mxu0 0.0
        %3544 = vmatpush1.msra.mxu0 0.0
        %3545 = vmatprep.subr.mxu0 0.0
        %3546 = vmatpush1.msra.mxu0 0.0
        %3547 = vmatprep.subr.mxu0 0.0
        %3548 = vmatpush1.msra.mxu0 0.0
        %3549 = vmatprep.subr.mxu0 0.0
        %3550 = vmatpush1.msra.mxu0 0.0
        %3551 = vmatprep.subr.mxu0 0.0
        %3552 = vmatpush1.msra.mxu0 0.0
        %3553 = vmatprep.subr.mxu0 0.0
        %3554 = vmatpush1.msra.mxu0 0.0
        %3555 = vmatprep.subr.mxu0 %v3519
        %3556 = vmatpush1.msra.mxu0 %v3517
        %3557 = vmatprep.subr.mxu0 0.0
        %3558 = vmatpush2.msra.mxu0 0.0
        %3559 = vmatprep.subr.mxu0 0.0
        %3560 = vmatpush2.msra.mxu0 0.0
        %3561 = vmatprep.subr.mxu0 0.0
        %3562 = vmatpush2.msra.mxu0 0.0
        %3563 = vmatprep.subr.mxu0 0.0
        %3564 = vmatpush2.msra.mxu0 0.0
        %3565 = vmatprep.subr.mxu0 0.0
        %3566 = vmatpush2.msra.mxu0 0.0
        %3567 = vmatprep.subr.mxu0 0.0
        %3568 = vmatpush2.msra.mxu0 0.0
        %3569 = vmatprep.subr.mxu0 0.0
        %3570 = vmatpush2.msra.mxu0 0.0
        %3571 = vmatprep.subr.mxu0 0.0
        %3572 = vmatpush2.msra.mxu0 0.0
        %3573 = vmatprep.subr.mxu0 0.0
        %3574 = vmatpush2.msra.mxu0 0.0
        %3575 = vmatprep.subr.mxu0 0.0
        %3576 = vmatpush2.msra.mxu0 0.0
        %3577 = vmatprep.subr.mxu0 0.0
        %3578 = vmatpush2.msra.mxu0 0.0
        %3579 = vmatprep.subr.mxu0 0.0
        %3580 = vmatpush2.msra.mxu0 0.0
        %3581 = vmatprep.subr.mxu0 0.0
        %3582 = vmatpush2.msra.mxu0 0.0
        %3583 = vmatprep.subr.mxu0 0.0
        %3584 = vmatpush2.msra.mxu0 0.0
        %3585 = vmatprep.subr.mxu0 0.0
        %3586 = vmatpush2.msra.mxu0 0.0
        %3587 = vmatprep.subr.mxu0 0.0
        %3588 = vmatpush2.msra.mxu0 0.0
        %3589 = vmatprep.mubr.f32.mxu0 0.0
        %3590 = vmatmul.mubr.f32.gmra.mxu0 %v3523
        %v3591 = vpop.f32.mrf.mxu0
        %v3592 = vadd.f32 0.0, %v3591
        %v3593 = vpop.f32.mrf.mxu0
        %v3594 = vadd.f32 0.0, %v3593
        %3595 = vdwg.mxu0
        %v3596 = vadd.f32 %v3384, %v3592
        %v3597 = vadd.f32 %v3385, %v3594
        %v3598 = vld [vmem:[#allocation4 + $0xe00] sm:$0xff]
        %v3599 = vld [vmem:[#allocation4 + $0xe08] sm:$0xff]
        %v3600 = vld [vmem:[#allocation4 + $0xe10] sm:$0xff]
        %v3601 = vld [vmem:[#allocation4 + $0xe18] sm:$0xff]
        %v3602 = vld [vmem:[#allocation4 + $0xe20] sm:$0xff]
        %v3603 = vld [vmem:[#allocation4 + $0xe28] sm:$0xff]
        %v3604 = vld [vmem:[#allocation4 + $0xe30] sm:$0xff]
        %v3605 = vld [vmem:[#allocation4 + $0xe38] sm:$0xff]
        %v3606 = vld [vmem:[#allocation4 + $0xe40] sm:$0xff]
        %v3607 = vld [vmem:[#allocation4 + $0xe48] sm:$0xff]
        %v3608 = vld [vmem:[#allocation4 + $0xe50] sm:$0xff]
        %v3609 = vld [vmem:[#allocation4 + $0xe58] sm:$0xff]
        %v3610 = vld [vmem:[#allocation4 + $0xe60] sm:$0xff]
        %v3611 = vld [vmem:[#allocation4 + $0xe68] sm:$0xff]
        %v3612 = vld [vmem:[#allocation4 + $0xe70] sm:$0xff]
        %v3613 = vld [vmem:[#allocation4 + $0xe78] sm:$0xff]
        %v3614 = vld [vmem:[#allocation4 + $0xe80] sm:$0xff]
        %v3615 = vld [vmem:[#allocation4 + $0xe88] sm:$0xff]
        %v3616 = vld [vmem:[#allocation4 + $0xe90] sm:$0xff]
        %v3617 = vld [vmem:[#allocation4 + $0xe98] sm:$0xff]
        %v3618 = vld [vmem:[#allocation4 + $0xea0] sm:$0xff]
        %v3619 = vld [vmem:[#allocation4 + $0xea8] sm:$0xff]
        %v3620 = vld [vmem:[#allocation4 + $0xeb0] sm:$0xff]
        %v3621 = vld [vmem:[#allocation4 + $0xeb8] sm:$0xff]
        %v3622 = vld [vmem:[#allocation4 + $0xec0] sm:$0xff]
        %v3623 = vld [vmem:[#allocation4 + $0xec8] sm:$0xff]
        %v3624 = vld [vmem:[#allocation4 + $0xed0] sm:$0xff]
        %v3625 = vld [vmem:[#allocation4 + $0xed8] sm:$0xff]
        %v3626 = vld [vmem:[#allocation4 + $0xee0] sm:$0xff]
        %v3627 = vld [vmem:[#allocation4 + $0xee8] sm:$0xff]
        %v3628 = vld [vmem:[#allocation4 + $0xef0] sm:$0xff]
        %v3629 = vld [vmem:[#allocation4 + $0xef8] sm:$0xff]
        %v3630 = vld [vmem:[#allocation4 + $0xf00] sm:$0xff]
        %v3631 = vld [vmem:[#allocation4 + $0xf08] sm:$0xff]
        %v3632 = vld [vmem:[#allocation4 + $0xf10] sm:$0xff]
        %v3633 = vld [vmem:[#allocation4 + $0xf18] sm:$0xff]
        %v3634 = vld [vmem:[#allocation4 + $0xf20] sm:$0xff]
        %v3635 = vld [vmem:[#allocation4 + $0xf28] sm:$0xff]
        %v3636 = vld [vmem:[#allocation4 + $0xf30] sm:$0xff]
        %v3637 = vld [vmem:[#allocation4 + $0xf38] sm:$0xff]
        %v3638 = vld [vmem:[#allocation4 + $0xf40] sm:$0xff]
        %v3639 = vld [vmem:[#allocation4 + $0xf48] sm:$0xff]
        %v3640 = vld [vmem:[#allocation4 + $0xf50] sm:$0xff]
        %v3641 = vld [vmem:[#allocation4 + $0xf58] sm:$0xff]
        %v3642 = vld [vmem:[#allocation4 + $0xf60] sm:$0xff]
        %v3643 = vld [vmem:[#allocation4 + $0xf68] sm:$0xff]
        %v3644 = vld [vmem:[#allocation4 + $0xf70] sm:$0xff]
        %v3645 = vld [vmem:[#allocation4 + $0xf78] sm:$0xff]
        %v3646 = vld [vmem:[#allocation4 + $0xf80] sm:$0xff]
        %v3647 = vld [vmem:[#allocation4 + $0xf88] sm:$0xff]
        %v3648 = vld [vmem:[#allocation4 + $0xf90] sm:$0xff]
        %v3649 = vld [vmem:[#allocation4 + $0xf98] sm:$0xff]
        %v3650 = vld [vmem:[#allocation4 + $0xfa0] sm:$0xff]
        %v3651 = vld [vmem:[#allocation4 + $0xfa8] sm:$0xff]
        %v3652 = vld [vmem:[#allocation4 + $0xfb0] sm:$0xff]
        %v3653 = vld [vmem:[#allocation4 + $0xfb8] sm:$0xff]
        %v3654 = vld [vmem:[#allocation4 + $0xfc0] sm:$0xff]
        %v3655 = vld [vmem:[#allocation4 + $0xfc8] sm:$0xff]
        %v3656 = vld [vmem:[#allocation4 + $0xfd0] sm:$0xff]
        %v3657 = vld [vmem:[#allocation4 + $0xfd8] sm:$0xff]
        %v3658 = vld [vmem:[#allocation4 + $0xfe0] sm:$0xff]
        %v3659 = vld [vmem:[#allocation4 + $0xfe8] sm:$0xff]
        %v3660 = vld [vmem:[#allocation4 + $0xff0] sm:$0xff]
        %v3661 = vld [vmem:[#allocation4 + $0xff8] sm:$0xff]
        %3662 = vmatprep.subr.mxu0 %v3629
        %3663 = vmatpush1.msra.mxu0 %v3628
        %3664 = vmatprep.subr.mxu0 %v3627
        %3665 = vmatpush1.msra.mxu0 %v3626
        %3666 = vmatprep.subr.mxu0 %v3625
        %3667 = vmatpush1.msra.mxu0 %v3624
        %3668 = vmatprep.subr.mxu0 %v3623
        %3669 = vmatpush1.msra.mxu0 %v3622
        %3670 = vmatprep.subr.mxu0 %v3621
        %3671 = vmatpush1.msra.mxu0 %v3620
        %3672 = vmatprep.subr.mxu0 %v3619
        %3673 = vmatpush1.msra.mxu0 %v3618
        %3674 = vmatprep.subr.mxu0 %v3617
        %3675 = vmatpush1.msra.mxu0 %v3616
        %3676 = vmatprep.subr.mxu0 %v3615
        %3677 = vmatpush1.msra.mxu0 %v3614
        %3678 = vmatprep.subr.mxu0 %v3613
        %3679 = vmatpush1.msra.mxu0 %v3612
        %3680 = vmatprep.subr.mxu0 %v3611
        %3681 = vmatpush1.msra.mxu0 %v3610
        %3682 = vmatprep.subr.mxu0 %v3609
        %3683 = vmatpush1.msra.mxu0 %v3608
        %3684 = vmatprep.subr.mxu0 %v3607
        %3685 = vmatpush1.msra.mxu0 %v3606
        %3686 = vmatprep.subr.mxu0 %v3605
        %3687 = vmatpush1.msra.mxu0 %v3604
        %3688 = vmatprep.subr.mxu0 %v3603
        %3689 = vmatpush1.msra.mxu0 %v3602
        %3690 = vmatprep.subr.mxu0 %v3601
        %3691 = vmatpush1.msra.mxu0 %v3600
        %3692 = vmatprep.subr.mxu0 %v3599
        %3693 = vmatpush1.msra.mxu0 %v3598
        %3694 = vmatprep.subr.mxu0 %v3661
        %3695 = vmatpush2.msra.mxu0 %v3660
        %3696 = vmatprep.subr.mxu0 %v3659
        %3697 = vmatpush2.msra.mxu0 %v3658
        %3698 = vmatprep.subr.mxu0 %v3657
        %3699 = vmatpush2.msra.mxu0 %v3656
        %3700 = vmatprep.subr.mxu0 %v3655
        %3701 = vmatpush2.msra.mxu0 %v3654
        %3702 = vmatprep.subr.mxu0 %v3653
        %3703 = vmatpush2.msra.mxu0 %v3652
        %3704 = vmatprep.subr.mxu0 %v3651
        %3705 = vmatpush2.msra.mxu0 %v3650
        %3706 = vmatprep.subr.mxu0 %v3649
        %3707 = vmatpush2.msra.mxu0 %v3648
        %3708 = vmatprep.subr.mxu0 %v3647
        %3709 = vmatpush2.msra.mxu0 %v3646
        %3710 = vmatprep.subr.mxu0 %v3645
        %3711 = vmatpush2.msra.mxu0 %v3644
        %3712 = vmatprep.subr.mxu0 %v3643
        %3713 = vmatpush2.msra.mxu0 %v3642
        %3714 = vmatprep.subr.mxu0 %v3641
        %3715 = vmatpush2.msra.mxu0 %v3640
        %3716 = vmatprep.subr.mxu0 %v3639
        %3717 = vmatpush2.msra.mxu0 %v3638
        %3718 = vmatprep.subr.mxu0 %v3637
        %3719 = vmatpush2.msra.mxu0 %v3636
        %3720 = vmatprep.subr.mxu0 %v3635
        %3721 = vmatpush2.msra.mxu0 %v3634
        %3722 = vmatprep.subr.mxu0 %v3633
        %3723 = vmatpush2.msra.mxu0 %v3632
        %3724 = vmatprep.subr.mxu0 %v3631
        %3725 = vmatpush2.msra.mxu0 %v3630
        %3726 = vmatprep.mubr.f32.mxu0 %v2250
        %3727 = vmatmul.mubr.f32.gmra.mxu0 %v2248
        %v3728 = vpop.f32.mrf.mxu0
        %v3729 = vadd.f32 0.0, %v3728
        %v3730 = vpop.f32.mrf.mxu0
        %v3731 = vadd.f32 0.0, %v3730
        %3732 = vdwg.mxu0
        %v3733 = vld [vmem:[%s7 + $0x38] sm:$0xff]
        %v3735 = vsel %vm2524, %v3733, 0
        %3737 = vmatprep.subr.mxu0 0.0
        %3738 = vmatpush1.msra.mxu0 0.0
        %3739 = vmatprep.subr.mxu0 0.0
        %3740 = vmatpush1.msra.mxu0 0.0
        %3741 = vmatprep.subr.mxu0 0.0
        %3742 = vmatpush1.msra.mxu0 0.0
        %3743 = vmatprep.subr.mxu0 0.0
        %3744 = vmatpush1.msra.mxu0 0.0
        %3745 = vmatprep.subr.mxu0 0.0
        %3746 = vmatpush1.msra.mxu0 0.0
        %3747 = vmatprep.subr.mxu0 0.0
        %3748 = vmatpush1.msra.mxu0 0.0
        %3749 = vmatprep.subr.mxu0 0.0
        %3750 = vmatpush1.msra.mxu0 0.0
        %3751 = vmatprep.subr.mxu0 0.0
        %3752 = vmatpush1.msra.mxu0 0.0
        %3753 = vmatprep.subr.mxu0 0.0
        %3754 = vmatpush1.msra.mxu0 0.0
        %3755 = vmatprep.subr.mxu0 0.0
        %3756 = vmatpush1.msra.mxu0 0.0
        %3757 = vmatprep.subr.mxu0 0.0
        %3758 = vmatpush1.msra.mxu0 0.0
        %3759 = vmatprep.subr.mxu0 0.0
        %3760 = vmatpush1.msra.mxu0 0.0
        %3761 = vmatprep.subr.mxu0 0.0
        %3762 = vmatpush1.msra.mxu0 0.0
        %3763 = vmatprep.subr.mxu0 0.0
        %3764 = vmatpush1.msra.mxu0 0.0
        %3765 = vmatprep.subr.mxu0 0.0
        %3766 = vmatpush1.msra.mxu0 0.0
        %3767 = vmatprep.subr.mxu0 %v3731
        %3768 = vmatpush1.msra.mxu0 %v3729
        %3769 = vmatprep.subr.mxu0 0.0
        %3770 = vmatpush2.msra.mxu0 0.0
        %3771 = vmatprep.subr.mxu0 0.0
        %3772 = vmatpush2.msra.mxu0 0.0
        %3773 = vmatprep.subr.mxu0 0.0
        %3774 = vmatpush2.msra.mxu0 0.0
        %3775 = vmatprep.subr.mxu0 0.0
        %3776 = vmatpush2.msra.mxu0 0.0
        %3777 = vmatprep.subr.mxu0 0.0
        %3778 = vmatpush2.msra.mxu0 0.0
        %3779 = vmatprep.subr.mxu0 0.0
        %3780 = vmatpush2.msra.mxu0 0.0
        %3781 = vmatprep.subr.mxu0 0.0
        %3782 = vmatpush2.msra.mxu0 0.0
        %3783 = vmatprep.subr.mxu0 0.0
        %3784 = vmatpush2.msra.mxu0 0.0
        %3785 = vmatprep.subr.mxu0 0.0
        %3786 = vmatpush2.msra.mxu0 0.0
        %3787 = vmatprep.subr.mxu0 0.0
        %3788 = vmatpush2.msra.mxu0 0.0
        %3789 = vmatprep.subr.mxu0 0.0
        %3790 = vmatpush2.msra.mxu0 0.0
        %3791 = vmatprep.subr.mxu0 0.0
        %3792 = vmatpush2.msra.mxu0 0.0
        %3793 = vmatprep.subr.mxu0 0.0
        %3794 = vmatpush2.msra.mxu0 0.0
        %3795 = vmatprep.subr.mxu0 0.0
        %3796 = vmatpush2.msra.mxu0 0.0
        %3797 = vmatprep.subr.mxu0 0.0
        %3798 = vmatpush2.msra.mxu0 0.0
        %3799 = vmatprep.subr.mxu0 0.0
        %3800 = vmatpush2.msra.mxu0 0.0
        %3801 = vmatprep.mubr.f32.mxu0 0.0
        %3802 = vmatmul.mubr.f32.gmra.mxu0 %v3735
        %v3803 = vpop.f32.mrf.mxu0
        %v3804 = vadd.f32 0.0, %v3803
        %v3805 = vpop.f32.mrf.mxu0
        %v3806 = vadd.f32 0.0, %v3805
        %3807 = vdwg.mxu0
        %v3808 = vadd.f32 %v3596, %v3804
        %v3809 = vadd.f32 %v3597, %v3806
        %v3810 = vld [vmem:[#allocation4 + $0x1000] sm:$0xff]
        %v3811 = vld [vmem:[#allocation4 + $0x1008] sm:$0xff]
        %v3812 = vld [vmem:[#allocation4 + $0x1010] sm:$0xff]
        %v3813 = vld [vmem:[#allocation4 + $0x1018] sm:$0xff]
        %v3814 = vld [vmem:[#allocation4 + $0x1020] sm:$0xff]
        %v3815 = vld [vmem:[#allocation4 + $0x1028] sm:$0xff]
        %v3816 = vld [vmem:[#allocation4 + $0x1030] sm:$0xff]
        %v3817 = vld [vmem:[#allocation4 + $0x1038] sm:$0xff]
        %v3818 = vld [vmem:[#allocation4 + $0x1040] sm:$0xff]
        %v3819 = vld [vmem:[#allocation4 + $0x1048] sm:$0xff]
        %v3820 = vld [vmem:[#allocation4 + $0x1050] sm:$0xff]
        %v3821 = vld [vmem:[#allocation4 + $0x1058] sm:$0xff]
        %v3822 = vld [vmem:[#allocation4 + $0x1060] sm:$0xff]
        %v3823 = vld [vmem:[#allocation4 + $0x1068] sm:$0xff]
        %v3824 = vld [vmem:[#allocation4 + $0x1070] sm:$0xff]
        %v3825 = vld [vmem:[#allocation4 + $0x1078] sm:$0xff]
        %v3826 = vld [vmem:[#allocation4 + $0x1080] sm:$0xff]
        %v3827 = vld [vmem:[#allocation4 + $0x1088] sm:$0xff]
        %v3828 = vld [vmem:[#allocation4 + $0x1090] sm:$0xff]
        %v3829 = vld [vmem:[#allocation4 + $0x1098] sm:$0xff]
        %v3830 = vld [vmem:[#allocation4 + $0x10a0] sm:$0xff]
        %v3831 = vld [vmem:[#allocation4 + $0x10a8] sm:$0xff]
        %v3832 = vld [vmem:[#allocation4 + $0x10b0] sm:$0xff]
        %v3833 = vld [vmem:[#allocation4 + $0x10b8] sm:$0xff]
        %v3834 = vld [vmem:[#allocation4 + $0x10c0] sm:$0xff]
        %v3835 = vld [vmem:[#allocation4 + $0x10c8] sm:$0xff]
        %v3836 = vld [vmem:[#allocation4 + $0x10d0] sm:$0xff]
        %v3837 = vld [vmem:[#allocation4 + $0x10d8] sm:$0xff]
        %v3838 = vld [vmem:[#allocation4 + $0x10e0] sm:$0xff]
        %v3839 = vld [vmem:[#allocation4 + $0x10e8] sm:$0xff]
        %v3840 = vld [vmem:[#allocation4 + $0x10f0] sm:$0xff]
        %v3841 = vld [vmem:[#allocation4 + $0x10f8] sm:$0xff]
        %v3842 = vld [vmem:[#allocation4 + $0x1100] sm:$0xff]
        %v3843 = vld [vmem:[#allocation4 + $0x1108] sm:$0xff]
        %v3844 = vld [vmem:[#allocation4 + $0x1110] sm:$0xff]
        %v3845 = vld [vmem:[#allocation4 + $0x1118] sm:$0xff]
        %v3846 = vld [vmem:[#allocation4 + $0x1120] sm:$0xff]
        %v3847 = vld [vmem:[#allocation4 + $0x1128] sm:$0xff]
        %v3848 = vld [vmem:[#allocation4 + $0x1130] sm:$0xff]
        %v3849 = vld [vmem:[#allocation4 + $0x1138] sm:$0xff]
        %v3850 = vld [vmem:[#allocation4 + $0x1140] sm:$0xff]
        %v3851 = vld [vmem:[#allocation4 + $0x1148] sm:$0xff]
        %v3852 = vld [vmem:[#allocation4 + $0x1150] sm:$0xff]
        %v3853 = vld [vmem:[#allocation4 + $0x1158] sm:$0xff]
        %v3854 = vld [vmem:[#allocation4 + $0x1160] sm:$0xff]
        %v3855 = vld [vmem:[#allocation4 + $0x1168] sm:$0xff]
        %v3856 = vld [vmem:[#allocation4 + $0x1170] sm:$0xff]
        %v3857 = vld [vmem:[#allocation4 + $0x1178] sm:$0xff]
        %v3858 = vld [vmem:[#allocation4 + $0x1180] sm:$0xff]
        %v3859 = vld [vmem:[#allocation4 + $0x1188] sm:$0xff]
        %v3860 = vld [vmem:[#allocation4 + $0x1190] sm:$0xff]
        %v3861 = vld [vmem:[#allocation4 + $0x1198] sm:$0xff]
        %v3862 = vld [vmem:[#allocation4 + $0x11a0] sm:$0xff]
        %v3863 = vld [vmem:[#allocation4 + $0x11a8] sm:$0xff]
        %v3864 = vld [vmem:[#allocation4 + $0x11b0] sm:$0xff]
        %v3865 = vld [vmem:[#allocation4 + $0x11b8] sm:$0xff]
        %v3866 = vld [vmem:[#allocation4 + $0x11c0] sm:$0xff]
        %v3867 = vld [vmem:[#allocation4 + $0x11c8] sm:$0xff]
        %v3868 = vld [vmem:[#allocation4 + $0x11d0] sm:$0xff]
        %v3869 = vld [vmem:[#allocation4 + $0x11d8] sm:$0xff]
        %v3870 = vld [vmem:[#allocation4 + $0x11e0] sm:$0xff]
        %v3871 = vld [vmem:[#allocation4 + $0x11e8] sm:$0xff]
        %v3872 = vld [vmem:[#allocation4 + $0x11f0] sm:$0xff]
        %v3873 = vld [vmem:[#allocation4 + $0x11f8] sm:$0xff]
        %3874 = vmatprep.subr.mxu0 %v3841
        %3875 = vmatpush1.msra.mxu0 %v3840
        %3876 = vmatprep.subr.mxu0 %v3839
        %3877 = vmatpush1.msra.mxu0 %v3838
        %3878 = vmatprep.subr.mxu0 %v3837
        %3879 = vmatpush1.msra.mxu0 %v3836
        %3880 = vmatprep.subr.mxu0 %v3835
        %3881 = vmatpush1.msra.mxu0 %v3834
        %3882 = vmatprep.subr.mxu0 %v3833
        %3883 = vmatpush1.msra.mxu0 %v3832
        %3884 = vmatprep.subr.mxu0 %v3831
        %3885 = vmatpush1.msra.mxu0 %v3830
        %3886 = vmatprep.subr.mxu0 %v3829
        %3887 = vmatpush1.msra.mxu0 %v3828
        %3888 = vmatprep.subr.mxu0 %v3827
        %3889 = vmatpush1.msra.mxu0 %v3826
        %3890 = vmatprep.subr.mxu0 %v3825
        %3891 = vmatpush1.msra.mxu0 %v3824
        %3892 = vmatprep.subr.mxu0 %v3823
        %3893 = vmatpush1.msra.mxu0 %v3822
        %3894 = vmatprep.subr.mxu0 %v3821
        %3895 = vmatpush1.msra.mxu0 %v3820
        %3896 = vmatprep.subr.mxu0 %v3819
        %3897 = vmatpush1.msra.mxu0 %v3818
        %3898 = vmatprep.subr.mxu0 %v3817
        %3899 = vmatpush1.msra.mxu0 %v3816
        %3900 = vmatprep.subr.mxu0 %v3815
        %3901 = vmatpush1.msra.mxu0 %v3814
        %3902 = vmatprep.subr.mxu0 %v3813
        %3903 = vmatpush1.msra.mxu0 %v3812
        %3904 = vmatprep.subr.mxu0 %v3811
        %3905 = vmatpush1.msra.mxu0 %v3810
        %3906 = vmatprep.subr.mxu0 %v3873
        %3907 = vmatpush2.msra.mxu0 %v3872
        %3908 = vmatprep.subr.mxu0 %v3871
        %3909 = vmatpush2.msra.mxu0 %v3870
        %3910 = vmatprep.subr.mxu0 %v3869
        %3911 = vmatpush2.msra.mxu0 %v3868
        %3912 = vmatprep.subr.mxu0 %v3867
        %3913 = vmatpush2.msra.mxu0 %v3866
        %3914 = vmatprep.subr.mxu0 %v3865
        %3915 = vmatpush2.msra.mxu0 %v3864
        %3916 = vmatprep.subr.mxu0 %v3863
        %3917 = vmatpush2.msra.mxu0 %v3862
        %3918 = vmatprep.subr.mxu0 %v3861
        %3919 = vmatpush2.msra.mxu0 %v3860
        %3920 = vmatprep.subr.mxu0 %v3859
        %3921 = vmatpush2.msra.mxu0 %v3858
        %3922 = vmatprep.subr.mxu0 %v3857
        %3923 = vmatpush2.msra.mxu0 %v3856
        %3924 = vmatprep.subr.mxu0 %v3855
        %3925 = vmatpush2.msra.mxu0 %v3854
        %3926 = vmatprep.subr.mxu0 %v3853
        %3927 = vmatpush2.msra.mxu0 %v3852
        %3928 = vmatprep.subr.mxu0 %v3851
        %3929 = vmatpush2.msra.mxu0 %v3850
        %3930 = vmatprep.subr.mxu0 %v3849
        %3931 = vmatpush2.msra.mxu0 %v3848
        %3932 = vmatprep.subr.mxu0 %v3847
        %3933 = vmatpush2.msra.mxu0 %v3846
        %3934 = vmatprep.subr.mxu0 %v3845
        %3935 = vmatpush2.msra.mxu0 %v3844
        %3936 = vmatprep.subr.mxu0 %v3843
        %3937 = vmatpush2.msra.mxu0 %v3842
        %3938 = vmatprep.mubr.f32.mxu0 %v2250
        %3939 = vmatmul.mubr.f32.gmra.mxu0 %v2248
        %v3940 = vpop.f32.mrf.mxu0
        %v3941 = vadd.f32 0.0, %v3940
        %v3942 = vpop.f32.mrf.mxu0
        %v3943 = vadd.f32 0.0, %v3942
        %3944 = vdwg.mxu0
        %v3945 = vld [vmem:[%s7 + $0x40] sm:$0xff]
        %v3947 = vsel %vm2524, %v3945, 0
        %3949 = vmatprep.subr.mxu0 0.0
        %3950 = vmatpush1.msra.mxu0 0.0
        %3951 = vmatprep.subr.mxu0 0.0
        %3952 = vmatpush1.msra.mxu0 0.0
        %3953 = vmatprep.subr.mxu0 0.0
        %3954 = vmatpush1.msra.mxu0 0.0
        %3955 = vmatprep.subr.mxu0 0.0
        %3956 = vmatpush1.msra.mxu0 0.0
        %3957 = vmatprep.subr.mxu0 0.0
        %3958 = vmatpush1.msra.mxu0 0.0
        %3959 = vmatprep.subr.mxu0 0.0
        %3960 = vmatpush1.msra.mxu0 0.0
        %3961 = vmatprep.subr.mxu0 0.0
        %3962 = vmatpush1.msra.mxu0 0.0
        %3963 = vmatprep.subr.mxu0 0.0
        %3964 = vmatpush1.msra.mxu0 0.0
        %3965 = vmatprep.subr.mxu0 0.0
        %3966 = vmatpush1.msra.mxu0 0.0
        %3967 = vmatprep.subr.mxu0 0.0
        %3968 = vmatpush1.msra.mxu0 0.0
        %3969 = vmatprep.subr.mxu0 0.0
        %3970 = vmatpush1.msra.mxu0 0.0
        %3971 = vmatprep.subr.mxu0 0.0
        %3972 = vmatpush1.msra.mxu0 0.0
        %3973 = vmatprep.subr.mxu0 0.0
        %3974 = vmatpush1.msra.mxu0 0.0
        %3975 = vmatprep.subr.mxu0 0.0
        %3976 = vmatpush1.msra.mxu0 0.0
        %3977 = vmatprep.subr.mxu0 0.0
        %3978 = vmatpush1.msra.mxu0 0.0
        %3979 = vmatprep.subr.mxu0 %v3943
        %3980 = vmatpush1.msra.mxu0 %v3941
        %3981 = vmatprep.subr.mxu0 0.0
        %3982 = vmatpush2.msra.mxu0 0.0
        %3983 = vmatprep.subr.mxu0 0.0
        %3984 = vmatpush2.msra.mxu0 0.0
        %3985 = vmatprep.subr.mxu0 0.0
        %3986 = vmatpush2.msra.mxu0 0.0
        %3987 = vmatprep.subr.mxu0 0.0
        %3988 = vmatpush2.msra.mxu0 0.0
        %3989 = vmatprep.subr.mxu0 0.0
        %3990 = vmatpush2.msra.mxu0 0.0
        %3991 = vmatprep.subr.mxu0 0.0
        %3992 = vmatpush2.msra.mxu0 0.0
        %3993 = vmatprep.subr.mxu0 0.0
        %3994 = vmatpush2.msra.mxu0 0.0
        %3995 = vmatprep.subr.mxu0 0.0
        %3996 = vmatpush2.msra.mxu0 0.0
        %3997 = vmatprep.subr.mxu0 0.0
        %3998 = vmatpush2.msra.mxu0 0.0
        %3999 = vmatprep.subr.mxu0 0.0
        %4000 = vmatpush2.msra.mxu0 0.0
        %4001 = vmatprep.subr.mxu0 0.0
        %4002 = vmatpush2.msra.mxu0 0.0
        %4003 = vmatprep.subr.mxu0 0.0
        %4004 = vmatpush2.msra.mxu0 0.0
        %4005 = vmatprep.subr.mxu0 0.0
        %4006 = vmatpush2.msra.mxu0 0.0
        %4007 = vmatprep.subr.mxu0 0.0
        %4008 = vmatpush2.msra.mxu0 0.0
        %4009 = vmatprep.subr.mxu0 0.0
        %4010 = vmatpush2.msra.mxu0 0.0
        %4011 = vmatprep.subr.mxu0 0.0
        %4012 = vmatpush2.msra.mxu0 0.0
        %4013 = vmatprep.mubr.f32.mxu0 0.0
        %4014 = vmatmul.mubr.f32.gmra.mxu0 %v3947
        %v4015 = vpop.f32.mrf.mxu0
        %v4016 = vadd.f32 0.0, %v4015
        %v4017 = vpop.f32.mrf.mxu0
        %v4018 = vadd.f32 0.0, %v4017
        %4019 = vdwg.mxu0
        %v4020 = vadd.f32 %v3808, %v4016
        %v4021 = vadd.f32 %v3809, %v4018
        %v4022 = vld [vmem:[%s8] sm:$0xff]
        %4024 = vset.pattern.permute.xlu0 0
        %4025 = vperm.xlu0 %4024, %v4022
        %v4026 = vpop.permute.xlu0 %4025
        %v4028 = vadd.f32 %v4020, %v4026
        %v4029 = vadd.f32 %v4021, %v4026
        %v4030 = vtanh.pop %v4028
        %v4031 = vtanh.pop %v4029
        %4032 = vmatprep.subr.mxu0 %v2283
        %4033 = vmatpush1.msra.mxu0 %v2282
        %4034 = vmatprep.subr.mxu0 %v2281
        %4035 = vmatpush1.msra.mxu0 %v2280
        %4036 = vmatprep.subr.mxu0 %v2279
        %4037 = vmatpush1.msra.mxu0 %v2278
        %4038 = vmatprep.subr.mxu0 %v2277
        %4039 = vmatpush1.msra.mxu0 %v2276
        %4040 = vmatprep.subr.mxu0 %v2275
        %4041 = vmatpush1.msra.mxu0 %v2274
        %4042 = vmatprep.subr.mxu0 %v2273
        %4043 = vmatpush1.msra.mxu0 %v2272
        %4044 = vmatprep.subr.mxu0 %v2271
        %4045 = vmatpush1.msra.mxu0 %v2270
        %4046 = vmatprep.subr.mxu0 %v2269
        %4047 = vmatpush1.msra.mxu0 %v2268
        %4048 = vmatprep.subr.mxu0 %v2267
        %4049 = vmatpush1.msra.mxu0 %v2266
        %4050 = vmatprep.subr.mxu0 %v2265
        %4051 = vmatpush1.msra.mxu0 %v2264
        %4052 = vmatprep.subr.mxu0 %v2263
        %4053 = vmatpush1.msra.mxu0 %v2262
        %4054 = vmatprep.subr.mxu0 %v2261
        %4055 = vmatpush1.msra.mxu0 %v2260
        %4056 = vmatprep.subr.mxu0 %v2259
        %4057 = vmatpush1.msra.mxu0 %v2258
        %4058 = vmatprep.subr.mxu0 %v2257
        %4059 = vmatpush1.msra.mxu0 %v2256
        %4060 = vmatprep.subr.mxu0 %v2255
        %4061 = vmatpush1.msra.mxu0 %v2254
        %4062 = vmatprep.subr.mxu0 %v2253
        %4063 = vmatpush1.msra.mxu0 %v2252
        %4064 = vmatprep.subr.mxu0 %v2315
        %4065 = vmatpush2.msra.mxu0 %v2314
        %4066 = vmatprep.subr.mxu0 %v2313
        %4067 = vmatpush2.msra.mxu0 %v2312
        %4068 = vmatprep.subr.mxu0 %v2311
        %4069 = vmatpush2.msra.mxu0 %v2310
        %4070 = vmatprep.subr.mxu0 %v2309
        %4071 = vmatpush2.msra.mxu0 %v2308
        %4072 = vmatprep.subr.mxu0 %v2307
        %4073 = vmatpush2.msra.mxu0 %v2306
        %4074 = vmatprep.subr.mxu0 %v2305
        %4075 = vmatpush2.msra.mxu0 %v2304
        %4076 = vmatprep.subr.mxu0 %v2303
        %4077 = vmatpush2.msra.mxu0 %v2302
        %4078 = vmatprep.subr.mxu0 %v2301
        %4079 = vmatpush2.msra.mxu0 %v2300
        %4080 = vmatprep.subr.mxu0 %v2299
        %4081 = vmatpush2.msra.mxu0 %v2298
        %4082 = vmatprep.subr.mxu0 %v2297
        %4083 = vmatpush2.msra.mxu0 %v2296
        %4084 = vmatprep.subr.mxu0 %v2295
        %4085 = vmatpush2.msra.mxu0 %v2294
        %4086 = vmatprep.subr.mxu0 %v2293
        %4087 = vmatpush2.msra.mxu0 %v2292
        %4088 = vmatprep.subr.mxu0 %v2291
        %4089 = vmatpush2.msra.mxu0 %v2290
        %4090 = vmatprep.subr.mxu0 %v2289
        %4091 = vmatpush2.msra.mxu0 %v2288
        %4092 = vmatprep.subr.mxu0 %v2287
        %4093 = vmatpush2.msra.mxu0 %v2286
        %4094 = vmatprep.subr.mxu0 %v2285
        %4095 = vmatpush2.msra.mxu0 %v2284
        %4096 = vmatprep.mubr.f32.mxu0 %v4031
        %4097 = vmatmul.mubr.f32.gmra.mxu0 %v4030
        %v4098 = vpop.f32.mrf.mxu0
        %v4099 = vadd.f32 0.0, %v4098
        %v4100 = vpop.f32.mrf.mxu0
        %v4101 = vadd.f32 0.0, %v4100
        %4102 = vdwg.mxu0
        %v4103 = vld [vmem:[%s10] sm:$0xff]
        %v4104 = vld [vmem:[%s10 + $0x8] sm:$0xff]
        %v4105 = vld [vmem:[%s10 + $0x10] sm:$0xff]
        %4106 = vmatprep.subr.mxu0 %v2419
        %4107 = vmatpush1.msra.mxu0 %v2418
        %4108 = vmatprep.subr.mxu0 %v2417
        %4109 = vmatpush1.msra.mxu0 %v2416
        %4110 = vmatprep.subr.mxu0 %v2415
        %4111 = vmatpush1.msra.mxu0 %v2414
        %4112 = vmatprep.subr.mxu0 %v2413
        %4113 = vmatpush1.msra.mxu0 %v2412
        %4114 = vmatprep.subr.mxu0 %v2411
        %4115 = vmatpush1.msra.mxu0 %v2410
        %4116 = vmatprep.subr.mxu0 %v2409
        %4117 = vmatpush1.msra.mxu0 %v2408
        %4118 = vmatprep.subr.mxu0 %v2407
        %4119 = vmatpush1.msra.mxu0 %v2406
        %4120 = vmatprep.subr.mxu0 %v2405
        %4121 = vmatpush1.msra.mxu0 %v2404
        %4122 = vmatprep.subr.mxu0 %v2403
        %4123 = vmatpush1.msra.mxu0 %v2402
        %4124 = vmatprep.subr.mxu0 %v2401
        %4125 = vmatpush1.msra.mxu0 %v2400
        %4126 = vmatprep.subr.mxu0 %v2399
        %4127 = vmatpush1.msra.mxu0 %v2398
        %4128 = vmatprep.subr.mxu0 %v2397
        %4129 = vmatpush1.msra.mxu0 %v2396
        %4130 = vmatprep.subr.mxu0 %v2395
        %4131 = vmatpush1.msra.mxu0 %v2394
        %4132 = vmatprep.subr.mxu0 %v2393
        %4133 = vmatpush1.msra.mxu0 %v2392
        %4134 = vmatprep.subr.mxu0 %v2391
        %4135 = vmatpush1.msra.mxu0 %v2390
        %4136 = vmatprep.subr.mxu0 %v2389
        %4137 = vmatpush1.msra.mxu0 %v2388
        %4138 = vmatprep.subr.mxu0 %v2451
        %4139 = vmatpush2.msra.mxu0 %v2450
        %4140 = vmatprep.subr.mxu0 %v2449
        %4141 = vmatpush2.msra.mxu0 %v2448
        %4142 = vmatprep.subr.mxu0 %v2447
        %4143 = vmatpush2.msra.mxu0 %v2446
        %4144 = vmatprep.subr.mxu0 %v2445
        %4145 = vmatpush2.msra.mxu0 %v2444
        %4146 = vmatprep.subr.mxu0 %v2443
        %4147 = vmatpush2.msra.mxu0 %v2442
        %4148 = vmatprep.subr.mxu0 %v2441
        %4149 = vmatpush2.msra.mxu0 %v2440
        %4150 = vmatprep.subr.mxu0 %v2439
        %4151 = vmatpush2.msra.mxu0 %v2438
        %4152 = vmatprep.subr.mxu0 %v2437
        %4153 = vmatpush2.msra.mxu0 %v2436
        %4154 = vmatprep.subr.mxu0 %v2435
        %4155 = vmatpush2.msra.mxu0 %v2434
        %4156 = vmatprep.subr.mxu0 %v2433
        %4157 = vmatpush2.msra.mxu0 %v2432
        %4158 = vmatprep.subr.mxu0 %v2431
        %4159 = vmatpush2.msra.mxu0 %v2430
        %4160 = vmatprep.subr.mxu0 %v2429
        %4161 = vmatpush2.msra.mxu0 %v2428
        %4162 = vmatprep.subr.mxu0 %v2427
        %4163 = vmatpush2.msra.mxu0 %v2426
        %4164 = vmatprep.subr.mxu0 %v2425
        %4165 = vmatpush2.msra.mxu0 %v2424
        %4166 = vmatprep.subr.mxu0 %v2423
        %4167 = vmatpush2.msra.mxu0 %v2422
        %4168 = vmatprep.subr.mxu0 %v2421
        %4169 = vmatpush2.msra.mxu0 %v2420
        %4170 = vmatprep.mubr.f32.mxu0 %v4031
        %4171 = vmatmul.mubr.f32.gmra.mxu0 %v4030
        %v4172 = vpop.f32.mrf.mxu0
        %v4173 = vadd.f32 0.0, %v4172
        %v4174 = vpop.f32.mrf.mxu0
        %v4175 = vadd.f32 0.0, %v4174
        %4176 = vdwg.mxu0
        %v4177 = vld [vmem:[%s10 + $0x18] sm:$0xff]
        %v4178 = vld [vmem:[%s10 + $0x20] sm:$0xff]
        %v4179 = vld [vmem:[%s10 + $0x28] sm:$0xff]
        %v4181 = vsel %vm2524, %v4177, 0
        %v4184 = vsel %vm2524, %v4178, 0
        %v4187 = vsel %vm2524, %v4179, 0
        %4189 = vmatprep.subr.mxu0 0.0
        %4190 = vmatpush1.msra.mxu0 0.0
        %4191 = vmatprep.subr.mxu0 0.0
        %4192 = vmatpush1.msra.mxu0 0.0
        %4193 = vmatprep.subr.mxu0 0.0
        %4194 = vmatpush1.msra.mxu0 0.0
        %4195 = vmatprep.subr.mxu0 0.0
        %4196 = vmatpush1.msra.mxu0 0.0
        %4197 = vmatprep.subr.mxu0 0.0
        %4198 = vmatpush1.msra.mxu0 0.0
        %4199 = vmatprep.subr.mxu0 0.0
        %4200 = vmatpush1.msra.mxu0 0.0
        %4201 = vmatprep.subr.mxu0 0.0
        %4202 = vmatpush1.msra.mxu0 0.0
        %4203 = vmatprep.subr.mxu0 0.0
        %4204 = vmatpush1.msra.mxu0 0.0
        %4205 = vmatprep.subr.mxu0 0.0
        %4206 = vmatpush1.msra.mxu0 0.0
        %4207 = vmatprep.subr.mxu0 0.0
        %4208 = vmatpush1.msra.mxu0 0.0
        %4209 = vmatprep.subr.mxu0 0.0
        %4210 = vmatpush1.msra.mxu0 0.0
        %4211 = vmatprep.subr.mxu0 0.0
        %4212 = vmatpush1.msra.mxu0 0.0
        %4213 = vmatprep.subr.mxu0 0.0
        %4214 = vmatpush1.msra.mxu0 0.0
        %4215 = vmatprep.subr.mxu0 0.0
        %4216 = vmatpush1.msra.mxu0 0.0
        %4217 = vmatprep.subr.mxu0 0.0
        %4218 = vmatpush1.msra.mxu0 0.0
        %4219 = vmatprep.subr.mxu0 %v4175
        %4220 = vmatpush1.msra.mxu0 %v4173
        %4221 = vmatprep.subr.mxu0 0.0
        %4222 = vmatpush2.msra.mxu0 0.0
        %4223 = vmatprep.subr.mxu0 0.0
        %4224 = vmatpush2.msra.mxu0 0.0
        %4225 = vmatprep.subr.mxu0 0.0
        %4226 = vmatpush2.msra.mxu0 0.0
        %4227 = vmatprep.subr.mxu0 0.0
        %4228 = vmatpush2.msra.mxu0 0.0
        %4229 = vmatprep.subr.mxu0 0.0
        %4230 = vmatpush2.msra.mxu0 0.0
        %4231 = vmatprep.subr.mxu0 0.0
        %4232 = vmatpush2.msra.mxu0 0.0
        %4233 = vmatprep.subr.mxu0 0.0
        %4234 = vmatpush2.msra.mxu0 0.0
        %4235 = vmatprep.subr.mxu0 0.0
        %4236 = vmatpush2.msra.mxu0 0.0
        %4237 = vmatprep.subr.mxu0 0.0
        %4238 = vmatpush2.msra.mxu0 0.0
        %4239 = vmatprep.subr.mxu0 0.0
        %4240 = vmatpush2.msra.mxu0 0.0
        %4241 = vmatprep.subr.mxu0 0.0
        %4242 = vmatpush2.msra.mxu0 0.0
        %4243 = vmatprep.subr.mxu0 0.0
        %4244 = vmatpush2.msra.mxu0 0.0
        %4245 = vmatprep.subr.mxu0 0.0
        %4246 = vmatpush2.msra.mxu0 0.0
        %4247 = vmatprep.subr.mxu0 0.0
        %4248 = vmatpush2.msra.mxu0 0.0
        %4249 = vmatprep.subr.mxu0 0.0
        %4250 = vmatpush2.msra.mxu0 0.0
        %4251 = vmatprep.subr.mxu0 0.0
        %4252 = vmatpush2.msra.mxu0 0.0
        %4253 = vmatprep.mubr.f32.mxu0 0.0
        %4254 = vmatmul.mubr.f32.gmra.mxu0 %v4181
        %v4255 = vpop.f32.mrf.mxu0
        %v4256 = vadd.f32 0.0, %v4255
        %v4257 = vpop.f32.mrf.mxu0
        %v4258 = vadd.f32 0.0, %v4257
        %4259 = vmatprep.mubr.f32.mxu0 0.0
        %4260 = vmatmul.mubr.f32.gmra.mxu0 %v4184
        %v4261 = vpop.f32.mrf.mxu0
        %v4262 = vadd.f32 0.0, %v4261
        %v4263 = vpop.f32.mrf.mxu0
        %v4264 = vadd.f32 0.0, %v4263
        %4265 = vmatprep.mubr.f32.mxu0 0.0
        %4266 = vmatmul.mubr.f32.gmra.mxu0 %v4187
        %v4267 = vpop.f32.mrf.mxu0
        %v4268 = vadd.f32 0.0, %v4267
        %v4269 = vpop.f32.mrf.mxu0
        %v4270 = vadd.f32 0.0, %v4269
        %4271 = vdwg.mxu0
        %v4273 = vsel %vm2524, %v4103, 0
        %v4276 = vsel %vm2524, %v4104, 0
        %v4279 = vsel %vm2524, %v4105, 0
        %4281 = vmatprep.subr.mxu0 0.0
        %4282 = vmatpush1.msra.mxu0 0.0
        %4283 = vmatprep.subr.mxu0 0.0
        %4284 = vmatpush1.msra.mxu0 0.0
        %4285 = vmatprep.subr.mxu0 0.0
        %4286 = vmatpush1.msra.mxu0 0.0
        %4287 = vmatprep.subr.mxu0 0.0
        %4288 = vmatpush1.msra.mxu0 0.0
        %4289 = vmatprep.subr.mxu0 0.0
        %4290 = vmatpush1.msra.mxu0 0.0
        %4291 = vmatprep.subr.mxu0 0.0
        %4292 = vmatpush1.msra.mxu0 0.0
        %4293 = vmatprep.subr.mxu0 0.0
        %4294 = vmatpush1.msra.mxu0 0.0
        %4295 = vmatprep.subr.mxu0 0.0
        %4296 = vmatpush1.msra.mxu0 0.0
        %4297 = vmatprep.subr.mxu0 0.0
        %4298 = vmatpush1.msra.mxu0 0.0
        %4299 = vmatprep.subr.mxu0 0.0
        %4300 = vmatpush1.msra.mxu0 0.0
        %4301 = vmatprep.subr.mxu0 0.0
        %4302 = vmatpush1.msra.mxu0 0.0
        %4303 = vmatprep.subr.mxu0 0.0
        %4304 = vmatpush1.msra.mxu0 0.0
        %4305 = vmatprep.subr.mxu0 0.0
        %4306 = vmatpush1.msra.mxu0 0.0
        %4307 = vmatprep.subr.mxu0 0.0
        %4308 = vmatpush1.msra.mxu0 0.0
        %4309 = vmatprep.subr.mxu0 0.0
        %4310 = vmatpush1.msra.mxu0 0.0
        %4311 = vmatprep.subr.mxu0 %v4101
        %4312 = vmatpush1.msra.mxu0 %v4099
        %4313 = vmatprep.subr.mxu0 0.0
        %4314 = vmatpush2.msra.mxu0 0.0
        %4315 = vmatprep.subr.mxu0 0.0
        %4316 = vmatpush2.msra.mxu0 0.0
        %4317 = vmatprep.subr.mxu0 0.0
        %4318 = vmatpush2.msra.mxu0 0.0
        %4319 = vmatprep.subr.mxu0 0.0
        %4320 = vmatpush2.msra.mxu0 0.0
        %4321 = vmatprep.subr.mxu0 0.0
        %4322 = vmatpush2.msra.mxu0 0.0
        %4323 = vmatprep.subr.mxu0 0.0
        %4324 = vmatpush2.msra.mxu0 0.0
        %4325 = vmatprep.subr.mxu0 0.0
        %4326 = vmatpush2.msra.mxu0 0.0
        %4327 = vmatprep.subr.mxu0 0.0
        %4328 = vmatpush2.msra.mxu0 0.0
        %4329 = vmatprep.subr.mxu0 0.0
        %4330 = vmatpush2.msra.mxu0 0.0
        %4331 = vmatprep.subr.mxu0 0.0
        %4332 = vmatpush2.msra.mxu0 0.0
        %4333 = vmatprep.subr.mxu0 0.0
        %4334 = vmatpush2.msra.mxu0 0.0
        %4335 = vmatprep.subr.mxu0 0.0
        %4336 = vmatpush2.msra.mxu0 0.0
        %4337 = vmatprep.subr.mxu0 0.0
        %4338 = vmatpush2.msra.mxu0 0.0
        %4339 = vmatprep.subr.mxu0 0.0
        %4340 = vmatpush2.msra.mxu0 0.0
        %4341 = vmatprep.subr.mxu0 0.0
        %4342 = vmatpush2.msra.mxu0 0.0
        %4343 = vmatprep.subr.mxu0 0.0
        %4344 = vmatpush2.msra.mxu0 0.0
        %4345 = vmatprep.mubr.f32.mxu0 0.0
        %4346 = vmatmul.mubr.f32.gmra.mxu0 %v4273
        %v4347 = vpop.f32.mrf.mxu0
        %v4348 = vadd.f32 %v4256, %v4347
        %v4349 = vpop.f32.mrf.mxu0
        %v4350 = vadd.f32 %v4258, %v4349
        %4351 = vmatprep.mubr.f32.mxu0 0.0
        %4352 = vmatmul.mubr.f32.gmra.mxu0 %v4276
        %v4353 = vpop.f32.mrf.mxu0
        %v4354 = vadd.f32 %v4262, %v4353
        %v4355 = vpop.f32.mrf.mxu0
        %v4356 = vadd.f32 %v4264, %v4355
        %4357 = vmatprep.mubr.f32.mxu0 0.0
        %4358 = vmatmul.mubr.f32.gmra.mxu0 %v4279
        %v4359 = vpop.f32.mrf.mxu0
        %v4360 = vadd.f32 %v4268, %v4359
        %v4361 = vpop.f32.mrf.mxu0
        %v4362 = vadd.f32 %v4270, %v4361
        %4363 = vdwg.mxu0
        %4364 = vmatprep.subr.mxu0 %v2704
        %4365 = vmatpush1.msra.mxu0 %v2703
        %4366 = vmatprep.subr.mxu0 %v2702
        %4367 = vmatpush1.msra.mxu0 %v2701
        %4368 = vmatprep.subr.mxu0 %v2700
        %4369 = vmatpush1.msra.mxu0 %v2699
        %4370 = vmatprep.subr.mxu0 %v2698
        %4371 = vmatpush1.msra.mxu0 %v2697
        %4372 = vmatprep.subr.mxu0 %v2696
        %4373 = vmatpush1.msra.mxu0 %v2695
        %4374 = vmatprep.subr.mxu0 %v2694
        %4375 = vmatpush1.msra.mxu0 %v2693
        %4376 = vmatprep.subr.mxu0 %v2692
        %4377 = vmatpush1.msra.mxu0 %v2691
        %4378 = vmatprep.subr.mxu0 %v2690
        %4379 = vmatpush1.msra.mxu0 %v2689
        %4380 = vmatprep.subr.mxu0 %v2688
        %4381 = vmatpush1.msra.mxu0 %v2687
        %4382 = vmatprep.subr.mxu0 %v2686
        %4383 = vmatpush1.msra.mxu0 %v2685
        %4384 = vmatprep.subr.mxu0 %v2684
        %4385 = vmatpush1.msra.mxu0 %v2683
        %4386 = vmatprep.subr.mxu0 %v2682
        %4387 = vmatpush1.msra.mxu0 %v2681
        %4388 = vmatprep.subr.mxu0 %v2680
        %4389 = vmatpush1.msra.mxu0 %v2679
        %4390 = vmatprep.subr.mxu0 %v2678
        %4391 = vmatpush1.msra.mxu0 %v2677
        %4392 = vmatprep.subr.mxu0 %v2676
        %4393 = vmatpush1.msra.mxu0 %v2675
        %4394 = vmatprep.subr.mxu0 %v2674
        %4395 = vmatpush1.msra.mxu0 %v2673
        %4396 = vmatprep.subr.mxu0 %v2736
        %4397 = vmatpush2.msra.mxu0 %v2735
        %4398 = vmatprep.subr.mxu0 %v2734
        %4399 = vmatpush2.msra.mxu0 %v2733
        %4400 = vmatprep.subr.mxu0 %v2732
        %4401 = vmatpush2.msra.mxu0 %v2731
        %4402 = vmatprep.subr.mxu0 %v2730
        %4403 = vmatpush2.msra.mxu0 %v2729
        %4404 = vmatprep.subr.mxu0 %v2728
        %4405 = vmatpush2.msra.mxu0 %v2727
        %4406 = vmatprep.subr.mxu0 %v2726
        %4407 = vmatpush2.msra.mxu0 %v2725
        %4408 = vmatprep.subr.mxu0 %v2724
        %4409 = vmatpush2.msra.mxu0 %v2723
        %4410 = vmatprep.subr.mxu0 %v2722
        %4411 = vmatpush2.msra.mxu0 %v2721
        %4412 = vmatprep.subr.mxu0 %v2720
        %4413 = vmatpush2.msra.mxu0 %v2719
        %4414 = vmatprep.subr.mxu0 %v2718
        %4415 = vmatpush2.msra.mxu0 %v2717
        %4416 = vmatprep.subr.mxu0 %v2716
        %4417 = vmatpush2.msra.mxu0 %v2715
        %4418 = vmatprep.subr.mxu0 %v2714
        %4419 = vmatpush2.msra.mxu0 %v2713
        %4420 = vmatprep.subr.mxu0 %v2712
        %4421 = vmatpush2.msra.mxu0 %v2711
        %4422 = vmatprep.subr.mxu0 %v2710
        %4423 = vmatpush2.msra.mxu0 %v2709
        %4424 = vmatprep.subr.mxu0 %v2708
        %4425 = vmatpush2.msra.mxu0 %v2707
        %4426 = vmatprep.subr.mxu0 %v2706
        %4427 = vmatpush2.msra.mxu0 %v2705
        %4428 = vmatprep.mubr.f32.mxu0 %v4031
        %4429 = vmatmul.mubr.f32.gmra.mxu0 %v4030
        %v4430 = vpop.f32.mrf.mxu0
        %v4431 = vadd.f32 0.0, %v4430
        %v4432 = vpop.f32.mrf.mxu0
        %v4433 = vadd.f32 0.0, %v4432
        %4434 = vdwg.mxu0
        %v4435 = vld [vmem:[%s10 + $0x30] sm:$0xff]
        %v4436 = vld [vmem:[%s10 + $0x38] sm:$0xff]
        %v4437 = vld [vmem:[%s10 + $0x40] sm:$0xff]
        %v4439 = vsel %vm2524, %v4435, 0
        %v4442 = vsel %vm2524, %v4436, 0
        %v4445 = vsel %vm2524, %v4437, 0
        %4447 = vmatprep.subr.mxu0 0.0
        %4448 = vmatpush1.msra.mxu0 0.0
        %4449 = vmatprep.subr.mxu0 0.0
        %4450 = vmatpush1.msra.mxu0 0.0
        %4451 = vmatprep.subr.mxu0 0.0
        %4452 = vmatpush1.msra.mxu0 0.0
        %4453 = vmatprep.subr.mxu0 0.0
        %4454 = vmatpush1.msra.mxu0 0.0
        %4455 = vmatprep.subr.mxu0 0.0
        %4456 = vmatpush1.msra.mxu0 0.0
        %4457 = vmatprep.subr.mxu0 0.0
        %4458 = vmatpush1.msra.mxu0 0.0
        %4459 = vmatprep.subr.mxu0 0.0
        %4460 = vmatpush1.msra.mxu0 0.0
        %4461 = vmatprep.subr.mxu0 0.0
        %4462 = vmatpush1.msra.mxu0 0.0
        %4463 = vmatprep.subr.mxu0 0.0
        %4464 = vmatpush1.msra.mxu0 0.0
        %4465 = vmatprep.subr.mxu0 0.0
        %4466 = vmatpush1.msra.mxu0 0.0
        %4467 = vmatprep.subr.mxu0 0.0
        %4468 = vmatpush1.msra.mxu0 0.0
        %4469 = vmatprep.subr.mxu0 0.0
        %4470 = vmatpush1.msra.mxu0 0.0
        %4471 = vmatprep.subr.mxu0 0.0
        %4472 = vmatpush1.msra.mxu0 0.0
        %4473 = vmatprep.subr.mxu0 0.0
        %4474 = vmatpush1.msra.mxu0 0.0
        %4475 = vmatprep.subr.mxu0 0.0
        %4476 = vmatpush1.msra.mxu0 0.0
        %4477 = vmatprep.subr.mxu0 %v4433
        %4478 = vmatpush1.msra.mxu0 %v4431
        %4479 = vmatprep.subr.mxu0 0.0
        %4480 = vmatpush2.msra.mxu0 0.0
        %4481 = vmatprep.subr.mxu0 0.0
        %4482 = vmatpush2.msra.mxu0 0.0
        %4483 = vmatprep.subr.mxu0 0.0
        %4484 = vmatpush2.msra.mxu0 0.0
        %4485 = vmatprep.subr.mxu0 0.0
        %4486 = vmatpush2.msra.mxu0 0.0
        %4487 = vmatprep.subr.mxu0 0.0
        %4488 = vmatpush2.msra.mxu0 0.0
        %4489 = vmatprep.subr.mxu0 0.0
        %4490 = vmatpush2.msra.mxu0 0.0
        %4491 = vmatprep.subr.mxu0 0.0
        %4492 = vmatpush2.msra.mxu0 0.0
        %4493 = vmatprep.subr.mxu0 0.0
        %4494 = vmatpush2.msra.mxu0 0.0
        %4495 = vmatprep.subr.mxu0 0.0
        %4496 = vmatpush2.msra.mxu0 0.0
        %4497 = vmatprep.subr.mxu0 0.0
        %4498 = vmatpush2.msra.mxu0 0.0
        %4499 = vmatprep.subr.mxu0 0.0
        %4500 = vmatpush2.msra.mxu0 0.0
        %4501 = vmatprep.subr.mxu0 0.0
        %4502 = vmatpush2.msra.mxu0 0.0
        %4503 = vmatprep.subr.mxu0 0.0
        %4504 = vmatpush2.msra.mxu0 0.0
        %4505 = vmatprep.subr.mxu0 0.0
        %4506 = vmatpush2.msra.mxu0 0.0
        %4507 = vmatprep.subr.mxu0 0.0
        %4508 = vmatpush2.msra.mxu0 0.0
        %4509 = vmatprep.subr.mxu0 0.0
        %4510 = vmatpush2.msra.mxu0 0.0
        %4511 = vmatprep.mubr.f32.mxu0 0.0
        %4512 = vmatmul.mubr.f32.gmra.mxu0 %v4439
        %v4513 = vpop.f32.mrf.mxu0
        %v4514 = vadd.f32 0.0, %v4513
        %v4515 = vpop.f32.mrf.mxu0
        %v4516 = vadd.f32 0.0, %v4515
        %4517 = vmatprep.mubr.f32.mxu0 0.0
        %4518 = vmatmul.mubr.f32.gmra.mxu0 %v4442
        %v4519 = vpop.f32.mrf.mxu0
        %v4520 = vadd.f32 0.0, %v4519
        %v4521 = vpop.f32.mrf.mxu0
        %v4522 = vadd.f32 0.0, %v4521
        %4523 = vmatprep.mubr.f32.mxu0 0.0
        %4524 = vmatmul.mubr.f32.gmra.mxu0 %v4445
        %v4525 = vpop.f32.mrf.mxu0
        %v4526 = vadd.f32 0.0, %v4525
        %v4527 = vpop.f32.mrf.mxu0
        %v4528 = vadd.f32 0.0, %v4527
        %4529 = vdwg.mxu0
        %v4530 = vadd.f32 %v4348, %v4514
        %v4531 = vadd.f32 %v4350, %v4516
        %v4532 = vadd.f32 %v4354, %v4520
        %v4533 = vadd.f32 %v4356, %v4522
        %v4534 = vadd.f32 %v4360, %v4526
        %v4535 = vadd.f32 %v4362, %v4528
        %4536 = vmatprep.subr.mxu0 %v2916
        %4537 = vmatpush1.msra.mxu0 %v2915
        %4538 = vmatprep.subr.mxu0 %v2914
        %4539 = vmatpush1.msra.mxu0 %v2913
        %4540 = vmatprep.subr.mxu0 %v2912
        %4541 = vmatpush1.msra.mxu0 %v2911
        %4542 = vmatprep.subr.mxu0 %v2910
        %4543 = vmatpush1.msra.mxu0 %v2909
        %4544 = vmatprep.subr.mxu0 %v2908
        %4545 = vmatpush1.msra.mxu0 %v2907
        %4546 = vmatprep.subr.mxu0 %v2906
        %4547 = vmatpush1.msra.mxu0 %v2905
        %4548 = vmatprep.subr.mxu0 %v2904
        %4549 = vmatpush1.msra.mxu0 %v2903
        %4550 = vmatprep.subr.mxu0 %v2902
        %4551 = vmatpush1.msra.mxu0 %v2901
        %4552 = vmatprep.subr.mxu0 %v2900
        %4553 = vmatpush1.msra.mxu0 %v2899
        %4554 = vmatprep.subr.mxu0 %v2898
        %4555 = vmatpush1.msra.mxu0 %v2897
        %4556 = vmatprep.subr.mxu0 %v2896
        %4557 = vmatpush1.msra.mxu0 %v2895
        %4558 = vmatprep.subr.mxu0 %v2894
        %4559 = vmatpush1.msra.mxu0 %v2893
        %4560 = vmatprep.subr.mxu0 %v2892
        %4561 = vmatpush1.msra.mxu0 %v2891
        %4562 = vmatprep.subr.mxu0 %v2890
        %4563 = vmatpush1.msra.mxu0 %v2889
        %4564 = vmatprep.subr.mxu0 %v2888
        %4565 = vmatpush1.msra.mxu0 %v2887
        %4566 = vmatprep.subr.mxu0 %v2886
        %4567 = vmatpush1.msra.mxu0 %v2885
        %4568 = vmatprep.subr.mxu0 %v2948
        %4569 = vmatpush2.msra.mxu0 %v2947
        %4570 = vmatprep.subr.mxu0 %v2946
        %4571 = vmatpush2.msra.mxu0 %v2945
        %4572 = vmatprep.subr.mxu0 %v2944
        %4573 = vmatpush2.msra.mxu0 %v2943
        %4574 = vmatprep.subr.mxu0 %v2942
        %4575 = vmatpush2.msra.mxu0 %v2941
        %4576 = vmatprep.subr.mxu0 %v2940
        %4577 = vmatpush2.msra.mxu0 %v2939
        %4578 = vmatprep.subr.mxu0 %v2938
        %4579 = vmatpush2.msra.mxu0 %v2937
        %4580 = vmatprep.subr.mxu0 %v2936
        %4581 = vmatpush2.msra.mxu0 %v2935
        %4582 = vmatprep.subr.mxu0 %v2934
        %4583 = vmatpush2.msra.mxu0 %v2933
        %4584 = vmatprep.subr.mxu0 %v2932
        %4585 = vmatpush2.msra.mxu0 %v2931
        %4586 = vmatprep.subr.mxu0 %v2930
        %4587 = vmatpush2.msra.mxu0 %v2929
        %4588 = vmatprep.subr.mxu0 %v2928
        %4589 = vmatpush2.msra.mxu0 %v2927
        %4590 = vmatprep.subr.mxu0 %v2926
        %4591 = vmatpush2.msra.mxu0 %v2925
        %4592 = vmatprep.subr.mxu0 %v2924
        %4593 = vmatpush2.msra.mxu0 %v2923
        %4594 = vmatprep.subr.mxu0 %v2922
        %4595 = vmatpush2.msra.mxu0 %v2921
        %4596 = vmatprep.subr.mxu0 %v2920
        %4597 = vmatpush2.msra.mxu0 %v2919
        %4598 = vmatprep.subr.mxu0 %v2918
        %4599 = vmatpush2.msra.mxu0 %v2917
        %4600 = vmatprep.mubr.f32.mxu0 %v4031
        %4601 = vmatmul.mubr.f32.gmra.mxu0 %v4030
        %v4602 = vpop.f32.mrf.mxu0
        %v4603 = vadd.f32 0.0, %v4602
        %v4604 = vpop.f32.mrf.mxu0
        %v4605 = vadd.f32 0.0, %v4604
        %4606 = vdwg.mxu0
        %v4607 = vld [vmem:[%s10 + $0x48] sm:$0xff]
        %v4608 = vld [vmem:[%s10 + $0x50] sm:$0xff]
        %v4609 = vld [vmem:[%s10 + $0x58] sm:$0xff]
        %v4611 = vsel %vm2524, %v4607, 0
        %v4614 = vsel %vm2524, %v4608, 0
        %v4617 = vsel %vm2524, %v4609, 0
        %4619 = vmatprep.subr.mxu0 0.0
        %4620 = vmatpush1.msra.mxu0 0.0
        %4621 = vmatprep.subr.mxu0 0.0
        %4622 = vmatpush1.msra.mxu0 0.0
        %4623 = vmatprep.subr.mxu0 0.0
        %4624 = vmatpush1.msra.mxu0 0.0
        %4625 = vmatprep.subr.mxu0 0.0
        %4626 = vmatpush1.msra.mxu0 0.0
        %4627 = vmatprep.subr.mxu0 0.0
        %4628 = vmatpush1.msra.mxu0 0.0
        %4629 = vmatprep.subr.mxu0 0.0
        %4630 = vmatpush1.msra.mxu0 0.0
        %4631 = vmatprep.subr.mxu0 0.0
        %4632 = vmatpush1.msra.mxu0 0.0
        %4633 = vmatprep.subr.mxu0 0.0
        %4634 = vmatpush1.msra.mxu0 0.0
        %4635 = vmatprep.subr.mxu0 0.0
        %4636 = vmatpush1.msra.mxu0 0.0
        %4637 = vmatprep.subr.mxu0 0.0
        %4638 = vmatpush1.msra.mxu0 0.0
        %4639 = vmatprep.subr.mxu0 0.0
        %4640 = vmatpush1.msra.mxu0 0.0
        %4641 = vmatprep.subr.mxu0 0.0
        %4642 = vmatpush1.msra.mxu0 0.0
        %4643 = vmatprep.subr.mxu0 0.0
        %4644 = vmatpush1.msra.mxu0 0.0
        %4645 = vmatprep.subr.mxu0 0.0
        %4646 = vmatpush1.msra.mxu0 0.0
        %4647 = vmatprep.subr.mxu0 0.0
        %4648 = vmatpush1.msra.mxu0 0.0
        %4649 = vmatprep.subr.mxu0 %v4605
        %4650 = vmatpush1.msra.mxu0 %v4603
        %4651 = vmatprep.subr.mxu0 0.0
        %4652 = vmatpush2.msra.mxu0 0.0
        %4653 = vmatprep.subr.mxu0 0.0
        %4654 = vmatpush2.msra.mxu0 0.0
        %4655 = vmatprep.subr.mxu0 0.0
        %4656 = vmatpush2.msra.mxu0 0.0
        %4657 = vmatprep.subr.mxu0 0.0
        %4658 = vmatpush2.msra.mxu0 0.0
        %4659 = vmatprep.subr.mxu0 0.0
        %4660 = vmatpush2.msra.mxu0 0.0
        %4661 = vmatprep.subr.mxu0 0.0
        %4662 = vmatpush2.msra.mxu0 0.0
        %4663 = vmatprep.subr.mxu0 0.0
        %4664 = vmatpush2.msra.mxu0 0.0
        %4665 = vmatprep.subr.mxu0 0.0
        %4666 = vmatpush2.msra.mxu0 0.0
        %4667 = vmatprep.subr.mxu0 0.0
        %4668 = vmatpush2.msra.mxu0 0.0
        %4669 = vmatprep.subr.mxu0 0.0
        %4670 = vmatpush2.msra.mxu0 0.0
        %4671 = vmatprep.subr.mxu0 0.0
        %4672 = vmatpush2.msra.mxu0 0.0
        %4673 = vmatprep.subr.mxu0 0.0
        %4674 = vmatpush2.msra.mxu0 0.0
        %4675 = vmatprep.subr.mxu0 0.0
        %4676 = vmatpush2.msra.mxu0 0.0
        %4677 = vmatprep.subr.mxu0 0.0
        %4678 = vmatpush2.msra.mxu0 0.0
        %4679 = vmatprep.subr.mxu0 0.0
        %4680 = vmatpush2.msra.mxu0 0.0
        %4681 = vmatprep.subr.mxu0 0.0
        %4682 = vmatpush2.msra.mxu0 0.0
        %4683 = vmatprep.mubr.f32.mxu0 0.0
        %4684 = vmatmul.mubr.f32.gmra.mxu0 %v4611
        %v4685 = vpop.f32.mrf.mxu0
        %v4686 = vadd.f32 0.0, %v4685
        %v4687 = vpop.f32.mrf.mxu0
        %v4688 = vadd.f32 0.0, %v4687
        %4689 = vmatprep.mubr.f32.mxu0 0.0
        %4690 = vmatmul.mubr.f32.gmra.mxu0 %v4614
        %v4691 = vpop.f32.mrf.mxu0
        %v4692 = vadd.f32 0.0, %v4691
        %v4693 = vpop.f32.mrf.mxu0
        %v4694 = vadd.f32 0.0, %v4693
        %4695 = vmatprep.mubr.f32.mxu0 0.0
        %4696 = vmatmul.mubr.f32.gmra.mxu0 %v4617
        %v4697 = vpop.f32.mrf.mxu0
        %v4698 = vadd.f32 0.0, %v4697
        %v4699 = vpop.f32.mrf.mxu0
        %v4700 = vadd.f32 0.0, %v4699
        %4701 = vdwg.mxu0
        %v4702 = vadd.f32 %v4530, %v4686
        %v4703 = vadd.f32 %v4531, %v4688
        %v4704 = vadd.f32 %v4532, %v4692
        %v4705 = vadd.f32 %v4533, %v4694
        %v4706 = vadd.f32 %v4534, %v4698
        %v4707 = vadd.f32 %v4535, %v4700
        %v4708 = vld [vmem:[%s10 + $0x60] sm:$0xff]
        %v4709 = vld [vmem:[%s10 + $0x68] sm:$0xff]
        %v4710 = vld [vmem:[%s10 + $0x70] sm:$0xff]
        %v4712 = vsel %vm2524, %v4708, 0
        %v4715 = vsel %vm2524, %v4709, 0
        %v4718 = vsel %vm2524, %v4710, 0
        %4720 = vmatprep.subr.mxu0 0.0
        %4721 = vmatpush1.msra.mxu0 0.0
        %4722 = vmatprep.subr.mxu0 0.0
        %4723 = vmatpush1.msra.mxu0 0.0
        %4724 = vmatprep.subr.mxu0 0.0
        %4725 = vmatpush1.msra.mxu0 0.0
        %4726 = vmatprep.subr.mxu0 0.0
        %4727 = vmatpush1.msra.mxu0 0.0
        %4728 = vmatprep.subr.mxu0 0.0
        %4729 = vmatpush1.msra.mxu0 0.0
        %4730 = vmatprep.subr.mxu0 0.0
        %4731 = vmatpush1.msra.mxu0 0.0
        %4732 = vmatprep.subr.mxu0 0.0
        %4733 = vmatpush1.msra.mxu0 0.0
        %4734 = vmatprep.subr.mxu0 0.0
        %4735 = vmatpush1.msra.mxu0 0.0
        %4736 = vmatprep.subr.mxu0 0.0
        %4737 = vmatpush1.msra.mxu0 0.0
        %4738 = vmatprep.subr.mxu0 0.0
        %4739 = vmatpush1.msra.mxu0 0.0
        %4740 = vmatprep.subr.mxu0 0.0
        %4741 = vmatpush1.msra.mxu0 0.0
        %4742 = vmatprep.subr.mxu0 0.0
        %4743 = vmatpush1.msra.mxu0 0.0
        %4744 = vmatprep.subr.mxu0 0.0
        %4745 = vmatpush1.msra.mxu0 0.0
        %4746 = vmatprep.subr.mxu0 0.0
        %4747 = vmatpush1.msra.mxu0 0.0
        %4748 = vmatprep.subr.mxu0 0.0
        %4749 = vmatpush1.msra.mxu0 0.0
        %4750 = vmatprep.subr.mxu0 %v4031
        %4751 = vmatpush1.msra.mxu0 %v4030
        %4752 = vmatprep.subr.mxu0 0.0
        %4753 = vmatpush2.msra.mxu0 0.0
        %4754 = vmatprep.subr.mxu0 0.0
        %4755 = vmatpush2.msra.mxu0 0.0
        %4756 = vmatprep.subr.mxu0 0.0
        %4757 = vmatpush2.msra.mxu0 0.0
        %4758 = vmatprep.subr.mxu0 0.0
        %4759 = vmatpush2.msra.mxu0 0.0
        %4760 = vmatprep.subr.mxu0 0.0
        %4761 = vmatpush2.msra.mxu0 0.0
        %4762 = vmatprep.subr.mxu0 0.0
        %4763 = vmatpush2.msra.mxu0 0.0
        %4764 = vmatprep.subr.mxu0 0.0
        %4765 = vmatpush2.msra.mxu0 0.0
        %4766 = vmatprep.subr.mxu0 0.0
        %4767 = vmatpush2.msra.mxu0 0.0
        %4768 = vmatprep.subr.mxu0 0.0
        %4769 = vmatpush2.msra.mxu0 0.0
        %4770 = vmatprep.subr.mxu0 0.0
        %4771 = vmatpush2.msra.mxu0 0.0
        %4772 = vmatprep.subr.mxu0 0.0
        %4773 = vmatpush2.msra.mxu0 0.0
        %4774 = vmatprep.subr.mxu0 0.0
        %4775 = vmatpush2.msra.mxu0 0.0
        %4776 = vmatprep.subr.mxu0 0.0
        %4777 = vmatpush2.msra.mxu0 0.0
        %4778 = vmatprep.subr.mxu0 0.0
        %4779 = vmatpush2.msra.mxu0 0.0
        %4780 = vmatprep.subr.mxu0 0.0
        %4781 = vmatpush2.msra.mxu0 0.0
        %4782 = vmatprep.subr.mxu0 0.0
        %4783 = vmatpush2.msra.mxu0 0.0
        %4784 = vmatprep.mubr.f32.mxu0 0.0
        %4785 = vmatmul.mubr.f32.gmra.mxu0 %v4712
        %v4786 = vpop.f32.mrf.mxu0
        %v4787 = vadd.f32 0.0, %v4786
        %v4788 = vpop.f32.mrf.mxu0
        %v4789 = vadd.f32 0.0, %v4788
        %4790 = vmatprep.mubr.f32.mxu0 0.0
        %4791 = vmatmul.mubr.f32.gmra.mxu0 %v4715
        %v4792 = vpop.f32.mrf.mxu0
        %v4793 = vadd.f32 0.0, %v4792
        %v4794 = vpop.f32.mrf.mxu0
        %v4795 = vadd.f32 0.0, %v4794
        %4796 = vmatprep.mubr.f32.mxu0 0.0
        %4797 = vmatmul.mubr.f32.gmra.mxu0 %v4718
        %v4798 = vpop.f32.mrf.mxu0
        %v4799 = vadd.f32 0.0, %v4798
        %v4800 = vpop.f32.mrf.mxu0
        %v4801 = vadd.f32 0.0, %v4800
        %4802 = vdwg.mxu0
        %v4803 = vadd.f32 %v4702, %v4787
        %v4804 = vadd.f32 %v4703, %v4789
        %v4805 = vadd.f32 %v4704, %v4793
        %v4806 = vadd.f32 %v4705, %v4795
        %v4807 = vadd.f32 %v4706, %v4799
        %v4808 = vadd.f32 %v4707, %v4801
        %4809 = vmatprep.subr.mxu0 %v3205
        %4810 = vmatpush1.msra.mxu0 %v3204
        %4811 = vmatprep.subr.mxu0 %v3203
        %4812 = vmatpush1.msra.mxu0 %v3202
        %4813 = vmatprep.subr.mxu0 %v3201
        %4814 = vmatpush1.msra.mxu0 %v3200
        %4815 = vmatprep.subr.mxu0 %v3199
        %4816 = vmatpush1.msra.mxu0 %v3198
        %4817 = vmatprep.subr.mxu0 %v3197
        %4818 = vmatpush1.msra.mxu0 %v3196
        %4819 = vmatprep.subr.mxu0 %v3195
        %4820 = vmatpush1.msra.mxu0 %v3194
        %4821 = vmatprep.subr.mxu0 %v3193
        %4822 = vmatpush1.msra.mxu0 %v3192
        %4823 = vmatprep.subr.mxu0 %v3191
        %4824 = vmatpush1.msra.mxu0 %v3190
        %4825 = vmatprep.subr.mxu0 %v3189
        %4826 = vmatpush1.msra.mxu0 %v3188
        %4827 = vmatprep.subr.mxu0 %v3187
        %4828 = vmatpush1.msra.mxu0 %v3186
        %4829 = vmatprep.subr.mxu0 %v3185
        %4830 = vmatpush1.msra.mxu0 %v3184
        %4831 = vmatprep.subr.mxu0 %v3183
        %4832 = vmatpush1.msra.mxu0 %v3182
        %4833 = vmatprep.subr.mxu0 %v3181
        %4834 = vmatpush1.msra.mxu0 %v3180
        %4835 = vmatprep.subr.mxu0 %v3179
        %4836 = vmatpush1.msra.mxu0 %v3178
        %4837 = vmatprep.subr.mxu0 %v3177
        %4838 = vmatpush1.msra.mxu0 %v3176
        %4839 = vmatprep.subr.mxu0 %v3175
        %4840 = vmatpush1.msra.mxu0 %v3174
        %4841 = vmatprep.subr.mxu0 %v3237
        %4842 = vmatpush2.msra.mxu0 %v3236
        %4843 = vmatprep.subr.mxu0 %v3235
        %4844 = vmatpush2.msra.mxu0 %v3234
        %4845 = vmatprep.subr.mxu0 %v3233
        %4846 = vmatpush2.msra.mxu0 %v3232
        %4847 = vmatprep.subr.mxu0 %v3231
        %4848 = vmatpush2.msra.mxu0 %v3230
        %4849 = vmatprep.subr.mxu0 %v3229
        %4850 = vmatpush2.msra.mxu0 %v3228
        %4851 = vmatprep.subr.mxu0 %v3227
        %4852 = vmatpush2.msra.mxu0 %v3226
        %4853 = vmatprep.subr.mxu0 %v3225
        %4854 = vmatpush2.msra.mxu0 %v3224
        %4855 = vmatprep.subr.mxu0 %v3223
        %4856 = vmatpush2.msra.mxu0 %v3222
        %4857 = vmatprep.subr.mxu0 %v3221
        %4858 = vmatpush2.msra.mxu0 %v3220
        %4859 = vmatprep.subr.mxu0 %v3219
        %4860 = vmatpush2.msra.mxu0 %v3218
        %4861 = vmatprep.subr.mxu0 %v3217
        %4862 = vmatpush2.msra.mxu0 %v3216
        %4863 = vmatprep.subr.mxu0 %v3215
        %4864 = vmatpush2.msra.mxu0 %v3214
        %4865 = vmatprep.subr.mxu0 %v3213
        %4866 = vmatpush2.msra.mxu0 %v3212
        %4867 = vmatprep.subr.mxu0 %v3211
        %4868 = vmatpush2.msra.mxu0 %v3210
        %4869 = vmatprep.subr.mxu0 %v3209
        %4870 = vmatpush2.msra.mxu0 %v3208
        %4871 = vmatprep.subr.mxu0 %v3207
        %4872 = vmatpush2.msra.mxu0 %v3206
        %4873 = vmatprep.mubr.f32.mxu0 %v4031
        %4874 = vmatmul.mubr.f32.gmra.mxu0 %v4030
        %v4875 = vpop.f32.mrf.mxu0
        %v4876 = vadd.f32 0.0, %v4875
        %v4877 = vpop.f32.mrf.mxu0
        %v4878 = vadd.f32 0.0, %v4877
        %4879 = vdwg.mxu0
        %v4880 = vld [vmem:[%s10 + $0x78] sm:$0xff]
        %v4881 = vld [vmem:[%s10 + $0x80] sm:$0xff]
        %v4882 = vld [vmem:[%s10 + $0x88] sm:$0xff]
        %v4884 = vsel %vm2524, %v4880, 0
        %v4887 = vsel %vm2524, %v4881, 0
        %v4890 = vsel %vm2524, %v4882, 0
        %4892 = vmatprep.subr.mxu0 0.0
        %4893 = vmatpush1.msra.mxu0 0.0
        %4894 = vmatprep.subr.mxu0 0.0
        %4895 = vmatpush1.msra.mxu0 0.0
        %4896 = vmatprep.subr.mxu0 0.0
        %4897 = vmatpush1.msra.mxu0 0.0
        %4898 = vmatprep.subr.mxu0 0.0
        %4899 = vmatpush1.msra.mxu0 0.0
        %4900 = vmatprep.subr.mxu0 0.0
        %4901 = vmatpush1.msra.mxu0 0.0
        %4902 = vmatprep.subr.mxu0 0.0
        %4903 = vmatpush1.msra.mxu0 0.0
        %4904 = vmatprep.subr.mxu0 0.0
        %4905 = vmatpush1.msra.mxu0 0.0
        %4906 = vmatprep.subr.mxu0 0.0
        %4907 = vmatpush1.msra.mxu0 0.0
        %4908 = vmatprep.subr.mxu0 0.0
        %4909 = vmatpush1.msra.mxu0 0.0
        %4910 = vmatprep.subr.mxu0 0.0
        %4911 = vmatpush1.msra.mxu0 0.0
        %4912 = vmatprep.subr.mxu0 0.0
        %4913 = vmatpush1.msra.mxu0 0.0
        %4914 = vmatprep.subr.mxu0 0.0
        %4915 = vmatpush1.msra.mxu0 0.0
        %4916 = vmatprep.subr.mxu0 0.0
        %4917 = vmatpush1.msra.mxu0 0.0
        %4918 = vmatprep.subr.mxu0 0.0
        %4919 = vmatpush1.msra.mxu0 0.0
        %4920 = vmatprep.subr.mxu0 0.0
        %4921 = vmatpush1.msra.mxu0 0.0
        %4922 = vmatprep.subr.mxu0 %v4878
        %4923 = vmatpush1.msra.mxu0 %v4876
        %4924 = vmatprep.subr.mxu0 0.0
        %4925 = vmatpush2.msra.mxu0 0.0
        %4926 = vmatprep.subr.mxu0 0.0
        %4927 = vmatpush2.msra.mxu0 0.0
        %4928 = vmatprep.subr.mxu0 0.0
        %4929 = vmatpush2.msra.mxu0 0.0
        %4930 = vmatprep.subr.mxu0 0.0
        %4931 = vmatpush2.msra.mxu0 0.0
        %4932 = vmatprep.subr.mxu0 0.0
        %4933 = vmatpush2.msra.mxu0 0.0
        %4934 = vmatprep.subr.mxu0 0.0
        %4935 = vmatpush2.msra.mxu0 0.0
        %4936 = vmatprep.subr.mxu0 0.0
        %4937 = vmatpush2.msra.mxu0 0.0
        %4938 = vmatprep.subr.mxu0 0.0
        %4939 = vmatpush2.msra.mxu0 0.0
        %4940 = vmatprep.subr.mxu0 0.0
        %4941 = vmatpush2.msra.mxu0 0.0
        %4942 = vmatprep.subr.mxu0 0.0
        %4943 = vmatpush2.msra.mxu0 0.0
        %4944 = vmatprep.subr.mxu0 0.0
        %4945 = vmatpush2.msra.mxu0 0.0
        %4946 = vmatprep.subr.mxu0 0.0
        %4947 = vmatpush2.msra.mxu0 0.0
        %4948 = vmatprep.subr.mxu0 0.0
        %4949 = vmatpush2.msra.mxu0 0.0
        %4950 = vmatprep.subr.mxu0 0.0
        %4951 = vmatpush2.msra.mxu0 0.0
        %4952 = vmatprep.subr.mxu0 0.0
        %4953 = vmatpush2.msra.mxu0 0.0
        %4954 = vmatprep.subr.mxu0 0.0
        %4955 = vmatpush2.msra.mxu0 0.0
        %4956 = vmatprep.mubr.f32.mxu0 0.0
        %4957 = vmatmul.mubr.f32.gmra.mxu0 %v4884
        %v4958 = vpop.f32.mrf.mxu0
        %v4959 = vadd.f32 0.0, %v4958
        %v4960 = vpop.f32.mrf.mxu0
        %v4961 = vadd.f32 0.0, %v4960
        %4962 = vmatprep.mubr.f32.mxu0 0.0
        %4963 = vmatmul.mubr.f32.gmra.mxu0 %v4887
        %v4964 = vpop.f32.mrf.mxu0
        %v4965 = vadd.f32 0.0, %v4964
        %v4966 = vpop.f32.mrf.mxu0
        %v4967 = vadd.f32 0.0, %v4966
        %4968 = vmatprep.mubr.f32.mxu0 0.0
        %4969 = vmatmul.mubr.f32.gmra.mxu0 %v4890
        %v4970 = vpop.f32.mrf.mxu0
        %v4971 = vadd.f32 0.0, %v4970
        %v4972 = vpop.f32.mrf.mxu0
        %v4973 = vadd.f32 0.0, %v4972
        %4974 = vdwg.mxu0
        %v4975 = vadd.f32 %v4803, %v4959
        %v4976 = vadd.f32 %v4804, %v4961
        %v4977 = vadd.f32 %v4805, %v4965
        %v4978 = vadd.f32 %v4806, %v4967
        %v4979 = vadd.f32 %v4807, %v4971
        %v4980 = vadd.f32 %v4808, %v4973
        %4981 = vmatprep.subr.mxu0 %v3417
        %4982 = vmatpush1.msra.mxu0 %v3416
        %4983 = vmatprep.subr.mxu0 %v3415
        %4984 = vmatpush1.msra.mxu0 %v3414
        %4985 = vmatprep.subr.mxu0 %v3413
        %4986 = vmatpush1.msra.mxu0 %v3412
        %4987 = vmatprep.subr.mxu0 %v3411
        %4988 = vmatpush1.msra.mxu0 %v3410
        %4989 = vmatprep.subr.mxu0 %v3409
        %4990 = vmatpush1.msra.mxu0 %v3408
        %4991 = vmatprep.subr.mxu0 %v3407
        %4992 = vmatpush1.msra.mxu0 %v3406
        %4993 = vmatprep.subr.mxu0 %v3405
        %4994 = vmatpush1.msra.mxu0 %v3404
        %4995 = vmatprep.subr.mxu0 %v3403
        %4996 = vmatpush1.msra.mxu0 %v3402
        %4997 = vmatprep.subr.mxu0 %v3401
        %4998 = vmatpush1.msra.mxu0 %v3400
        %4999 = vmatprep.subr.mxu0 %v3399
        %5000 = vmatpush1.msra.mxu0 %v3398
        %5001 = vmatprep.subr.mxu0 %v3397
        %5002 = vmatpush1.msra.mxu0 %v3396
        %5003 = vmatprep.subr.mxu0 %v3395
        %5004 = vmatpush1.msra.mxu0 %v3394
        %5005 = vmatprep.subr.mxu0 %v3393
        %5006 = vmatpush1.msra.mxu0 %v3392
        %5007 = vmatprep.subr.mxu0 %v3391
        %5008 = vmatpush1.msra.mxu0 %v3390
        %5009 = vmatprep.subr.mxu0 %v3389
        %5010 = vmatpush1.msra.mxu0 %v3388
        %5011 = vmatprep.subr.mxu0 %v3387
        %5012 = vmatpush1.msra.mxu0 %v3386
        %5013 = vmatprep.subr.mxu0 %v3449
        %5014 = vmatpush2.msra.mxu0 %v3448
        %5015 = vmatprep.subr.mxu0 %v3447
        %5016 = vmatpush2.msra.mxu0 %v3446
        %5017 = vmatprep.subr.mxu0 %v3445
        %5018 = vmatpush2.msra.mxu0 %v3444
        %5019 = vmatprep.subr.mxu0 %v3443
        %5020 = vmatpush2.msra.mxu0 %v3442
        %5021 = vmatprep.subr.mxu0 %v3441
        %5022 = vmatpush2.msra.mxu0 %v3440
        %5023 = vmatprep.subr.mxu0 %v3439
        %5024 = vmatpush2.msra.mxu0 %v3438
        %5025 = vmatprep.subr.mxu0 %v3437
        %5026 = vmatpush2.msra.mxu0 %v3436
        %5027 = vmatprep.subr.mxu0 %v3435
        %5028 = vmatpush2.msra.mxu0 %v3434
        %5029 = vmatprep.subr.mxu0 %v3433
        %5030 = vmatpush2.msra.mxu0 %v3432
        %5031 = vmatprep.subr.mxu0 %v3431
        %5032 = vmatpush2.msra.mxu0 %v3430
        %5033 = vmatprep.subr.mxu0 %v3429
        %5034 = vmatpush2.msra.mxu0 %v3428
        %5035 = vmatprep.subr.mxu0 %v3427
        %5036 = vmatpush2.msra.mxu0 %v3426
        %5037 = vmatprep.subr.mxu0 %v3425
        %5038 = vmatpush2.msra.mxu0 %v3424
        %5039 = vmatprep.subr.mxu0 %v3423
        %5040 = vmatpush2.msra.mxu0 %v3422
        %5041 = vmatprep.subr.mxu0 %v3421
        %5042 = vmatpush2.msra.mxu0 %v3420
        %5043 = vmatprep.subr.mxu0 %v3419
        %5044 = vmatpush2.msra.mxu0 %v3418
        %5045 = vmatprep.mubr.f32.mxu0 %v4031
        %5046 = vmatmul.mubr.f32.gmra.mxu0 %v4030
        %v5047 = vpop.f32.mrf.mxu0
        %v5048 = vadd.f32 0.0, %v5047
        %v5049 = vpop.f32.mrf.mxu0
        %v5050 = vadd.f32 0.0, %v5049
        %5051 = vdwg.mxu0
        %v5052 = vld [vmem:[%s10 + $0x90] sm:$0xff]
        %v5053 = vld [vmem:[%s10 + $0x98] sm:$0xff]
        %v5054 = vld [vmem:[%s10 + $0xa0] sm:$0xff]
        %v5056 = vsel %vm2524, %v5052, 0
        %v5059 = vsel %vm2524, %v5053, 0
        %v5062 = vsel %vm2524, %v5054, 0
        %5064 = vmatprep.subr.mxu0 0.0
        %5065 = vmatpush1.msra.mxu0 0.0
        %5066 = vmatprep.subr.mxu0 0.0
        %5067 = vmatpush1.msra.mxu0 0.0
        %5068 = vmatprep.subr.mxu0 0.0
        %5069 = vmatpush1.msra.mxu0 0.0
        %5070 = vmatprep.subr.mxu0 0.0
        %5071 = vmatpush1.msra.mxu0 0.0
        %5072 = vmatprep.subr.mxu0 0.0
        %5073 = vmatpush1.msra.mxu0 0.0
        %5074 = vmatprep.subr.mxu0 0.0
        %5075 = vmatpush1.msra.mxu0 0.0
        %5076 = vmatprep.subr.mxu0 0.0
        %5077 = vmatpush1.msra.mxu0 0.0
        %5078 = vmatprep.subr.mxu0 0.0
        %5079 = vmatpush1.msra.mxu0 0.0
        %5080 = vmatprep.subr.mxu0 0.0
        %5081 = vmatpush1.msra.mxu0 0.0
        %5082 = vmatprep.subr.mxu0 0.0
        %5083 = vmatpush1.msra.mxu0 0.0
        %5084 = vmatprep.subr.mxu0 0.0
        %5085 = vmatpush1.msra.mxu0 0.0
        %5086 = vmatprep.subr.mxu0 0.0
        %5087 = vmatpush1.msra.mxu0 0.0
        %5088 = vmatprep.subr.mxu0 0.0
        %5089 = vmatpush1.msra.mxu0 0.0
        %5090 = vmatprep.subr.mxu0 0.0
        %5091 = vmatpush1.msra.mxu0 0.0
        %5092 = vmatprep.subr.mxu0 0.0
        %5093 = vmatpush1.msra.mxu0 0.0
        %5094 = vmatprep.subr.mxu0 %v5050
        %5095 = vmatpush1.msra.mxu0 %v5048
        %5096 = vmatprep.subr.mxu0 0.0
        %5097 = vmatpush2.msra.mxu0 0.0
        %5098 = vmatprep.subr.mxu0 0.0
        %5099 = vmatpush2.msra.mxu0 0.0
        %5100 = vmatprep.subr.mxu0 0.0
        %5101 = vmatpush2.msra.mxu0 0.0
        %5102 = vmatprep.subr.mxu0 0.0
        %5103 = vmatpush2.msra.mxu0 0.0
        %5104 = vmatprep.subr.mxu0 0.0
        %5105 = vmatpush2.msra.mxu0 0.0
        %5106 = vmatprep.subr.mxu0 0.0
        %5107 = vmatpush2.msra.mxu0 0.0
        %5108 = vmatprep.subr.mxu0 0.0
        %5109 = vmatpush2.msra.mxu0 0.0
        %5110 = vmatprep.subr.mxu0 0.0
        %5111 = vmatpush2.msra.mxu0 0.0
        %5112 = vmatprep.subr.mxu0 0.0
        %5113 = vmatpush2.msra.mxu0 0.0
        %5114 = vmatprep.subr.mxu0 0.0
        %5115 = vmatpush2.msra.mxu0 0.0
        %5116 = vmatprep.subr.mxu0 0.0
        %5117 = vmatpush2.msra.mxu0 0.0
        %5118 = vmatprep.subr.mxu0 0.0
        %5119 = vmatpush2.msra.mxu0 0.0
        %5120 = vmatprep.subr.mxu0 0.0
        %5121 = vmatpush2.msra.mxu0 0.0
        %5122 = vmatprep.subr.mxu0 0.0
        %5123 = vmatpush2.msra.mxu0 0.0
        %5124 = vmatprep.subr.mxu0 0.0
        %5125 = vmatpush2.msra.mxu0 0.0
        %5126 = vmatprep.subr.mxu0 0.0
        %5127 = vmatpush2.msra.mxu0 0.0
        %5128 = vmatprep.mubr.f32.mxu0 0.0
        %5129 = vmatmul.mubr.f32.gmra.mxu0 %v5056
        %v5130 = vpop.f32.mrf.mxu0
        %v5131 = vadd.f32 0.0, %v5130
        %v5132 = vpop.f32.mrf.mxu0
        %v5133 = vadd.f32 0.0, %v5132
        %5134 = vmatprep.mubr.f32.mxu0 0.0
        %5135 = vmatmul.mubr.f32.gmra.mxu0 %v5059
        %v5136 = vpop.f32.mrf.mxu0
        %v5137 = vadd.f32 0.0, %v5136
        %v5138 = vpop.f32.mrf.mxu0
        %v5139 = vadd.f32 0.0, %v5138
        %5140 = vmatprep.mubr.f32.mxu0 0.0
        %5141 = vmatmul.mubr.f32.gmra.mxu0 %v5062
        %v5142 = vpop.f32.mrf.mxu0
        %v5143 = vadd.f32 0.0, %v5142
        %v5144 = vpop.f32.mrf.mxu0
        %v5145 = vadd.f32 0.0, %v5144
        %5146 = vdwg.mxu0
        %v5147 = vadd.f32 %v4975, %v5131
        %v5148 = vadd.f32 %v4976, %v5133
        %v5149 = vadd.f32 %v4977, %v5137
        %v5150 = vadd.f32 %v4978, %v5139
        %v5151 = vadd.f32 %v4979, %v5143
        %v5152 = vadd.f32 %v4980, %v5145
        %5153 = vmatprep.subr.mxu0 %v3629
        %5154 = vmatpush1.msra.mxu0 %v3628
        %5155 = vmatprep.subr.mxu0 %v3627
        %5156 = vmatpush1.msra.mxu0 %v3626
        %5157 = vmatprep.subr.mxu0 %v3625
        %5158 = vmatpush1.msra.mxu0 %v3624
        %5159 = vmatprep.subr.mxu0 %v3623
        %5160 = vmatpush1.msra.mxu0 %v3622
        %5161 = vmatprep.subr.mxu0 %v3621
        %5162 = vmatpush1.msra.mxu0 %v3620
        %5163 = vmatprep.subr.mxu0 %v3619
        %5164 = vmatpush1.msra.mxu0 %v3618
        %5165 = vmatprep.subr.mxu0 %v3617
        %5166 = vmatpush1.msra.mxu0 %v3616
        %5167 = vmatprep.subr.mxu0 %v3615
        %5168 = vmatpush1.msra.mxu0 %v3614
        %5169 = vmatprep.subr.mxu0 %v3613
        %5170 = vmatpush1.msra.mxu0 %v3612
        %5171 = vmatprep.subr.mxu0 %v3611
        %5172 = vmatpush1.msra.mxu0 %v3610
        %5173 = vmatprep.subr.mxu0 %v3609
        %5174 = vmatpush1.msra.mxu0 %v3608
        %5175 = vmatprep.subr.mxu0 %v3607
        %5176 = vmatpush1.msra.mxu0 %v3606
        %5177 = vmatprep.subr.mxu0 %v3605
        %5178 = vmatpush1.msra.mxu0 %v3604
        %5179 = vmatprep.subr.mxu0 %v3603
        %5180 = vmatpush1.msra.mxu0 %v3602
        %5181 = vmatprep.subr.mxu0 %v3601
        %5182 = vmatpush1.msra.mxu0 %v3600
        %5183 = vmatprep.subr.mxu0 %v3599
        %5184 = vmatpush1.msra.mxu0 %v3598
        %5185 = vmatprep.subr.mxu0 %v3661
        %5186 = vmatpush2.msra.mxu0 %v3660
        %5187 = vmatprep.subr.mxu0 %v3659
        %5188 = vmatpush2.msra.mxu0 %v3658
        %5189 = vmatprep.subr.mxu0 %v3657
        %5190 = vmatpush2.msra.mxu0 %v3656
        %5191 = vmatprep.subr.mxu0 %v3655
        %5192 = vmatpush2.msra.mxu0 %v3654
        %5193 = vmatprep.subr.mxu0 %v3653
        %5194 = vmatpush2.msra.mxu0 %v3652
        %5195 = vmatprep.subr.mxu0 %v3651
        %5196 = vmatpush2.msra.mxu0 %v3650
        %5197 = vmatprep.subr.mxu0 %v3649
        %5198 = vmatpush2.msra.mxu0 %v3648
        %5199 = vmatprep.subr.mxu0 %v3647
        %5200 = vmatpush2.msra.mxu0 %v3646
        %5201 = vmatprep.subr.mxu0 %v3645
        %5202 = vmatpush2.msra.mxu0 %v3644
        %5203 = vmatprep.subr.mxu0 %v3643
        %5204 = vmatpush2.msra.mxu0 %v3642
        %5205 = vmatprep.subr.mxu0 %v3641
        %5206 = vmatpush2.msra.mxu0 %v3640
        %5207 = vmatprep.subr.mxu0 %v3639
        %5208 = vmatpush2.msra.mxu0 %v3638
        %5209 = vmatprep.subr.mxu0 %v3637
        %5210 = vmatpush2.msra.mxu0 %v3636
        %5211 = vmatprep.subr.mxu0 %v3635
        %5212 = vmatpush2.msra.mxu0 %v3634
        %5213 = vmatprep.subr.mxu0 %v3633
        %5214 = vmatpush2.msra.mxu0 %v3632
        %5215 = vmatprep.subr.mxu0 %v3631
        %5216 = vmatpush2.msra.mxu0 %v3630
        %5217 = vmatprep.mubr.f32.mxu0 %v4031
        %5218 = vmatmul.mubr.f32.gmra.mxu0 %v4030
        %v5219 = vpop.f32.mrf.mxu0
        %v5220 = vadd.f32 0.0, %v5219
        %v5221 = vpop.f32.mrf.mxu0
        %v5222 = vadd.f32 0.0, %v5221
        %5223 = vdwg.mxu0
        %v5224 = vld [vmem:[%s10 + $0xa8] sm:$0xff]
        %v5225 = vld [vmem:[%s10 + $0xb0] sm:$0xff]
        %v5226 = vld [vmem:[%s10 + $0xb8] sm:$0xff]
        %v5228 = vsel %vm2524, %v5224, 0
        %v5231 = vsel %vm2524, %v5225, 0
        %v5234 = vsel %vm2524, %v5226, 0
        %5236 = vmatprep.subr.mxu0 0.0
        %5237 = vmatpush1.msra.mxu0 0.0
        %5238 = vmatprep.subr.mxu0 0.0
        %5239 = vmatpush1.msra.mxu0 0.0
        %5240 = vmatprep.subr.mxu0 0.0
        %5241 = vmatpush1.msra.mxu0 0.0
        %5242 = vmatprep.subr.mxu0 0.0
        %5243 = vmatpush1.msra.mxu0 0.0
        %5244 = vmatprep.subr.mxu0 0.0
        %5245 = vmatpush1.msra.mxu0 0.0
        %5246 = vmatprep.subr.mxu0 0.0
        %5247 = vmatpush1.msra.mxu0 0.0
        %5248 = vmatprep.subr.mxu0 0.0
        %5249 = vmatpush1.msra.mxu0 0.0
        %5250 = vmatprep.subr.mxu0 0.0
        %5251 = vmatpush1.msra.mxu0 0.0
        %5252 = vmatprep.subr.mxu0 0.0
        %5253 = vmatpush1.msra.mxu0 0.0
        %5254 = vmatprep.subr.mxu0 0.0
        %5255 = vmatpush1.msra.mxu0 0.0
        %5256 = vmatprep.subr.mxu0 0.0
        %5257 = vmatpush1.msra.mxu0 0.0
        %5258 = vmatprep.subr.mxu0 0.0
        %5259 = vmatpush1.msra.mxu0 0.0
        %5260 = vmatprep.subr.mxu0 0.0
        %5261 = vmatpush1.msra.mxu0 0.0
        %5262 = vmatprep.subr.mxu0 0.0
        %5263 = vmatpush1.msra.mxu0 0.0
        %5264 = vmatprep.subr.mxu0 0.0
        %5265 = vmatpush1.msra.mxu0 0.0
        %5266 = vmatprep.subr.mxu0 %v5222
        %5267 = vmatpush1.msra.mxu0 %v5220
        %5268 = vmatprep.subr.mxu0 0.0
        %5269 = vmatpush2.msra.mxu0 0.0
        %5270 = vmatprep.subr.mxu0 0.0
        %5271 = vmatpush2.msra.mxu0 0.0
        %5272 = vmatprep.subr.mxu0 0.0
        %5273 = vmatpush2.msra.mxu0 0.0
        %5274 = vmatprep.subr.mxu0 0.0
        %5275 = vmatpush2.msra.mxu0 0.0
        %5276 = vmatprep.subr.mxu0 0.0
        %5277 = vmatpush2.msra.mxu0 0.0
        %5278 = vmatprep.subr.mxu0 0.0
        %5279 = vmatpush2.msra.mxu0 0.0
        %5280 = vmatprep.subr.mxu0 0.0
        %5281 = vmatpush2.msra.mxu0 0.0
        %5282 = vmatprep.subr.mxu0 0.0
        %5283 = vmatpush2.msra.mxu0 0.0
        %5284 = vmatprep.subr.mxu0 0.0
        %5285 = vmatpush2.msra.mxu0 0.0
        %5286 = vmatprep.subr.mxu0 0.0
        %5287 = vmatpush2.msra.mxu0 0.0
        %5288 = vmatprep.subr.mxu0 0.0
        %5289 = vmatpush2.msra.mxu0 0.0
        %5290 = vmatprep.subr.mxu0 0.0
        %5291 = vmatpush2.msra.mxu0 0.0
        %5292 = vmatprep.subr.mxu0 0.0
        %5293 = vmatpush2.msra.mxu0 0.0
        %5294 = vmatprep.subr.mxu0 0.0
        %5295 = vmatpush2.msra.mxu0 0.0
        %5296 = vmatprep.subr.mxu0 0.0
        %5297 = vmatpush2.msra.mxu0 0.0
        %5298 = vmatprep.subr.mxu0 0.0
        %5299 = vmatpush2.msra.mxu0 0.0
        %5300 = vmatprep.mubr.f32.mxu0 0.0
        %5301 = vmatmul.mubr.f32.gmra.mxu0 %v5228
        %v5302 = vpop.f32.mrf.mxu0
        %v5303 = vadd.f32 0.0, %v5302
        %v5304 = vpop.f32.mrf.mxu0
        %v5305 = vadd.f32 0.0, %v5304
        %5306 = vmatprep.mubr.f32.mxu0 0.0
        %5307 = vmatmul.mubr.f32.gmra.mxu0 %v5231
        %v5308 = vpop.f32.mrf.mxu0
        %v5309 = vadd.f32 0.0, %v5308
        %v5310 = vpop.f32.mrf.mxu0
        %v5311 = vadd.f32 0.0, %v5310
        %5312 = vmatprep.mubr.f32.mxu0 0.0
        %5313 = vmatmul.mubr.f32.gmra.mxu0 %v5234
        %v5314 = vpop.f32.mrf.mxu0
        %v5315 = vadd.f32 0.0, %v5314
        %v5316 = vpop.f32.mrf.mxu0
        %v5317 = vadd.f32 0.0, %v5316
        %5318 = vdwg.mxu0
        %v5319 = vadd.f32 %v5147, %v5303
        %v5320 = vadd.f32 %v5148, %v5305
        %v5321 = vadd.f32 %v5149, %v5309
        %v5322 = vadd.f32 %v5150, %v5311
        %v5323 = vadd.f32 %v5151, %v5315
        %v5324 = vadd.f32 %v5152, %v5317
        %5325 = vmatprep.subr.mxu0 %v3841
        %5326 = vmatpush1.msra.mxu0 %v3840
        %5327 = vmatprep.subr.mxu0 %v3839
        %5328 = vmatpush1.msra.mxu0 %v3838
        %5329 = vmatprep.subr.mxu0 %v3837
        %5330 = vmatpush1.msra.mxu0 %v3836
        %5331 = vmatprep.subr.mxu0 %v3835
        %5332 = vmatpush1.msra.mxu0 %v3834
        %5333 = vmatprep.subr.mxu0 %v3833
        %5334 = vmatpush1.msra.mxu0 %v3832
        %5335 = vmatprep.subr.mxu0 %v3831
        %5336 = vmatpush1.msra.mxu0 %v3830
        %5337 = vmatprep.subr.mxu0 %v3829
        %5338 = vmatpush1.msra.mxu0 %v3828
        %5339 = vmatprep.subr.mxu0 %v3827
        %5340 = vmatpush1.msra.mxu0 %v3826
        %5341 = vmatprep.subr.mxu0 %v3825
        %5342 = vmatpush1.msra.mxu0 %v3824
        %5343 = vmatprep.subr.mxu0 %v3823
        %5344 = vmatpush1.msra.mxu0 %v3822
        %5345 = vmatprep.subr.mxu0 %v3821
        %5346 = vmatpush1.msra.mxu0 %v3820
        %5347 = vmatprep.subr.mxu0 %v3819
        %5348 = vmatpush1.msra.mxu0 %v3818
        %5349 = vmatprep.subr.mxu0 %v3817
        %5350 = vmatpush1.msra.mxu0 %v3816
        %5351 = vmatprep.subr.mxu0 %v3815
        %5352 = vmatpush1.msra.mxu0 %v3814
        %5353 = vmatprep.subr.mxu0 %v3813
        %5354 = vmatpush1.msra.mxu0 %v3812
        %5355 = vmatprep.subr.mxu0 %v3811
        %5356 = vmatpush1.msra.mxu0 %v3810
        %5357 = vmatprep.subr.mxu0 %v3873
        %5358 = vmatpush2.msra.mxu0 %v3872
        %5359 = vmatprep.subr.mxu0 %v3871
        %5360 = vmatpush2.msra.mxu0 %v3870
        %5361 = vmatprep.subr.mxu0 %v3869
        %5362 = vmatpush2.msra.mxu0 %v3868
        %5363 = vmatprep.subr.mxu0 %v3867
        %5364 = vmatpush2.msra.mxu0 %v3866
        %5365 = vmatprep.subr.mxu0 %v3865
        %5366 = vmatpush2.msra.mxu0 %v3864
        %5367 = vmatprep.subr.mxu0 %v3863
        %5368 = vmatpush2.msra.mxu0 %v3862
        %5369 = vmatprep.subr.mxu0 %v3861
        %5370 = vmatpush2.msra.mxu0 %v3860
        %5371 = vmatprep.subr.mxu0 %v3859
        %5372 = vmatpush2.msra.mxu0 %v3858
        %5373 = vmatprep.subr.mxu0 %v3857
        %5374 = vmatpush2.msra.mxu0 %v3856
        %5375 = vmatprep.subr.mxu0 %v3855
        %5376 = vmatpush2.msra.mxu0 %v3854
        %5377 = vmatprep.subr.mxu0 %v3853
        %5378 = vmatpush2.msra.mxu0 %v3852
        %5379 = vmatprep.subr.mxu0 %v3851
        %5380 = vmatpush2.msra.mxu0 %v3850
        %5381 = vmatprep.subr.mxu0 %v3849
        %5382 = vmatpush2.msra.mxu0 %v3848
        %5383 = vmatprep.subr.mxu0 %v3847
        %5384 = vmatpush2.msra.mxu0 %v3846
        %5385 = vmatprep.subr.mxu0 %v3845
        %5386 = vmatpush2.msra.mxu0 %v3844
        %5387 = vmatprep.subr.mxu0 %v3843
        %5388 = vmatpush2.msra.mxu0 %v3842
        %5389 = vmatprep.mubr.f32.mxu0 %v4031
        %5390 = vmatmul.mubr.f32.gmra.mxu0 %v4030
        %v5391 = vpop.f32.mrf.mxu0
        %v5392 = vadd.f32 0.0, %v5391
        %v5393 = vpop.f32.mrf.mxu0
        %v5394 = vadd.f32 0.0, %v5393
        %5395 = vdwg.mxu0
        %v5396 = vld [vmem:[%s10 + $0xc0] sm:$0xff]
        %v5397 = vld [vmem:[%s10 + $0xc8] sm:$0xff]
        %v5398 = vld [vmem:[%s10 + $0xd0] sm:$0xff]
        %v5400 = vsel %vm2524, %v5396, 0
        %v5403 = vsel %vm2524, %v5397, 0
        %v5406 = vsel %vm2524, %v5398, 0
        %5408 = vmatprep.subr.mxu0 0.0
        %5409 = vmatpush1.msra.mxu0 0.0
        %5410 = vmatprep.subr.mxu0 0.0
        %5411 = vmatpush1.msra.mxu0 0.0
        %5412 = vmatprep.subr.mxu0 0.0
        %5413 = vmatpush1.msra.mxu0 0.0
        %5414 = vmatprep.subr.mxu0 0.0
        %5415 = vmatpush1.msra.mxu0 0.0
        %5416 = vmatprep.subr.mxu0 0.0
        %5417 = vmatpush1.msra.mxu0 0.0
        %5418 = vmatprep.subr.mxu0 0.0
        %5419 = vmatpush1.msra.mxu0 0.0
        %5420 = vmatprep.subr.mxu0 0.0
        %5421 = vmatpush1.msra.mxu0 0.0
        %5422 = vmatprep.subr.mxu0 0.0
        %5423 = vmatpush1.msra.mxu0 0.0
        %5424 = vmatprep.subr.mxu0 0.0
        %5425 = vmatpush1.msra.mxu0 0.0
        %5426 = vmatprep.subr.mxu0 0.0
        %5427 = vmatpush1.msra.mxu0 0.0
        %5428 = vmatprep.subr.mxu0 0.0
        %5429 = vmatpush1.msra.mxu0 0.0
        %5430 = vmatprep.subr.mxu0 0.0
        %5431 = vmatpush1.msra.mxu0 0.0
        %5432 = vmatprep.subr.mxu0 0.0
        %5433 = vmatpush1.msra.mxu0 0.0
        %5434 = vmatprep.subr.mxu0 0.0
        %5435 = vmatpush1.msra.mxu0 0.0
        %5436 = vmatprep.subr.mxu0 0.0
        %5437 = vmatpush1.msra.mxu0 0.0
        %5438 = vmatprep.subr.mxu0 %v5394
        %5439 = vmatpush1.msra.mxu0 %v5392
        %5440 = vmatprep.subr.mxu0 0.0
        %5441 = vmatpush2.msra.mxu0 0.0
        %5442 = vmatprep.subr.mxu0 0.0
        %5443 = vmatpush2.msra.mxu0 0.0
        %5444 = vmatprep.subr.mxu0 0.0
        %5445 = vmatpush2.msra.mxu0 0.0
        %5446 = vmatprep.subr.mxu0 0.0
        %5447 = vmatpush2.msra.mxu0 0.0
        %5448 = vmatprep.subr.mxu0 0.0
        %5449 = vmatpush2.msra.mxu0 0.0
        %5450 = vmatprep.subr.mxu0 0.0
        %5451 = vmatpush2.msra.mxu0 0.0
        %5452 = vmatprep.subr.mxu0 0.0
        %5453 = vmatpush2.msra.mxu0 0.0
        %5454 = vmatprep.subr.mxu0 0.0
        %5455 = vmatpush2.msra.mxu0 0.0
        %5456 = vmatprep.subr.mxu0 0.0
        %5457 = vmatpush2.msra.mxu0 0.0
        %5458 = vmatprep.subr.mxu0 0.0
        %5459 = vmatpush2.msra.mxu0 0.0
        %5460 = vmatprep.subr.mxu0 0.0
        %5461 = vmatpush2.msra.mxu0 0.0
        %5462 = vmatprep.subr.mxu0 0.0
        %5463 = vmatpush2.msra.mxu0 0.0
        %5464 = vmatprep.subr.mxu0 0.0
        %5465 = vmatpush2.msra.mxu0 0.0
        %5466 = vmatprep.subr.mxu0 0.0
        %5467 = vmatpush2.msra.mxu0 0.0
        %5468 = vmatprep.subr.mxu0 0.0
        %5469 = vmatpush2.msra.mxu0 0.0
        %5470 = vmatprep.subr.mxu0 0.0
        %5471 = vmatpush2.msra.mxu0 0.0
        %5472 = vmatprep.mubr.f32.mxu0 0.0
        %5473 = vmatmul.mubr.f32.gmra.mxu0 %v5400
        %v5474 = vpop.f32.mrf.mxu0
        %v5475 = vadd.f32 0.0, %v5474
        %v5476 = vpop.f32.mrf.mxu0
        %v5477 = vadd.f32 0.0, %v5476
        %5478 = vmatprep.mubr.f32.mxu0 0.0
        %5479 = vmatmul.mubr.f32.gmra.mxu0 %v5403
        %v5480 = vpop.f32.mrf.mxu0
        %v5481 = vadd.f32 0.0, %v5480
        %v5482 = vpop.f32.mrf.mxu0
        %v5483 = vadd.f32 0.0, %v5482
        %5484 = vmatprep.mubr.f32.mxu0 0.0
        %5485 = vmatmul.mubr.f32.gmra.mxu0 %v5406
        %v5486 = vpop.f32.mrf.mxu0
        %v5487 = vadd.f32 0.0, %v5486
        %v5488 = vpop.f32.mrf.mxu0
        %v5489 = vadd.f32 0.0, %v5488
        %5490 = vdwg.mxu0
        %v5491 = vadd.f32 %v5319, %v5475
        %v5492 = vadd.f32 %v5320, %v5477
        %v5493 = vadd.f32 %v5321, %v5481
        %v5494 = vadd.f32 %v5322, %v5483
        %v5495 = vadd.f32 %v5323, %v5487
        %v5496 = vadd.f32 %v5324, %v5489
        %v5497 = vld [vmem:[%s11] sm:$0xff]
        %v5498 = vld [vmem:[%s11 + $0x8] sm:$0xff]
        %v5499 = vld [vmem:[%s11 + $0x10] sm:$0xff]
        %5501 = vset.pattern.permute.xlu0 0
        %5502 = vperm.xlu0 %5501, %v5497
        %v5503 = vpop.permute.xlu0 %5502
        %5506 = vset.pattern.permute.xlu0 0
        %5507 = vperm.xlu0 %5506, %v5498
        %v5508 = vpop.permute.xlu0 %5507
        %5511 = vset.pattern.permute.xlu0 0
        %5512 = vperm.xlu0 %5511, %v5499
        %v5513 = vpop.permute.xlu0 %5512
        %v5515 = vadd.f32 %v5491, %v5503
        %v5516 = vadd.f32 %v5492, %v5503
        %v5517 = vadd.f32 %v5493, %v5508
        %v5518 = vadd.f32 %v5494, %v5508
        %v5519 = vadd.f32 %v5495, %v5513
        %v5520 = vadd.f32 %v5496, %v5513
        %v5521 = vld [vmem:[#allocation6] sm:$0x7]
        %v5522 = vxor.u32 %v5515, 2147483648
        %v5523 = vxor.u32 %v5516, 2147483648
        %v5524 = vxor.u32 %v5517, 2147483648
        %v5525 = vxor.u32 %v5518, 2147483648
        %v5526 = vxor.u32 %v5519, 2147483648
        %v5527 = vxor.u32 %v5520, 2147483648
        %v5528 = vmul.f32 %v5522, 1.442695
        %v5529 = vpow.pop %v5528
        %v5530 = vmul.f32 %v5523, 1.442695
        %v5531 = vpow.pop %v5530
        %v5532 = vmul.f32 %v5524, 1.442695
        %v5533 = vpow.pop %v5532
        %v5534 = vmul.f32 %v5525, 1.442695
        %v5535 = vpow.pop %v5534
        %v5536 = vmul.f32 %v5526, 1.442695
        %v5537 = vpow.pop %v5536
        %v5538 = vmul.f32 %v5527, 1.442695
        %v5539 = vpow.pop %v5538
        %v5540 = vadd.f32 %v5529, 1.0
        %v5541 = vadd.f32 %v5531, 1.0
        %v5542 = vadd.f32 %v5533, 1.0
        %v5543 = vadd.f32 %v5535, 1.0
        %v5544 = vadd.f32 %v5537, 1.0
        %v5545 = vadd.f32 %v5539, 1.0
        %v5546 = vrcp.pop %v5540
        %v5547 = vmul.f32 1.0, %v5546
        %v5548 = vrcp.pop %v5541
        %v5549 = vmul.f32 1.0, %v5548
        %v5550 = vrcp.pop %v5542
        %v5551 = vmul.f32 1.0, %v5550
        %v5552 = vrcp.pop %v5543
        %v5553 = vmul.f32 1.0, %v5552
        %v5554 = vrcp.pop %v5544
        %v5555 = vmul.f32 1.0, %v5554
        %v5556 = vrcp.pop %v5545
        %v5557 = vmul.f32 1.0, %v5556
        %vm5558 = vcmask 195584
        %v5560 = vsel %vm5558, %v5521, 0
        %5562 = vmatprep.subr.mxu0 0.0
        %5563 = vmatpush1.msra.mxu0 0.0
        %5564 = vmatprep.subr.mxu0 0.0
        %5565 = vmatpush1.msra.mxu0 0.0
        %5566 = vmatprep.subr.mxu0 0.0
        %5567 = vmatpush1.msra.mxu0 0.0
        %5568 = vmatprep.subr.mxu0 0.0
        %5569 = vmatpush1.msra.mxu0 0.0
        %5570 = vmatprep.subr.mxu0 0.0
        %5571 = vmatpush1.msra.mxu0 0.0
        %5572 = vmatprep.subr.mxu0 0.0
        %5573 = vmatpush1.msra.mxu0 0.0
        %5574 = vmatprep.subr.mxu0 0.0
        %5575 = vmatpush1.msra.mxu0 0.0
        %5576 = vmatprep.subr.mxu0 0.0
        %5577 = vmatpush1.msra.mxu0 0.0
        %5578 = vmatprep.subr.mxu0 0.0
        %5579 = vmatpush1.msra.mxu0 0.0
        %5580 = vmatprep.subr.mxu0 0.0
        %5581 = vmatpush1.msra.mxu0 0.0
        %5582 = vmatprep.subr.mxu0 0.0
        %5583 = vmatpush1.msra.mxu0 0.0
        %5584 = vmatprep.subr.mxu0 0.0
        %5585 = vmatpush1.msra.mxu0 0.0
        %5586 = vmatprep.subr.mxu0 0.0
        %5587 = vmatpush1.msra.mxu0 0.0
        %5588 = vmatprep.subr.mxu0 %v5557
        %5589 = vmatpush1.msra.mxu0 %v5555
        %5590 = vmatprep.subr.mxu0 %v5553
        %5591 = vmatpush1.msra.mxu0 %v5551
        %5592 = vmatprep.subr.mxu0 %v5549
        %5593 = vmatpush1.msra.mxu0 %v5547
        %5594 = vmatprep.subr.mxu0 0.0
        %5595 = vmatpush2.msra.mxu0 0.0
        %5596 = vmatprep.subr.mxu0 0.0
        %5597 = vmatpush2.msra.mxu0 0.0
        %5598 = vmatprep.subr.mxu0 0.0
        %5599 = vmatpush2.msra.mxu0 0.0
        %5600 = vmatprep.subr.mxu0 0.0
        %5601 = vmatpush2.msra.mxu0 0.0
        %5602 = vmatprep.subr.mxu0 0.0
        %5603 = vmatpush2.msra.mxu0 0.0
        %5604 = vmatprep.subr.mxu0 0.0
        %5605 = vmatpush2.msra.mxu0 0.0
        %5606 = vmatprep.subr.mxu0 0.0
        %5607 = vmatpush2.msra.mxu0 0.0
        %5608 = vmatprep.subr.mxu0 0.0
        %5609 = vmatpush2.msra.mxu0 0.0
        %5610 = vmatprep.subr.mxu0 0.0
        %5611 = vmatpush2.msra.mxu0 0.0
        %5612 = vmatprep.subr.mxu0 0.0
        %5613 = vmatpush2.msra.mxu0 0.0
        %5614 = vmatprep.subr.mxu0 0.0
        %5615 = vmatpush2.msra.mxu0 0.0
        %5616 = vmatprep.subr.mxu0 0.0
        %5617 = vmatpush2.msra.mxu0 0.0
        %5618 = vmatprep.subr.mxu0 0.0
        %5619 = vmatpush2.msra.mxu0 0.0
        %5620 = vmatprep.subr.mxu0 0.0
        %5621 = vmatpush2.msra.mxu0 0.0
        %5622 = vmatprep.subr.mxu0 0.0
        %5623 = vmatpush2.msra.mxu0 0.0
        %5624 = vmatprep.subr.mxu0 0.0
        %5625 = vmatpush2.msra.mxu0 0.0
        %5626 = vmatprep.mubr.f32.mxu0 0.0
        %5627 = vmatmul.mubr.f32.gmra.mxu0 %v5560
        %v5628 = vpop.f32.mrf.mxu0
        %v5629 = vadd.f32 0.0, %v5628
        %v5630 = vpop.f32.mrf.mxu0
        %v5631 = vadd.f32 0.0, %v5630
        %5632 = vdwg.mxu0
        %v5633 = vsub.f32 %v5629, 1.0
        %v5634 = vsub.f32 %v5631, 1.0
        %5635 = vst [vmem:[%s556] sm:$0xff] %v4030
        %5636 = vst [vmem:[%s556 + $0x8] sm:$0xff] %v4031
        %5637 = vst [vmem:[%s566] sm:$0xff] %v5515
        %5638 = vst [vmem:[%s566 + $0x8] sm:$0xff] %v5516
        %5639 = vst [vmem:[%s566 + $0x10] sm:$0xff] %v5517
        %5640 = vst [vmem:[%s566 + $0x18] sm:$0xff] %v5518
        %5641 = vst [vmem:[%s566 + $0x20] sm:$0xff] %v5519
        %5642 = vst [vmem:[%s566 + $0x28] sm:$0xff] %v5520
        %v5645 = vcombine.low %v5633, %v5634
        %5647 = vst [vmem:[%s561] sm:$0x77] %v5645
        %p5648 = scmp.lt.s32.totalorder %s29, 1
        %s5649 = scalar_select %p5648, %s29, 1
        %s5650 = smul.addr %s5649, 2
        %s5651 = smul.addr %s5650, 8
        %s5652 = scalar_lea.vmem %s13, %s5651
        %p5653 = scmp.lt.s32.totalorder %s29, 1
        %s5654 = scalar_select %p5653, %s29, 1
        %s5655 = smul.addr %s5654, 2
        %s5656 = smul.addr %s5655, 4
        %s5657 = scalar_lea.vmem %s14, %s5656
        %p5658 = scmp.lt.s32.totalorder %s29, 1
        %s5659 = scalar_select %p5658, %s29, 1
        %s5660 = smul.addr %s5659, 6
        %s5661 = smul.addr %s5660, 8
        %s5662 = scalar_lea.vmem %s15, %s5661
        // Predicated region
        $region85: #{probabilistic_conv_decoder_forward.1} parent=71 // pred_check
          %p5663 = pneg %p325
        $region86: #{probabilistic_conv_decoder_forward.1} parent=71 // pred_check_branch
          %5665 = sbr.rel (%p5663) target = $region88
        $region87: #{probabilistic_conv_decoder_forward.1} parent=71 // pred_region
          _
        $region88: #{probabilistic_conv_decoder_forward.1} parent=71 // pred_fallthru
          _
        // Predicated region
        $region89: #{probabilistic_conv_decoder_forward.1} parent=71 // pred_check
          %p5666 = pneg %p351
        $region90: #{probabilistic_conv_decoder_forward.1} parent=71 // pred_check_branch
          %5668 = sbr.rel (%p5666) target = $region92
        $region91: #{probabilistic_conv_decoder_forward.1} parent=71 // pred_region
          _
        $region92: #{probabilistic_conv_decoder_forward.1} parent=71 // pred_fallthru
          _
        // Predicated region
        $region93: #{probabilistic_conv_decoder_forward.1} parent=71 // pred_check
          %p5669 = pneg %p377
        $region94: #{probabilistic_conv_decoder_forward.1} parent=71 // pred_check_branch
          %5671 = sbr.rel (%p5669) target = $region96
        $region95: #{probabilistic_conv_decoder_forward.1} parent=71 // pred_region
          _
        $region96: #{probabilistic_conv_decoder_forward.1} parent=71 // pred_fallthru
          _
      $region72: #{probabilistic_conv_decoder_forward.1} parent=5 // pred_fallthru
        _
      %p5672 = scmp.le.s32.totalorder 2, %s24
      // Predicated region
      $region97: #{probabilistic_conv_decoder_forward.1} parent=5 // pred_check
        %p5673 = pneg %p5672
      $region98: #{probabilistic_conv_decoder_forward.1} parent=5 // pred_check_branch
        %5675 = sbr.rel (%p5673) target = $region100
      $region99: #{probabilistic_conv_decoder_forward.1} parent=5 // pred_region
        %s5676 = ssub.s32 %s24, 2
        // Predicated region
        $region101: #{probabilistic_conv_decoder_forward.1} parent=99 // pred_check
          %p5677 = pneg %p331
        $region102: #{probabilistic_conv_decoder_forward.1} parent=99 // pred_check_branch
          %5679 = sbr.rel (%p5677) target = $region104
        $region103: #{probabilistic_conv_decoder_forward.1} parent=99 // pred_region
          %p5680 = scmp.lt.s32.totalorder %s30, 1
          %s5681 = scalar_select %p5680, %s30, 1
          %s5682 = smul.addr %s5681, 2
          %s5683 = smul.addr %s5682, 8
          %s5684 = scalar_lea.vmem %s13, %s5683
        $region104: #{probabilistic_conv_decoder_forward.1} parent=99 // pred_fallthru
          _
        // Predicated region
        $region105: #{probabilistic_conv_decoder_forward.1} parent=99 // pred_check
          %p5685 = pneg %p357
        $region106: #{probabilistic_conv_decoder_forward.1} parent=99 // pred_check_branch
          %5687 = sbr.rel (%p5685) target = $region108
        $region107: #{probabilistic_conv_decoder_forward.1} parent=99 // pred_region
          %p5688 = scmp.lt.s32.totalorder %s30, 1
          %s5689 = scalar_select %p5688, %s30, 1
          %s5690 = smul.addr %s5689, 2
          %s5691 = smul.addr %s5690, 4
          %s5692 = scalar_lea.vmem %s14, %s5691
        $region108: #{probabilistic_conv_decoder_forward.1} parent=99 // pred_fallthru
          _
        // Predicated region
        $region109: #{probabilistic_conv_decoder_forward.1} parent=99 // pred_check
          %p5693 = pneg %p383
        $region110: #{probabilistic_conv_decoder_forward.1} parent=99 // pred_check_branch
          %5695 = sbr.rel (%p5693) target = $region112
        $region111: #{probabilistic_conv_decoder_forward.1} parent=99 // pred_region
          %p5696 = scmp.lt.s32.totalorder %s30, 1
          %s5697 = scalar_select %p5696, %s30, 1
          %s5698 = smul.addr %s5697, 6
          %s5699 = smul.addr %s5698, 8
          %s5700 = scalar_lea.vmem %s15, %s5699
        $region112: #{probabilistic_conv_decoder_forward.1} parent=99 // pred_fallthru
          _
      $region100: #{probabilistic_conv_decoder_forward.1} parent=5 // pred_fallthru
        _
    $region6: #{probabilistic_conv_decoder_forward.1} parent=1 // loop_footer
      %s28 = sadd.s32 1, %s24
    $region7: #{probabilistic_conv_decoder_forward.1} parent=1 // loop_footer_branch
      %23 = sbr.rel target = $region3
    $region8: #{probabilistic_conv_decoder_forward.1} parent=1 // loop_exit
      _
    %5701 = vsyncpa [#allocation3], 1
    %s5702 = scalar_lea.sflag [#allocation3], 1
    %5703 = vsyncpa %s5702, 1
    %5704 = vsyncpa [#allocation5], 1

</llo_original>
